<compile_context>
chip_gen: v7x
topology: tpu7x:2x2x1
jax: 0.10.0
libtpu: 0.0.40
codegen_flags: <defaults>
</compile_context>

<pallas_src>
import functools

import jax
import jax.numpy as jnp
from jax.experimental import pallas as pl
from jax.experimental.pallas import tpu as pltpu

F32 = jnp.float32


# ------------------------------ fused kernel ---------------------------------
def _cbhg_fused_kernel(
        ids_ref, emb_ref,
        pw1_ref, pb1_ref, pw2_ref, pb2_ref,
        bank_w_ref, bank_shift_ref,
        p1_w_ref, p1_shift_ref, p2_w_ref, p2_shift_ref,
        hw_w_ref, hw_b_ref,
        gru_wi_ref, gru_bi_ref, gru_wh_ref, gru_bh_ref,
        l1_wi_ref, l1_b_ref, l1_wh_ref, bn1_scale_ref, bn1_shift_ref,
        l2_wi_ref, l2_b_ref, l2_wh_ref, bn2_scale_ref, bn2_shift_ref,
        proj_w_ref, proj_b_ref,
        o_ref,
        gru_hist, l1_hist, l2_hist,
        *, tlen, bsz_pad):
    n = tlen * bsz_pad
    vocab = emb_ref.shape[0]
    cdim = pw2_ref.shape[1]                       # CBHG in_dim (prenet output)
    k_bank = bank_w_ref.shape[0] // cdim
    pad = k_bank // 2
    n_highways = hw_w_ref.shape[0]

    # ---- embedding lookup: iota-compare one-hot built in VMEM (no XLA-side
    #      one-hot and no HBM-materialized (T*B, vocab) array) ----
    ids = ids_ref[...]                            # (n, 1) int32
    iota = jax.lax.broadcasted_iota(jnp.int32, (n, vocab), 1)
    onehot = (iota == ids).astype(F32)
    e = jnp.dot(onehot, emb_ref[...], preferred_element_type=F32)

    # ---- prenet: 2 x (Linear + ReLU); Dropout == identity at inference ----
    x = jnp.maximum(jnp.dot(e, pw1_ref[...], preferred_element_type=F32)
                    + pb1_ref[...], 0.0)
    x = jnp.maximum(jnp.dot(x, pw2_ref[...], preferred_element_type=F32)
                    + pb2_ref[...], 0.0)          # (n, cdim), row = t*bsz_pad+b

    def tshift(v, d):
        """out[t] = v[t + d], zero halo; d*bsz_pad rows => sublane aligned."""
        r = d * bsz_pad
        if r == 0:
            return v
        zeros = jnp.zeros((abs(r), v.shape[1]), F32)
        if r > 0:
            return jnp.concatenate([v[r:, :], zeros], axis=0)
        return jnp.concatenate([zeros, v[:v.shape[0] + r, :]], axis=0)

    # ---- conv bank (kernel sizes 1..K) as ONE matmul over a K-offset im2col;
    #      per-kernel eval-BN scale folded into bank_w, shift applied pre-ReLU.
    col = jnp.concatenate([tshift(x, d) for d in range(-pad, k_bank - pad)],
                          axis=-1)
    bank = jnp.maximum(jnp.dot(col, bank_w_ref[...], preferred_element_type=F32)
                       + bank_shift_ref[...], 0.0)

    # ---- MaxPool1d(2, stride 1, pad 1)[:, :, :T]: out[t] = max(bank[t-1], bank[t]);
    #      bank is post-ReLU so the t=-1 halo can be 0 instead of -inf. ----
    pooled = jnp.maximum(bank, tshift(bank, -1))

    # ---- conv projection 1 (k=3, BN folded, ReLU) ----
    col1 = jnp.concatenate([tshift(pooled, -1), pooled, tshift(pooled, 1)],
                           axis=-1)
    p1 = jnp.maximum(jnp.dot(col1, p1_w_ref[...], preferred_element_type=F32)
                     + p1_shift_ref[...], 0.0)

    # ---- conv projection 2 (k=3, BN folded, no activation) + residual ----
    col2 = jnp.concatenate([tshift(p1, -1), p1, tshift(p1, 1)], axis=-1)
    h = (jnp.dot(col2, p2_w_ref[...], preferred_element_type=F32)
         + p2_shift_ref[...] + x)

    # ---- 4 Highway layers; H|T weights packed -> one matmul per layer
    #      (CBHG pre_highway Linear skipped: projections[-1] == in_dim). ----
    for li in range(n_highways):
        g = jnp.dot(h, hw_w_ref[li], preferred_element_type=F32) + hw_b_ref[li]
        tt = jax.nn.sigmoid(g[:, cdim:])
        h = jnp.maximum(g[:, :cdim], 0.0) * tt + h * (1.0 - tt)

    def time_reverse(v):
        return jnp.concatenate(
            [v[(tlen - 1 - t) * bsz_pad:(tlen - t) * bsz_pad, :]
             for t in range(tlen)], axis=0)

    # ---- bidirectional GRU, both directions merged into ONE MXU push per step.
    #      Gate columns: [r_f r_b z_f z_b n_f n_b]; hidden h_cat = [h_f | h_b];
    #      backward inputs arrive time-reversed through xx = [x | x_rev]. ----
    def bidir_gru(x_in, wi_ref, bi_ref, wh_ref, bh_ref, hist):
        hid = wh_ref.shape[0] // 2
        xx = jnp.concatenate([x_in, time_reverse(x_in)], axis=-1)
        gi = jnp.dot(xx, wi_ref[...], preferred_element_type=F32) + bi_ref[...]
        wh = wh_ref[...]
        bh = bh_ref[...]
        h_cat = jnp.zeros((bsz_pad, 2 * hid), F32)
        for t in range(tlen):     # static unroll: T is small and fixed
            # TODO(synk): switch to lax.fori_loop carries if T grows large.
            g = gi[t * bsz_pad:(t + 1) * bsz_pad, :]
            gh = jnp.dot(h_cat, wh, preferred_element_type=F32) + bh
            sg = jax.nn.sigmoid(g[:, :4 * hid] + gh[:, :4 * hid])
            r = sg[:, :2 * hid]
            z = sg[:, 2 * hid:]
            c = jnp.tanh(g[:, 4 * hid:] + r * gh[:, 4 * hid:])
            h_cat = (1.0 - z) * c + z * h_cat
            tb = tlen - 1 - t
            hist[t * bsz_pad:(t + 1) * bsz_pad, :hid] = h_cat[:, :hid]
            hist[tb * bsz_pad:(tb + 1) * bsz_pad, hid:] = h_cat[:, hid:]
        return hist[...]

    y = bidir_gru(h, gru_wi_ref, gru_bi_ref, gru_wh_ref, gru_bh_ref, gru_hist)

    # ---- post-CBHG: 2 x (biLSTM + eval BatchNorm1d); (hn, cn) threaded from
    #      layer 1 into layer 2 exactly as the PyTorch loop does.  Gate columns
    #      [i_f i_b f_f f_b o_f o_b g_f g_b]; b_i + b_h folded into one bias. ----
    def bidir_lstm(x_in, wi_ref, b_ref, wh_ref, h0, c0, hist):
        hid = wh_ref.shape[0] // 2
        xx = jnp.concatenate([x_in, time_reverse(x_in)], axis=-1)
        gi = jnp.dot(xx, wi_ref[...], preferred_element_type=F32) + b_ref[...]
        wh = wh_ref[...]
        h_cat, c_cat = h0, c0
        for t in range(tlen):     # static unroll
            g = (gi[t * bsz_pad:(t + 1) * bsz_pad, :]
                 + jnp.dot(h_cat, wh, preferred_element_type=F32))
            sg = jax.nn.sigmoid(g[:, :6 * hid])
            gg = jnp.tanh(g[:, 6 * hid:])
            c_cat = sg[:, 2 * hid:4 * hid] * c_cat + sg[:, :2 * hid] * gg
            h_cat = sg[:, 4 * hid:] * jnp.tanh(c_cat)
            tb = tlen - 1 - t
            hist[t * bsz_pad:(t + 1) * bsz_pad, :hid] = h_cat[:, :hid]
            hist[tb * bsz_pad:(tb + 1) * bsz_pad, hid:] = h_cat[:, hid:]
        return hist[...], h_cat, c_cat

    hid1 = l1_wh_ref.shape[0] // 2
    zeros0 = jnp.zeros((bsz_pad, 2 * hid1), F32)
    y1, hn, cn = bidir_lstm(y, l1_wi_ref, l1_b_ref, l1_wh_ref,
                            zeros0, zeros0, l1_hist)
    y1 = y1 * bn1_scale_ref[...] + bn1_shift_ref[...]
    y2, _, _ = bidir_lstm(y1, l2_wi_ref, l2_b_ref, l2_wh_ref, hn, cn, l2_hist)
    y2 = y2 * bn2_scale_ref[...] + bn2_shift_ref[...]

    # ---- final projection ----
    o_ref[...] = (jnp.dot(y2, proj_w_ref[...], preferred_element_type=F32)
                  + proj_b_ref[...])


def cbhg_fused_forward(ids_flat, p, tlen, bsz_pad):
    assert bsz_pad % 8 == 0
    n = tlen * bsz_pad
    gru_hid = p["gru_wh"].shape[0] // 2
    hid1 = p["l1_wh"].shape[0] // 2
    hid2 = p["l2_wh"].shape[0] // 2
    assert hid1 == hid2, "hn/cn threading between post-CBHG LSTMs needs equal hidden sizes"
    vt = p["proj_w"].shape[1]
    kern = functools.partial(_cbhg_fused_kernel, tlen=tlen, bsz_pad=bsz_pad)
    return pl.pallas_call(
        kern,
        out_shape=jax.ShapeDtypeStruct((n, vt), F32),
        scratch_shapes=[
            pltpu.VMEM((n, 2 * gru_hid), F32),   # GRU history  [fwd | bwd]
            pltpu.VMEM((n, 2 * hid1), F32),      # LSTM1 history
            pltpu.VMEM((n, 2 * hid2), F32),      # LSTM2 history
        ],
        compiler_params=pltpu.CompilerParams(
            vmem_limit_bytes=32 * 1024 * 1024),
    )(ids_flat,
      p["embedding"],
      p["pre_w1"], p["pre_b1"], p["pre_w2"], p["pre_b2"],
      p["bank_w"], p["bank_shift"],
      p["proj1_w"], p["proj1_shift"], p["proj2_w"], p["proj2_shift"],
      p["hw_w"], p["hw_b"],
      p["gru_wi"], p["gru_bi"], p["gru_wh"], p["gru_bh"],
      p["l1_wi"], p["l1_b"], p["l1_wh"], p["bn1_scale"], p["bn1_shift"],
      p["l2_wi"], p["l2_b"], p["l2_wh"], p["bn2_scale"], p["bn2_shift"],
      p["proj_w"], p["proj_b"])


# ------------------------------ parameter init --------------------------------
class KeyGen:
    def __init__(self, seed):
        self.key = jax.random.PRNGKey(seed)

    def __call__(self):
        self.key, sub = jax.random.split(self.key)
        return sub


def linear_init(kg, din, dout):
    bound = 1.0 / (din ** 0.5)
    w = jax.random.uniform(kg(), (din, dout), F32, -bound, bound)
    b = jax.random.uniform(kg(), (dout,), F32, -bound, bound)
    return w, b


def bn_init(kg, c, eps=1e-5):
    gamma = jax.random.uniform(kg(), (c,), F32, 0.5, 1.5)
    beta = jax.random.uniform(kg(), (c,), F32, -0.1, 0.1)
    mean = jax.random.uniform(kg(), (c,), F32, -0.1, 0.1)
    var = jax.random.uniform(kg(), (c,), F32, 0.5, 1.5)
    scale = gamma / jnp.sqrt(var + eps)
    shift = beta - mean * scale
    return scale, shift


def conv_bn_folded_init(kg, k, cin, cout):
    # Conv1d(bias=False) weight with eval-BatchNorm scale folded in; tap-major
    # (k*cin, cout) layout matching the in-kernel im2col block order.
    bound = 1.0 / ((cin * k) ** 0.5)
    w = jax.random.uniform(kg(), (k, cin, cout), F32, -bound, bound)
    scale, shift = bn_init(kg, cout)
    return (w * scale[None, None, :]).reshape(k * cin, cout), shift


def rnn_gate_init(kg, din, hid, n_gates):
    bound = 1.0 / (hid ** 0.5)
    wi = jax.random.uniform(kg(), (din, n_gates * hid), F32, -bound, bound)
    wh = jax.random.uniform(kg(), (hid, n_gates * hid), F32, -bound, bound)
    bi = jax.random.uniform(kg(), (n_gates * hid,), F32, -bound, bound)
    bh = jax.random.uniform(kg(), (n_gates * hid,), F32, -bound, bound)
    return wi, wh, bi, bh


def _interleave_cols(w, n_gates, hid, dirn):
    # place gate block g of direction `dirn` at columns (2g + dirn)*hid
    out = jnp.zeros((w.shape[0], 2 * n_gates * hid), F32)
    for g in range(n_gates):
        out = out.at[:, (2 * g + dirn) * hid:(2 * g + dirn + 1) * hid].set(
            w[:, g * hid:(g + 1) * hid])
    return out


def bigru_init(kg, din, hid):
    # per-direction gate order [r, z, n]; merged columns [r_f r_b z_f z_b n_f n_b]
    wi_f, wh_f, bi_f, bh_f = rnn_gate_init(kg, din, hid, 3)
    wi_b, wh_b, bi_b, bh_b = rnn_gate_init(kg, din, hid, 3)
    wi = jnp.concatenate([_interleave_cols(wi_f, 3, hid, 0),
                          _interleave_cols(wi_b, 3, hid, 1)], axis=0)
    wh = jnp.concatenate([_interleave_cols(wh_f, 3, hid, 0),
                          _interleave_cols(wh_b, 3, hid, 1)], axis=0)
    bi = (_interleave_cols(bi_f.reshape(1, -1), 3, hid, 0)
          + _interleave_cols(bi_b.reshape(1, -1), 3, hid, 1))
    bh = (_interleave_cols(bh_f.reshape(1, -1), 3, hid, 0)
          + _interleave_cols(bh_b.reshape(1, -1), 3, hid, 1))
    return wi, bi, wh, bh


def bilstm_init(kg, din, hid):
    # per-direction gate order [i, f, o, g] (sigmoid gates first);
    # merged columns [i_f i_b f_f f_b o_f o_b g_f g_b]; b_i + b_h folded.
    wi_f, wh_f, bi_f, bh_f = rnn_gate_init(kg, din, hid, 4)
    wi_b, wh_b, bi_b, bh_b = rnn_gate_init(kg, din, hid, 4)
    wi = jnp.concatenate([_interleave_cols(wi_f, 4, hid, 0),
                          _interleave_cols(wi_b, 4, hid, 1)], axis=0)
    wh = jnp.concatenate([_interleave_cols(wh_f, 4, hid, 0),
                          _interleave_cols(wh_b, 4, hid, 1)], axis=0)
    b = (_interleave_cols((bi_f + bh_f).reshape(1, -1), 4, hid, 0)
         + _interleave_cols((bi_b + bh_b).reshape(1, -1), 4, hid, 1))
    return wi, b, wh


def init_params(kg, cfg):
    p = {}
    V, E = cfg["inp_vocab"], cfg["emb"]
    C = cfg["prenet_sizes"][-1]
    K = cfg["K"]
    proj = cfg["projections"]
    assert proj[-1] == C, "residual + skipped pre_highway require projections[-1] == prenet_sizes[-1]"
    assert len(cfg["post_units"]) == 2, "fused kernel is specialized to 2 post-CBHG LSTM layers"

    p["embedding"] = 0.1 * jax.random.normal(kg(), (V, E), F32)

    sizes_in = [E] + cfg["prenet_sizes"][:-1]
    (w1, b1), (w2, b2) = [linear_init(kg, di, do)
                          for di, do in zip(sizes_in, cfg["prenet_sizes"])]
    p["pre_w1"], p["pre_b1"] = w1, b1.reshape(1, -1)
    p["pre_w2"], p["pre_b2"] = w2, b2.reshape(1, -1)

    # conv bank: all K kernels packed into one (K*C, K*C) block weight over a
    # K-offset im2col (offsets -K//2 .. K-1-K//2); unused taps stay zero.
    pad = K // 2
    bank_w = jnp.zeros((K * C, K * C), F32)
    shifts = []
    for ki in range(K):
        k = ki + 1
        wf, shift = conv_bn_folded_init(kg, k, C, C)
        s = pad - k // 2
        bank_w = bank_w.at[s * C:(s + k) * C, ki * C:(ki + 1) * C].set(wf)
        shifts.append(shift)
    p["bank_w"] = bank_w
    p["bank_shift"] = jnp.concatenate(shifts).reshape(1, -1)

    w1p, s1 = conv_bn_folded_init(kg, 3, K * C, proj[0])
    w2p, s2 = conv_bn_folded_init(kg, 3, proj[0], proj[1])
    p["proj1_w"], p["proj1_shift"] = w1p, s1.reshape(1, -1)
    p["proj2_w"], p["proj2_shift"] = w2p, s2.reshape(1, -1)

    # 4 Highway layers, H and T Linear weights packed into one (C, 2C) matrix
    # (T-gate bias initialised to -1, as in the PyTorch module).
    hw_w, hw_b = [], []
    for _ in range(4):
        w_h, b_h = linear_init(kg, C, C)
        w_t, _ = linear_init(kg, C, C)
        hw_w.append(jnp.concatenate([w_h, w_t], axis=-1))
        hw_b.append(jnp.concatenate([b_h.reshape(1, -1),
                                     jnp.full((1, C), -1.0, F32)], axis=-1))
    p["hw_w"] = jnp.stack(hw_w)   # (4, C, 2C)
    p["hw_b"] = jnp.stack(hw_b)   # (4, 1, 2C)

    G = cfg["gru_units"]
    p["gru_wi"], p["gru_bi"], p["gru_wh"], p["gru_bh"] = bigru_init(kg, C, G)

    units = [G] + cfg["post_units"]
    hid1 = units[1]
    p["l1_wi"], p["l1_b"], p["l1_wh"] = bilstm_init(kg, 2 * units[0], hid1)
    sc, sh = bn_init(kg, 2 * hid1)
    p["bn1_scale"], p["bn1_shift"] = sc.reshape(1, -1), sh.reshape(1, -1)

    hid2 = units[2]
    p["l2_wi"], p["l2_b"], p["l2_wh"] = bilstm_init(kg, 2 * hid1, hid2)
    sc, sh = bn_init(kg, 2 * hid2)
    p["bn2_scale"], p["bn2_shift"] = sc.reshape(1, -1), sh.reshape(1, -1)

    wp, bp = linear_init(kg, 2 * hid2, cfg["targ_vocab"])
    p["proj_w"], p["proj_b"] = wp, bp.reshape(1, -1)
    return p


# --------------------------------- forward ------------------------------------
@jax.jit
def cbhg_model_forward(params, src):
    # src: (B, T) int32 token ids; lengths=None, target=None path of the module
    bsz, tlen = src.shape
    bsz_pad = ((bsz + 7) // 8) * 8          # sublane-aligned row blocks
    ids_tb = jnp.zeros((tlen, bsz_pad), jnp.int32).at[:, :bsz].set(src.T)
    ids_flat = ids_tb.reshape(-1, 1)        # row = t*bsz_pad + b
    pred = cbhg_fused_forward(ids_flat, params, tlen, bsz_pad)   # (T*Bp, Vt)
    pred = pred.reshape(tlen, bsz_pad, -1)[:, :bsz, :]
    return {"diacritics": jnp.transpose(pred, (1, 0, 2))}


# ----------------------------------- main --------------------------------------
if __name__ == "__main__":
    cfg = dict(
        inp_vocab=24, targ_vocab=12, emb=32,
        prenet_sizes=[32, 16],          # use_prenet=True
        K=4, projections=[16, 16],      # projections[-1] == prenet_sizes[-1]
        gru_units=16, post_units=[16, 16],
    )
    kg = KeyGen(0)
    params = init_params(kg, cfg)

    B, T = 2, 8
    src = jax.random.randint(jax.random.PRNGKey(0), (B, T), 0,
                             cfg["inp_vocab"], dtype=jnp.int32)

    out = cbhg_model_forward(params, src)
    pred = jax.block_until_ready(out["diacritics"])
    assert pred.shape == (B, T, cfg["targ_vocab"])
    assert bool(jnp.all(jnp.isfinite(pred)))
    print("KERNEL_OK")
</pallas_src>

<mosaic_0001>
module attributes {stable_mosaic.version = 11 : i64} {
  func.func @_cbhg_fused_kernel(%arg0: memref<64x1xi32, #tpu.memory_space<vmem>>, %arg1: memref<24x32xf32, #tpu.memory_space<vmem>>, %arg2: memref<32x32xf32, #tpu.memory_space<vmem>>, %arg3: memref<1x32xf32, #tpu.memory_space<vmem>>, %arg4: memref<32x16xf32, #tpu.memory_space<vmem>>, %arg5: memref<1x16xf32, #tpu.memory_space<vmem>>, %arg6: memref<64x64xf32, #tpu.memory_space<vmem>>, %arg7: memref<1x64xf32, #tpu.memory_space<vmem>>, %arg8: memref<192x16xf32, #tpu.memory_space<vmem>>, %arg9: memref<1x16xf32, #tpu.memory_space<vmem>>, %arg10: memref<48x16xf32, #tpu.memory_space<vmem>>, %arg11: memref<1x16xf32, #tpu.memory_space<vmem>>, %arg12: memref<4x16x32xf32, #tpu.memory_space<vmem>>, %arg13: memref<4x1x32xf32, #tpu.memory_space<vmem>>, %arg14: memref<32x96xf32, #tpu.memory_space<vmem>>, %arg15: memref<1x96xf32, #tpu.memory_space<vmem>>, %arg16: memref<32x96xf32, #tpu.memory_space<vmem>>, %arg17: memref<1x96xf32, #tpu.memory_space<vmem>>, %arg18: memref<64x128xf32, #tpu.memory_space<vmem>>, %arg19: memref<1x128xf32, #tpu.memory_space<vmem>>, %arg20: memref<32x128xf32, #tpu.memory_space<vmem>>, %arg21: memref<1x32xf32, #tpu.memory_space<vmem>>, %arg22: memref<1x32xf32, #tpu.memory_space<vmem>>, %arg23: memref<64x128xf32, #tpu.memory_space<vmem>>, %arg24: memref<1x128xf32, #tpu.memory_space<vmem>>, %arg25: memref<32x128xf32, #tpu.memory_space<vmem>>, %arg26: memref<1x32xf32, #tpu.memory_space<vmem>>, %arg27: memref<1x32xf32, #tpu.memory_space<vmem>>, %arg28: memref<32x12xf32, #tpu.memory_space<vmem>>, %arg29: memref<1x12xf32, #tpu.memory_space<vmem>>, %arg30: memref<64x12xf32, #tpu.memory_space<vmem>>, %arg31: memref<64x32xf32, #tpu.memory_space<vmem>>, %arg32: memref<64x32xf32, #tpu.memory_space<vmem>>, %arg33: memref<64x32xf32, #tpu.memory_space<vmem>>) attributes {dimension_semantics = [], scalar_prefetch = 0 : i64, scratch_operands = 3 : i64, tpu.core_type = #tpu.core_type<tc>} {
    %c0 = arith.constant 0 : index
    %c0_0 = arith.constant 0 : index
    %0 = vector.load %arg0[%c0, %c0_0] : memref<64x1xi32, #tpu.memory_space<vmem>>, vector<64x1xi32>
    %1 = tpu.iota {dimensions = array<i32: 1>} : vector<64x24xi32>
    %2 = vector.broadcast %0 : vector<64x1xi32> to vector<64x24xi32>
    %3 = arith.cmpi eq, %1, %2 : vector<64x24xi32>
    %4 = arith.extui %3 : vector<64x24xi1> to vector<64x24xi32>
    %5 = arith.sitofp %4 : vector<64x24xi32> to vector<64x24xf32>
    %c0_1 = arith.constant 0 : index
    %c0_2 = arith.constant 0 : index
    %6 = vector.load %arg1[%c0_1, %c0_2] : memref<24x32xf32, #tpu.memory_space<vmem>>, vector<24x32xf32>
    %cst = arith.constant dense<0.000000e+00> : vector<64x32xf32>
    %7 = tpu.matmul %5, %6, %cst {dimension_numbers = #tpu.dot_dimension_numbers<[1], [0], [0], [1], [0, 0, 1, 1], [], []>} : vector<64x24xf32>, vector<24x32xf32>, vector<64x32xf32> -> vector<64x32xf32>
    %c0_3 = arith.constant 0 : index
    %c0_4 = arith.constant 0 : index
    %8 = vector.load %arg2[%c0_3, %c0_4] : memref<32x32xf32, #tpu.memory_space<vmem>>, vector<32x32xf32>
    %cst_5 = arith.constant dense<0.000000e+00> : vector<64x32xf32>
    %9 = tpu.matmul %7, %8, %cst_5 {dimension_numbers = #tpu.dot_dimension_numbers<[1], [0], [0], [1], [0, 0, 1, 1], [], []>} : vector<64x32xf32>, vector<32x32xf32>, vector<64x32xf32> -> vector<64x32xf32>
    %c0_6 = arith.constant 0 : index
    %c0_7 = arith.constant 0 : index
    %10 = vector.load %arg3[%c0_6, %c0_7] : memref<1x32xf32, #tpu.memory_space<vmem>>, vector<1x32xf32>
    %11 = vector.broadcast %10 : vector<1x32xf32> to vector<64x32xf32>
    %12 = arith.addf %9, %11 : vector<64x32xf32>
    %cst_8 = arith.constant 0.000000e+00 : f32
    %13 = vector.broadcast %cst_8 : f32 to vector<64x32xf32>
    %14 = arith.maximumf %12, %13 : vector<64x32xf32>
    %c0_9 = arith.constant 0 : index
    %c0_10 = arith.constant 0 : index
    %15 = vector.load %arg4[%c0_9, %c0_10] : memref<32x16xf32, #tpu.memory_space<vmem>>, vector<32x16xf32>
    %cst_11 = arith.constant dense<0.000000e+00> : vector<64x16xf32>
    %16 = tpu.matmul %14, %15, %cst_11 {dimension_numbers = #tpu.dot_dimension_numbers<[1], [0], [0], [1], [0, 0, 1, 1], [], []>} : vector<64x32xf32>, vector<32x16xf32>, vector<64x16xf32> -> vector<64x16xf32>
    %c0_12 = arith.constant 0 : index
    %c0_13 = arith.constant 0 : index
    %17 = vector.load %arg5[%c0_12, %c0_13] : memref<1x16xf32, #tpu.memory_space<vmem>>, vector<1x16xf32>
    %18 = vector.broadcast %17 : vector<1x16xf32> to vector<64x16xf32>
    %19 = arith.addf %16, %18 : vector<64x16xf32>
    %cst_14 = arith.constant 0.000000e+00 : f32
    %20 = vector.broadcast %cst_14 : f32 to vector<64x16xf32>
    %21 = arith.maximumf %19, %20 : vector<64x16xf32>
    %cst_15 = arith.constant 0.000000e+00 : f32
    %22 = vector.broadcast %cst_15 : f32 to vector<16x16xf32>
    %23 = vector.extract_strided_slice %21 {offsets = [0, 0], sizes = [48, 16], strides = [1, 1]} : vector<64x16xf32> to vector<48x16xf32>
    %24 = tpu.concatenate %22, %23 in 0 : vector<16x16xf32>, vector<48x16xf32> -> vector<64x16xf32>
    %cst_16 = arith.constant 0.000000e+00 : f32
    %25 = vector.broadcast %cst_16 : f32 to vector<8x16xf32>
    %26 = vector.extract_strided_slice %21 {offsets = [0, 0], sizes = [56, 16], strides = [1, 1]} : vector<64x16xf32> to vector<56x16xf32>
    %27 = tpu.concatenate %25, %26 in 0 : vector<8x16xf32>, vector<56x16xf32> -> vector<64x16xf32>
    %cst_17 = arith.constant 0.000000e+00 : f32
    %28 = vector.broadcast %cst_17 : f32 to vector<8x16xf32>
    %29 = vector.extract_strided_slice %21 {offsets = [8, 0], sizes = [56, 16], strides = [1, 1]} : vector<64x16xf32> to vector<56x16xf32>
    %30 = tpu.concatenate %29, %28 in 0 : vector<56x16xf32>, vector<8x16xf32> -> vector<64x16xf32>
    %31 = tpu.concatenate %24, %27, %21, %30 in 1 : vector<64x16xf32>, vector<64x16xf32>, vector<64x16xf32>, vector<64x16xf32> -> vector<64x64xf32>
    %c0_18 = arith.constant 0 : index
    %c0_19 = arith.constant 0 : index
    %32 = vector.load %arg6[%c0_18, %c0_19] : memref<64x64xf32, #tpu.memory_space<vmem>>, vector<64x64xf32>
    %cst_20 = arith.constant dense<0.000000e+00> : vector<64x64xf32>
    %33 = tpu.matmul %31, %32, %cst_20 {dimension_numbers = #tpu.dot_dimension_numbers<[1], [0], [0], [1], [0, 0, 1, 1], [], []>} : vector<64x64xf32>, vector<64x64xf32>, vector<64x64xf32> -> vector<64x64xf32>
    %c0_21 = arith.constant 0 : index
    %c0_22 = arith.constant 0 : index
    %34 = vector.load %arg7[%c0_21, %c0_22] : memref<1x64xf32, #tpu.memory_space<vmem>>, vector<1x64xf32>
    %35 = vector.broadcast %34 : vector<1x64xf32> to vector<64x64xf32>
    %36 = arith.addf %33, %35 : vector<64x64xf32>
    %cst_23 = arith.constant 0.000000e+00 : f32
    %37 = vector.broadcast %cst_23 : f32 to vector<64x64xf32>
    %38 = arith.maximumf %36, %37 : vector<64x64xf32>
    %cst_24 = arith.constant 0.000000e+00 : f32
    %39 = vector.broadcast %cst_24 : f32 to vector<8x64xf32>
    %40 = vector.extract_strided_slice %38 {offsets = [0, 0], sizes = [56, 64], strides = [1, 1]} : vector<64x64xf32> to vector<56x64xf32>
    %41 = tpu.concatenate %39, %40 in 0 : vector<8x64xf32>, vector<56x64xf32> -> vector<64x64xf32>
    %42 = arith.maximumf %38, %41 : vector<64x64xf32>
    %cst_25 = arith.constant 0.000000e+00 : f32
    %43 = vector.broadcast %cst_25 : f32 to vector<8x64xf32>
    %44 = vector.extract_strided_slice %42 {offsets = [0, 0], sizes = [56, 64], strides = [1, 1]} : vector<64x64xf32> to vector<56x64xf32>
    %45 = tpu.concatenate %43, %44 in 0 : vector<8x64xf32>, vector<56x64xf32> -> vector<64x64xf32>
    %cst_26 = arith.constant 0.000000e+00 : f32
    %46 = vector.broadcast %cst_26 : f32 to vector<8x64xf32>
    %47 = vector.extract_strided_slice %42 {offsets = [8, 0], sizes = [56, 64], strides = [1, 1]} : vector<64x64xf32> to vector<56x64xf32>
    %48 = tpu.concatenate %47, %46 in 0 : vector<56x64xf32>, vector<8x64xf32> -> vector<64x64xf32>
    %49 = tpu.concatenate %45, %42, %48 in 1 : vector<64x64xf32>, vector<64x64xf32>, vector<64x64xf32> -> vector<64x192xf32>
    %c0_27 = arith.constant 0 : index
    %c0_28 = arith.constant 0 : index
    %50 = vector.load %arg8[%c0_27, %c0_28] : memref<192x16xf32, #tpu.memory_space<vmem>>, vector<192x16xf32>
    %cst_29 = arith.constant dense<0.000000e+00> : vector<64x16xf32>
    %51 = tpu.matmul %49, %50, %cst_29 {dimension_numbers = #tpu.dot_dimension_numbers<[1], [0], [0], [1], [0, 0, 1, 1], [], []>} : vector<64x192xf32>, vector<192x16xf32>, vector<64x16xf32> -> vector<64x16xf32>
    %c0_30 = arith.constant 0 : index
    %c0_31 = arith.constant 0 : index
    %52 = vector.load %arg9[%c0_30, %c0_31] : memref<1x16xf32, #tpu.memory_space<vmem>>, vector<1x16xf32>
    %53 = vector.broadcast %52 : vector<1x16xf32> to vector<64x16xf32>
    %54 = arith.addf %51, %53 : vector<64x16xf32>
    %cst_32 = arith.constant 0.000000e+00 : f32
    %55 = vector.broadcast %cst_32 : f32 to vector<64x16xf32>
    %56 = arith.maximumf %54, %55 : vector<64x16xf32>
    %cst_33 = arith.constant 0.000000e+00 : f32
    %57 = vector.broadcast %cst_33 : f32 to vector<8x16xf32>
    %58 = vector.extract_strided_slice %56 {offsets = [0, 0], sizes = [56, 16], strides = [1, 1]} : vector<64x16xf32> to vector<56x16xf32>
    %59 = tpu.concatenate %57, %58 in 0 : vector<8x16xf32>, vector<56x16xf32> -> vector<64x16xf32>
    %cst_34 = arith.constant 0.000000e+00 : f32
    %60 = vector.broadcast %cst_34 : f32 to vector<8x16xf32>
    %61 = vector.extract_strided_slice %56 {offsets = [8, 0], sizes = [56, 16], strides = [1, 1]} : vector<64x16xf32> to vector<56x16xf32>
    %62 = tpu.concatenate %61, %60 in 0 : vector<56x16xf32>, vector<8x16xf32> -> vector<64x16xf32>
    %63 = tpu.concatenate %59, %56, %62 in 1 : vector<64x16xf32>, vector<64x16xf32>, vector<64x16xf32> -> vector<64x48xf32>
    %c0_35 = arith.constant 0 : index
    %c0_36 = arith.constant 0 : index
    %64 = vector.load %arg10[%c0_35, %c0_36] : memref<48x16xf32, #tpu.memory_space<vmem>>, vector<48x16xf32>
    %cst_37 = arith.constant dense<0.000000e+00> : vector<64x16xf32>
    %65 = tpu.matmul %63, %64, %cst_37 {dimension_numbers = #tpu.dot_dimension_numbers<[1], [0], [0], [1], [0, 0, 1, 1], [], []>} : vector<64x48xf32>, vector<48x16xf32>, vector<64x16xf32> -> vector<64x16xf32>
    %c0_38 = arith.constant 0 : index
    %c0_39 = arith.constant 0 : index
    %66 = vector.load %arg11[%c0_38, %c0_39] : memref<1x16xf32, #tpu.memory_space<vmem>>, vector<1x16xf32>
    %67 = vector.broadcast %66 : vector<1x16xf32> to vector<64x16xf32>
    %68 = arith.addf %65, %67 : vector<64x16xf32>
    %69 = arith.addf %68, %21 : vector<64x16xf32>
    %c0_40 = arith.constant 0 : index
    %c0_41 = arith.constant 0 : index
    %c0_42 = arith.constant 0 : index
    %70 = vector.load %arg12[%c0_40, %c0_41, %c0_42] : memref<4x16x32xf32, #tpu.memory_space<vmem>>, vector<1x16x32xf32>
    %71 = vector.shape_cast %70 : vector<1x16x32xf32> to vector<16x32xf32>
    %cst_43 = arith.constant dense<0.000000e+00> : vector<64x32xf32>
    %72 = tpu.matmul %69, %71, %cst_43 {dimension_numbers = #tpu.dot_dimension_numbers<[1], [0], [0], [1], [0, 0, 1, 1], [], []>} : vector<64x16xf32>, vector<16x32xf32>, vector<64x32xf32> -> vector<64x32xf32>
    %c0_44 = arith.constant 0 : index
    %c0_45 = arith.constant 0 : index
    %c0_46 = arith.constant 0 : index
    %73 = vector.load %arg13[%c0_44, %c0_45, %c0_46] : memref<4x1x32xf32, #tpu.memory_space<vmem>>, vector<1x1x32xf32>
    %74 = vector.shape_cast %73 : vector<1x1x32xf32> to vector<1x32xf32>
    %75 = vector.broadcast %74 : vector<1x32xf32> to vector<64x32xf32>
    %76 = arith.addf %72, %75 : vector<64x32xf32>
    %77 = vector.extract_strided_slice %76 {offsets = [0, 16], sizes = [64, 16], strides = [1, 1]} : vector<64x32xf32> to vector<64x16xf32>
    %78 = arith.negf %77 : vector<64x16xf32>
    %79 = math.exp %78 : vector<64x16xf32>
    %cst_47 = arith.constant 1.000000e+00 : f32
    %80 = vector.broadcast %cst_47 : f32 to vector<64x16xf32>
    %81 = arith.addf %80, %79 : vector<64x16xf32>
    %82 = arith.divf %80, %81 : vector<64x16xf32>
    %83 = vector.extract_strided_slice %76 {offsets = [0, 0], sizes = [64, 16], strides = [1, 1]} : vector<64x32xf32> to vector<64x16xf32>
    %cst_48 = arith.constant 0.000000e+00 : f32
    %84 = vector.broadcast %cst_48 : f32 to vector<64x16xf32>
    %85 = arith.maximumf %83, %84 : vector<64x16xf32>
    %86 = arith.mulf %85, %82 : vector<64x16xf32>
    %cst_49 = arith.constant 1.000000e+00 : f32
    %87 = vector.broadcast %cst_49 : f32 to vector<64x16xf32>
    %88 = arith.subf %87, %82 : vector<64x16xf32>
    %89 = arith.mulf %69, %88 : vector<64x16xf32>
    %90 = arith.addf %86, %89 : vector<64x16xf32>
    %c1 = arith.constant 1 : index
    %c0_50 = arith.constant 0 : index
    %c0_51 = arith.constant 0 : index
    %91 = vector.load %arg12[%c1, %c0_50, %c0_51] : memref<4x16x32xf32, #tpu.memory_space<vmem>>, vector<1x16x32xf32>
    %92 = vector.shape_cast %91 : vector<1x16x32xf32> to vector<16x32xf32>
    %cst_52 = arith.constant dense<0.000000e+00> : vector<64x32xf32>
    %93 = tpu.matmul %90, %92, %cst_52 {dimension_numbers = #tpu.dot_dimension_numbers<[1], [0], [0], [1], [0, 0, 1, 1], [], []>} : vector<64x16xf32>, vector<16x32xf32>, vector<64x32xf32> -> vector<64x32xf32>
    %c1_53 = arith.constant 1 : index
    %c0_54 = arith.constant 0 : index
    %c0_55 = arith.constant 0 : index
    %94 = vector.load %arg13[%c1_53, %c0_54, %c0_55] : memref<4x1x32xf32, #tpu.memory_space<vmem>>, vector<1x1x32xf32>
    %95 = vector.shape_cast %94 : vector<1x1x32xf32> to vector<1x32xf32>
    %96 = vector.broadcast %95 : vector<1x32xf32> to vector<64x32xf32>
    %97 = arith.addf %93, %96 : vector<64x32xf32>
    %98 = vector.extract_strided_slice %97 {offsets = [0, 16], sizes = [64, 16], strides = [1, 1]} : vector<64x32xf32> to vector<64x16xf32>
    %99 = arith.negf %98 : vector<64x16xf32>
    %100 = math.exp %99 : vector<64x16xf32>
    %cst_56 = arith.constant 1.000000e+00 : f32
    %101 = vector.broadcast %cst_56 : f32 to vector<64x16xf32>
    %102 = arith.addf %101, %100 : vector<64x16xf32>
    %103 = arith.divf %101, %102 : vector<64x16xf32>
    %104 = vector.extract_strided_slice %97 {offsets = [0, 0], sizes = [64, 16], strides = [1, 1]} : vector<64x32xf32> to vector<64x16xf32>
    %cst_57 = arith.constant 0.000000e+00 : f32
    %105 = vector.broadcast %cst_57 : f32 to vector<64x16xf32>
    %106 = arith.maximumf %104, %105 : vector<64x16xf32>
    %107 = arith.mulf %106, %103 : vector<64x16xf32>
    %cst_58 = arith.constant 1.000000e+00 : f32
    %108 = vector.broadcast %cst_58 : f32 to vector<64x16xf32>
    %109 = arith.subf %108, %103 : vector<64x16xf32>
    %110 = arith.mulf %90, %109 : vector<64x16xf32>
    %111 = arith.addf %107, %110 : vector<64x16xf32>
    %c2 = arith.constant 2 : index
    %c0_59 = arith.constant 0 : index
    %c0_60 = arith.constant 0 : index
    %112 = vector.load %arg12[%c2, %c0_59, %c0_60] : memref<4x16x32xf32, #tpu.memory_space<vmem>>, vector<1x16x32xf32>
    %113 = vector.shape_cast %112 : vector<1x16x32xf32> to vector<16x32xf32>
    %cst_61 = arith.constant dense<0.000000e+00> : vector<64x32xf32>
    %114 = tpu.matmul %111, %113, %cst_61 {dimension_numbers = #tpu.dot_dimension_numbers<[1], [0], [0], [1], [0, 0, 1, 1], [], []>} : vector<64x16xf32>, vector<16x32xf32>, vector<64x32xf32> -> vector<64x32xf32>
    %c2_62 = arith.constant 2 : index
    %c0_63 = arith.constant 0 : index
    %c0_64 = arith.constant 0 : index
    %115 = vector.load %arg13[%c2_62, %c0_63, %c0_64] : memref<4x1x32xf32, #tpu.memory_space<vmem>>, vector<1x1x32xf32>
    %116 = vector.shape_cast %115 : vector<1x1x32xf32> to vector<1x32xf32>
    %117 = vector.broadcast %116 : vector<1x32xf32> to vector<64x32xf32>
    %118 = arith.addf %114, %117 : vector<64x32xf32>
    %119 = vector.extract_strided_slice %118 {offsets = [0, 16], sizes = [64, 16], strides = [1, 1]} : vector<64x32xf32> to vector<64x16xf32>
    %120 = arith.negf %119 : vector<64x16xf32>
    %121 = math.exp %120 : vector<64x16xf32>
    %cst_65 = arith.constant 1.000000e+00 : f32
    %122 = vector.broadcast %cst_65 : f32 to vector<64x16xf32>
    %123 = arith.addf %122, %121 : vector<64x16xf32>
    %124 = arith.divf %122, %123 : vector<64x16xf32>
    %125 = vector.extract_strided_slice %118 {offsets = [0, 0], sizes = [64, 16], strides = [1, 1]} : vector<64x32xf32> to vector<64x16xf32>
    %cst_66 = arith.constant 0.000000e+00 : f32
    %126 = vector.broadcast %cst_66 : f32 to vector<64x16xf32>
    %127 = arith.maximumf %125, %126 : vector<64x16xf32>
    %128 = arith.mulf %127, %124 : vector<64x16xf32>
    %cst_67 = arith.constant 1.000000e+00 : f32
    %129 = vector.broadcast %cst_67 : f32 to vector<64x16xf32>
    %130 = arith.subf %129, %124 : vector<64x16xf32>
    %131 = arith.mulf %111, %130 : vector<64x16xf32>
    %132 = arith.addf %128, %131 : vector<64x16xf32>
    %c3 = arith.constant 3 : index
    %c0_68 = arith.constant 0 : index
    %c0_69 = arith.constant 0 : index
    %133 = vector.load %arg12[%c3, %c0_68, %c0_69] : memref<4x16x32xf32, #tpu.memory_space<vmem>>, vector<1x16x32xf32>
    %134 = vector.shape_cast %133 : vector<1x16x32xf32> to vector<16x32xf32>
    %cst_70 = arith.constant dense<0.000000e+00> : vector<64x32xf32>
    %135 = tpu.matmul %132, %134, %cst_70 {dimension_numbers = #tpu.dot_dimension_numbers<[1], [0], [0], [1], [0, 0, 1, 1], [], []>} : vector<64x16xf32>, vector<16x32xf32>, vector<64x32xf32> -> vector<64x32xf32>
    %c3_71 = arith.constant 3 : index
    %c0_72 = arith.constant 0 : index
    %c0_73 = arith.constant 0 : index
    %136 = vector.load %arg13[%c3_71, %c0_72, %c0_73] : memref<4x1x32xf32, #tpu.memory_space<vmem>>, vector<1x1x32xf32>
    %137 = vector.shape_cast %136 : vector<1x1x32xf32> to vector<1x32xf32>
    %138 = vector.broadcast %137 : vector<1x32xf32> to vector<64x32xf32>
    %139 = arith.addf %135, %138 : vector<64x32xf32>
    %140 = vector.extract_strided_slice %139 {offsets = [0, 16], sizes = [64, 16], strides = [1, 1]} : vector<64x32xf32> to vector<64x16xf32>
    %141 = arith.negf %140 : vector<64x16xf32>
    %142 = math.exp %141 : vector<64x16xf32>
    %cst_74 = arith.constant 1.000000e+00 : f32
    %143 = vector.broadcast %cst_74 : f32 to vector<64x16xf32>
    %144 = arith.addf %143, %142 : vector<64x16xf32>
    %145 = arith.divf %143, %144 : vector<64x16xf32>
    %146 = vector.extract_strided_slice %139 {offsets = [0, 0], sizes = [64, 16], strides = [1, 1]} : vector<64x32xf32> to vector<64x16xf32>
    %cst_75 = arith.constant 0.000000e+00 : f32
    %147 = vector.broadcast %cst_75 : f32 to vector<64x16xf32>
    %148 = arith.maximumf %146, %147 : vector<64x16xf32>
    %149 = arith.mulf %148, %145 : vector<64x16xf32>
    %cst_76 = arith.constant 1.000000e+00 : f32
    %150 = vector.broadcast %cst_76 : f32 to vector<64x16xf32>
    %151 = arith.subf %150, %145 : vector<64x16xf32>
    %152 = arith.mulf %132, %151 : vector<64x16xf32>
    %153 = arith.addf %149, %152 : vector<64x16xf32>
    %154 = vector.extract_strided_slice %153 {offsets = [56, 0], sizes = [8, 16], strides = [1, 1]} : vector<64x16xf32> to vector<8x16xf32>
    %155 = vector.extract_strided_slice %153 {offsets = [48, 0], sizes = [8, 16], strides = [1, 1]} : vector<64x16xf32> to vector<8x16xf32>
    %156 = vector.extract_strided_slice %153 {offsets = [40, 0], sizes = [8, 16], strides = [1, 1]} : vector<64x16xf32> to vector<8x16xf32>
    %157 = vector.extract_strided_slice %153 {offsets = [32, 0], sizes = [8, 16], strides = [1, 1]} : vector<64x16xf32> to vector<8x16xf32>
    %158 = vector.extract_strided_slice %153 {offsets = [24, 0], sizes = [8, 16], strides = [1, 1]} : vector<64x16xf32> to vector<8x16xf32>
    %159 = vector.extract_strided_slice %153 {offsets = [16, 0], sizes = [8, 16], strides = [1, 1]} : vector<64x16xf32> to vector<8x16xf32>
    %160 = vector.extract_strided_slice %153 {offsets = [8, 0], sizes = [8, 16], strides = [1, 1]} : vector<64x16xf32> to vector<8x16xf32>
    %161 = vector.extract_strided_slice %153 {offsets = [0, 0], sizes = [8, 16], strides = [1, 1]} : vector<64x16xf32> to vector<8x16xf32>
    %162 = tpu.concatenate %154, %155, %156, %157, %158, %159, %160, %161 in 0 : vector<8x16xf32>, vector<8x16xf32>, vector<8x16xf32>, vector<8x16xf32>, vector<8x16xf32>, vector<8x16xf32>, vector<8x16xf32>, vector<8x16xf32> -> vector<64x16xf32>
    %163 = tpu.concatenate %153, %162 in 1 : vector<64x16xf32>, vector<64x16xf32> -> vector<64x32xf32>
    %c0_77 = arith.constant 0 : index
    %c0_78 = arith.constant 0 : index
    %164 = vector.load %arg14[%c0_77, %c0_78] : memref<32x96xf32, #tpu.memory_space<vmem>>, vector<32x96xf32>
    %cst_79 = arith.constant dense<0.000000e+00> : vector<64x96xf32>
    %165 = tpu.matmul %163, %164, %cst_79 {dimension_numbers = #tpu.dot_dimension_numbers<[1], [0], [0], [1], [0, 0, 1, 1], [], []>} : vector<64x32xf32>, vector<32x96xf32>, vector<64x96xf32> -> vector<64x96xf32>
    %c0_80 = arith.constant 0 : index
    %c0_81 = arith.constant 0 : index
    %166 = vector.load %arg15[%c0_80, %c0_81] : memref<1x96xf32, #tpu.memory_space<vmem>>, vector<1x96xf32>
    %167 = vector.broadcast %166 : vector<1x96xf32> to vector<64x96xf32>
    %168 = arith.addf %165, %167 : vector<64x96xf32>
    %c0_82 = arith.constant 0 : index
    %c0_83 = arith.constant 0 : index
    %169 = vector.load %arg16[%c0_82, %c0_83] : memref<32x96xf32, #tpu.memory_space<vmem>>, vector<32x96xf32>
    %c0_84 = arith.constant 0 : index
    %c0_85 = arith.constant 0 : index
    %170 = vector.load %arg17[%c0_84, %c0_85] : memref<1x96xf32, #tpu.memory_space<vmem>>, vector<1x96xf32>
    %cst_86 = arith.constant 0.000000e+00 : f32
    %171 = vector.broadcast %cst_86 : f32 to vector<8x32xf32>
    %172 = vector.extract_strided_slice %168 {offsets = [0, 0], sizes = [8, 96], strides = [1, 1]} : vector<64x96xf32> to vector<8x96xf32>
    %cst_87 = arith.constant dense<0.000000e+00> : vector<8x96xf32>
    %173 = tpu.matmul %171, %169, %cst_87 {dimension_numbers = #tpu.dot_dimension_numbers<[1], [0], [0], [1], [0, 0, 1, 1], [], []>} : vector<8x32xf32>, vector<32x96xf32>, vector<8x96xf32> -> vector<8x96xf32>
    %174 = vector.broadcast %170 : vector<1x96xf32> to vector<8x96xf32>
    %175 = arith.addf %173, %174 : vector<8x96xf32>
    %176 = vector.extract_strided_slice %172 {offsets = [0, 0], sizes = [8, 64], strides = [1, 1]} : vector<8x96xf32> to vector<8x64xf32>
    %177 = vector.extract_strided_slice %175 {offsets = [0, 0], sizes = [8, 64], strides = [1, 1]} : vector<8x96xf32> to vector<8x64xf32>
    %178 = arith.addf %176, %177 : vector<8x64xf32>
    %179 = arith.negf %178 : vector<8x64xf32>
    %180 = math.exp %179 : vector<8x64xf32>
    %cst_88 = arith.constant 1.000000e+00 : f32
    %181 = vector.broadcast %cst_88 : f32 to vector<8x64xf32>
    %182 = arith.addf %181, %180 : vector<8x64xf32>
    %183 = arith.divf %181, %182 : vector<8x64xf32>
    %184 = vector.extract_strided_slice %183 {offsets = [0, 0], sizes = [8, 32], strides = [1, 1]} : vector<8x64xf32> to vector<8x32xf32>
    %185 = vector.extract_strided_slice %183 {offsets = [0, 32], sizes = [8, 32], strides = [1, 1]} : vector<8x64xf32> to vector<8x32xf32>
    %186 = vector.extract_strided_slice %172 {offsets = [0, 64], sizes = [8, 32], strides = [1, 1]} : vector<8x96xf32> to vector<8x32xf32>
    %187 = vector.extract_strided_slice %175 {offsets = [0, 64], sizes = [8, 32], strides = [1, 1]} : vector<8x96xf32> to vector<8x32xf32>
    %188 = arith.mulf %184, %187 : vector<8x32xf32>
    %189 = arith.addf %186, %188 : vector<8x32xf32>
    %190 = math.tanh %189 : vector<8x32xf32>
    %cst_89 = arith.constant 1.000000e+00 : f32
    %191 = vector.broadcast %cst_89 : f32 to vector<8x32xf32>
    %192 = arith.subf %191, %185 : vector<8x32xf32>
    %193 = arith.mulf %192, %190 : vector<8x32xf32>
    %194 = arith.mulf %185, %171 : vector<8x32xf32>
    %195 = arith.addf %193, %194 : vector<8x32xf32>
    %196 = vector.extract_strided_slice %195 {offsets = [0, 0], sizes = [8, 16], strides = [1, 1]} : vector<8x32xf32> to vector<8x16xf32>
    %c0_90 = arith.constant 0 : index
    %c0_91 = arith.constant 0 : index
    %197 = vector.load %arg31[%c0_90, %c0_91] : memref<64x32xf32, #tpu.memory_space<vmem>>, vector<8x16xf32>
    tpu.vector_store %arg31[%c0_90, %c0_91], %196 {strides = array<i32>} : memref<64x32xf32, #tpu.memory_space<vmem>>, vector<8x16xf32>,
    %198 = vector.extract_strided_slice %195 {offsets = [0, 16], sizes = [8, 16], strides = [1, 1]} : vector<8x32xf32> to vector<8x16xf32>
    %c56 = arith.constant 56 : index
    %c16 = arith.constant 16 : index
    %199 = vector.load %arg31[%c56, %c16] : memref<64x32xf32, #tpu.memory_space<vmem>>, vector<8x16xf32>
    tpu.vector_store %arg31[%c56, %c16], %198 {strides = array<i32>} : memref<64x32xf32, #tpu.memory_space<vmem>>, vector<8x16xf32>,
    %200 = vector.extract_strided_slice %168 {offsets = [8, 0], sizes = [8, 96], strides = [1, 1]} : vector<64x96xf32> to vector<8x96xf32>
    %cst_92 = arith.constant dense<0.000000e+00> : vector<8x96xf32>
    %201 = tpu.matmul %195, %169, %cst_92 {dimension_numbers = #tpu.dot_dimension_numbers<[1], [0], [0], [1], [0, 0, 1, 1], [], []>} : vector<8x32xf32>, vector<32x96xf32>, vector<8x96xf32> -> vector<8x96xf32>
    %202 = vector.broadcast %170 : vector<1x96xf32> to vector<8x96xf32>
    %203 = arith.addf %201, %202 : vector<8x96xf32>
    %204 = vector.extract_strided_slice %200 {offsets = [0, 0], sizes = [8, 64], strides = [1, 1]} : vector<8x96xf32> to vector<8x64xf32>
    %205 = vector.extract_strided_slice %203 {offsets = [0, 0], sizes = [8, 64], strides = [1, 1]} : vector<8x96xf32> to vector<8x64xf32>
    %206 = arith.addf %204, %205 : vector<8x64xf32>
    %207 = arith.negf %206 : vector<8x64xf32>
    %208 = math.exp %207 : vector<8x64xf32>
    %cst_93 = arith.constant 1.000000e+00 : f32
    %209 = vector.broadcast %cst_93 : f32 to vector<8x64xf32>
    %210 = arith.addf %209, %208 : vector<8x64xf32>
    %211 = arith.divf %209, %210 : vector<8x64xf32>
    %212 = vector.extract_strided_slice %211 {offsets = [0, 0], sizes = [8, 32], strides = [1, 1]} : vector<8x64xf32> to vector<8x32xf32>
    %213 = vector.extract_strided_slice %211 {offsets = [0, 32], sizes = [8, 32], strides = [1, 1]} : vector<8x64xf32> to vector<8x32xf32>
    %214 = vector.extract_strided_slice %200 {offsets = [0, 64], sizes = [8, 32], strides = [1, 1]} : vector<8x96xf32> to vector<8x32xf32>
    %215 = vector.extract_strided_slice %203 {offsets = [0, 64], sizes = [8, 32], strides = [1, 1]} : vector<8x96xf32> to vector<8x32xf32>
    %216 = arith.mulf %212, %215 : vector<8x32xf32>
    %217 = arith.addf %214, %216 : vector<8x32xf32>
    %218 = math.tanh %217 : vector<8x32xf32>
    %cst_94 = arith.constant 1.000000e+00 : f32
    %219 = vector.broadcast %cst_94 : f32 to vector<8x32xf32>
    %220 = arith.subf %219, %213 : vector<8x32xf32>
    %221 = arith.mulf %220, %218 : vector<8x32xf32>
    %222 = arith.mulf %213, %195 : vector<8x32xf32>
    %223 = arith.addf %221, %222 : vector<8x32xf32>
    %224 = vector.extract_strided_slice %223 {offsets = [0, 0], sizes = [8, 16], strides = [1, 1]} : vector<8x32xf32> to vector<8x16xf32>
    %c8 = arith.constant 8 : index
    %c0_95 = arith.constant 0 : index
    %225 = vector.load %arg31[%c8, %c0_95] : memref<64x32xf32, #tpu.memory_space<vmem>>, vector<8x16xf32>
    tpu.vector_store %arg31[%c8, %c0_95], %224 {strides = array<i32>} : memref<64x32xf32, #tpu.memory_space<vmem>>, vector<8x16xf32>,
    %226 = vector.extract_strided_slice %223 {offsets = [0, 16], sizes = [8, 16], strides = [1, 1]} : vector<8x32xf32> to vector<8x16xf32>
    %c48 = arith.constant 48 : index
    %c16_96 = arith.constant 16 : index
    %227 = vector.load %arg31[%c48, %c16_96] : memref<64x32xf32, #tpu.memory_space<vmem>>, vector<8x16xf32>
    tpu.vector_store %arg31[%c48, %c16_96], %226 {strides = array<i32>} : memref<64x32xf32, #tpu.memory_space<vmem>>, vector<8x16xf32>,
    %228 = vector.extract_strided_slice %168 {offsets = [16, 0], sizes = [8, 96], strides = [1, 1]} : vector<64x96xf32> to vector<8x96xf32>
    %cst_97 = arith.constant dense<0.000000e+00> : vector<8x96xf32>
    %229 = tpu.matmul %223, %169, %cst_97 {dimension_numbers = #tpu.dot_dimension_numbers<[1], [0], [0], [1], [0, 0, 1, 1], [], []>} : vector<8x32xf32>, vector<32x96xf32>, vector<8x96xf32> -> vector<8x96xf32>
    %230 = vector.broadcast %170 : vector<1x96xf32> to vector<8x96xf32>
    %231 = arith.addf %229, %230 : vector<8x96xf32>
    %232 = vector.extract_strided_slice %228 {offsets = [0, 0], sizes = [8, 64], strides = [1, 1]} : vector<8x96xf32> to vector<8x64xf32>
    %233 = vector.extract_strided_slice %231 {offsets = [0, 0], sizes = [8, 64], strides = [1, 1]} : vector<8x96xf32> to vector<8x64xf32>
    %234 = arith.addf %232, %233 : vector<8x64xf32>
    %235 = arith.negf %234 : vector<8x64xf32>
    %236 = math.exp %235 : vector<8x64xf32>
    %cst_98 = arith.constant 1.000000e+00 : f32
    %237 = vector.broadcast %cst_98 : f32 to vector<8x64xf32>
    %238 = arith.addf %237, %236 : vector<8x64xf32>
    %239 = arith.divf %237, %238 : vector<8x64xf32>
    %240 = vector.extract_strided_slice %239 {offsets = [0, 0], sizes = [8, 32], strides = [1, 1]} : vector<8x64xf32> to vector<8x32xf32>
    %241 = vector.extract_strided_slice %239 {offsets = [0, 32], sizes = [8, 32], strides = [1, 1]} : vector<8x64xf32> to vector<8x32xf32>
    %242 = vector.extract_strided_slice %228 {offsets = [0, 64], sizes = [8, 32], strides = [1, 1]} : vector<8x96xf32> to vector<8x32xf32>
    %243 = vector.extract_strided_slice %231 {offsets = [0, 64], sizes = [8, 32], strides = [1, 1]} : vector<8x96xf32> to vector<8x32xf32>
    %244 = arith.mulf %240, %243 : vector<8x32xf32>
    %245 = arith.addf %242, %244 : vector<8x32xf32>
    %246 = math.tanh %245 : vector<8x32xf32>
    %cst_99 = arith.constant 1.000000e+00 : f32
    %247 = vector.broadcast %cst_99 : f32 to vector<8x32xf32>
    %248 = arith.subf %247, %241 : vector<8x32xf32>
    %249 = arith.mulf %248, %246 : vector<8x32xf32>
    %250 = arith.mulf %241, %223 : vector<8x32xf32>
    %251 = arith.addf %249, %250 : vector<8x32xf32>
    %252 = vector.extract_strided_slice %251 {offsets = [0, 0], sizes = [8, 16], strides = [1, 1]} : vector<8x32xf32> to vector<8x16xf32>
    %c16_100 = arith.constant 16 : index
    %c0_101 = arith.constant 0 : index
    %253 = vector.load %arg31[%c16_100, %c0_101] : memref<64x32xf32, #tpu.memory_space<vmem>>, vector<8x16xf32>
    tpu.vector_store %arg31[%c16_100, %c0_101], %252 {strides = array<i32>} : memref<64x32xf32, #tpu.memory_space<vmem>>, vector<8x16xf32>,
    %254 = vector.extract_strided_slice %251 {offsets = [0, 16], sizes = [8, 16], strides = [1, 1]} : vector<8x32xf32> to vector<8x16xf32>
    %c40 = arith.constant 40 : index
    %c16_102 = arith.constant 16 : index
    %255 = vector.load %arg31[%c40, %c16_102] : memref<64x32xf32, #tpu.memory_space<vmem>>, vector<8x16xf32>
    tpu.vector_store %arg31[%c40, %c16_102], %254 {strides = array<i32>} : memref<64x32xf32, #tpu.memory_space<vmem>>, vector<8x16xf32>,
    %256 = vector.extract_strided_slice %168 {offsets = [24, 0], sizes = [8, 96], strides = [1, 1]} : vector<64x96xf32> to vector<8x96xf32>
    %cst_103 = arith.constant dense<0.000000e+00> : vector<8x96xf32>
    %257 = tpu.matmul %251, %169, %cst_103 {dimension_numbers = #tpu.dot_dimension_numbers<[1], [0], [0], [1], [0, 0, 1, 1], [], []>} : vector<8x32xf32>, vector<32x96xf32>, vector<8x96xf32> -> vector<8x96xf32>
    %258 = vector.broadcast %170 : vector<1x96xf32> to vector<8x96xf32>
    %259 = arith.addf %257, %258 : vector<8x96xf32>
    %260 = vector.extract_strided_slice %256 {offsets = [0, 0], sizes = [8, 64], strides = [1, 1]} : vector<8x96xf32> to vector<8x64xf32>
    %261 = vector.extract_strided_slice %259 {offsets = [0, 0], sizes = [8, 64], strides = [1, 1]} : vector<8x96xf32> to vector<8x64xf32>
    %262 = arith.addf %260, %261 : vector<8x64xf32>
    %263 = arith.negf %262 : vector<8x64xf32>
    %264 = math.exp %263 : vector<8x64xf32>
    %cst_104 = arith.constant 1.000000e+00 : f32
    %265 = vector.broadcast %cst_104 : f32 to vector<8x64xf32>
    %266 = arith.addf %265, %264 : vector<8x64xf32>
    %267 = arith.divf %265, %266 : vector<8x64xf32>
    %268 = vector.extract_strided_slice %267 {offsets = [0, 0], sizes = [8, 32], strides = [1, 1]} : vector<8x64xf32> to vector<8x32xf32>
    %269 = vector.extract_strided_slice %267 {offsets = [0, 32], sizes = [8, 32], strides = [1, 1]} : vector<8x64xf32> to vector<8x32xf32>
    %270 = vector.extract_strided_slice %256 {offsets = [0, 64], sizes = [8, 32], strides = [1, 1]} : vector<8x96xf32> to vector<8x32xf32>
    %271 = vector.extract_strided_slice %259 {offsets = [0, 64], sizes = [8, 32], strides = [1, 1]} : vector<8x96xf32> to vector<8x32xf32>
    %272 = arith.mulf %268, %271 : vector<8x32xf32>
    %273 = arith.addf %270, %272 : vector<8x32xf32>
    %274 = math.tanh %273 : vector<8x32xf32>
    %cst_105 = arith.constant 1.000000e+00 : f32
    %275 = vector.broadcast %cst_105 : f32 to vector<8x32xf32>
    %276 = arith.subf %275, %269 : vector<8x32xf32>
    %277 = arith.mulf %276, %274 : vector<8x32xf32>
    %278 = arith.mulf %269, %251 : vector<8x32xf32>
    %279 = arith.addf %277, %278 : vector<8x32xf32>
    %280 = vector.extract_strided_slice %279 {offsets = [0, 0], sizes = [8, 16], strides = [1, 1]} : vector<8x32xf32> to vector<8x16xf32>
    %c24 = arith.constant 24 : index
    %c0_106 = arith.constant 0 : index
    %281 = vector.load %arg31[%c24, %c0_106] : memref<64x32xf32, #tpu.memory_space<vmem>>, vector<8x16xf32>
    tpu.vector_store %arg31[%c24, %c0_106], %280 {strides = array<i32>} : memref<64x32xf32, #tpu.memory_space<vmem>>, vector<8x16xf32>,
    %282 = vector.extract_strided_slice %279 {offsets = [0, 16], sizes = [8, 16], strides = [1, 1]} : vector<8x32xf32> to vector<8x16xf32>
    %c32 = arith.constant 32 : index
    %c16_107 = arith.constant 16 : index
    %283 = vector.load %arg31[%c32, %c16_107] : memref<64x32xf32, #tpu.memory_space<vmem>>, vector<8x16xf32>
    tpu.vector_store %arg31[%c32, %c16_107], %282 {strides = array<i32>} : memref<64x32xf32, #tpu.memory_space<vmem>>, vector<8x16xf32>,
    %284 = vector.extract_strided_slice %168 {offsets = [32, 0], sizes = [8, 96], strides = [1, 1]} : vector<64x96xf32> to vector<8x96xf32>
    %cst_108 = arith.constant dense<0.000000e+00> : vector<8x96xf32>
    %285 = tpu.matmul %279, %169, %cst_108 {dimension_numbers = #tpu.dot_dimension_numbers<[1], [0], [0], [1], [0, 0, 1, 1], [], []>} : vector<8x32xf32>, vector<32x96xf32>, vector<8x96xf32> -> vector<8x96xf32>
    %286 = vector.broadcast %170 : vector<1x96xf32> to vector<8x96xf32>
    %287 = arith.addf %285, %286 : vector<8x96xf32>
    %288 = vector.extract_strided_slice %284 {offsets = [0, 0], sizes = [8, 64], strides = [1, 1]} : vector<8x96xf32> to vector<8x64xf32>
    %289 = vector.extract_strided_slice %287 {offsets = [0, 0], sizes = [8, 64], strides = [1, 1]} : vector<8x96xf32> to vector<8x64xf32>
    %290 = arith.addf %288, %289 : vector<8x64xf32>
    %291 = arith.negf %290 : vector<8x64xf32>
    %292 = math.exp %291 : vector<8x64xf32>
    %cst_109 = arith.constant 1.000000e+00 : f32
    %293 = vector.broadcast %cst_109 : f32 to vector<8x64xf32>
    %294 = arith.addf %293, %292 : vector<8x64xf32>
    %295 = arith.divf %293, %294 : vector<8x64xf32>
    %296 = vector.extract_strided_slice %295 {offsets = [0, 0], sizes = [8, 32], strides = [1, 1]} : vector<8x64xf32> to vector<8x32xf32>
    %297 = vector.extract_strided_slice %295 {offsets = [0, 32], sizes = [8, 32], strides = [1, 1]} : vector<8x64xf32> to vector<8x32xf32>
    %298 = vector.extract_strided_slice %284 {offsets = [0, 64], sizes = [8, 32], strides = [1, 1]} : vector<8x96xf32> to vector<8x32xf32>
    %299 = vector.extract_strided_slice %287 {offsets = [0, 64], sizes = [8, 32], strides = [1, 1]} : vector<8x96xf32> to vector<8x32xf32>
    %300 = arith.mulf %296, %299 : vector<8x32xf32>
    %301 = arith.addf %298, %300 : vector<8x32xf32>
    %302 = math.tanh %301 : vector<8x32xf32>
    %cst_110 = arith.constant 1.000000e+00 : f32
    %303 = vector.broadcast %cst_110 : f32 to vector<8x32xf32>
    %304 = arith.subf %303, %297 : vector<8x32xf32>
    %305 = arith.mulf %304, %302 : vector<8x32xf32>
    %306 = arith.mulf %297, %279 : vector<8x32xf32>
    %307 = arith.addf %305, %306 : vector<8x32xf32>
    %308 = vector.extract_strided_slice %307 {offsets = [0, 0], sizes = [8, 16], strides = [1, 1]} : vector<8x32xf32> to vector<8x16xf32>
    %c32_111 = arith.constant 32 : index
    %c0_112 = arith.constant 0 : index
    %309 = vector.load %arg31[%c32_111, %c0_112] : memref<64x32xf32, #tpu.memory_space<vmem>>, vector<8x16xf32>
    tpu.vector_store %arg31[%c32_111, %c0_112], %308 {strides = array<i32>} : memref<64x32xf32, #tpu.memory_space<vmem>>, vector<8x16xf32>,
    %310 = vector.extract_strided_slice %307 {offsets = [0, 16], sizes = [8, 16], strides = [1, 1]} : vector<8x32xf32> to vector<8x16xf32>
    %c24_113 = arith.constant 24 : index
    %c16_114 = arith.constant 16 : index
    %311 = vector.load %arg31[%c24_113, %c16_114] : memref<64x32xf32, #tpu.memory_space<vmem>>, vector<8x16xf32>
    tpu.vector_store %arg31[%c24_113, %c16_114], %310 {strides = array<i32>} : memref<64x32xf32, #tpu.memory_space<vmem>>, vector<8x16xf32>,
    %312 = vector.extract_strided_slice %168 {offsets = [40, 0], sizes = [8, 96], strides = [1, 1]} : vector<64x96xf32> to vector<8x96xf32>
    %cst_115 = arith.constant dense<0.000000e+00> : vector<8x96xf32>
    %313 = tpu.matmul %307, %169, %cst_115 {dimension_numbers = #tpu.dot_dimension_numbers<[1], [0], [0], [1], [0, 0, 1, 1], [], []>} : vector<8x32xf32>, vector<32x96xf32>, vector<8x96xf32> -> vector<8x96xf32>
    %314 = vector.broadcast %170 : vector<1x96xf32> to vector<8x96xf32>
    %315 = arith.addf %313, %314 : vector<8x96xf32>
    %316 = vector.extract_strided_slice %312 {offsets = [0, 0], sizes = [8, 64], strides = [1, 1]} : vector<8x96xf32> to vector<8x64xf32>
    %317 = vector.extract_strided_slice %315 {offsets = [0, 0], sizes = [8, 64], strides = [1, 1]} : vector<8x96xf32> to vector<8x64xf32>
    %318 = arith.addf %316, %317 : vector<8x64xf32>
    %319 = arith.negf %318 : vector<8x64xf32>
    %320 = math.exp %319 : vector<8x64xf32>
    %cst_116 = arith.constant 1.000000e+00 : f32
    %321 = vector.broadcast %cst_116 : f32 to vector<8x64xf32>
    %322 = arith.addf %321, %320 : vector<8x64xf32>
    %323 = arith.divf %321, %322 : vector<8x64xf32>
    %324 = vector.extract_strided_slice %323 {offsets = [0, 0], sizes = [8, 32], strides = [1, 1]} : vector<8x64xf32> to vector<8x32xf32>
    %325 = vector.extract_strided_slice %323 {offsets = [0, 32], sizes = [8, 32], strides = [1, 1]} : vector<8x64xf32> to vector<8x32xf32>
    %326 = vector.extract_strided_slice %312 {offsets = [0, 64], sizes = [8, 32], strides = [1, 1]} : vector<8x96xf32> to vector<8x32xf32>
    %327 = vector.extract_strided_slice %315 {offsets = [0, 64], sizes = [8, 32], strides = [1, 1]} : vector<8x96xf32> to vector<8x32xf32>
    %328 = arith.mulf %324, %327 : vector<8x32xf32>
    %329 = arith.addf %326, %328 : vector<8x32xf32>
    %330 = math.tanh %329 : vector<8x32xf32>
    %cst_117 = arith.constant 1.000000e+00 : f32
    %331 = vector.broadcast %cst_117 : f32 to vector<8x32xf32>
    %332 = arith.subf %331, %325 : vector<8x32xf32>
    %333 = arith.mulf %332, %330 : vector<8x32xf32>
    %334 = arith.mulf %325, %307 : vector<8x32xf32>
    %335 = arith.addf %333, %334 : vector<8x32xf32>
    %336 = vector.extract_strided_slice %335 {offsets = [0, 0], sizes = [8, 16], strides = [1, 1]} : vector<8x32xf32> to vector<8x16xf32>
    %c40_118 = arith.constant 40 : index
    %c0_119 = arith.constant 0 : index
    %337 = vector.load %arg31[%c40_118, %c0_119] : memref<64x32xf32, #tpu.memory_space<vmem>>, vector<8x16xf32>
    tpu.vector_store %arg31[%c40_118, %c0_119], %336 {strides = array<i32>} : memref<64x32xf32, #tpu.memory_space<vmem>>, vector<8x16xf32>,
    %338 = vector.extract_strided_slice %335 {offsets = [0, 16], sizes = [8, 16], strides = [1, 1]} : vector<8x32xf32> to vector<8x16xf32>
    %c16_120 = arith.constant 16 : index
    %c16_121 = arith.constant 16 : index
    %339 = vector.load %arg31[%c16_120, %c16_121] : memref<64x32xf32, #tpu.memory_space<vmem>>, vector<8x16xf32>
    tpu.vector_store %arg31[%c16_120, %c16_121], %338 {strides = array<i32>} : memref<64x32xf32, #tpu.memory_space<vmem>>, vector<8x16xf32>,
    %340 = vector.extract_strided_slice %168 {offsets = [48, 0], sizes = [8, 96], strides = [1, 1]} : vector<64x96xf32> to vector<8x96xf32>
    %cst_122 = arith.constant dense<0.000000e+00> : vector<8x96xf32>
    %341 = tpu.matmul %335, %169, %cst_122 {dimension_numbers = #tpu.dot_dimension_numbers<[1], [0], [0], [1], [0, 0, 1, 1], [], []>} : vector<8x32xf32>, vector<32x96xf32>, vector<8x96xf32> -> vector<8x96xf32>
    %342 = vector.broadcast %170 : vector<1x96xf32> to vector<8x96xf32>
    %343 = arith.addf %341, %342 : vector<8x96xf32>
    %344 = vector.extract_strided_slice %340 {offsets = [0, 0], sizes = [8, 64], strides = [1, 1]} : vector<8x96xf32> to vector<8x64xf32>
    %345 = vector.extract_strided_slice %343 {offsets = [0, 0], sizes = [8, 64], strides = [1, 1]} : vector<8x96xf32> to vector<8x64xf32>
    %346 = arith.addf %344, %345 : vector<8x64xf32>
    %347 = arith.negf %346 : vector<8x64xf32>
    %348 = math.exp %347 : vector<8x64xf32>
    %cst_123 = arith.constant 1.000000e+00 : f32
    %349 = vector.broadcast %cst_123 : f32 to vector<8x64xf32>
    %350 = arith.addf %349, %348 : vector<8x64xf32>
    %351 = arith.divf %349, %350 : vector<8x64xf32>
    %352 = vector.extract_strided_slice %351 {offsets = [0, 0], sizes = [8, 32], strides = [1, 1]} : vector<8x64xf32> to vector<8x32xf32>
    %353 = vector.extract_strided_slice %351 {offsets = [0, 32], sizes = [8, 32], strides = [1, 1]} : vector<8x64xf32> to vector<8x32xf32>
    %354 = vector.extract_strided_slice %340 {offsets = [0, 64], sizes = [8, 32], strides = [1, 1]} : vector<8x96xf32> to vector<8x32xf32>
    %355 = vector.extract_strided_slice %343 {offsets = [0, 64], sizes = [8, 32], strides = [1, 1]} : vector<8x96xf32> to vector<8x32xf32>
    %356 = arith.mulf %352, %355 : vector<8x32xf32>
    %357 = arith.addf %354, %356 : vector<8x32xf32>
    %358 = math.tanh %357 : vector<8x32xf32>
    %cst_124 = arith.constant 1.000000e+00 : f32
    %359 = vector.broadcast %cst_124 : f32 to vector<8x32xf32>
    %360 = arith.subf %359, %353 : vector<8x32xf32>
    %361 = arith.mulf %360, %358 : vector<8x32xf32>
    %362 = arith.mulf %353, %335 : vector<8x32xf32>
    %363 = arith.addf %361, %362 : vector<8x32xf32>
    %364 = vector.extract_strided_slice %363 {offsets = [0, 0], sizes = [8, 16], strides = [1, 1]} : vector<8x32xf32> to vector<8x16xf32>
    %c48_125 = arith.constant 48 : index
    %c0_126 = arith.constant 0 : index
    %365 = vector.load %arg31[%c48_125, %c0_126] : memref<64x32xf32, #tpu.memory_space<vmem>>, vector<8x16xf32>
    tpu.vector_store %arg31[%c48_125, %c0_126], %364 {strides = array<i32>} : memref<64x32xf32, #tpu.memory_space<vmem>>, vector<8x16xf32>,
    %366 = vector.extract_strided_slice %363 {offsets = [0, 16], sizes = [8, 16], strides = [1, 1]} : vector<8x32xf32> to vector<8x16xf32>
    %c8_127 = arith.constant 8 : index
    %c16_128 = arith.constant 16 : index
    %367 = vector.load %arg31[%c8_127, %c16_128] : memref<64x32xf32, #tpu.memory_space<vmem>>, vector<8x16xf32>
    tpu.vector_store %arg31[%c8_127, %c16_128], %366 {strides = array<i32>} : memref<64x32xf32, #tpu.memory_space<vmem>>, vector<8x16xf32>,
    %368 = vector.extract_strided_slice %168 {offsets = [56, 0], sizes = [8, 96], strides = [1, 1]} : vector<64x96xf32> to vector<8x96xf32>
    %cst_129 = arith.constant dense<0.000000e+00> : vector<8x96xf32>
    %369 = tpu.matmul %363, %169, %cst_129 {dimension_numbers = #tpu.dot_dimension_numbers<[1], [0], [0], [1], [0, 0, 1, 1], [], []>} : vector<8x32xf32>, vector<32x96xf32>, vector<8x96xf32> -> vector<8x96xf32>
    %370 = vector.broadcast %170 : vector<1x96xf32> to vector<8x96xf32>
    %371 = arith.addf %369, %370 : vector<8x96xf32>
    %372 = vector.extract_strided_slice %368 {offsets = [0, 0], sizes = [8, 64], strides = [1, 1]} : vector<8x96xf32> to vector<8x64xf32>
    %373 = vector.extract_strided_slice %371 {offsets = [0, 0], sizes = [8, 64], strides = [1, 1]} : vector<8x96xf32> to vector<8x64xf32>
    %374 = arith.addf %372, %373 : vector<8x64xf32>
    %375 = arith.negf %374 : vector<8x64xf32>
    %376 = math.exp %375 : vector<8x64xf32>
    %cst_130 = arith.constant 1.000000e+00 : f32
    %377 = vector.broadcast %cst_130 : f32 to vector<8x64xf32>
    %378 = arith.addf %377, %376 : vector<8x64xf32>
    %379 = arith.divf %377, %378 : vector<8x64xf32>
    %380 = vector.extract_strided_slice %379 {offsets = [0, 0], sizes = [8, 32], strides = [1, 1]} : vector<8x64xf32> to vector<8x32xf32>
    %381 = vector.extract_strided_slice %379 {offsets = [0, 32], sizes = [8, 32], strides = [1, 1]} : vector<8x64xf32> to vector<8x32xf32>
    %382 = vector.extract_strided_slice %368 {offsets = [0, 64], sizes = [8, 32], strides = [1, 1]} : vector<8x96xf32> to vector<8x32xf32>
    %383 = vector.extract_strided_slice %371 {offsets = [0, 64], sizes = [8, 32], strides = [1, 1]} : vector<8x96xf32> to vector<8x32xf32>
    %384 = arith.mulf %380, %383 : vector<8x32xf32>
    %385 = arith.addf %382, %384 : vector<8x32xf32>
    %386 = math.tanh %385 : vector<8x32xf32>
    %cst_131 = arith.constant 1.000000e+00 : f32
    %387 = vector.broadcast %cst_131 : f32 to vector<8x32xf32>
    %388 = arith.subf %387, %381 : vector<8x32xf32>
    %389 = arith.mulf %388, %386 : vector<8x32xf32>
    %390 = arith.mulf %381, %363 : vector<8x32xf32>
    %391 = arith.addf %389, %390 : vector<8x32xf32>
    %392 = vector.extract_strided_slice %391 {offsets = [0, 0], sizes = [8, 16], strides = [1, 1]} : vector<8x32xf32> to vector<8x16xf32>
    %c56_132 = arith.constant 56 : index
    %c0_133 = arith.constant 0 : index
    %393 = vector.load %arg31[%c56_132, %c0_133] : memref<64x32xf32, #tpu.memory_space<vmem>>, vector<8x16xf32>
    tpu.vector_store %arg31[%c56_132, %c0_133], %392 {strides = array<i32>} : memref<64x32xf32, #tpu.memory_space<vmem>>, vector<8x16xf32>,
    %394 = vector.extract_strided_slice %391 {offsets = [0, 16], sizes = [8, 16], strides = [1, 1]} : vector<8x32xf32> to vector<8x16xf32>
    %c0_134 = arith.constant 0 : index
    %c16_135 = arith.constant 16 : index
    %395 = vector.load %arg31[%c0_134, %c16_135] : memref<64x32xf32, #tpu.memory_space<vmem>>, vector<8x16xf32>
    tpu.vector_store %arg31[%c0_134, %c16_135], %394 {strides = array<i32>} : memref<64x32xf32, #tpu.memory_space<vmem>>, vector<8x16xf32>,
    %c0_136 = arith.constant 0 : index
    %c0_137 = arith.constant 0 : index
    %396 = vector.load %arg31[%c0_136, %c0_137] : memref<64x32xf32, #tpu.memory_space<vmem>>, vector<64x32xf32>
    %cst_138 = arith.constant 0.000000e+00 : f32
    %397 = vector.broadcast %cst_138 : f32 to vector<8x32xf32>
    %398 = vector.extract_strided_slice %396 {offsets = [56, 0], sizes = [8, 32], strides = [1, 1]} : vector<64x32xf32> to vector<8x32xf32>
    %399 = vector.extract_strided_slice %396 {offsets = [48, 0], sizes = [8, 32], strides = [1, 1]} : vector<64x32xf32> to vector<8x32xf32>
    %400 = vector.extract_strided_slice %396 {offsets = [40, 0], sizes = [8, 32], strides = [1, 1]} : vector<64x32xf32> to vector<8x32xf32>
    %401 = vector.extract_strided_slice %396 {offsets = [32, 0], sizes = [8, 32], strides = [1, 1]} : vector<64x32xf32> to vector<8x32xf32>
    %402 = vector.extract_strided_slice %396 {offsets = [24, 0], sizes = [8, 32], strides = [1, 1]} : vector<64x32xf32> to vector<8x32xf32>
    %403 = vector.extract_strided_slice %396 {offsets = [16, 0], sizes = [8, 32], strides = [1, 1]} : vector<64x32xf32> to vector<8x32xf32>
    %404 = vector.extract_strided_slice %396 {offsets = [8, 0], sizes = [8, 32], strides = [1, 1]} : vector<64x32xf32> to vector<8x32xf32>
    %405 = vector.extract_strided_slice %396 {offsets = [0, 0], sizes = [8, 32], strides = [1, 1]} : vector<64x32xf32> to vector<8x32xf32>
    %406 = tpu.concatenate %398, %399, %400, %401, %402, %403, %404, %405 in 0 : vector<8x32xf32>, vector<8x32xf32>, vector<8x32xf32>, vector<8x32xf32>, vector<8x32xf32>, vector<8x32xf32>, vector<8x32xf32>, vector<8x32xf32> -> vector<64x32xf32>
    %407 = tpu.concatenate %396, %406 in 1 : vector<64x32xf32>, vector<64x32xf32> -> vector<64x64xf32>
    %c0_139 = arith.constant 0 : index
    %c0_140 = arith.constant 0 : index
    %408 = vector.load %arg18[%c0_139, %c0_140] : memref<64x128xf32, #tpu.memory_space<vmem>>, vector<64x128xf32>
    %cst_141 = arith.constant dense<0.000000e+00> : vector<64x128xf32>
    %409 = tpu.matmul %407, %408, %cst_141 {dimension_numbers = #tpu.dot_dimension_numbers<[1], [0], [0], [1], [0, 0, 1, 1], [], []>} : vector<64x64xf32>, vector<64x128xf32>, vector<64x128xf32> -> vector<64x128xf32>
    %c0_142 = arith.constant 0 : index
    %c0_143 = arith.constant 0 : index
    %410 = vector.load %arg19[%c0_142, %c0_143] : memref<1x128xf32, #tpu.memory_space<vmem>>, vector<1x128xf32>
    %411 = vector.broadcast %410 : vector<1x128xf32> to vector<64x128xf32>
    %412 = arith.addf %409, %411 : vector<64x128xf32>
    %c0_144 = arith.constant 0 : index
    %c0_145 = arith.constant 0 : index
    %413 = vector.load %arg20[%c0_144, %c0_145] : memref<32x128xf32, #tpu.memory_space<vmem>>, vector<32x128xf32>
    %414 = vector.extract_strided_slice %412 {offsets = [0, 0], sizes = [8, 128], strides = [1, 1]} : vector<64x128xf32> to vector<8x128xf32>
    %cst_146 = arith.constant dense<0.000000e+00> : vector<8x128xf32>
    %415 = tpu.matmul %397, %413, %cst_146 {dimension_numbers = #tpu.dot_dimension_numbers<[1], [0], [0], [1], [0, 0, 1, 1], [], []>} : vector<8x32xf32>, vector<32x128xf32>, vector<8x128xf32> -> vector<8x128xf32>
    %416 = arith.addf %414, %415 : vector<8x128xf32>
    %417 = vector.extract_strided_slice %416 {offsets = [0, 0], sizes = [8, 96], strides = [1, 1]} : vector<8x128xf32> to vector<8x96xf32>
    %418 = arith.negf %417 : vector<8x96xf32>
    %419 = math.exp %418 : vector<8x96xf32>
    %cst_147 = arith.constant 1.000000e+00 : f32
    %420 = vector.broadcast %cst_147 : f32 to vector<8x96xf32>
    %421 = arith.addf %420, %419 : vector<8x96xf32>
    %422 = arith.divf %420, %421 : vector<8x96xf32>
    %423 = vector.extract_strided_slice %416 {offsets = [0, 96], sizes = [8, 32], strides = [1, 1]} : vector<8x128xf32> to vector<8x32xf32>
    %424 = math.tanh %423 : vector<8x32xf32>
    %425 = vector.extract_strided_slice %422 {offsets = [0, 32], sizes = [8, 32], strides = [1, 1]} : vector<8x96xf32> to vector<8x32xf32>
    %426 = arith.mulf %425, %397 : vector<8x32xf32>
    %427 = vector.extract_strided_slice %422 {offsets = [0, 0], sizes = [8, 32], strides = [1, 1]} : vector<8x96xf32> to vector<8x32xf32>
    %428 = arith.mulf %427, %424 : vector<8x32xf32>
    %429 = arith.addf %426, %428 : vector<8x32xf32>
    %430 = vector.extract_strided_slice %422 {offsets = [0, 64], sizes = [8, 32], strides = [1, 1]} : vector<8x96xf32> to vector<8x32xf32>
    %431 = math.tanh %429 : vector<8x32xf32>
    %432 = arith.mulf %430, %431 : vector<8x32xf32>
    %433 = vector.extract_strided_slice %432 {offsets = [0, 0], sizes = [8, 16], strides = [1, 1]} : vector<8x32xf32> to vector<8x16xf32>
    %c0_148 = arith.constant 0 : index
    %c0_149 = arith.constant 0 : index
    %434 = vector.load %arg32[%c0_148, %c0_149] : memref<64x32xf32, #tpu.memory_space<vmem>>, vector<8x16xf32>
    tpu.vector_store %arg32[%c0_148, %c0_149], %433 {strides = array<i32>} : memref<64x32xf32, #tpu.memory_space<vmem>>, vector<8x16xf32>,
    %435 = vector.extract_strided_slice %432 {offsets = [0, 16], sizes = [8, 16], strides = [1, 1]} : vector<8x32xf32> to vector<8x16xf32>
    %c56_150 = arith.constant 56 : index
    %c16_151 = arith.constant 16 : index
    %436 = vector.load %arg32[%c56_150, %c16_151] : memref<64x32xf32, #tpu.memory_space<vmem>>, vector<8x16xf32>
    tpu.vector_store %arg32[%c56_150, %c16_151], %435 {strides = array<i32>} : memref<64x32xf32, #tpu.memory_space<vmem>>, vector<8x16xf32>,
    %437 = vector.extract_strided_slice %412 {offsets = [8, 0], sizes = [8, 128], strides = [1, 1]} : vector<64x128xf32> to vector<8x128xf32>
    %cst_152 = arith.constant dense<0.000000e+00> : vector<8x128xf32>
    %438 = tpu.matmul %432, %413, %cst_152 {dimension_numbers = #tpu.dot_dimension_numbers<[1], [0], [0], [1], [0, 0, 1, 1], [], []>} : vector<8x32xf32>, vector<32x128xf32>, vector<8x128xf32> -> vector<8x128xf32>
    %439 = arith.addf %437, %438 : vector<8x128xf32>
    %440 = vector.extract_strided_slice %439 {offsets = [0, 0], sizes = [8, 96], strides = [1, 1]} : vector<8x128xf32> to vector<8x96xf32>
    %441 = arith.negf %440 : vector<8x96xf32>
    %442 = math.exp %441 : vector<8x96xf32>
    %cst_153 = arith.constant 1.000000e+00 : f32
    %443 = vector.broadcast %cst_153 : f32 to vector<8x96xf32>
    %444 = arith.addf %443, %442 : vector<8x96xf32>
    %445 = arith.divf %443, %444 : vector<8x96xf32>
    %446 = vector.extract_strided_slice %439 {offsets = [0, 96], sizes = [8, 32], strides = [1, 1]} : vector<8x128xf32> to vector<8x32xf32>
    %447 = math.tanh %446 : vector<8x32xf32>
    %448 = vector.extract_strided_slice %445 {offsets = [0, 32], sizes = [8, 32], strides = [1, 1]} : vector<8x96xf32> to vector<8x32xf32>
    %449 = arith.mulf %448, %429 : vector<8x32xf32>
    %450 = vector.extract_strided_slice %445 {offsets = [0, 0], sizes = [8, 32], strides = [1, 1]} : vector<8x96xf32> to vector<8x32xf32>
    %451 = arith.mulf %450, %447 : vector<8x32xf32>
    %452 = arith.addf %449, %451 : vector<8x32xf32>
    %453 = vector.extract_strided_slice %445 {offsets = [0, 64], sizes = [8, 32], strides = [1, 1]} : vector<8x96xf32> to vector<8x32xf32>
    %454 = math.tanh %452 : vector<8x32xf32>
    %455 = arith.mulf %453, %454 : vector<8x32xf32>
    %456 = vector.extract_strided_slice %455 {offsets = [0, 0], sizes = [8, 16], strides = [1, 1]} : vector<8x32xf32> to vector<8x16xf32>
    %c8_154 = arith.constant 8 : index
    %c0_155 = arith.constant 0 : index
    %457 = vector.load %arg32[%c8_154, %c0_155] : memref<64x32xf32, #tpu.memory_space<vmem>>, vector<8x16xf32>
    tpu.vector_store %arg32[%c8_154, %c0_155], %456 {strides = array<i32>} : memref<64x32xf32, #tpu.memory_space<vmem>>, vector<8x16xf32>,
    %458 = vector.extract_strided_slice %455 {offsets = [0, 16], sizes = [8, 16], strides = [1, 1]} : vector<8x32xf32> to vector<8x16xf32>
    %c48_156 = arith.constant 48 : index
    %c16_157 = arith.constant 16 : index
    %459 = vector.load %arg32[%c48_156, %c16_157] : memref<64x32xf32, #tpu.memory_space<vmem>>, vector<8x16xf32>
    tpu.vector_store %arg32[%c48_156, %c16_157], %458 {strides = array<i32>} : memref<64x32xf32, #tpu.memory_space<vmem>>, vector<8x16xf32>,
    %460 = vector.extract_strided_slice %412 {offsets = [16, 0], sizes = [8, 128], strides = [1, 1]} : vector<64x128xf32> to vector<8x128xf32>
    %cst_158 = arith.constant dense<0.000000e+00> : vector<8x128xf32>
    %461 = tpu.matmul %455, %413, %cst_158 {dimension_numbers = #tpu.dot_dimension_numbers<[1], [0], [0], [1], [0, 0, 1, 1], [], []>} : vector<8x32xf32>, vector<32x128xf32>, vector<8x128xf32> -> vector<8x128xf32>
    %462 = arith.addf %460, %461 : vector<8x128xf32>
    %463 = vector.extract_strided_slice %462 {offsets = [0, 0], sizes = [8, 96], strides = [1, 1]} : vector<8x128xf32> to vector<8x96xf32>
    %464 = arith.negf %463 : vector<8x96xf32>
    %465 = math.exp %464 : vector<8x96xf32>
    %cst_159 = arith.constant 1.000000e+00 : f32
    %466 = vector.broadcast %cst_159 : f32 to vector<8x96xf32>
    %467 = arith.addf %466, %465 : vector<8x96xf32>
    %468 = arith.divf %466, %467 : vector<8x96xf32>
    %469 = vector.extract_strided_slice %462 {offsets = [0, 96], sizes = [8, 32], strides = [1, 1]} : vector<8x128xf32> to vector<8x32xf32>
    %470 = math.tanh %469 : vector<8x32xf32>
    %471 = vector.extract_strided_slice %468 {offsets = [0, 32], sizes = [8, 32], strides = [1, 1]} : vector<8x96xf32> to vector<8x32xf32>
    %472 = arith.mulf %471, %452 : vector<8x32xf32>
    %473 = vector.extract_strided_slice %468 {offsets = [0, 0], sizes = [8, 32], strides = [1, 1]} : vector<8x96xf32> to vector<8x32xf32>
    %474 = arith.mulf %473, %470 : vector<8x32xf32>
    %475 = arith.addf %472, %474 : vector<8x32xf32>
    %476 = vector.extract_strided_slice %468 {offsets = [0, 64], sizes = [8, 32], strides = [1, 1]} : vector<8x96xf32> to vector<8x32xf32>
    %477 = math.tanh %475 : vector<8x32xf32>
    %478 = arith.mulf %476, %477 : vector<8x32xf32>
    %479 = vector.extract_strided_slice %478 {offsets = [0, 0], sizes = [8, 16], strides = [1, 1]} : vector<8x32xf32> to vector<8x16xf32>
    %c16_160 = arith.constant 16 : index
    %c0_161 = arith.constant 0 : index
    %480 = vector.load %arg32[%c16_160, %c0_161] : memref<64x32xf32, #tpu.memory_space<vmem>>, vector<8x16xf32>
    tpu.vector_store %arg32[%c16_160, %c0_161], %479 {strides = array<i32>} : memref<64x32xf32, #tpu.memory_space<vmem>>, vector<8x16xf32>,
    %481 = vector.extract_strided_slice %478 {offsets = [0, 16], sizes = [8, 16], strides = [1, 1]} : vector<8x32xf32> to vector<8x16xf32>
    %c40_162 = arith.constant 40 : index
    %c16_163 = arith.constant 16 : index
    %482 = vector.load %arg32[%c40_162, %c16_163] : memref<64x32xf32, #tpu.memory_space<vmem>>, vector<8x16xf32>
    tpu.vector_store %arg32[%c40_162, %c16_163], %481 {strides = array<i32>} : memref<64x32xf32, #tpu.memory_space<vmem>>, vector<8x16xf32>,
    %483 = vector.extract_strided_slice %412 {offsets = [24, 0], sizes = [8, 128], strides = [1, 1]} : vector<64x128xf32> to vector<8x128xf32>
    %cst_164 = arith.constant dense<0.000000e+00> : vector<8x128xf32>
    %484 = tpu.matmul %478, %413, %cst_164 {dimension_numbers = #tpu.dot_dimension_numbers<[1], [0], [0], [1], [0, 0, 1, 1], [], []>} : vector<8x32xf32>, vector<32x128xf32>, vector<8x128xf32> -> vector<8x128xf32>
    %485 = arith.addf %483, %484 : vector<8x128xf32>
    %486 = vector.extract_strided_slice %485 {offsets = [0, 0], sizes = [8, 96], strides = [1, 1]} : vector<8x128xf32> to vector<8x96xf32>
    %487 = arith.negf %486 : vector<8x96xf32>
    %488 = math.exp %487 : vector<8x96xf32>
    %cst_165 = arith.constant 1.000000e+00 : f32
    %489 = vector.broadcast %cst_165 : f32 to vector<8x96xf32>
    %490 = arith.addf %489, %488 : vector<8x96xf32>
    %491 = arith.divf %489, %490 : vector<8x96xf32>
    %492 = vector.extract_strided_slice %485 {offsets = [0, 96], sizes = [8, 32], strides = [1, 1]} : vector<8x128xf32> to vector<8x32xf32>
    %493 = math.tanh %492 : vector<8x32xf32>
    %494 = vector.extract_strided_slice %491 {offsets = [0, 32], sizes = [8, 32], strides = [1, 1]} : vector<8x96xf32> to vector<8x32xf32>
    %495 = arith.mulf %494, %475 : vector<8x32xf32>
    %496 = vector.extract_strided_slice %491 {offsets = [0, 0], sizes = [8, 32], strides = [1, 1]} : vector<8x96xf32> to vector<8x32xf32>
    %497 = arith.mulf %496, %493 : vector<8x32xf32>
    %498 = arith.addf %495, %497 : vector<8x32xf32>
    %499 = vector.extract_strided_slice %491 {offsets = [0, 64], sizes = [8, 32], strides = [1, 1]} : vector<8x96xf32> to vector<8x32xf32>
    %500 = math.tanh %498 : vector<8x32xf32>
    %501 = arith.mulf %499, %500 : vector<8x32xf32>
    %502 = vector.extract_strided_slice %501 {offsets = [0, 0], sizes = [8, 16], strides = [1, 1]} : vector<8x32xf32> to vector<8x16xf32>
    %c24_166 = arith.constant 24 : index
    %c0_167 = arith.constant 0 : index
    %503 = vector.load %arg32[%c24_166, %c0_167] : memref<64x32xf32, #tpu.memory_space<vmem>>, vector<8x16xf32>
    tpu.vector_store %arg32[%c24_166, %c0_167], %502 {strides = array<i32>} : memref<64x32xf32, #tpu.memory_space<vmem>>, vector<8x16xf32>,
    %504 = vector.extract_strided_slice %501 {offsets = [0, 16], sizes = [8, 16], strides = [1, 1]} : vector<8x32xf32> to vector<8x16xf32>
    %c32_168 = arith.constant 32 : index
    %c16_169 = arith.constant 16 : index
    %505 = vector.load %arg32[%c32_168, %c16_169] : memref<64x32xf32, #tpu.memory_space<vmem>>, vector<8x16xf32>
    tpu.vector_store %arg32[%c32_168, %c16_169], %504 {strides = array<i32>} : memref<64x32xf32, #tpu.memory_space<vmem>>, vector<8x16xf32>,
    %506 = vector.extract_strided_slice %412 {offsets = [32, 0], sizes = [8, 128], strides = [1, 1]} : vector<64x128xf32> to vector<8x128xf32>
    %cst_170 = arith.constant dense<0.000000e+00> : vector<8x128xf32>
    %507 = tpu.matmul %501, %413, %cst_170 {dimension_numbers = #tpu.dot_dimension_numbers<[1], [0], [0], [1], [0, 0, 1, 1], [], []>} : vector<8x32xf32>, vector<32x128xf32>, vector<8x128xf32> -> vector<8x128xf32>
    %508 = arith.addf %506, %507 : vector<8x128xf32>
    %509 = vector.extract_strided_slice %508 {offsets = [0, 0], sizes = [8, 96], strides = [1, 1]} : vector<8x128xf32> to vector<8x96xf32>
    %510 = arith.negf %509 : vector<8x96xf32>
    %511 = math.exp %510 : vector<8x96xf32>
    %cst_171 = arith.constant 1.000000e+00 : f32
    %512 = vector.broadcast %cst_171 : f32 to vector<8x96xf32>
    %513 = arith.addf %512, %511 : vector<8x96xf32>
    %514 = arith.divf %512, %513 : vector<8x96xf32>
    %515 = vector.extract_strided_slice %508 {offsets = [0, 96], sizes = [8, 32], strides = [1, 1]} : vector<8x128xf32> to vector<8x32xf32>
    %516 = math.tanh %515 : vector<8x32xf32>
    %517 = vector.extract_strided_slice %514 {offsets = [0, 32], sizes = [8, 32], strides = [1, 1]} : vector<8x96xf32> to vector<8x32xf32>
    %518 = arith.mulf %517, %498 : vector<8x32xf32>
    %519 = vector.extract_strided_slice %514 {offsets = [0, 0], sizes = [8, 32], strides = [1, 1]} : vector<8x96xf32> to vector<8x32xf32>
    %520 = arith.mulf %519, %516 : vector<8x32xf32>
    %521 = arith.addf %518, %520 : vector<8x32xf32>
    %522 = vector.extract_strided_slice %514 {offsets = [0, 64], sizes = [8, 32], strides = [1, 1]} : vector<8x96xf32> to vector<8x32xf32>
    %523 = math.tanh %521 : vector<8x32xf32>
    %524 = arith.mulf %522, %523 : vector<8x32xf32>
    %525 = vector.extract_strided_slice %524 {offsets = [0, 0], sizes = [8, 16], strides = [1, 1]} : vector<8x32xf32> to vector<8x16xf32>
    %c32_172 = arith.constant 32 : index
    %c0_173 = arith.constant 0 : index
    %526 = vector.load %arg32[%c32_172, %c0_173] : memref<64x32xf32, #tpu.memory_space<vmem>>, vector<8x16xf32>
    tpu.vector_store %arg32[%c32_172, %c0_173], %525 {strides = array<i32>} : memref<64x32xf32, #tpu.memory_space<vmem>>, vector<8x16xf32>,
    %527 = vector.extract_strided_slice %524 {offsets = [0, 16], sizes = [8, 16], strides = [1, 1]} : vector<8x32xf32> to vector<8x16xf32>
    %c24_174 = arith.constant 24 : index
    %c16_175 = arith.constant 16 : index
    %528 = vector.load %arg32[%c24_174, %c16_175] : memref<64x32xf32, #tpu.memory_space<vmem>>, vector<8x16xf32>
    tpu.vector_store %arg32[%c24_174, %c16_175], %527 {strides = array<i32>} : memref<64x32xf32, #tpu.memory_space<vmem>>, vector<8x16xf32>,
    %529 = vector.extract_strided_slice %412 {offsets = [40, 0], sizes = [8, 128], strides = [1, 1]} : vector<64x128xf32> to vector<8x128xf32>
    %cst_176 = arith.constant dense<0.000000e+00> : vector<8x128xf32>
    %530 = tpu.matmul %524, %413, %cst_176 {dimension_numbers = #tpu.dot_dimension_numbers<[1], [0], [0], [1], [0, 0, 1, 1], [], []>} : vector<8x32xf32>, vector<32x128xf32>, vector<8x128xf32> -> vector<8x128xf32>
    %531 = arith.addf %529, %530 : vector<8x128xf32>
    %532 = vector.extract_strided_slice %531 {offsets = [0, 0], sizes = [8, 96], strides = [1, 1]} : vector<8x128xf32> to vector<8x96xf32>
    %533 = arith.negf %532 : vector<8x96xf32>
    %534 = math.exp %533 : vector<8x96xf32>
    %cst_177 = arith.constant 1.000000e+00 : f32
    %535 = vector.broadcast %cst_177 : f32 to vector<8x96xf32>
    %536 = arith.addf %535, %534 : vector<8x96xf32>
    %537 = arith.divf %535, %536 : vector<8x96xf32>
    %538 = vector.extract_strided_slice %531 {offsets = [0, 96], sizes = [8, 32], strides = [1, 1]} : vector<8x128xf32> to vector<8x32xf32>
    %539 = math.tanh %538 : vector<8x32xf32>
    %540 = vector.extract_strided_slice %537 {offsets = [0, 32], sizes = [8, 32], strides = [1, 1]} : vector<8x96xf32> to vector<8x32xf32>
    %541 = arith.mulf %540, %521 : vector<8x32xf32>
    %542 = vector.extract_strided_slice %537 {offsets = [0, 0], sizes = [8, 32], strides = [1, 1]} : vector<8x96xf32> to vector<8x32xf32>
    %543 = arith.mulf %542, %539 : vector<8x32xf32>
    %544 = arith.addf %541, %543 : vector<8x32xf32>
    %545 = vector.extract_strided_slice %537 {offsets = [0, 64], sizes = [8, 32], strides = [1, 1]} : vector<8x96xf32> to vector<8x32xf32>
    %546 = math.tanh %544 : vector<8x32xf32>
    %547 = arith.mulf %545, %546 : vector<8x32xf32>
    %548 = vector.extract_strided_slice %547 {offsets = [0, 0], sizes = [8, 16], strides = [1, 1]} : vector<8x32xf32> to vector<8x16xf32>
    %c40_178 = arith.constant 40 : index
    %c0_179 = arith.constant 0 : index
    %549 = vector.load %arg32[%c40_178, %c0_179] : memref<64x32xf32, #tpu.memory_space<vmem>>, vector<8x16xf32>
    tpu.vector_store %arg32[%c40_178, %c0_179], %548 {strides = array<i32>} : memref<64x32xf32, #tpu.memory_space<vmem>>, vector<8x16xf32>,
    %550 = vector.extract_strided_slice %547 {offsets = [0, 16], sizes = [8, 16], strides = [1, 1]} : vector<8x32xf32> to vector<8x16xf32>
    %c16_180 = arith.constant 16 : index
    %c16_181 = arith.constant 16 : index
    %551 = vector.load %arg32[%c16_180, %c16_181] : memref<64x32xf32, #tpu.memory_space<vmem>>, vector<8x16xf32>
    tpu.vector_store %arg32[%c16_180, %c16_181], %550 {strides = array<i32>} : memref<64x32xf32, #tpu.memory_space<vmem>>, vector<8x16xf32>,
    %552 = vector.extract_strided_slice %412 {offsets = [48, 0], sizes = [8, 128], strides = [1, 1]} : vector<64x128xf32> to vector<8x128xf32>
    %cst_182 = arith.constant dense<0.000000e+00> : vector<8x128xf32>
    %553 = tpu.matmul %547, %413, %cst_182 {dimension_numbers = #tpu.dot_dimension_numbers<[1], [0], [0], [1], [0, 0, 1, 1], [], []>} : vector<8x32xf32>, vector<32x128xf32>, vector<8x128xf32> -> vector<8x128xf32>
    %554 = arith.addf %552, %553 : vector<8x128xf32>
    %555 = vector.extract_strided_slice %554 {offsets = [0, 0], sizes = [8, 96], strides = [1, 1]} : vector<8x128xf32> to vector<8x96xf32>
    %556 = arith.negf %555 : vector<8x96xf32>
    %557 = math.exp %556 : vector<8x96xf32>
    %cst_183 = arith.constant 1.000000e+00 : f32
    %558 = vector.broadcast %cst_183 : f32 to vector<8x96xf32>
    %559 = arith.addf %558, %557 : vector<8x96xf32>
    %560 = arith.divf %558, %559 : vector<8x96xf32>
    %561 = vector.extract_strided_slice %554 {offsets = [0, 96], sizes = [8, 32], strides = [1, 1]} : vector<8x128xf32> to vector<8x32xf32>
    %562 = math.tanh %561 : vector<8x32xf32>
    %563 = vector.extract_strided_slice %560 {offsets = [0, 32], sizes = [8, 32], strides = [1, 1]} : vector<8x96xf32> to vector<8x32xf32>
    %564 = arith.mulf %563, %544 : vector<8x32xf32>
    %565 = vector.extract_strided_slice %560 {offsets = [0, 0], sizes = [8, 32], strides = [1, 1]} : vector<8x96xf32> to vector<8x32xf32>
    %566 = arith.mulf %565, %562 : vector<8x32xf32>
    %567 = arith.addf %564, %566 : vector<8x32xf32>
    %568 = vector.extract_strided_slice %560 {offsets = [0, 64], sizes = [8, 32], strides = [1, 1]} : vector<8x96xf32> to vector<8x32xf32>
    %569 = math.tanh %567 : vector<8x32xf32>
    %570 = arith.mulf %568, %569 : vector<8x32xf32>
    %571 = vector.extract_strided_slice %570 {offsets = [0, 0], sizes = [8, 16], strides = [1, 1]} : vector<8x32xf32> to vector<8x16xf32>
    %c48_184 = arith.constant 48 : index
    %c0_185 = arith.constant 0 : index
    %572 = vector.load %arg32[%c48_184, %c0_185] : memref<64x32xf32, #tpu.memory_space<vmem>>, vector<8x16xf32>
    tpu.vector_store %arg32[%c48_184, %c0_185], %571 {strides = array<i32>} : memref<64x32xf32, #tpu.memory_space<vmem>>, vector<8x16xf32>,
    %573 = vector.extract_strided_slice %570 {offsets = [0, 16], sizes = [8, 16], strides = [1, 1]} : vector<8x32xf32> to vector<8x16xf32>
    %c8_186 = arith.constant 8 : index
    %c16_187 = arith.constant 16 : index
    %574 = vector.load %arg32[%c8_186, %c16_187] : memref<64x32xf32, #tpu.memory_space<vmem>>, vector<8x16xf32>
    tpu.vector_store %arg32[%c8_186, %c16_187], %573 {strides = array<i32>} : memref<64x32xf32, #tpu.memory_space<vmem>>, vector<8x16xf32>,
    %575 = vector.extract_strided_slice %412 {offsets = [56, 0], sizes = [8, 128], strides = [1, 1]} : vector<64x128xf32> to vector<8x128xf32>
    %cst_188 = arith.constant dense<0.000000e+00> : vector<8x128xf32>
    %576 = tpu.matmul %570, %413, %cst_188 {dimension_numbers = #tpu.dot_dimension_numbers<[1], [0], [0], [1], [0, 0, 1, 1], [], []>} : vector<8x32xf32>, vector<32x128xf32>, vector<8x128xf32> -> vector<8x128xf32>
    %577 = arith.addf %575, %576 : vector<8x128xf32>
    %578 = vector.extract_strided_slice %577 {offsets = [0, 0], sizes = [8, 96], strides = [1, 1]} : vector<8x128xf32> to vector<8x96xf32>
    %579 = arith.negf %578 : vector<8x96xf32>
    %580 = math.exp %579 : vector<8x96xf32>
    %cst_189 = arith.constant 1.000000e+00 : f32
    %581 = vector.broadcast %cst_189 : f32 to vector<8x96xf32>
    %582 = arith.addf %581, %580 : vector<8x96xf32>
    %583 = arith.divf %581, %582 : vector<8x96xf32>
    %584 = vector.extract_strided_slice %577 {offsets = [0, 96], sizes = [8, 32], strides = [1, 1]} : vector<8x128xf32> to vector<8x32xf32>
    %585 = math.tanh %584 : vector<8x32xf32>
    %586 = vector.extract_strided_slice %583 {offsets = [0, 32], sizes = [8, 32], strides = [1, 1]} : vector<8x96xf32> to vector<8x32xf32>
    %587 = arith.mulf %586, %567 : vector<8x32xf32>
    %588 = vector.extract_strided_slice %583 {offsets = [0, 0], sizes = [8, 32], strides = [1, 1]} : vector<8x96xf32> to vector<8x32xf32>
    %589 = arith.mulf %588, %585 : vector<8x32xf32>
    %590 = arith.addf %587, %589 : vector<8x32xf32>
    %591 = vector.extract_strided_slice %583 {offsets = [0, 64], sizes = [8, 32], strides = [1, 1]} : vector<8x96xf32> to vector<8x32xf32>
    %592 = math.tanh %590 : vector<8x32xf32>
    %593 = arith.mulf %591, %592 : vector<8x32xf32>
    %594 = vector.extract_strided_slice %593 {offsets = [0, 0], sizes = [8, 16], strides = [1, 1]} : vector<8x32xf32> to vector<8x16xf32>
    %c56_190 = arith.constant 56 : index
    %c0_191 = arith.constant 0 : index
    %595 = vector.load %arg32[%c56_190, %c0_191] : memref<64x32xf32, #tpu.memory_space<vmem>>, vector<8x16xf32>
    tpu.vector_store %arg32[%c56_190, %c0_191], %594 {strides = array<i32>} : memref<64x32xf32, #tpu.memory_space<vmem>>, vector<8x16xf32>,
    %596 = vector.extract_strided_slice %593 {offsets = [0, 16], sizes = [8, 16], strides = [1, 1]} : vector<8x32xf32> to vector<8x16xf32>
    %c0_192 = arith.constant 0 : index
    %c16_193 = arith.constant 16 : index
    %597 = vector.load %arg32[%c0_192, %c16_193] : memref<64x32xf32, #tpu.memory_space<vmem>>, vector<8x16xf32>
    tpu.vector_store %arg32[%c0_192, %c16_193], %596 {strides = array<i32>} : memref<64x32xf32, #tpu.memory_space<vmem>>, vector<8x16xf32>,
    %c0_194 = arith.constant 0 : index
    %c0_195 = arith.constant 0 : index
    %598 = vector.load %arg32[%c0_194, %c0_195] : memref<64x32xf32, #tpu.memory_space<vmem>>, vector<64x32xf32>
    %c0_196 = arith.constant 0 : index
    %c0_197 = arith.constant 0 : index
    %599 = vector.load %arg21[%c0_196, %c0_197] : memref<1x32xf32, #tpu.memory_space<vmem>>, vector<1x32xf32>
    %600 = vector.broadcast %599 : vector<1x32xf32> to vector<64x32xf32>
    %601 = arith.mulf %598, %600 : vector<64x32xf32>
    %c0_198 = arith.constant 0 : index
    %c0_199 = arith.constant 0 : index
    %602 = vector.load %arg22[%c0_198, %c0_199] : memref<1x32xf32, #tpu.memory_space<vmem>>, vector<1x32xf32>
    %603 = vector.broadcast %602 : vector<1x32xf32> to vector<64x32xf32>
    %604 = arith.addf %601, %603 : vector<64x32xf32>
    %605 = vector.extract_strided_slice %604 {offsets = [56, 0], sizes = [8, 32], strides = [1, 1]} : vector<64x32xf32> to vector<8x32xf32>
    %606 = vector.extract_strided_slice %604 {offsets = [48, 0], sizes = [8, 32], strides = [1, 1]} : vector<64x32xf32> to vector<8x32xf32>
    %607 = vector.extract_strided_slice %604 {offsets = [40, 0], sizes = [8, 32], strides = [1, 1]} : vector<64x32xf32> to vector<8x32xf32>
    %608 = vector.extract_strided_slice %604 {offsets = [32, 0], sizes = [8, 32], strides = [1, 1]} : vector<64x32xf32> to vector<8x32xf32>
    %609 = vector.extract_strided_slice %604 {offsets = [24, 0], sizes = [8, 32], strides = [1, 1]} : vector<64x32xf32> to vector<8x32xf32>
    %610 = vector.extract_strided_slice %604 {offsets = [16, 0], sizes = [8, 32], strides = [1, 1]} : vector<64x32xf32> to vector<8x32xf32>
    %611 = vector.extract_strided_slice %604 {offsets = [8, 0], sizes = [8, 32], strides = [1, 1]} : vector<64x32xf32> to vector<8x32xf32>
    %612 = vector.extract_strided_slice %604 {offsets = [0, 0], sizes = [8, 32], strides = [1, 1]} : vector<64x32xf32> to vector<8x32xf32>
    %613 = tpu.concatenate %605, %606, %607, %608, %609, %610, %611, %612 in 0 : vector<8x32xf32>, vector<8x32xf32>, vector<8x32xf32>, vector<8x32xf32>, vector<8x32xf32>, vector<8x32xf32>, vector<8x32xf32>, vector<8x32xf32> -> vector<64x32xf32>
    %614 = tpu.concatenate %604, %613 in 1 : vector<64x32xf32>, vector<64x32xf32> -> vector<64x64xf32>
    %c0_200 = arith.constant 0 : index
    %c0_201 = arith.constant 0 : index
    %615 = vector.load %arg23[%c0_200, %c0_201] : memref<64x128xf32, #tpu.memory_space<vmem>>, vector<64x128xf32>
    %cst_202 = arith.constant dense<0.000000e+00> : vector<64x128xf32>
    %616 = tpu.matmul %614, %615, %cst_202 {dimension_numbers = #tpu.dot_dimension_numbers<[1], [0], [0], [1], [0, 0, 1, 1], [], []>} : vector<64x64xf32>, vector<64x128xf32>, vector<64x128xf32> -> vector<64x128xf32>
    %c0_203 = arith.constant 0 : index
    %c0_204 = arith.constant 0 : index
    %617 = vector.load %arg24[%c0_203, %c0_204] : memref<1x128xf32, #tpu.memory_space<vmem>>, vector<1x128xf32>
    %618 = vector.broadcast %617 : vector<1x128xf32> to vector<64x128xf32>
    %619 = arith.addf %616, %618 : vector<64x128xf32>
    %c0_205 = arith.constant 0 : index
    %c0_206 = arith.constant 0 : index
    %620 = vector.load %arg25[%c0_205, %c0_206] : memref<32x128xf32, #tpu.memory_space<vmem>>, vector<32x128xf32>
    %621 = vector.extract_strided_slice %619 {offsets = [0, 0], sizes = [8, 128], strides = [1, 1]} : vector<64x128xf32> to vector<8x128xf32>
    %cst_207 = arith.constant dense<0.000000e+00> : vector<8x128xf32>
    %622 = tpu.matmul %593, %620, %cst_207 {dimension_numbers = #tpu.dot_dimension_numbers<[1], [0], [0], [1], [0, 0, 1, 1], [], []>} : vector<8x32xf32>, vector<32x128xf32>, vector<8x128xf32> -> vector<8x128xf32>
    %623 = arith.addf %621, %622 : vector<8x128xf32>
    %624 = vector.extract_strided_slice %623 {offsets = [0, 0], sizes = [8, 96], strides = [1, 1]} : vector<8x128xf32> to vector<8x96xf32>
    %625 = arith.negf %624 : vector<8x96xf32>
    %626 = math.exp %625 : vector<8x96xf32>
    %cst_208 = arith.constant 1.000000e+00 : f32
    %627 = vector.broadcast %cst_208 : f32 to vector<8x96xf32>
    %628 = arith.addf %627, %626 : vector<8x96xf32>
    %629 = arith.divf %627, %628 : vector<8x96xf32>
    %630 = vector.extract_strided_slice %623 {offsets = [0, 96], sizes = [8, 32], strides = [1, 1]} : vector<8x128xf32> to vector<8x32xf32>
    %631 = math.tanh %630 : vector<8x32xf32>
    %632 = vector.extract_strided_slice %629 {offsets = [0, 32], sizes = [8, 32], strides = [1, 1]} : vector<8x96xf32> to vector<8x32xf32>
    %633 = arith.mulf %632, %590 : vector<8x32xf32>
    %634 = vector.extract_strided_slice %629 {offsets = [0, 0], sizes = [8, 32], strides = [1, 1]} : vector<8x96xf32> to vector<8x32xf32>
    %635 = arith.mulf %634, %631 : vector<8x32xf32>
    %636 = arith.addf %633, %635 : vector<8x32xf32>
    %637 = vector.extract_strided_slice %629 {offsets = [0, 64], sizes = [8, 32], strides = [1, 1]} : vector<8x96xf32> to vector<8x32xf32>
    %638 = math.tanh %636 : vector<8x32xf32>
    %639 = arith.mulf %637, %638 : vector<8x32xf32>
    %640 = vector.extract_strided_slice %639 {offsets = [0, 0], sizes = [8, 16], strides = [1, 1]} : vector<8x32xf32> to vector<8x16xf32>
    %c0_209 = arith.constant 0 : index
    %c0_210 = arith.constant 0 : index
    %641 = vector.load %arg33[%c0_209, %c0_210] : memref<64x32xf32, #tpu.memory_space<vmem>>, vector<8x16xf32>
    tpu.vector_store %arg33[%c0_209, %c0_210], %640 {strides = array<i32>} : memref<64x32xf32, #tpu.memory_space<vmem>>, vector<8x16xf32>,
    %642 = vector.extract_strided_slice %639 {offsets = [0, 16], sizes = [8, 16], strides = [1, 1]} : vector<8x32xf32> to vector<8x16xf32>
    %c56_211 = arith.constant 56 : index
    %c16_212 = arith.constant 16 : index
    %643 = vector.load %arg33[%c56_211, %c16_212] : memref<64x32xf32, #tpu.memory_space<vmem>>, vector<8x16xf32>
    tpu.vector_store %arg33[%c56_211, %c16_212], %642 {strides = array<i32>} : memref<64x32xf32, #tpu.memory_space<vmem>>, vector<8x16xf32>,
    %644 = vector.extract_strided_slice %619 {offsets = [8, 0], sizes = [8, 128], strides = [1, 1]} : vector<64x128xf32> to vector<8x128xf32>
    %cst_213 = arith.constant dense<0.000000e+00> : vector<8x128xf32>
    %645 = tpu.matmul %639, %620, %cst_213 {dimension_numbers = #tpu.dot_dimension_numbers<[1], [0], [0], [1], [0, 0, 1, 1], [], []>} : vector<8x32xf32>, vector<32x128xf32>, vector<8x128xf32> -> vector<8x128xf32>
    %646 = arith.addf %644, %645 : vector<8x128xf32>
    %647 = vector.extract_strided_slice %646 {offsets = [0, 0], sizes = [8, 96], strides = [1, 1]} : vector<8x128xf32> to vector<8x96xf32>
    %648 = arith.negf %647 : vector<8x96xf32>
    %649 = math.exp %648 : vector<8x96xf32>
    %cst_214 = arith.constant 1.000000e+00 : f32
    %650 = vector.broadcast %cst_214 : f32 to vector<8x96xf32>
    %651 = arith.addf %650, %649 : vector<8x96xf32>
    %652 = arith.divf %650, %651 : vector<8x96xf32>
    %653 = vector.extract_strided_slice %646 {offsets = [0, 96], sizes = [8, 32], strides = [1, 1]} : vector<8x128xf32> to vector<8x32xf32>
    %654 = math.tanh %653 : vector<8x32xf32>
    %655 = vector.extract_strided_slice %652 {offsets = [0, 32], sizes = [8, 32], strides = [1, 1]} : vector<8x96xf32> to vector<8x32xf32>
    %656 = arith.mulf %655, %636 : vector<8x32xf32>
    %657 = vector.extract_strided_slice %652 {offsets = [0, 0], sizes = [8, 32], strides = [1, 1]} : vector<8x96xf32> to vector<8x32xf32>
    %658 = arith.mulf %657, %654 : vector<8x32xf32>
    %659 = arith.addf %656, %658 : vector<8x32xf32>
    %660 = vector.extract_strided_slice %652 {offsets = [0, 64], sizes = [8, 32], strides = [1, 1]} : vector<8x96xf32> to vector<8x32xf32>
    %661 = math.tanh %659 : vector<8x32xf32>
    %662 = arith.mulf %660, %661 : vector<8x32xf32>
    %663 = vector.extract_strided_slice %662 {offsets = [0, 0], sizes = [8, 16], strides = [1, 1]} : vector<8x32xf32> to vector<8x16xf32>
    %c8_215 = arith.constant 8 : index
    %c0_216 = arith.constant 0 : index
    %664 = vector.load %arg33[%c8_215, %c0_216] : memref<64x32xf32, #tpu.memory_space<vmem>>, vector<8x16xf32>
    tpu.vector_store %arg33[%c8_215, %c0_216], %663 {strides = array<i32>} : memref<64x32xf32, #tpu.memory_space<vmem>>, vector<8x16xf32>,
    %665 = vector.extract_strided_slice %662 {offsets = [0, 16], sizes = [8, 16], strides = [1, 1]} : vector<8x32xf32> to vector<8x16xf32>
    %c48_217 = arith.constant 48 : index
    %c16_218 = arith.constant 16 : index
    %666 = vector.load %arg33[%c48_217, %c16_218] : memref<64x32xf32, #tpu.memory_space<vmem>>, vector<8x16xf32>
    tpu.vector_store %arg33[%c48_217, %c16_218], %665 {strides = array<i32>} : memref<64x32xf32, #tpu.memory_space<vmem>>, vector<8x16xf32>,
    %667 = vector.extract_strided_slice %619 {offsets = [16, 0], sizes = [8, 128], strides = [1, 1]} : vector<64x128xf32> to vector<8x128xf32>
    %cst_219 = arith.constant dense<0.000000e+00> : vector<8x128xf32>
    %668 = tpu.matmul %662, %620, %cst_219 {dimension_numbers = #tpu.dot_dimension_numbers<[1], [0], [0], [1], [0, 0, 1, 1], [], []>} : vector<8x32xf32>, vector<32x128xf32>, vector<8x128xf32> -> vector<8x128xf32>
    %669 = arith.addf %667, %668 : vector<8x128xf32>
    %670 = vector.extract_strided_slice %669 {offsets = [0, 0], sizes = [8, 96], strides = [1, 1]} : vector<8x128xf32> to vector<8x96xf32>
    %671 = arith.negf %670 : vector<8x96xf32>
    %672 = math.exp %671 : vector<8x96xf32>
    %cst_220 = arith.constant 1.000000e+00 : f32
    %673 = vector.broadcast %cst_220 : f32 to vector<8x96xf32>
    %674 = arith.addf %673, %672 : vector<8x96xf32>
    %675 = arith.divf %673, %674 : vector<8x96xf32>
    %676 = vector.extract_strided_slice %669 {offsets = [0, 96], sizes = [8, 32], strides = [1, 1]} : vector<8x128xf32> to vector<8x32xf32>
    %677 = math.tanh %676 : vector<8x32xf32>
    %678 = vector.extract_strided_slice %675 {offsets = [0, 32], sizes = [8, 32], strides = [1, 1]} : vector<8x96xf32> to vector<8x32xf32>
    %679 = arith.mulf %678, %659 : vector<8x32xf32>
    %680 = vector.extract_strided_slice %675 {offsets = [0, 0], sizes = [8, 32], strides = [1, 1]} : vector<8x96xf32> to vector<8x32xf32>
    %681 = arith.mulf %680, %677 : vector<8x32xf32>
    %682 = arith.addf %679, %681 : vector<8x32xf32>
    %683 = vector.extract_strided_slice %675 {offsets = [0, 64], sizes = [8, 32], strides = [1, 1]} : vector<8x96xf32> to vector<8x32xf32>
    %684 = math.tanh %682 : vector<8x32xf32>
    %685 = arith.mulf %683, %684 : vector<8x32xf32>
    %686 = vector.extract_strided_slice %685 {offsets = [0, 0], sizes = [8, 16], strides = [1, 1]} : vector<8x32xf32> to vector<8x16xf32>
    %c16_221 = arith.constant 16 : index
    %c0_222 = arith.constant 0 : index
    %687 = vector.load %arg33[%c16_221, %c0_222] : memref<64x32xf32, #tpu.memory_space<vmem>>, vector<8x16xf32>
    tpu.vector_store %arg33[%c16_221, %c0_222], %686 {strides = array<i32>} : memref<64x32xf32, #tpu.memory_space<vmem>>, vector<8x16xf32>,
    %688 = vector.extract_strided_slice %685 {offsets = [0, 16], sizes = [8, 16], strides = [1, 1]} : vector<8x32xf32> to vector<8x16xf32>
    %c40_223 = arith.constant 40 : index
    %c16_224 = arith.constant 16 : index
    %689 = vector.load %arg33[%c40_223, %c16_224] : memref<64x32xf32, #tpu.memory_space<vmem>>, vector<8x16xf32>
    tpu.vector_store %arg33[%c40_223, %c16_224], %688 {strides = array<i32>} : memref<64x32xf32, #tpu.memory_space<vmem>>, vector<8x16xf32>,
    %690 = vector.extract_strided_slice %619 {offsets = [24, 0], sizes = [8, 128], strides = [1, 1]} : vector<64x128xf32> to vector<8x128xf32>
    %cst_225 = arith.constant dense<0.000000e+00> : vector<8x128xf32>
    %691 = tpu.matmul %685, %620, %cst_225 {dimension_numbers = #tpu.dot_dimension_numbers<[1], [0], [0], [1], [0, 0, 1, 1], [], []>} : vector<8x32xf32>, vector<32x128xf32>, vector<8x128xf32> -> vector<8x128xf32>
    %692 = arith.addf %690, %691 : vector<8x128xf32>
    %693 = vector.extract_strided_slice %692 {offsets = [0, 0], sizes = [8, 96], strides = [1, 1]} : vector<8x128xf32> to vector<8x96xf32>
    %694 = arith.negf %693 : vector<8x96xf32>
    %695 = math.exp %694 : vector<8x96xf32>
    %cst_226 = arith.constant 1.000000e+00 : f32
    %696 = vector.broadcast %cst_226 : f32 to vector<8x96xf32>
    %697 = arith.addf %696, %695 : vector<8x96xf32>
    %698 = arith.divf %696, %697 : vector<8x96xf32>
    %699 = vector.extract_strided_slice %692 {offsets = [0, 96], sizes = [8, 32], strides = [1, 1]} : vector<8x128xf32> to vector<8x32xf32>
    %700 = math.tanh %699 : vector<8x32xf32>
    %701 = vector.extract_strided_slice %698 {offsets = [0, 32], sizes = [8, 32], strides = [1, 1]} : vector<8x96xf32> to vector<8x32xf32>
    %702 = arith.mulf %701, %682 : vector<8x32xf32>
    %703 = vector.extract_strided_slice %698 {offsets = [0, 0], sizes = [8, 32], strides = [1, 1]} : vector<8x96xf32> to vector<8x32xf32>
    %704 = arith.mulf %703, %700 : vector<8x32xf32>
    %705 = arith.addf %702, %704 : vector<8x32xf32>
    %706 = vector.extract_strided_slice %698 {offsets = [0, 64], sizes = [8, 32], strides = [1, 1]} : vector<8x96xf32> to vector<8x32xf32>
    %707 = math.tanh %705 : vector<8x32xf32>
    %708 = arith.mulf %706, %707 : vector<8x32xf32>
    %709 = vector.extract_strided_slice %708 {offsets = [0, 0], sizes = [8, 16], strides = [1, 1]} : vector<8x32xf32> to vector<8x16xf32>
    %c24_227 = arith.constant 24 : index
    %c0_228 = arith.constant 0 : index
    %710 = vector.load %arg33[%c24_227, %c0_228] : memref<64x32xf32, #tpu.memory_space<vmem>>, vector<8x16xf32>
    tpu.vector_store %arg33[%c24_227, %c0_228], %709 {strides = array<i32>} : memref<64x32xf32, #tpu.memory_space<vmem>>, vector<8x16xf32>,
    %711 = vector.extract_strided_slice %708 {offsets = [0, 16], sizes = [8, 16], strides = [1, 1]} : vector<8x32xf32> to vector<8x16xf32>
    %c32_229 = arith.constant 32 : index
    %c16_230 = arith.constant 16 : index
    %712 = vector.load %arg33[%c32_229, %c16_230] : memref<64x32xf32, #tpu.memory_space<vmem>>, vector<8x16xf32>
    tpu.vector_store %arg33[%c32_229, %c16_230], %711 {strides = array<i32>} : memref<64x32xf32, #tpu.memory_space<vmem>>, vector<8x16xf32>,
    %713 = vector.extract_strided_slice %619 {offsets = [32, 0], sizes = [8, 128], strides = [1, 1]} : vector<64x128xf32> to vector<8x128xf32>
    %cst_231 = arith.constant dense<0.000000e+00> : vector<8x128xf32>
    %714 = tpu.matmul %708, %620, %cst_231 {dimension_numbers = #tpu.dot_dimension_numbers<[1], [0], [0], [1], [0, 0, 1, 1], [], []>} : vector<8x32xf32>, vector<32x128xf32>, vector<8x128xf32> -> vector<8x128xf32>
    %715 = arith.addf %713, %714 : vector<8x128xf32>
    %716 = vector.extract_strided_slice %715 {offsets = [0, 0], sizes = [8, 96], strides = [1, 1]} : vector<8x128xf32> to vector<8x96xf32>
    %717 = arith.negf %716 : vector<8x96xf32>
    %718 = math.exp %717 : vector<8x96xf32>
    %cst_232 = arith.constant 1.000000e+00 : f32
    %719 = vector.broadcast %cst_232 : f32 to vector<8x96xf32>
    %720 = arith.addf %719, %718 : vector<8x96xf32>
    %721 = arith.divf %719, %720 : vector<8x96xf32>
    %722 = vector.extract_strided_slice %715 {offsets = [0, 96], sizes = [8, 32], strides = [1, 1]} : vector<8x128xf32> to vector<8x32xf32>
    %723 = math.tanh %722 : vector<8x32xf32>
    %724 = vector.extract_strided_slice %721 {offsets = [0, 32], sizes = [8, 32], strides = [1, 1]} : vector<8x96xf32> to vector<8x32xf32>
    %725 = arith.mulf %724, %705 : vector<8x32xf32>
    %726 = vector.extract_strided_slice %721 {offsets = [0, 0], sizes = [8, 32], strides = [1, 1]} : vector<8x96xf32> to vector<8x32xf32>
    %727 = arith.mulf %726, %723 : vector<8x32xf32>
    %728 = arith.addf %725, %727 : vector<8x32xf32>
    %729 = vector.extract_strided_slice %721 {offsets = [0, 64], sizes = [8, 32], strides = [1, 1]} : vector<8x96xf32> to vector<8x32xf32>
    %730 = math.tanh %728 : vector<8x32xf32>
    %731 = arith.mulf %729, %730 : vector<8x32xf32>
    %732 = vector.extract_strided_slice %731 {offsets = [0, 0], sizes = [8, 16], strides = [1, 1]} : vector<8x32xf32> to vector<8x16xf32>
    %c32_233 = arith.constant 32 : index
    %c0_234 = arith.constant 0 : index
    %733 = vector.load %arg33[%c32_233, %c0_234] : memref<64x32xf32, #tpu.memory_space<vmem>>, vector<8x16xf32>
    tpu.vector_store %arg33[%c32_233, %c0_234], %732 {strides = array<i32>} : memref<64x32xf32, #tpu.memory_space<vmem>>, vector<8x16xf32>,
    %734 = vector.extract_strided_slice %731 {offsets = [0, 16], sizes = [8, 16], strides = [1, 1]} : vector<8x32xf32> to vector<8x16xf32>
    %c24_235 = arith.constant 24 : index
    %c16_236 = arith.constant 16 : index
    %735 = vector.load %arg33[%c24_235, %c16_236] : memref<64x32xf32, #tpu.memory_space<vmem>>, vector<8x16xf32>
    tpu.vector_store %arg33[%c24_235, %c16_236], %734 {strides = array<i32>} : memref<64x32xf32, #tpu.memory_space<vmem>>, vector<8x16xf32>,
    %736 = vector.extract_strided_slice %619 {offsets = [40, 0], sizes = [8, 128], strides = [1, 1]} : vector<64x128xf32> to vector<8x128xf32>
    %cst_237 = arith.constant dense<0.000000e+00> : vector<8x128xf32>
    %737 = tpu.matmul %731, %620, %cst_237 {dimension_numbers = #tpu.dot_dimension_numbers<[1], [0], [0], [1], [0, 0, 1, 1], [], []>} : vector<8x32xf32>, vector<32x128xf32>, vector<8x128xf32> -> vector<8x128xf32>
    %738 = arith.addf %736, %737 : vector<8x128xf32>
    %739 = vector.extract_strided_slice %738 {offsets = [0, 0], sizes = [8, 96], strides = [1, 1]} : vector<8x128xf32> to vector<8x96xf32>
    %740 = arith.negf %739 : vector<8x96xf32>
    %741 = math.exp %740 : vector<8x96xf32>
    %cst_238 = arith.constant 1.000000e+00 : f32
    %742 = vector.broadcast %cst_238 : f32 to vector<8x96xf32>
    %743 = arith.addf %742, %741 : vector<8x96xf32>
    %744 = arith.divf %742, %743 : vector<8x96xf32>
    %745 = vector.extract_strided_slice %738 {offsets = [0, 96], sizes = [8, 32], strides = [1, 1]} : vector<8x128xf32> to vector<8x32xf32>
    %746 = math.tanh %745 : vector<8x32xf32>
    %747 = vector.extract_strided_slice %744 {offsets = [0, 32], sizes = [8, 32], strides = [1, 1]} : vector<8x96xf32> to vector<8x32xf32>
    %748 = arith.mulf %747, %728 : vector<8x32xf32>
    %749 = vector.extract_strided_slice %744 {offsets = [0, 0], sizes = [8, 32], strides = [1, 1]} : vector<8x96xf32> to vector<8x32xf32>
    %750 = arith.mulf %749, %746 : vector<8x32xf32>
    %751 = arith.addf %748, %750 : vector<8x32xf32>
    %752 = vector.extract_strided_slice %744 {offsets = [0, 64], sizes = [8, 32], strides = [1, 1]} : vector<8x96xf32> to vector<8x32xf32>
    %753 = math.tanh %751 : vector<8x32xf32>
    %754 = arith.mulf %752, %753 : vector<8x32xf32>
    %755 = vector.extract_strided_slice %754 {offsets = [0, 0], sizes = [8, 16], strides = [1, 1]} : vector<8x32xf32> to vector<8x16xf32>
    %c40_239 = arith.constant 40 : index
    %c0_240 = arith.constant 0 : index
    %756 = vector.load %arg33[%c40_239, %c0_240] : memref<64x32xf32, #tpu.memory_space<vmem>>, vector<8x16xf32>
    tpu.vector_store %arg33[%c40_239, %c0_240], %755 {strides = array<i32>} : memref<64x32xf32, #tpu.memory_space<vmem>>, vector<8x16xf32>,
    %757 = vector.extract_strided_slice %754 {offsets = [0, 16], sizes = [8, 16], strides = [1, 1]} : vector<8x32xf32> to vector<8x16xf32>
    %c16_241 = arith.constant 16 : index
    %c16_242 = arith.constant 16 : index
    %758 = vector.load %arg33[%c16_241, %c16_242] : memref<64x32xf32, #tpu.memory_space<vmem>>, vector<8x16xf32>
    tpu.vector_store %arg33[%c16_241, %c16_242], %757 {strides = array<i32>} : memref<64x32xf32, #tpu.memory_space<vmem>>, vector<8x16xf32>,
    %759 = vector.extract_strided_slice %619 {offsets = [48, 0], sizes = [8, 128], strides = [1, 1]} : vector<64x128xf32> to vector<8x128xf32>
    %cst_243 = arith.constant dense<0.000000e+00> : vector<8x128xf32>
    %760 = tpu.matmul %754, %620, %cst_243 {dimension_numbers = #tpu.dot_dimension_numbers<[1], [0], [0], [1], [0, 0, 1, 1], [], []>} : vector<8x32xf32>, vector<32x128xf32>, vector<8x128xf32> -> vector<8x128xf32>
    %761 = arith.addf %759, %760 : vector<8x128xf32>
    %762 = vector.extract_strided_slice %761 {offsets = [0, 0], sizes = [8, 96], strides = [1, 1]} : vector<8x128xf32> to vector<8x96xf32>
    %763 = arith.negf %762 : vector<8x96xf32>
    %764 = math.exp %763 : vector<8x96xf32>
    %cst_244 = arith.constant 1.000000e+00 : f32
    %765 = vector.broadcast %cst_244 : f32 to vector<8x96xf32>
    %766 = arith.addf %765, %764 : vector<8x96xf32>
    %767 = arith.divf %765, %766 : vector<8x96xf32>
    %768 = vector.extract_strided_slice %761 {offsets = [0, 96], sizes = [8, 32], strides = [1, 1]} : vector<8x128xf32> to vector<8x32xf32>
    %769 = math.tanh %768 : vector<8x32xf32>
    %770 = vector.extract_strided_slice %767 {offsets = [0, 32], sizes = [8, 32], strides = [1, 1]} : vector<8x96xf32> to vector<8x32xf32>
    %771 = arith.mulf %770, %751 : vector<8x32xf32>
    %772 = vector.extract_strided_slice %767 {offsets = [0, 0], sizes = [8, 32], strides = [1, 1]} : vector<8x96xf32> to vector<8x32xf32>
    %773 = arith.mulf %772, %769 : vector<8x32xf32>
    %774 = arith.addf %771, %773 : vector<8x32xf32>
    %775 = vector.extract_strided_slice %767 {offsets = [0, 64], sizes = [8, 32], strides = [1, 1]} : vector<8x96xf32> to vector<8x32xf32>
    %776 = math.tanh %774 : vector<8x32xf32>
    %777 = arith.mulf %775, %776 : vector<8x32xf32>
    %778 = vector.extract_strided_slice %777 {offsets = [0, 0], sizes = [8, 16], strides = [1, 1]} : vector<8x32xf32> to vector<8x16xf32>
    %c48_245 = arith.constant 48 : index
    %c0_246 = arith.constant 0 : index
    %779 = vector.load %arg33[%c48_245, %c0_246] : memref<64x32xf32, #tpu.memory_space<vmem>>, vector<8x16xf32>
    tpu.vector_store %arg33[%c48_245, %c0_246], %778 {strides = array<i32>} : memref<64x32xf32, #tpu.memory_space<vmem>>, vector<8x16xf32>,
    %780 = vector.extract_strided_slice %777 {offsets = [0, 16], sizes = [8, 16], strides = [1, 1]} : vector<8x32xf32> to vector<8x16xf32>
    %c8_247 = arith.constant 8 : index
    %c16_248 = arith.constant 16 : index
    %781 = vector.load %arg33[%c8_247, %c16_248] : memref<64x32xf32, #tpu.memory_space<vmem>>, vector<8x16xf32>
    tpu.vector_store %arg33[%c8_247, %c16_248], %780 {strides = array<i32>} : memref<64x32xf32, #tpu.memory_space<vmem>>, vector<8x16xf32>,
    %782 = vector.extract_strided_slice %619 {offsets = [56, 0], sizes = [8, 128], strides = [1, 1]} : vector<64x128xf32> to vector<8x128xf32>
    %cst_249 = arith.constant dense<0.000000e+00> : vector<8x128xf32>
    %783 = tpu.matmul %777, %620, %cst_249 {dimension_numbers = #tpu.dot_dimension_numbers<[1], [0], [0], [1], [0, 0, 1, 1], [], []>} : vector<8x32xf32>, vector<32x128xf32>, vector<8x128xf32> -> vector<8x128xf32>
    %784 = arith.addf %782, %783 : vector<8x128xf32>
    %785 = vector.extract_strided_slice %784 {offsets = [0, 0], sizes = [8, 96], strides = [1, 1]} : vector<8x128xf32> to vector<8x96xf32>
    %786 = arith.negf %785 : vector<8x96xf32>
    %787 = math.exp %786 : vector<8x96xf32>
    %cst_250 = arith.constant 1.000000e+00 : f32
    %788 = vector.broadcast %cst_250 : f32 to vector<8x96xf32>
    %789 = arith.addf %788, %787 : vector<8x96xf32>
    %790 = arith.divf %788, %789 : vector<8x96xf32>
    %791 = vector.extract_strided_slice %784 {offsets = [0, 96], sizes = [8, 32], strides = [1, 1]} : vector<8x128xf32> to vector<8x32xf32>
    %792 = math.tanh %791 : vector<8x32xf32>
    %793 = vector.extract_strided_slice %790 {offsets = [0, 32], sizes = [8, 32], strides = [1, 1]} : vector<8x96xf32> to vector<8x32xf32>
    %794 = arith.mulf %793, %774 : vector<8x32xf32>
    %795 = vector.extract_strided_slice %790 {offsets = [0, 0], sizes = [8, 32], strides = [1, 1]} : vector<8x96xf32> to vector<8x32xf32>
    %796 = arith.mulf %795, %792 : vector<8x32xf32>
    %797 = arith.addf %794, %796 : vector<8x32xf32>
    %798 = vector.extract_strided_slice %790 {offsets = [0, 64], sizes = [8, 32], strides = [1, 1]} : vector<8x96xf32> to vector<8x32xf32>
    %799 = math.tanh %797 : vector<8x32xf32>
    %800 = arith.mulf %798, %799 : vector<8x32xf32>
    %801 = vector.extract_strided_slice %800 {offsets = [0, 0], sizes = [8, 16], strides = [1, 1]} : vector<8x32xf32> to vector<8x16xf32>
    %c56_251 = arith.constant 56 : index
    %c0_252 = arith.constant 0 : index
    %802 = vector.load %arg33[%c56_251, %c0_252] : memref<64x32xf32, #tpu.memory_space<vmem>>, vector<8x16xf32>
    tpu.vector_store %arg33[%c56_251, %c0_252], %801 {strides = array<i32>} : memref<64x32xf32, #tpu.memory_space<vmem>>, vector<8x16xf32>,
    %803 = vector.extract_strided_slice %800 {offsets = [0, 16], sizes = [8, 16], strides = [1, 1]} : vector<8x32xf32> to vector<8x16xf32>
    %c0_253 = arith.constant 0 : index
    %c16_254 = arith.constant 16 : index
    %804 = vector.load %arg33[%c0_253, %c16_254] : memref<64x32xf32, #tpu.memory_space<vmem>>, vector<8x16xf32>
    tpu.vector_store %arg33[%c0_253, %c16_254], %803 {strides = array<i32>} : memref<64x32xf32, #tpu.memory_space<vmem>>, vector<8x16xf32>,
    %c0_255 = arith.constant 0 : index
    %c0_256 = arith.constant 0 : index
    %805 = vector.load %arg33[%c0_255, %c0_256] : memref<64x32xf32, #tpu.memory_space<vmem>>, vector<64x32xf32>
    %c0_257 = arith.constant 0 : index
    %c0_258 = arith.constant 0 : index
    %806 = vector.load %arg26[%c0_257, %c0_258] : memref<1x32xf32, #tpu.memory_space<vmem>>, vector<1x32xf32>
    %807 = vector.broadcast %806 : vector<1x32xf32> to vector<64x32xf32>
    %808 = arith.mulf %805, %807 : vector<64x32xf32>
    %c0_259 = arith.constant 0 : index
    %c0_260 = arith.constant 0 : index
    %809 = vector.load %arg27[%c0_259, %c0_260] : memref<1x32xf32, #tpu.memory_space<vmem>>, vector<1x32xf32>
    %810 = vector.broadcast %809 : vector<1x32xf32> to vector<64x32xf32>
    %811 = arith.addf %808, %810 : vector<64x32xf32>
    %c0_261 = arith.constant 0 : index
    %c0_262 = arith.constant 0 : index
    %812 = vector.load %arg28[%c0_261, %c0_262] : memref<32x12xf32, #tpu.memory_space<vmem>>, vector<32x12xf32>
    %cst_263 = arith.constant dense<0.000000e+00> : vector<64x12xf32>
    %813 = tpu.matmul %811, %812, %cst_263 {dimension_numbers = #tpu.dot_dimension_numbers<[1], [0], [0], [1], [0, 0, 1, 1], [], []>} : vector<64x32xf32>, vector<32x12xf32>, vector<64x12xf32> -> vector<64x12xf32>
    %c0_264 = arith.constant 0 : index
    %c0_265 = arith.constant 0 : index
    %814 = vector.load %arg29[%c0_264, %c0_265] : memref<1x12xf32, #tpu.memory_space<vmem>>, vector<1x12xf32>
    %815 = vector.broadcast %814 : vector<1x12xf32> to vector<64x12xf32>
    %816 = arith.addf %813, %815 : vector<64x12xf32>
    %c0_266 = arith.constant 0 : index
    %c0_267 = arith.constant 0 : index
    %817 = vector.load %arg30[%c0_266, %c0_267] : memref<64x12xf32, #tpu.memory_space<vmem>>, vector<64x12xf32>
    tpu.vector_store %arg30[%c0_266, %c0_267], %816 {strides = array<i32>} : memref<64x12xf32, #tpu.memory_space<vmem>>, vector<64x12xf32>,
    return
  }
}

</mosaic_0001>

<llo_original>
// kernel: cbhg_model_forward.1
$region0: #{cbhg_model_forward.1}
  #allocation0 [shape = 'u32[]', space=smem, size = 0x4, offset = 0x4, fixed_abs, tag = 'smem constant byte address 0x4 - core index']
  #allocation1 [shape = 'u32[144,128]{1,0:T(1,128)}', space=vmem, size = 0x12000, scoped, tag = 'internal scratch']
  #allocation2 [shape = 'f32[64,32]{1,0:T(8,128)}', space=vmem, size = 0x8000, scoped, tag = 'scratch operand']
  #allocation3 [shape = 'f32[64,32]{1,0:T(8,128)}', space=vmem, size = 0x8000, scoped, tag = 'scratch operand']
  #allocation4 [shape = 'f32[64,32]{1,0:T(8,128)}', space=vmem, size = 0x8000, scoped, tag = 'scratch operand']
  %s0 = inlined_call_operand.smem [shape: u32[31], index: -1, kind: input, shape index: {}]
  %s1 = sld [smem:[%s0]]
  %s2 = scalar_lea.smem %s0, 1
  %s3 = sld [smem:[%s2]]
  %s4 = scalar_lea.smem %s0, 2
  %s5 = sld [smem:[%s4]]
  %s6 = scalar_lea.smem %s0, 3
  %s7 = sld [smem:[%s6]]
  %s8 = scalar_lea.smem %s0, 4
  %s9 = sld [smem:[%s8]]
  %s10 = scalar_lea.smem %s0, 5
  %s11 = sld [smem:[%s10]]
  %s12 = scalar_lea.smem %s0, 6
  %s13 = sld [smem:[%s12]]
  %s14 = scalar_lea.smem %s0, 7
  %s15 = sld [smem:[%s14]]
  %s16 = scalar_lea.smem %s0, 8
  %s17 = sld [smem:[%s16]]
  %s18 = scalar_lea.smem %s0, 9
  %s19 = sld [smem:[%s18]]
  %s20 = scalar_lea.smem %s0, 10
  %s21 = sld [smem:[%s20]]
  %s22 = scalar_lea.smem %s0, 11
  %s23 = sld [smem:[%s22]]
  %s24 = scalar_lea.smem %s0, 12
  %s25 = sld [smem:[%s24]]
  %s26 = scalar_lea.smem %s0, 13
  %s27 = sld [smem:[%s26]]
  %s28 = scalar_lea.smem %s0, 14
  %s29 = sld [smem:[%s28]]
  %s30 = scalar_lea.smem %s0, 15
  %s31 = sld [smem:[%s30]]
  %s32 = scalar_lea.smem %s0, 16
  %s33 = sld [smem:[%s32]]
  %s34 = scalar_lea.smem %s0, 17
  %s35 = sld [smem:[%s34]]
  %s36 = scalar_lea.smem %s0, 18
  %s37 = sld [smem:[%s36]]
  %s38 = scalar_lea.smem %s0, 19
  %s39 = sld [smem:[%s38]]
  %s40 = scalar_lea.smem %s0, 20
  %s41 = sld [smem:[%s40]]
  %s42 = scalar_lea.smem %s0, 21
  %s43 = sld [smem:[%s42]]
  %s44 = scalar_lea.smem %s0, 22
  %s45 = sld [smem:[%s44]]
  %s46 = scalar_lea.smem %s0, 23
  %s47 = sld [smem:[%s46]]
  %s48 = scalar_lea.smem %s0, 24
  %s49 = sld [smem:[%s48]]
  %s50 = scalar_lea.smem %s0, 25
  %s51 = sld [smem:[%s50]]
  %s52 = scalar_lea.smem %s0, 26
  %s53 = sld [smem:[%s52]]
  %s54 = scalar_lea.smem %s0, 27
  %s55 = sld [smem:[%s54]]
  %s56 = scalar_lea.smem %s0, 28
  %s57 = sld [smem:[%s56]]
  %s58 = scalar_lea.smem %s0, 29
  %s59 = sld [smem:[%s58]]
  %s60 = scalar_lea.smem %s0, 30
  %s61 = sld [smem:[%s60]]
  %s62 = sld [smem:[#allocation0]]
  $region158: #{cbhg_model_forward.1} parent=0
    _
  %s64 = ssub.s32 1, %s62
  %s65 = scalar_select 0, %s64, %s62
  $region1: #{cbhg_model_forward.1} parent=0
    #allocation5 [shape = 'u8[512]{0}', space=vmem, size = 0x400, scoped, tag = 'input window, operand 7, single buffered']
    #allocation6 [shape = 's32[1]{0}', space=sflag, size = 0x4, scoped, tag = 'scoped memory for cbhg_model_forward.1']
    #allocation7 [shape = 'u8[512]{0}', space=vmem, size = 0x400, scoped, tag = 'input window, operand 15, single buffered']
    #allocation8 [shape = 's32[1]{0}', space=sflag, size = 0x4, scoped, tag = 'scoped memory for cbhg_model_forward.1']
    #allocation9 [shape = 'u8[512]{0}', space=vmem, size = 0x400, scoped, tag = 'input window, operand 17, single buffered']
    #allocation10 [shape = 'u8[512]{0}', space=vmem, size = 0x400, scoped, tag = 'input window, operand 21, single buffered']
    #allocation11 [shape = 's32[1]{0}', space=sflag, size = 0x4, scoped, tag = 'scoped memory for cbhg_model_forward.1']
    #allocation12 [shape = 'u8[512]{0}', space=vmem, size = 0x400, scoped, tag = 'input window, operand 22, single buffered']
    #allocation13 [shape = 'u8[512]{0}', space=vmem, size = 0x400, scoped, tag = 'input window, operand 26, single buffered']
    #allocation14 [shape = 's32[1]{0}', space=sflag, size = 0x4, scoped, tag = 'scoped memory for cbhg_model_forward.1']
    #allocation15 [shape = 'u8[512]{0}', space=vmem, size = 0x400, scoped, tag = 'input window, operand 27, single buffered']
    %66 = vsyncpa [#allocation6], 0
    %67 = vsyncpa [#allocation8], 0
    %68 = vsyncpa [#allocation11], 0
    %69 = vsyncpa [#allocation14], 0
    // Predicated region
    $region2: #{cbhg_model_forward.1} parent=1 // pred_check
      _
    $region3: #{cbhg_model_forward.1} parent=1 // pred_check_branch
      %71 = sbr.rel (0) target = $region5
    $region4: #{cbhg_model_forward.1} parent=1 // pred_region
      _
    $region5: #{cbhg_model_forward.1} parent=1 // pred_fallthru
      _
    // Predicated region
    $region6: #{cbhg_model_forward.1} parent=1 // pred_check
      _
    $region7: #{cbhg_model_forward.1} parent=1 // pred_check_branch
      %73 = sbr.rel (0) target = $region9
    $region8: #{cbhg_model_forward.1} parent=1 // pred_region
      _
    $region9: #{cbhg_model_forward.1} parent=1 // pred_fallthru
      _
    // Predicated region
    $region10: #{cbhg_model_forward.1} parent=1 // pred_check
      _
    $region11: #{cbhg_model_forward.1} parent=1 // pred_check_branch
      %75 = sbr.rel (0) target = $region13
    $region12: #{cbhg_model_forward.1} parent=1 // pred_region
      _
    $region13: #{cbhg_model_forward.1} parent=1 // pred_fallthru
      _
    // Predicated region
    $region14: #{cbhg_model_forward.1} parent=1 // pred_check
      _
    $region15: #{cbhg_model_forward.1} parent=1 // pred_check_branch
      %77 = sbr.rel (0) target = $region17
    $region16: #{cbhg_model_forward.1} parent=1 // pred_region
      _
    $region17: #{cbhg_model_forward.1} parent=1 // pred_fallthru
      _
    // Predicated region
    $region18: #{cbhg_model_forward.1} parent=1 // pred_check
      _
    $region19: #{cbhg_model_forward.1} parent=1 // pred_check_branch
      %79 = sbr.rel (0) target = $region21
    $region20: #{cbhg_model_forward.1} parent=1 // pred_region
      _
    $region21: #{cbhg_model_forward.1} parent=1 // pred_fallthru
      _
    // Predicated region
    $region22: #{cbhg_model_forward.1} parent=1 // pred_check
      _
    $region23: #{cbhg_model_forward.1} parent=1 // pred_check_branch
      %81 = sbr.rel (0) target = $region25
    $region24: #{cbhg_model_forward.1} parent=1 // pred_region
      _
    $region25: #{cbhg_model_forward.1} parent=1 // pred_fallthru
      _
    // Predicated region
    $region26: #{cbhg_model_forward.1} parent=1 // pred_check
      _
    $region27: #{cbhg_model_forward.1} parent=1 // pred_check_branch
      %83 = sbr.rel (0) target = $region29
    $region28: #{cbhg_model_forward.1} parent=1 // pred_region
      _
    $region29: #{cbhg_model_forward.1} parent=1 // pred_fallthru
      _
    // Predicated region
    $region30: #{cbhg_model_forward.1} parent=1 // pred_check
      _
    $region31: #{cbhg_model_forward.1} parent=1 // pred_check_branch
      %85 = sbr.rel (0) target = $region33
    $region32: #{cbhg_model_forward.1} parent=1 // pred_region
      %s87 = ssub.s32 16, 16
      %88 = vsyncadd [#allocation6], %s87
      %s90 = sshll.u32 [#allocation5], 4
      %s91 = int_to_ptr.vmem [resolvable:$true] %s90
      %93 = dma.hbm_to_vmem [thread:$0]  %s15, 16, %s91, [#allocation6]
    $region33: #{cbhg_model_forward.1} parent=1 // pred_fallthru
      _
    // Predicated region
    $region34: #{cbhg_model_forward.1} parent=1 // pred_check
      _
    $region35: #{cbhg_model_forward.1} parent=1 // pred_check_branch
      %95 = sbr.rel (0) target = $region37
    $region36: #{cbhg_model_forward.1} parent=1 // pred_region
      _
    $region37: #{cbhg_model_forward.1} parent=1 // pred_fallthru
      _
    // Predicated region
    $region38: #{cbhg_model_forward.1} parent=1 // pred_check
      _
    $region39: #{cbhg_model_forward.1} parent=1 // pred_check_branch
      %97 = sbr.rel (0) target = $region41
    $region40: #{cbhg_model_forward.1} parent=1 // pred_region
      _
    $region41: #{cbhg_model_forward.1} parent=1 // pred_fallthru
      _
    // Predicated region
    $region42: #{cbhg_model_forward.1} parent=1 // pred_check
      _
    $region43: #{cbhg_model_forward.1} parent=1 // pred_check_branch
      %99 = sbr.rel (0) target = $region45
    $region44: #{cbhg_model_forward.1} parent=1 // pred_region
      _
    $region45: #{cbhg_model_forward.1} parent=1 // pred_fallthru
      _
    // Predicated region
    $region46: #{cbhg_model_forward.1} parent=1 // pred_check
      _
    $region47: #{cbhg_model_forward.1} parent=1 // pred_check_branch
      %101 = sbr.rel (0) target = $region49
    $region48: #{cbhg_model_forward.1} parent=1 // pred_region
      _
    $region49: #{cbhg_model_forward.1} parent=1 // pred_fallthru
      _
    // Predicated region
    $region50: #{cbhg_model_forward.1} parent=1 // pred_check
      _
    $region51: #{cbhg_model_forward.1} parent=1 // pred_check_branch
      %103 = sbr.rel (0) target = $region53
    $region52: #{cbhg_model_forward.1} parent=1 // pred_region
      _
    $region53: #{cbhg_model_forward.1} parent=1 // pred_fallthru
      _
    // Predicated region
    $region54: #{cbhg_model_forward.1} parent=1 // pred_check
      _
    $region55: #{cbhg_model_forward.1} parent=1 // pred_check_branch
      %105 = sbr.rel (0) target = $region57
    $region56: #{cbhg_model_forward.1} parent=1 // pred_region
      _
    $region57: #{cbhg_model_forward.1} parent=1 // pred_fallthru
      _
    // Predicated region
    $region58: #{cbhg_model_forward.1} parent=1 // pred_check
      _
    $region59: #{cbhg_model_forward.1} parent=1 // pred_check_branch
      %107 = sbr.rel (0) target = $region61
    $region60: #{cbhg_model_forward.1} parent=1 // pred_region
      _
    $region61: #{cbhg_model_forward.1} parent=1 // pred_fallthru
      _
    // Predicated region
    $region62: #{cbhg_model_forward.1} parent=1 // pred_check
      _
    $region63: #{cbhg_model_forward.1} parent=1 // pred_check_branch
      %109 = sbr.rel (0) target = $region65
    $region64: #{cbhg_model_forward.1} parent=1 // pred_region
      %s111 = ssub.s32 16, 16
      %112 = vsyncadd [#allocation8], %s111
      %s114 = sshll.u32 [#allocation7], 4
      %s115 = int_to_ptr.vmem [resolvable:$true] %s114
      %117 = dma.hbm_to_vmem [thread:$0]  %s31, 16, %s115, [#allocation8]
    $region65: #{cbhg_model_forward.1} parent=1 // pred_fallthru
      _
    // Predicated region
    $region66: #{cbhg_model_forward.1} parent=1 // pred_check
      _
    $region67: #{cbhg_model_forward.1} parent=1 // pred_check_branch
      %119 = sbr.rel (0) target = $region69
    $region68: #{cbhg_model_forward.1} parent=1 // pred_region
      _
    $region69: #{cbhg_model_forward.1} parent=1 // pred_fallthru
      _
    // Predicated region
    $region70: #{cbhg_model_forward.1} parent=1 // pred_check
      _
    $region71: #{cbhg_model_forward.1} parent=1 // pred_check_branch
      %121 = sbr.rel (0) target = $region73
    $region72: #{cbhg_model_forward.1} parent=1 // pred_region
      %s123 = ssub.s32 16, 16
      %124 = vsyncadd [#allocation8], %s123
      %s126 = sshll.u32 [#allocation9], 4
      %s127 = int_to_ptr.vmem [resolvable:$true] %s126
      %129 = dma.hbm_to_vmem [thread:$0]  %s35, 16, %s127, [#allocation8]
    $region73: #{cbhg_model_forward.1} parent=1 // pred_fallthru
      _
    // Predicated region
    $region74: #{cbhg_model_forward.1} parent=1 // pred_check
      _
    $region75: #{cbhg_model_forward.1} parent=1 // pred_check_branch
      %131 = sbr.rel (0) target = $region77
    $region76: #{cbhg_model_forward.1} parent=1 // pred_region
      _
    $region77: #{cbhg_model_forward.1} parent=1 // pred_fallthru
      _
    // Predicated region
    $region78: #{cbhg_model_forward.1} parent=1 // pred_check
      _
    $region79: #{cbhg_model_forward.1} parent=1 // pred_check_branch
      %133 = sbr.rel (0) target = $region81
    $region80: #{cbhg_model_forward.1} parent=1 // pred_region
      _
    $region81: #{cbhg_model_forward.1} parent=1 // pred_fallthru
      _
    // Predicated region
    $region82: #{cbhg_model_forward.1} parent=1 // pred_check
      _
    $region83: #{cbhg_model_forward.1} parent=1 // pred_check_branch
      %135 = sbr.rel (0) target = $region85
    $region84: #{cbhg_model_forward.1} parent=1 // pred_region
      _
    $region85: #{cbhg_model_forward.1} parent=1 // pred_fallthru
      _
    // Predicated region
    $region86: #{cbhg_model_forward.1} parent=1 // pred_check
      _
    $region87: #{cbhg_model_forward.1} parent=1 // pred_check_branch
      %137 = sbr.rel (0) target = $region89
    $region88: #{cbhg_model_forward.1} parent=1 // pred_region
      %s139 = ssub.s32 16, 16
      %140 = vsyncadd [#allocation11], %s139
      %s142 = sshll.u32 [#allocation10], 4
      %s143 = int_to_ptr.vmem [resolvable:$true] %s142
      %145 = dma.hbm_to_vmem [thread:$0]  %s43, 16, %s143, [#allocation11]
    $region89: #{cbhg_model_forward.1} parent=1 // pred_fallthru
      _
    // Predicated region
    $region90: #{cbhg_model_forward.1} parent=1 // pred_check
      _
    $region91: #{cbhg_model_forward.1} parent=1 // pred_check_branch
      %147 = sbr.rel (0) target = $region93
    $region92: #{cbhg_model_forward.1} parent=1 // pred_region
      %s149 = ssub.s32 16, 16
      %150 = vsyncadd [#allocation11], %s149
      %s152 = sshll.u32 [#allocation12], 4
      %s153 = int_to_ptr.vmem [resolvable:$true] %s152
      %155 = dma.hbm_to_vmem [thread:$0]  %s45, 16, %s153, [#allocation11]
    $region93: #{cbhg_model_forward.1} parent=1 // pred_fallthru
      _
    // Predicated region
    $region94: #{cbhg_model_forward.1} parent=1 // pred_check
      _
    $region95: #{cbhg_model_forward.1} parent=1 // pred_check_branch
      %157 = sbr.rel (0) target = $region97
    $region96: #{cbhg_model_forward.1} parent=1 // pred_region
      _
    $region97: #{cbhg_model_forward.1} parent=1 // pred_fallthru
      _
    // Predicated region
    $region98: #{cbhg_model_forward.1} parent=1 // pred_check
      _
    $region99: #{cbhg_model_forward.1} parent=1 // pred_check_branch
      %159 = sbr.rel (0) target = $region101
    $region100: #{cbhg_model_forward.1} parent=1 // pred_region
      _
    $region101: #{cbhg_model_forward.1} parent=1 // pred_fallthru
      _
    // Predicated region
    $region102: #{cbhg_model_forward.1} parent=1 // pred_check
      _
    $region103: #{cbhg_model_forward.1} parent=1 // pred_check_branch
      %161 = sbr.rel (0) target = $region105
    $region104: #{cbhg_model_forward.1} parent=1 // pred_region
      _
    $region105: #{cbhg_model_forward.1} parent=1 // pred_fallthru
      _
    // Predicated region
    $region106: #{cbhg_model_forward.1} parent=1 // pred_check
      _
    $region107: #{cbhg_model_forward.1} parent=1 // pred_check_branch
      %163 = sbr.rel (0) target = $region109
    $region108: #{cbhg_model_forward.1} parent=1 // pred_region
      %s165 = ssub.s32 16, 16
      %166 = vsyncadd [#allocation14], %s165
      %s168 = sshll.u32 [#allocation13], 4
      %s169 = int_to_ptr.vmem [resolvable:$true] %s168
      %171 = dma.hbm_to_vmem [thread:$0]  %s53, 16, %s169, [#allocation14]
    $region109: #{cbhg_model_forward.1} parent=1 // pred_fallthru
      _
    // Predicated region
    $region110: #{cbhg_model_forward.1} parent=1 // pred_check
      _
    $region111: #{cbhg_model_forward.1} parent=1 // pred_check_branch
      %173 = sbr.rel (0) target = $region113
    $region112: #{cbhg_model_forward.1} parent=1 // pred_region
      %s175 = ssub.s32 16, 16
      %176 = vsyncadd [#allocation14], %s175
      %s178 = sshll.u32 [#allocation15], 4
      %s179 = int_to_ptr.vmem [resolvable:$true] %s178
      %181 = dma.hbm_to_vmem [thread:$0]  %s55, 16, %s179, [#allocation14]
    $region113: #{cbhg_model_forward.1} parent=1 // pred_fallthru
      _
    // Predicated region
    $region114: #{cbhg_model_forward.1} parent=1 // pred_check
      _
    $region115: #{cbhg_model_forward.1} parent=1 // pred_check_branch
      %183 = sbr.rel (0) target = $region117
    $region116: #{cbhg_model_forward.1} parent=1 // pred_region
      _
    $region117: #{cbhg_model_forward.1} parent=1 // pred_fallthru
      _
    // Predicated region
    $region118: #{cbhg_model_forward.1} parent=1 // pred_check
      _
    $region119: #{cbhg_model_forward.1} parent=1 // pred_check_branch
      %185 = sbr.rel (0) target = $region121
    $region120: #{cbhg_model_forward.1} parent=1 // pred_region
      _
    $region121: #{cbhg_model_forward.1} parent=1 // pred_fallthru
      _
    // Predicated region
    $region122: #{cbhg_model_forward.1} parent=1 // pred_check
      _
    $region123: #{cbhg_model_forward.1} parent=1 // pred_check_branch
      %187 = sbr.rel (0) target = $region125
    $region124: #{cbhg_model_forward.1} parent=1 // pred_region
      %188 = dma.done [#allocation6], 16
    $region125: #{cbhg_model_forward.1} parent=1 // pred_fallthru
      _
    // Predicated region
    $region126: #{cbhg_model_forward.1} parent=1 // pred_check
      _
    $region127: #{cbhg_model_forward.1} parent=1 // pred_check_branch
      %190 = sbr.rel (0) target = $region129
    $region128: #{cbhg_model_forward.1} parent=1 // pred_region
      %191 = dma.done [#allocation8], 16
    $region129: #{cbhg_model_forward.1} parent=1 // pred_fallthru
      _
    // Predicated region
    $region130: #{cbhg_model_forward.1} parent=1 // pred_check
      _
    $region131: #{cbhg_model_forward.1} parent=1 // pred_check_branch
      %193 = sbr.rel (0) target = $region133
    $region132: #{cbhg_model_forward.1} parent=1 // pred_region
      %194 = dma.done [#allocation8], 16
    $region133: #{cbhg_model_forward.1} parent=1 // pred_fallthru
      _
    // Predicated region
    $region134: #{cbhg_model_forward.1} parent=1 // pred_check
      _
    $region135: #{cbhg_model_forward.1} parent=1 // pred_check_branch
      %196 = sbr.rel (0) target = $region137
    $region136: #{cbhg_model_forward.1} parent=1 // pred_region
      %197 = dma.done [#allocation11], 16
    $region137: #{cbhg_model_forward.1} parent=1 // pred_fallthru
      _
    // Predicated region
    $region138: #{cbhg_model_forward.1} parent=1 // pred_check
      _
    $region139: #{cbhg_model_forward.1} parent=1 // pred_check_branch
      %199 = sbr.rel (0) target = $region141
    $region140: #{cbhg_model_forward.1} parent=1 // pred_region
      %200 = dma.done [#allocation11], 16
    $region141: #{cbhg_model_forward.1} parent=1 // pred_fallthru
      _
    // Predicated region
    $region142: #{cbhg_model_forward.1} parent=1 // pred_check
      _
    $region143: #{cbhg_model_forward.1} parent=1 // pred_check_branch
      %202 = sbr.rel (0) target = $region145
    $region144: #{cbhg_model_forward.1} parent=1 // pred_region
      %203 = dma.done [#allocation14], 16
    $region145: #{cbhg_model_forward.1} parent=1 // pred_fallthru
      _
    // Predicated region
    $region146: #{cbhg_model_forward.1} parent=1 // pred_check
      _
    $region147: #{cbhg_model_forward.1} parent=1 // pred_check_branch
      %205 = sbr.rel (0) target = $region149
    $region148: #{cbhg_model_forward.1} parent=1 // pred_region
      %206 = dma.done [#allocation14], 16
    $region149: #{cbhg_model_forward.1} parent=1 // pred_fallthru
      _
    %v207 = vld [vmem:[%s1] sm:$0xff]
    %v208 = vld [vmem:[%s1 + $0x8] sm:$0xff]
    %v209 = vld [vmem:[%s1 + $0x10] sm:$0xff]
    %v210 = vld [vmem:[%s1 + $0x18] sm:$0xff]
    %v211 = vld [vmem:[%s1 + $0x20] sm:$0xff]
    %v212 = vld [vmem:[%s1 + $0x28] sm:$0xff]
    %v213 = vld [vmem:[%s1 + $0x30] sm:$0xff]
    %v214 = vld [vmem:[%s1 + $0x38] sm:$0xff]
    %v215 = vlaneseq
    %v216 = vand.u32 %v215, 127
    %217 = vset.pattern.permute.xlu0 0
    %218 = vperm.xlu0 %217, %v207
    %v219 = vpop.permute.xlu0 %218
    %220 = vset.pattern.permute.xlu0 0
    %221 = vperm.xlu0 %220, %v208
    %v222 = vpop.permute.xlu0 %221
    %223 = vset.pattern.permute.xlu0 0
    %224 = vperm.xlu0 %223, %v209
    %v225 = vpop.permute.xlu0 %224
    %226 = vset.pattern.permute.xlu0 0
    %227 = vperm.xlu0 %226, %v210
    %v228 = vpop.permute.xlu0 %227
    %229 = vset.pattern.permute.xlu0 0
    %230 = vperm.xlu0 %229, %v211
    %v231 = vpop.permute.xlu0 %230
    %232 = vset.pattern.permute.xlu0 0
    %233 = vperm.xlu0 %232, %v212
    %v234 = vpop.permute.xlu0 %233
    %235 = vset.pattern.permute.xlu0 0
    %236 = vperm.xlu0 %235, %v213
    %v237 = vpop.permute.xlu0 %236
    %238 = vset.pattern.permute.xlu0 0
    %239 = vperm.xlu0 %238, %v214
    %v240 = vpop.permute.xlu0 %239
    %vm241 = vcmp.eq.s32.totalorder %v216, %v219
    %vm242 = vcmp.eq.s32.totalorder %v216, %v222
    %vm243 = vcmp.eq.s32.totalorder %v216, %v225
    %vm244 = vcmp.eq.s32.totalorder %v216, %v228
    %vm245 = vcmp.eq.s32.totalorder %v216, %v231
    %vm246 = vcmp.eq.s32.totalorder %v216, %v234
    %vm247 = vcmp.eq.s32.totalorder %v216, %v237
    %vm248 = vcmp.eq.s32.totalorder %v216, %v240
    %v249 = vsel %vm241, 1, 0
    %v250 = vsel %vm242, 1, 0
    %v251 = vsel %vm243, 1, 0
    %v252 = vsel %vm244, 1, 0
    %v253 = vsel %vm245, 1, 0
    %v254 = vsel %vm246, 1, 0
    %v255 = vsel %vm247, 1, 0
    %v256 = vsel %vm248, 1, 0
    %v257 = vcvt.s32.f32 %v249
    %v258 = vcvt.s32.f32 %v250
    %v259 = vcvt.s32.f32 %v251
    %v260 = vcvt.s32.f32 %v252
    %v261 = vcvt.s32.f32 %v253
    %v262 = vcvt.s32.f32 %v254
    %v263 = vcvt.s32.f32 %v255
    %v264 = vcvt.s32.f32 %v256
    %v265 = vld [vmem:[%s3] sm:$0xff]
    %v266 = vld [vmem:[%s3 + $0x8] sm:$0xff]
    %v267 = vld [vmem:[%s3 + $0x10] sm:$0xff]
    %vm268 = vcmask 195584
    %v270 = vsel %vm268, %v257, 0
    %v273 = vsel %vm268, %v258, 0
    %v276 = vsel %vm268, %v259, 0
    %v279 = vsel %vm268, %v260, 0
    %v282 = vsel %vm268, %v261, 0
    %v285 = vsel %vm268, %v262, 0
    %v288 = vsel %vm268, %v263, 0
    %v291 = vsel %vm268, %v264, 0
    %293 = vmatprep.subr.mxu0 0.0
    %294 = vmatpush1.msra.mxu0 %v265
    %295 = vmatprep.subr.mxu0 0.0
    %296 = vmatpush1.msra.mxu0 %v266
    %297 = vmatprep.subr.mxu0 0.0
    %298 = vmatpush1.msra.mxu0 %v267
    %299 = vmatprep.subr.mxu0 0.0
    %300 = vmatpush1.msra.mxu0 0.0
    %301 = vmatprep.subr.mxu0 0.0
    %302 = vmatpush1.msra.mxu0 0.0
    %303 = vmatprep.subr.mxu0 0.0
    %304 = vmatpush1.msra.mxu0 0.0
    %305 = vmatprep.subr.mxu0 0.0
    %306 = vmatpush1.msra.mxu0 0.0
    %307 = vmatprep.subr.mxu0 0.0
    %308 = vmatpush1.msra.mxu0 0.0
    %309 = vmatprep.subr.mxu0 0.0
    %310 = vmatpush1.msra.mxu0 0.0
    %311 = vmatprep.subr.mxu0 0.0
    %312 = vmatpush1.msra.mxu0 0.0
    %313 = vmatprep.subr.mxu0 0.0
    %314 = vmatpush1.msra.mxu0 0.0
    %315 = vmatprep.subr.mxu0 0.0
    %316 = vmatpush1.msra.mxu0 0.0
    %317 = vmatprep.subr.mxu0 0.0
    %318 = vmatpush1.msra.mxu0 0.0
    %319 = vmatprep.subr.mxu0 0.0
    %320 = vmatpush1.msra.mxu0 0.0
    %321 = vmatprep.subr.mxu0 0.0
    %322 = vmatpush1.msra.mxu0 0.0
    %323 = vmatprep.subr.mxu0 0.0
    %324 = vmatpush1.msra.mxu0 0.0
    %325 = vmatprep.subr.mxu0 0.0
    %326 = vmatpush1.msra.mxu0 0.0
    %327 = vmatprep.subr.mxu0 0.0
    %328 = vmatpush1.msra.mxu0 0.0
    %329 = vmatprep.subr.mxu0 0.0
    %330 = vmatpush1.msra.mxu0 0.0
    %331 = vmatprep.subr.mxu0 0.0
    %332 = vmatpush1.msra.mxu0 0.0
    %333 = vmatprep.subr.mxu0 0.0
    %334 = vmatpush1.msra.mxu0 0.0
    %335 = vmatprep.subr.mxu0 0.0
    %336 = vmatpush1.msra.mxu0 0.0
    %337 = vmatprep.subr.mxu0 0.0
    %338 = vmatpush1.msra.mxu0 0.0
    %339 = vmatprep.subr.mxu0 0.0
    %340 = vmatpush1.msra.mxu0 0.0
    %341 = vmatprep.subr.mxu0 0.0
    %342 = vmatpush1.msra.mxu0 0.0
    %343 = vmatprep.subr.mxu0 0.0
    %344 = vmatpush1.msra.mxu0 0.0
    %345 = vmatprep.subr.mxu0 0.0
    %346 = vmatpush1.msra.mxu0 0.0
    %347 = vmatprep.subr.mxu0 0.0
    %348 = vmatpush1.msra.mxu0 0.0
    %349 = vmatprep.subr.mxu0 0.0
    %350 = vmatpush1.msra.mxu0 0.0
    %351 = vmatprep.subr.mxu0 0.0
    %352 = vmatpush1.msra.mxu0 0.0
    %353 = vmatprep.subr.mxu0 0.0
    %354 = vmatpush1.msra.mxu0 0.0
    %355 = vmatprep.subr.mxu0 0.0
    %356 = vmatpush1.msra.mxu0 0.0
    %357 = vmatprep.mubr.f32.mxu0 0.0
    %358 = vmatmul.mubr.f32.gmra.mrb[0].mxu0 %v270
    %v359 = vpop.f32.mrb[0].mxu0
    %v360 = vadd.f32 0.0, %v359
    %v361 = vpop.f32.mrb[0].mxu0
    %362 = vmatprep.mubr.f32.mxu0 0.0
    %363 = vmatmul.mubr.f32.gmra.mrb[0].mxu0 %v273
    %v364 = vpop.f32.mrb[0].mxu0
    %v365 = vadd.f32 0.0, %v364
    %v366 = vpop.f32.mrb[0].mxu0
    %367 = vmatprep.mubr.f32.mxu0 0.0
    %368 = vmatmul.mubr.f32.gmra.mrb[0].mxu0 %v276
    %v369 = vpop.f32.mrb[0].mxu0
    %v370 = vadd.f32 0.0, %v369
    %v371 = vpop.f32.mrb[0].mxu0
    %372 = vmatprep.mubr.f32.mxu0 0.0
    %373 = vmatmul.mubr.f32.gmra.mrb[0].mxu0 %v279
    %v374 = vpop.f32.mrb[0].mxu0
    %v375 = vadd.f32 0.0, %v374
    %v376 = vpop.f32.mrb[0].mxu0
    %377 = vmatprep.mubr.f32.mxu0 0.0
    %378 = vmatmul.mubr.f32.gmra.mrb[0].mxu0 %v282
    %v379 = vpop.f32.mrb[0].mxu0
    %v380 = vadd.f32 0.0, %v379
    %v381 = vpop.f32.mrb[0].mxu0
    %382 = vmatprep.mubr.f32.mxu0 0.0
    %383 = vmatmul.mubr.f32.gmra.mrb[0].mxu0 %v285
    %v384 = vpop.f32.mrb[0].mxu0
    %v385 = vadd.f32 0.0, %v384
    %v386 = vpop.f32.mrb[0].mxu0
    %387 = vmatprep.mubr.f32.mxu0 0.0
    %388 = vmatmul.mubr.f32.gmra.mrb[0].mxu0 %v288
    %v389 = vpop.f32.mrb[0].mxu0
    %v390 = vadd.f32 0.0, %v389
    %v391 = vpop.f32.mrb[0].mxu0
    %392 = vmatprep.mubr.f32.mxu0 0.0
    %393 = vmatmul.mubr.f32.gmra.mrb[0].mxu0 %v291
    %v394 = vpop.f32.mrb[0].mxu0
    %v395 = vadd.f32 0.0, %v394
    %v396 = vpop.f32.mrb[0].mxu0
    %397 = vdwg.mxu0
    %v398 = vld [vmem:[%s5] sm:$0xff]
    %v399 = vld [vmem:[%s5 + $0x8] sm:$0xff]
    %v400 = vld [vmem:[%s5 + $0x10] sm:$0xff]
    %v401 = vld [vmem:[%s5 + $0x18] sm:$0xff]
    %v402 = vld [vmem:[%s7] sm:$0x1]
    %v404 = vlaneseq
    %v405 = vshrl.u32 %v404, 7
    %v406 = vsub.s32 0, %v405
    %v407 = vrot.slane %v402, %v406
    %vm409 = vcmask 261120
    %v411 = vsel %vm409, %v360, 0
    %v414 = vsel %vm409, %v365, 0
    %v417 = vsel %vm409, %v370, 0
    %v420 = vsel %vm409, %v375, 0
    %v423 = vsel %vm409, %v380, 0
    %v426 = vsel %vm409, %v385, 0
    %v429 = vsel %vm409, %v390, 0
    %v432 = vsel %vm409, %v395, 0
    %434 = vmatprep.subr.mxu0 0.0
    %435 = vmatpush1.msra.mxu0 %v398
    %436 = vmatprep.subr.mxu0 0.0
    %437 = vmatpush1.msra.mxu0 %v399
    %438 = vmatprep.subr.mxu0 0.0
    %439 = vmatpush1.msra.mxu0 %v400
    %440 = vmatprep.subr.mxu0 0.0
    %441 = vmatpush1.msra.mxu0 %v401
    %442 = vmatprep.subr.mxu0 0.0
    %443 = vmatpush1.msra.mxu0 0.0
    %444 = vmatprep.subr.mxu0 0.0
    %445 = vmatpush1.msra.mxu0 0.0
    %446 = vmatprep.subr.mxu0 0.0
    %447 = vmatpush1.msra.mxu0 0.0
    %448 = vmatprep.subr.mxu0 0.0
    %449 = vmatpush1.msra.mxu0 0.0
    %450 = vmatprep.subr.mxu0 0.0
    %451 = vmatpush1.msra.mxu0 0.0
    %452 = vmatprep.subr.mxu0 0.0
    %453 = vmatpush1.msra.mxu0 0.0
    %454 = vmatprep.subr.mxu0 0.0
    %455 = vmatpush1.msra.mxu0 0.0
    %456 = vmatprep.subr.mxu0 0.0
    %457 = vmatpush1.msra.mxu0 0.0
    %458 = vmatprep.subr.mxu0 0.0
    %459 = vmatpush1.msra.mxu0 0.0
    %460 = vmatprep.subr.mxu0 0.0
    %461 = vmatpush1.msra.mxu0 0.0
    %462 = vmatprep.subr.mxu0 0.0
    %463 = vmatpush1.msra.mxu0 0.0
    %464 = vmatprep.subr.mxu0 0.0
    %465 = vmatpush1.msra.mxu0 0.0
    %466 = vmatprep.subr.mxu0 0.0
    %467 = vmatpush1.msra.mxu0 0.0
    %468 = vmatprep.subr.mxu0 0.0
    %469 = vmatpush1.msra.mxu0 0.0
    %470 = vmatprep.subr.mxu0 0.0
    %471 = vmatpush1.msra.mxu0 0.0
    %472 = vmatprep.subr.mxu0 0.0
    %473 = vmatpush1.msra.mxu0 0.0
    %474 = vmatprep.subr.mxu0 0.0
    %475 = vmatpush1.msra.mxu0 0.0
    %476 = vmatprep.subr.mxu0 0.0
    %477 = vmatpush1.msra.mxu0 0.0
    %478 = vmatprep.subr.mxu0 0.0
    %479 = vmatpush1.msra.mxu0 0.0
    %480 = vmatprep.subr.mxu0 0.0
    %481 = vmatpush1.msra.mxu0 0.0
    %482 = vmatprep.subr.mxu0 0.0
    %483 = vmatpush1.msra.mxu0 0.0
    %484 = vmatprep.subr.mxu0 0.0
    %485 = vmatpush1.msra.mxu0 0.0
    %486 = vmatprep.subr.mxu0 0.0
    %487 = vmatpush1.msra.mxu0 0.0
    %488 = vmatprep.subr.mxu0 0.0
    %489 = vmatpush1.msra.mxu0 0.0
    %490 = vmatprep.subr.mxu0 0.0
    %491 = vmatpush1.msra.mxu0 0.0
    %492 = vmatprep.subr.mxu0 0.0
    %493 = vmatpush1.msra.mxu0 0.0
    %494 = vmatprep.subr.mxu0 0.0
    %495 = vmatpush1.msra.mxu0 0.0
    %496 = vmatprep.subr.mxu0 0.0
    %497 = vmatpush1.msra.mxu0 0.0
    %498 = vmatprep.mubr.f32.mxu0 0.0
    %499 = vmatmul.mubr.f32.gmra.mrb[0].mxu0 %v411
    %v500 = vpop.f32.mrb[0].mxu0
    %v501 = vadd.f32 %v407, %v500
    %v502 = vpop.f32.mrb[0].mxu0
    %503 = vmatprep.mubr.f32.mxu0 0.0
    %504 = vmatmul.mubr.f32.gmra.mrb[0].mxu0 %v414
    %v505 = vpop.f32.mrb[0].mxu0
    %v506 = vadd.f32 %v407, %v505
    %v507 = vpop.f32.mrb[0].mxu0
    %508 = vmatprep.mubr.f32.mxu0 0.0
    %509 = vmatmul.mubr.f32.gmra.mrb[0].mxu0 %v417
    %v510 = vpop.f32.mrb[0].mxu0
    %v511 = vadd.f32 %v407, %v510
    %v512 = vpop.f32.mrb[0].mxu0
    %513 = vmatprep.mubr.f32.mxu0 0.0
    %514 = vmatmul.mubr.f32.gmra.mrb[0].mxu0 %v420
    %v515 = vpop.f32.mrb[0].mxu0
    %v516 = vadd.f32 %v407, %v515
    %v517 = vpop.f32.mrb[0].mxu0
    %518 = vmatprep.mubr.f32.mxu0 0.0
    %519 = vmatmul.mubr.f32.gmra.mrb[0].mxu0 %v423
    %v520 = vpop.f32.mrb[0].mxu0
    %v521 = vadd.f32 %v407, %v520
    %v522 = vpop.f32.mrb[0].mxu0
    %523 = vmatprep.mubr.f32.mxu0 0.0
    %524 = vmatmul.mubr.f32.gmra.mrb[0].mxu0 %v426
    %v525 = vpop.f32.mrb[0].mxu0
    %v526 = vadd.f32 %v407, %v525
    %v527 = vpop.f32.mrb[0].mxu0
    %528 = vmatprep.mubr.f32.mxu0 0.0
    %529 = vmatmul.mubr.f32.gmra.mrb[0].mxu0 %v429
    %v530 = vpop.f32.mrb[0].mxu0
    %v531 = vadd.f32 %v407, %v530
    %v532 = vpop.f32.mrb[0].mxu0
    %533 = vmatprep.mubr.f32.mxu0 0.0
    %534 = vmatmul.mubr.f32.gmra.mrb[0].mxu0 %v432
    %v535 = vpop.f32.mrb[0].mxu0
    %v536 = vadd.f32 %v407, %v535
    %v537 = vpop.f32.mrb[0].mxu0
    %538 = vdwg.mxu0
    %v539 = vmax.f32 %v501, 0.0
    %v540 = vmax.f32 %v506, 0.0
    %v541 = vmax.f32 %v511, 0.0
    %v542 = vmax.f32 %v516, 0.0
    %v543 = vmax.f32 %v521, 0.0
    %v544 = vmax.f32 %v526, 0.0
    %v545 = vmax.f32 %v531, 0.0
    %v546 = vmax.f32 %v536, 0.0
    %v547 = vld [vmem:[%s9] sm:$0xff]
    %v548 = vld [vmem:[%s9 + $0x8] sm:$0xff]
    %v549 = vld [vmem:[%s9 + $0x10] sm:$0xff]
    %v550 = vld [vmem:[%s9 + $0x18] sm:$0xff]
    %v551 = vld [vmem:[%s11] sm:$0x1]
    %v553 = vlaneseq
    %v554 = vshrl.u32 %v553, 7
    %v555 = vsub.s32 0, %v554
    %v556 = vrot.slane %v551, %v555
    %v559 = vsel %vm409, %v539, 0
    %v562 = vsel %vm409, %v540, 0
    %v565 = vsel %vm409, %v541, 0
    %v568 = vsel %vm409, %v542, 0
    %v571 = vsel %vm409, %v543, 0
    %v574 = vsel %vm409, %v544, 0
    %v577 = vsel %vm409, %v545, 0
    %v580 = vsel %vm409, %v546, 0
    %582 = vmatprep.subr.mxu0 0.0
    %583 = vmatpush1.msra.mxu0 %v547
    %584 = vmatprep.subr.mxu0 0.0
    %585 = vmatpush1.msra.mxu0 %v548
    %586 = vmatprep.subr.mxu0 0.0
    %587 = vmatpush1.msra.mxu0 %v549
    %588 = vmatprep.subr.mxu0 0.0
    %589 = vmatpush1.msra.mxu0 %v550
    %590 = vmatprep.subr.mxu0 0.0
    %591 = vmatpush1.msra.mxu0 0.0
    %592 = vmatprep.subr.mxu0 0.0
    %593 = vmatpush1.msra.mxu0 0.0
    %594 = vmatprep.subr.mxu0 0.0
    %595 = vmatpush1.msra.mxu0 0.0
    %596 = vmatprep.subr.mxu0 0.0
    %597 = vmatpush1.msra.mxu0 0.0
    %598 = vmatprep.subr.mxu0 0.0
    %599 = vmatpush1.msra.mxu0 0.0
    %600 = vmatprep.subr.mxu0 0.0
    %601 = vmatpush1.msra.mxu0 0.0
    %602 = vmatprep.subr.mxu0 0.0
    %603 = vmatpush1.msra.mxu0 0.0
    %604 = vmatprep.subr.mxu0 0.0
    %605 = vmatpush1.msra.mxu0 0.0
    %606 = vmatprep.subr.mxu0 0.0
    %607 = vmatpush1.msra.mxu0 0.0
    %608 = vmatprep.subr.mxu0 0.0
    %609 = vmatpush1.msra.mxu0 0.0
    %610 = vmatprep.subr.mxu0 0.0
    %611 = vmatpush1.msra.mxu0 0.0
    %612 = vmatprep.subr.mxu0 0.0
    %613 = vmatpush1.msra.mxu0 0.0
    %614 = vmatprep.subr.mxu0 0.0
    %615 = vmatpush1.msra.mxu0 0.0
    %616 = vmatprep.subr.mxu0 0.0
    %617 = vmatpush1.msra.mxu0 0.0
    %618 = vmatprep.subr.mxu0 0.0
    %619 = vmatpush1.msra.mxu0 0.0
    %620 = vmatprep.subr.mxu0 0.0
    %621 = vmatpush1.msra.mxu0 0.0
    %622 = vmatprep.subr.mxu0 0.0
    %623 = vmatpush1.msra.mxu0 0.0
    %624 = vmatprep.subr.mxu0 0.0
    %625 = vmatpush1.msra.mxu0 0.0
    %626 = vmatprep.subr.mxu0 0.0
    %627 = vmatpush1.msra.mxu0 0.0
    %628 = vmatprep.subr.mxu0 0.0
    %629 = vmatpush1.msra.mxu0 0.0
    %630 = vmatprep.subr.mxu0 0.0
    %631 = vmatpush1.msra.mxu0 0.0
    %632 = vmatprep.subr.mxu0 0.0
    %633 = vmatpush1.msra.mxu0 0.0
    %634 = vmatprep.subr.mxu0 0.0
    %635 = vmatpush1.msra.mxu0 0.0
    %636 = vmatprep.subr.mxu0 0.0
    %637 = vmatpush1.msra.mxu0 0.0
    %638 = vmatprep.subr.mxu0 0.0
    %639 = vmatpush1.msra.mxu0 0.0
    %640 = vmatprep.subr.mxu0 0.0
    %641 = vmatpush1.msra.mxu0 0.0
    %642 = vmatprep.subr.mxu0 0.0
    %643 = vmatpush1.msra.mxu0 0.0
    %644 = vmatprep.subr.mxu0 0.0
    %645 = vmatpush1.msra.mxu0 0.0
    %646 = vmatprep.mubr.f32.mxu0 0.0
    %647 = vmatmul.mubr.f32.gmra.mrb[0].mxu0 %v559
    %v648 = vpop.f32.mrb[0].mxu0
    %v649 = vadd.f32 %v556, %v648
    %v650 = vpop.f32.mrb[0].mxu0
    %651 = vmatprep.mubr.f32.mxu0 0.0
    %652 = vmatmul.mubr.f32.gmra.mrb[0].mxu0 %v562
    %v653 = vpop.f32.mrb[0].mxu0
    %v654 = vadd.f32 %v556, %v653
    %v655 = vpop.f32.mrb[0].mxu0
    %656 = vmatprep.mubr.f32.mxu0 0.0
    %657 = vmatmul.mubr.f32.gmra.mrb[0].mxu0 %v565
    %v658 = vpop.f32.mrb[0].mxu0
    %v659 = vadd.f32 %v556, %v658
    %v660 = vpop.f32.mrb[0].mxu0
    %661 = vmatprep.mubr.f32.mxu0 0.0
    %662 = vmatmul.mubr.f32.gmra.mrb[0].mxu0 %v568
    %v663 = vpop.f32.mrb[0].mxu0
    %v664 = vadd.f32 %v556, %v663
    %v665 = vpop.f32.mrb[0].mxu0
    %666 = vmatprep.mubr.f32.mxu0 0.0
    %667 = vmatmul.mubr.f32.gmra.mrb[0].mxu0 %v571
    %v668 = vpop.f32.mrb[0].mxu0
    %v669 = vadd.f32 %v556, %v668
    %v670 = vpop.f32.mrb[0].mxu0
    %671 = vmatprep.mubr.f32.mxu0 0.0
    %672 = vmatmul.mubr.f32.gmra.mrb[0].mxu0 %v574
    %v673 = vpop.f32.mrb[0].mxu0
    %v674 = vadd.f32 %v556, %v673
    %v675 = vpop.f32.mrb[0].mxu0
    %676 = vmatprep.mubr.f32.mxu0 0.0
    %677 = vmatmul.mubr.f32.gmra.mrb[0].mxu0 %v577
    %v678 = vpop.f32.mrb[0].mxu0
    %v679 = vadd.f32 %v556, %v678
    %v680 = vpop.f32.mrb[0].mxu0
    %681 = vmatprep.mubr.f32.mxu0 0.0
    %682 = vmatmul.mubr.f32.gmra.mrb[0].mxu0 %v580
    %v683 = vpop.f32.mrb[0].mxu0
    %v684 = vadd.f32 %v556, %v683
    %v685 = vpop.f32.mrb[0].mxu0
    %686 = vdwg.mxu0
    %v687 = vmax.f32 %v649, 0.0
    %v688 = vmax.f32 %v654, 0.0
    %v689 = vmax.f32 %v659, 0.0
    %v690 = vmax.f32 %v664, 0.0
    %v691 = vmax.f32 %v669, 0.0
    %v692 = vmax.f32 %v674, 0.0
    %v693 = vmax.f32 %v679, 0.0
    %v694 = vmax.f32 %v684, 0.0
    %703 = vrot.lane.b32.xlu0 0.0, 16
    %v704 = vpop.permute.xlu0 %703
    %705 = vrot.lane.b32.xlu0 %v687, 16
    %v706 = vpop.permute.xlu0 %705
    %707 = vrot.lane.b32.xlu0 %v688, 16
    %v708 = vpop.permute.xlu0 %707
    %709 = vrot.lane.b32.xlu0 %v689, 16
    %v710 = vpop.permute.xlu0 %709
    %711 = vrot.lane.b32.xlu0 %v690, 16
    %v712 = vpop.permute.xlu0 %711
    %713 = vrot.lane.b32.xlu0 %v691, 16
    %v714 = vpop.permute.xlu0 %713
    %715 = vrot.lane.b32.xlu0 %v692, 16
    %v716 = vpop.permute.xlu0 %715
    %717 = vrot.lane.b32.xlu0 %v693, 16
    %v718 = vpop.permute.xlu0 %717
    %728 = vrot.lane.b32.xlu0 %v687, 32
    %v729 = vpop.permute.xlu0 %728
    %730 = vrot.lane.b32.xlu0 %v688, 32
    %v731 = vpop.permute.xlu0 %730
    %732 = vrot.lane.b32.xlu0 %v689, 32
    %v733 = vpop.permute.xlu0 %732
    %734 = vrot.lane.b32.xlu0 %v690, 32
    %v735 = vpop.permute.xlu0 %734
    %736 = vrot.lane.b32.xlu0 %v691, 32
    %v737 = vpop.permute.xlu0 %736
    %738 = vrot.lane.b32.xlu0 %v692, 32
    %v739 = vpop.permute.xlu0 %738
    %740 = vrot.lane.b32.xlu0 %v693, 32
    %v741 = vpop.permute.xlu0 %740
    %742 = vrot.lane.b32.xlu0 %v694, 32
    %v743 = vpop.permute.xlu0 %742
    %752 = vrot.lane.b32.xlu0 %v688, 48
    %v753 = vpop.permute.xlu0 %752
    %754 = vrot.lane.b32.xlu0 %v689, 48
    %v755 = vpop.permute.xlu0 %754
    %756 = vrot.lane.b32.xlu0 %v690, 48
    %v757 = vpop.permute.xlu0 %756
    %758 = vrot.lane.b32.xlu0 %v691, 48
    %v759 = vpop.permute.xlu0 %758
    %760 = vrot.lane.b32.xlu0 %v692, 48
    %v761 = vpop.permute.xlu0 %760
    %762 = vrot.lane.b32.xlu0 %v693, 48
    %v763 = vpop.permute.xlu0 %762
    %764 = vrot.lane.b32.xlu0 %v694, 48
    %v765 = vpop.permute.xlu0 %764
    %766 = vrot.lane.b32.xlu0 0.0, 48
    %v767 = vpop.permute.xlu0 %766
    %vm776 = vcmask 130048
    %v777 = vsel %vm776, 0.0, %v704
    %v778 = vsel %vm776, 0.0, %v706
    %v779 = vsel %vm776, %v687, %v708
    %v780 = vsel %vm776, %v688, %v710
    %v781 = vsel %vm776, %v689, %v712
    %v782 = vsel %vm776, %v690, %v714
    %v783 = vsel %vm776, %v691, %v716
    %v784 = vsel %vm776, %v692, %v718
    %v785 = vsel %vm409, %v777, %v729
    %v786 = vsel %vm409, %v778, %v731
    %v787 = vsel %vm409, %v779, %v733
    %v788 = vsel %vm409, %v780, %v735
    %v789 = vsel %vm409, %v781, %v737
    %v790 = vsel %vm409, %v782, %v739
    %v791 = vsel %vm409, %v783, %v741
    %v792 = vsel %vm409, %v784, %v743
    %vm793 = vcmask 392192
    %v794 = vsel %vm793, %v785, %v753
    %v795 = vsel %vm793, %v786, %v755
    %v796 = vsel %vm793, %v787, %v757
    %v797 = vsel %vm793, %v788, %v759
    %v798 = vsel %vm793, %v789, %v761
    %v799 = vsel %vm793, %v790, %v763
    %v800 = vsel %vm793, %v791, %v765
    %v801 = vsel %vm793, %v792, %v767
    %v802 = vld [vmem:[%s13] sm:$0xff]
    %v803 = vld [vmem:[%s13 + $0x8] sm:$0xff]
    %v804 = vld [vmem:[%s13 + $0x10] sm:$0xff]
    %v805 = vld [vmem:[%s13 + $0x18] sm:$0xff]
    %v806 = vld [vmem:[%s13 + $0x20] sm:$0xff]
    %v807 = vld [vmem:[%s13 + $0x28] sm:$0xff]
    %v808 = vld [vmem:[%s13 + $0x30] sm:$0xff]
    %v809 = vld [vmem:[%s13 + $0x38] sm:$0xff]
    %v810 = vld [vmem:[#allocation5] sm:$0x1]
    %v812 = vlaneseq
    %v813 = vshrl.u32 %v812, 7
    %v814 = vsub.s32 0, %v813
    %v815 = vrot.slane %v810, %v814
    %vm817 = vcmask 523264
    %v819 = vsel %vm817, %v794, 0
    %v822 = vsel %vm817, %v795, 0
    %v825 = vsel %vm817, %v796, 0
    %v828 = vsel %vm817, %v797, 0
    %v831 = vsel %vm817, %v798, 0
    %v834 = vsel %vm817, %v799, 0
    %v837 = vsel %vm817, %v800, 0
    %v840 = vsel %vm817, %v801, 0
    %842 = vmatprep.subr.mxu0 0.0
    %843 = vmatpush1.msra.mxu0 %v802
    %844 = vmatprep.subr.mxu0 0.0
    %845 = vmatpush1.msra.mxu0 %v803
    %846 = vmatprep.subr.mxu0 0.0
    %847 = vmatpush1.msra.mxu0 %v804
    %848 = vmatprep.subr.mxu0 0.0
    %849 = vmatpush1.msra.mxu0 %v805
    %850 = vmatprep.subr.mxu0 0.0
    %851 = vmatpush1.msra.mxu0 %v806
    %852 = vmatprep.subr.mxu0 0.0
    %853 = vmatpush1.msra.mxu0 %v807
    %854 = vmatprep.subr.mxu0 0.0
    %855 = vmatpush1.msra.mxu0 %v808
    %856 = vmatprep.subr.mxu0 0.0
    %857 = vmatpush1.msra.mxu0 %v809
    %858 = vmatprep.subr.mxu0 0.0
    %859 = vmatpush1.msra.mxu0 0.0
    %860 = vmatprep.subr.mxu0 0.0
    %861 = vmatpush1.msra.mxu0 0.0
    %862 = vmatprep.subr.mxu0 0.0
    %863 = vmatpush1.msra.mxu0 0.0
    %864 = vmatprep.subr.mxu0 0.0
    %865 = vmatpush1.msra.mxu0 0.0
    %866 = vmatprep.subr.mxu0 0.0
    %867 = vmatpush1.msra.mxu0 0.0
    %868 = vmatprep.subr.mxu0 0.0
    %869 = vmatpush1.msra.mxu0 0.0
    %870 = vmatprep.subr.mxu0 0.0
    %871 = vmatpush1.msra.mxu0 0.0
    %872 = vmatprep.subr.mxu0 0.0
    %873 = vmatpush1.msra.mxu0 0.0
    %874 = vmatprep.subr.mxu0 0.0
    %875 = vmatpush1.msra.mxu0 0.0
    %876 = vmatprep.subr.mxu0 0.0
    %877 = vmatpush1.msra.mxu0 0.0
    %878 = vmatprep.subr.mxu0 0.0
    %879 = vmatpush1.msra.mxu0 0.0
    %880 = vmatprep.subr.mxu0 0.0
    %881 = vmatpush1.msra.mxu0 0.0
    %882 = vmatprep.subr.mxu0 0.0
    %883 = vmatpush1.msra.mxu0 0.0
    %884 = vmatprep.subr.mxu0 0.0
    %885 = vmatpush1.msra.mxu0 0.0
    %886 = vmatprep.subr.mxu0 0.0
    %887 = vmatpush1.msra.mxu0 0.0
    %888 = vmatprep.subr.mxu0 0.0
    %889 = vmatpush1.msra.mxu0 0.0
    %890 = vmatprep.subr.mxu0 0.0
    %891 = vmatpush1.msra.mxu0 0.0
    %892 = vmatprep.subr.mxu0 0.0
    %893 = vmatpush1.msra.mxu0 0.0
    %894 = vmatprep.subr.mxu0 0.0
    %895 = vmatpush1.msra.mxu0 0.0
    %896 = vmatprep.subr.mxu0 0.0
    %897 = vmatpush1.msra.mxu0 0.0
    %898 = vmatprep.subr.mxu0 0.0
    %899 = vmatpush1.msra.mxu0 0.0
    %900 = vmatprep.subr.mxu0 0.0
    %901 = vmatpush1.msra.mxu0 0.0
    %902 = vmatprep.subr.mxu0 0.0
    %903 = vmatpush1.msra.mxu0 0.0
    %904 = vmatprep.subr.mxu0 0.0
    %905 = vmatpush1.msra.mxu0 0.0
    %906 = vmatprep.mubr.f32.mxu0 0.0
    %907 = vmatmul.mubr.f32.gmra.mrb[0].mxu0 %v819
    %v908 = vpop.f32.mrb[0].mxu0
    %v909 = vadd.f32 %v815, %v908
    %v910 = vpop.f32.mrb[0].mxu0
    %911 = vmatprep.mubr.f32.mxu0 0.0
    %912 = vmatmul.mubr.f32.gmra.mrb[0].mxu0 %v822
    %v913 = vpop.f32.mrb[0].mxu0
    %v914 = vadd.f32 %v815, %v913
    %v915 = vpop.f32.mrb[0].mxu0
    %916 = vmatprep.mubr.f32.mxu0 0.0
    %917 = vmatmul.mubr.f32.gmra.mrb[0].mxu0 %v825
    %v918 = vpop.f32.mrb[0].mxu0
    %v919 = vadd.f32 %v815, %v918
    %v920 = vpop.f32.mrb[0].mxu0
    %921 = vmatprep.mubr.f32.mxu0 0.0
    %922 = vmatmul.mubr.f32.gmra.mrb[0].mxu0 %v828
    %v923 = vpop.f32.mrb[0].mxu0
    %v924 = vadd.f32 %v815, %v923
    %v925 = vpop.f32.mrb[0].mxu0
    %926 = vmatprep.mubr.f32.mxu0 0.0
    %927 = vmatmul.mubr.f32.gmra.mrb[0].mxu0 %v831
    %v928 = vpop.f32.mrb[0].mxu0
    %v929 = vadd.f32 %v815, %v928
    %v930 = vpop.f32.mrb[0].mxu0
    %931 = vmatprep.mubr.f32.mxu0 0.0
    %932 = vmatmul.mubr.f32.gmra.mrb[0].mxu0 %v834
    %v933 = vpop.f32.mrb[0].mxu0
    %v934 = vadd.f32 %v815, %v933
    %v935 = vpop.f32.mrb[0].mxu0
    %936 = vmatprep.mubr.f32.mxu0 0.0
    %937 = vmatmul.mubr.f32.gmra.mrb[0].mxu0 %v837
    %v938 = vpop.f32.mrb[0].mxu0
    %v939 = vadd.f32 %v815, %v938
    %v940 = vpop.f32.mrb[0].mxu0
    %941 = vmatprep.mubr.f32.mxu0 0.0
    %942 = vmatmul.mubr.f32.gmra.mrb[0].mxu0 %v840
    %v943 = vpop.f32.mrb[0].mxu0
    %v944 = vadd.f32 %v815, %v943
    %v945 = vpop.f32.mrb[0].mxu0
    %946 = vdwg.mxu0
    %v947 = vmax.f32 %v909, 0.0
    %v948 = vmax.f32 %v914, 0.0
    %v949 = vmax.f32 %v919, 0.0
    %v950 = vmax.f32 %v924, 0.0
    %v951 = vmax.f32 %v929, 0.0
    %v952 = vmax.f32 %v934, 0.0
    %v953 = vmax.f32 %v939, 0.0
    %v954 = vmax.f32 %v944, 0.0
    %v955 = vmax.f32 %v947, 0.0
    %v956 = vmax.f32 %v948, %v947
    %v957 = vmax.f32 %v949, %v948
    %v958 = vmax.f32 %v950, %v949
    %v959 = vmax.f32 %v951, %v950
    %v960 = vmax.f32 %v952, %v951
    %v961 = vmax.f32 %v953, %v952
    %v962 = vmax.f32 %v954, %v953
    %971 = vrot.lane.b32.xlu0 %v955, 64
    %v972 = vpop.permute.xlu0 %971
    %973 = vrot.lane.b32.xlu0 %v956, 64
    %v974 = vpop.permute.xlu0 %973
    %975 = vrot.lane.b32.xlu0 %v957, 64
    %v976 = vpop.permute.xlu0 %975
    %977 = vrot.lane.b32.xlu0 %v958, 64
    %v978 = vpop.permute.xlu0 %977
    %979 = vrot.lane.b32.xlu0 %v959, 64
    %v980 = vpop.permute.xlu0 %979
    %981 = vrot.lane.b32.xlu0 %v960, 64
    %v982 = vpop.permute.xlu0 %981
    %983 = vrot.lane.b32.xlu0 %v961, 64
    %v984 = vpop.permute.xlu0 %983
    %985 = vrot.lane.b32.xlu0 %v962, 64
    %v986 = vpop.permute.xlu0 %985
    %v995 = vsel %vm817, 0.0, %v972
    %v996 = vsel %vm817, %v955, %v974
    %v997 = vsel %vm817, %v956, %v976
    %v998 = vsel %vm817, %v957, %v978
    %v999 = vsel %vm817, %v958, %v980
    %v1000 = vsel %vm817, %v959, %v982
    %v1001 = vsel %vm817, %v960, %v984
    %v1002 = vsel %vm817, %v961, %v986
    %v1003 = vld [vmem:[%s17] sm:$0xff]
    %v1004 = vld [vmem:[%s17 + $0x8] sm:$0xff]
    %v1005 = vld [vmem:[%s17 + $0x10] sm:$0xff]
    %v1006 = vld [vmem:[%s17 + $0x18] sm:$0xff]
    %v1007 = vld [vmem:[%s17 + $0x20] sm:$0xff]
    %v1008 = vld [vmem:[%s17 + $0x28] sm:$0xff]
    %v1009 = vld [vmem:[%s17 + $0x30] sm:$0xff]
    %v1010 = vld [vmem:[%s17 + $0x38] sm:$0xff]
    %v1011 = vld [vmem:[%s17 + $0x40] sm:$0xff]
    %v1012 = vld [vmem:[%s17 + $0x48] sm:$0xff]
    %v1013 = vld [vmem:[%s17 + $0x50] sm:$0xff]
    %v1014 = vld [vmem:[%s17 + $0x58] sm:$0xff]
    %v1015 = vld [vmem:[%s17 + $0x60] sm:$0xff]
    %v1016 = vld [vmem:[%s17 + $0x68] sm:$0xff]
    %v1017 = vld [vmem:[%s17 + $0x70] sm:$0xff]
    %v1018 = vld [vmem:[%s17 + $0x78] sm:$0xff]
    %v1019 = vld [vmem:[%s17 + $0x80] sm:$0xff]
    %v1020 = vld [vmem:[%s17 + $0x88] sm:$0xff]
    %v1021 = vld [vmem:[%s17 + $0x90] sm:$0xff]
    %v1022 = vld [vmem:[%s17 + $0x98] sm:$0xff]
    %v1023 = vld [vmem:[%s17 + $0xa0] sm:$0xff]
    %v1024 = vld [vmem:[%s17 + $0xa8] sm:$0xff]
    %v1025 = vld [vmem:[%s17 + $0xb0] sm:$0xff]
    %v1026 = vld [vmem:[%s17 + $0xb8] sm:$0xff]
    %v1027 = vld [vmem:[%s19] sm:$0x1]
    %v1029 = vlaneseq
    %v1030 = vshrl.u32 %v1029, 7
    %v1031 = vsub.s32 0, %v1030
    %v1032 = vrot.slane %v1027, %v1031
    %v1034 = vsel %vm817, %v956, 0
    %v1036 = vsel %vm817, %v957, 0
    %v1038 = vsel %vm817, %v958, 0
    %v1040 = vsel %vm817, %v959, 0
    %v1042 = vsel %vm817, %v960, 0
    %v1044 = vsel %vm817, %v961, 0
    %v1046 = vsel %vm817, %v962, 0
    %v1048 = vsel %vm817, 0.0, 0
    %1050 = vmatprep.subr.mxu0 0.0
    %1051 = vmatpush1.msra.mxu0 %v1003
    %1052 = vmatprep.subr.mxu0 0.0
    %1053 = vmatpush1.msra.mxu0 %v1004
    %1054 = vmatprep.subr.mxu0 0.0
    %1055 = vmatpush1.msra.mxu0 %v1005
    %1056 = vmatprep.subr.mxu0 0.0
    %1057 = vmatpush1.msra.mxu0 %v1006
    %1058 = vmatprep.subr.mxu0 0.0
    %1059 = vmatpush1.msra.mxu0 %v1007
    %1060 = vmatprep.subr.mxu0 0.0
    %1061 = vmatpush1.msra.mxu0 %v1008
    %1062 = vmatprep.subr.mxu0 0.0
    %1063 = vmatpush1.msra.mxu0 %v1009
    %1064 = vmatprep.subr.mxu0 0.0
    %1065 = vmatpush1.msra.mxu0 %v1010
    %1066 = vmatprep.subr.mxu0 0.0
    %1067 = vmatpush1.msra.mxu0 %v1011
    %1068 = vmatprep.subr.mxu0 0.0
    %1069 = vmatpush1.msra.mxu0 %v1012
    %1070 = vmatprep.subr.mxu0 0.0
    %1071 = vmatpush1.msra.mxu0 %v1013
    %1072 = vmatprep.subr.mxu0 0.0
    %1073 = vmatpush1.msra.mxu0 %v1014
    %1074 = vmatprep.subr.mxu0 0.0
    %1075 = vmatpush1.msra.mxu0 %v1015
    %1076 = vmatprep.subr.mxu0 0.0
    %1077 = vmatpush1.msra.mxu0 %v1016
    %1078 = vmatprep.subr.mxu0 0.0
    %1079 = vmatpush1.msra.mxu0 %v1017
    %1080 = vmatprep.subr.mxu0 0.0
    %1081 = vmatpush1.msra.mxu0 %v1018
    %1082 = vmatprep.subr.mxu0 0.0
    %1083 = vmatpush1.msra.mxu0 %v1019
    %1084 = vmatprep.subr.mxu0 0.0
    %1085 = vmatpush1.msra.mxu0 %v1020
    %1086 = vmatprep.subr.mxu0 0.0
    %1087 = vmatpush1.msra.mxu0 %v1021
    %1088 = vmatprep.subr.mxu0 0.0
    %1089 = vmatpush1.msra.mxu0 %v1022
    %1090 = vmatprep.subr.mxu0 0.0
    %1091 = vmatpush1.msra.mxu0 %v1023
    %1092 = vmatprep.subr.mxu0 0.0
    %1093 = vmatpush1.msra.mxu0 %v1024
    %1094 = vmatprep.subr.mxu0 0.0
    %1095 = vmatpush1.msra.mxu0 %v1025
    %1096 = vmatprep.subr.mxu0 0.0
    %1097 = vmatpush1.msra.mxu0 %v1026
    %1098 = vmatprep.subr.mxu0 0.0
    %1099 = vmatpush1.msra.mxu0 0.0
    %1100 = vmatprep.subr.mxu0 0.0
    %1101 = vmatpush1.msra.mxu0 0.0
    %1102 = vmatprep.subr.mxu0 0.0
    %1103 = vmatpush1.msra.mxu0 0.0
    %1104 = vmatprep.subr.mxu0 0.0
    %1105 = vmatpush1.msra.mxu0 0.0
    %1106 = vmatprep.subr.mxu0 0.0
    %1107 = vmatpush1.msra.mxu0 0.0
    %1108 = vmatprep.subr.mxu0 0.0
    %1109 = vmatpush1.msra.mxu0 0.0
    %1110 = vmatprep.subr.mxu0 0.0
    %1111 = vmatpush1.msra.mxu0 0.0
    %1112 = vmatprep.subr.mxu0 0.0
    %1113 = vmatpush1.msra.mxu0 0.0
    %1114 = vmatprep.mubr.f32.mxu0 %v1034
    %1115 = vmatmul.mubr.f32.gmra.mrb[0].mxu0 %v995
    %v1116 = vpop.f32.mrb[0].mxu0
    %v1117 = vadd.f32 %v1032, %v1116
    %v1118 = vpop.f32.mrb[0].mxu0
    %1119 = vmatprep.mubr.f32.mxu0 %v1036
    %1120 = vmatmul.mubr.f32.gmra.mrb[0].mxu0 %v996
    %v1121 = vpop.f32.mrb[0].mxu0
    %v1122 = vadd.f32 %v1032, %v1121
    %v1123 = vpop.f32.mrb[0].mxu0
    %1124 = vmatprep.mubr.f32.mxu0 %v1038
    %1125 = vmatmul.mubr.f32.gmra.mrb[0].mxu0 %v997
    %v1126 = vpop.f32.mrb[0].mxu0
    %v1127 = vadd.f32 %v1032, %v1126
    %v1128 = vpop.f32.mrb[0].mxu0
    %1129 = vmatprep.mubr.f32.mxu0 %v1040
    %1130 = vmatmul.mubr.f32.gmra.mrb[0].mxu0 %v998
    %v1131 = vpop.f32.mrb[0].mxu0
    %v1132 = vadd.f32 %v1032, %v1131
    %v1133 = vpop.f32.mrb[0].mxu0
    %1134 = vmatprep.mubr.f32.mxu0 %v1042
    %1135 = vmatmul.mubr.f32.gmra.mrb[0].mxu0 %v999
    %v1136 = vpop.f32.mrb[0].mxu0
    %v1137 = vadd.f32 %v1032, %v1136
    %v1138 = vpop.f32.mrb[0].mxu0
    %1139 = vmatprep.mubr.f32.mxu0 %v1044
    %1140 = vmatmul.mubr.f32.gmra.mrb[0].mxu0 %v1000
    %v1141 = vpop.f32.mrb[0].mxu0
    %v1142 = vadd.f32 %v1032, %v1141
    %v1143 = vpop.f32.mrb[0].mxu0
    %1144 = vmatprep.mubr.f32.mxu0 %v1046
    %1145 = vmatmul.mubr.f32.gmra.mrb[0].mxu0 %v1001
    %v1146 = vpop.f32.mrb[0].mxu0
    %v1147 = vadd.f32 %v1032, %v1146
    %v1148 = vpop.f32.mrb[0].mxu0
    %1149 = vmatprep.mubr.f32.mxu0 %v1048
    %1150 = vmatmul.mubr.f32.gmra.mrb[0].mxu0 %v1002
    %v1151 = vpop.f32.mrb[0].mxu0
    %v1152 = vadd.f32 %v1032, %v1151
    %v1153 = vpop.f32.mrb[0].mxu0
    %1154 = vdwg.mxu0
    %v1155 = vmax.f32 %v1117, 0.0
    %v1156 = vmax.f32 %v1122, 0.0
    %v1157 = vmax.f32 %v1127, 0.0
    %v1158 = vmax.f32 %v1132, 0.0
    %v1159 = vmax.f32 %v1137, 0.0
    %v1160 = vmax.f32 %v1142, 0.0
    %v1161 = vmax.f32 %v1147, 0.0
    %v1162 = vmax.f32 %v1152, 0.0
    %1171 = vrot.lane.b32.xlu0 %v1155, 16
    %v1172 = vpop.permute.xlu0 %1171
    %1173 = vrot.lane.b32.xlu0 %v1156, 16
    %v1174 = vpop.permute.xlu0 %1173
    %1175 = vrot.lane.b32.xlu0 %v1157, 16
    %v1176 = vpop.permute.xlu0 %1175
    %1177 = vrot.lane.b32.xlu0 %v1158, 16
    %v1178 = vpop.permute.xlu0 %1177
    %1179 = vrot.lane.b32.xlu0 %v1159, 16
    %v1180 = vpop.permute.xlu0 %1179
    %1181 = vrot.lane.b32.xlu0 %v1160, 16
    %v1182 = vpop.permute.xlu0 %1181
    %1183 = vrot.lane.b32.xlu0 %v1161, 16
    %v1184 = vpop.permute.xlu0 %1183
    %1185 = vrot.lane.b32.xlu0 %v1162, 16
    %v1186 = vpop.permute.xlu0 %1185
    %1195 = vrot.lane.b32.xlu0 %v1156, 32
    %v1196 = vpop.permute.xlu0 %1195
    %1197 = vrot.lane.b32.xlu0 %v1157, 32
    %v1198 = vpop.permute.xlu0 %1197
    %1199 = vrot.lane.b32.xlu0 %v1158, 32
    %v1200 = vpop.permute.xlu0 %1199
    %1201 = vrot.lane.b32.xlu0 %v1159, 32
    %v1202 = vpop.permute.xlu0 %1201
    %1203 = vrot.lane.b32.xlu0 %v1160, 32
    %v1204 = vpop.permute.xlu0 %1203
    %1205 = vrot.lane.b32.xlu0 %v1161, 32
    %v1206 = vpop.permute.xlu0 %1205
    %1207 = vrot.lane.b32.xlu0 %v1162, 32
    %v1208 = vpop.permute.xlu0 %1207
    %1209 = vrot.lane.b32.xlu0 0.0, 32
    %v1210 = vpop.permute.xlu0 %1209
    %v1219 = vsel %vm776, 0.0, %v1172
    %v1220 = vsel %vm776, %v1155, %v1174
    %v1221 = vsel %vm776, %v1156, %v1176
    %v1222 = vsel %vm776, %v1157, %v1178
    %v1223 = vsel %vm776, %v1158, %v1180
    %v1224 = vsel %vm776, %v1159, %v1182
    %v1225 = vsel %vm776, %v1160, %v1184
    %v1226 = vsel %vm776, %v1161, %v1186
    %v1227 = vsel %vm409, %v1219, %v1196
    %v1228 = vsel %vm409, %v1220, %v1198
    %v1229 = vsel %vm409, %v1221, %v1200
    %v1230 = vsel %vm409, %v1222, %v1202
    %v1231 = vsel %vm409, %v1223, %v1204
    %v1232 = vsel %vm409, %v1224, %v1206
    %v1233 = vsel %vm409, %v1225, %v1208
    %v1234 = vsel %vm409, %v1226, %v1210
    %v1235 = vld [vmem:[%s21] sm:$0xff]
    %v1236 = vld [vmem:[%s21 + $0x8] sm:$0xff]
    %v1237 = vld [vmem:[%s21 + $0x10] sm:$0xff]
    %v1238 = vld [vmem:[%s21 + $0x18] sm:$0xff]
    %v1239 = vld [vmem:[%s21 + $0x20] sm:$0xff]
    %v1240 = vld [vmem:[%s21 + $0x28] sm:$0xff]
    %v1241 = vld [vmem:[%s23] sm:$0x1]
    %v1243 = vlaneseq
    %v1244 = vshrl.u32 %v1243, 7
    %v1245 = vsub.s32 0, %v1244
    %v1246 = vrot.slane %v1241, %v1245
    %v1249 = vsel %vm793, %v1227, 0
    %v1252 = vsel %vm793, %v1228, 0
    %v1255 = vsel %vm793, %v1229, 0
    %v1258 = vsel %vm793, %v1230, 0
    %v1261 = vsel %vm793, %v1231, 0
    %v1264 = vsel %vm793, %v1232, 0
    %v1267 = vsel %vm793, %v1233, 0
    %v1270 = vsel %vm793, %v1234, 0
    %1272 = vmatprep.subr.mxu0 0.0
    %1273 = vmatpush1.msra.mxu0 %v1235
    %1274 = vmatprep.subr.mxu0 0.0
    %1275 = vmatpush1.msra.mxu0 %v1236
    %1276 = vmatprep.subr.mxu0 0.0
    %1277 = vmatpush1.msra.mxu0 %v1237
    %1278 = vmatprep.subr.mxu0 0.0
    %1279 = vmatpush1.msra.mxu0 %v1238
    %1280 = vmatprep.subr.mxu0 0.0
    %1281 = vmatpush1.msra.mxu0 %v1239
    %1282 = vmatprep.subr.mxu0 0.0
    %1283 = vmatpush1.msra.mxu0 %v1240
    %1284 = vmatprep.subr.mxu0 0.0
    %1285 = vmatpush1.msra.mxu0 0.0
    %1286 = vmatprep.subr.mxu0 0.0
    %1287 = vmatpush1.msra.mxu0 0.0
    %1288 = vmatprep.subr.mxu0 0.0
    %1289 = vmatpush1.msra.mxu0 0.0
    %1290 = vmatprep.subr.mxu0 0.0
    %1291 = vmatpush1.msra.mxu0 0.0
    %1292 = vmatprep.subr.mxu0 0.0
    %1293 = vmatpush1.msra.mxu0 0.0
    %1294 = vmatprep.subr.mxu0 0.0
    %1295 = vmatpush1.msra.mxu0 0.0
    %1296 = vmatprep.subr.mxu0 0.0
    %1297 = vmatpush1.msra.mxu0 0.0
    %1298 = vmatprep.subr.mxu0 0.0
    %1299 = vmatpush1.msra.mxu0 0.0
    %1300 = vmatprep.subr.mxu0 0.0
    %1301 = vmatpush1.msra.mxu0 0.0
    %1302 = vmatprep.subr.mxu0 0.0
    %1303 = vmatpush1.msra.mxu0 0.0
    %1304 = vmatprep.subr.mxu0 0.0
    %1305 = vmatpush1.msra.mxu0 0.0
    %1306 = vmatprep.subr.mxu0 0.0
    %1307 = vmatpush1.msra.mxu0 0.0
    %1308 = vmatprep.subr.mxu0 0.0
    %1309 = vmatpush1.msra.mxu0 0.0
    %1310 = vmatprep.subr.mxu0 0.0
    %1311 = vmatpush1.msra.mxu0 0.0
    %1312 = vmatprep.subr.mxu0 0.0
    %1313 = vmatpush1.msra.mxu0 0.0
    %1314 = vmatprep.subr.mxu0 0.0
    %1315 = vmatpush1.msra.mxu0 0.0
    %1316 = vmatprep.subr.mxu0 0.0
    %1317 = vmatpush1.msra.mxu0 0.0
    %1318 = vmatprep.subr.mxu0 0.0
    %1319 = vmatpush1.msra.mxu0 0.0
    %1320 = vmatprep.subr.mxu0 0.0
    %1321 = vmatpush1.msra.mxu0 0.0
    %1322 = vmatprep.subr.mxu0 0.0
    %1323 = vmatpush1.msra.mxu0 0.0
    %1324 = vmatprep.subr.mxu0 0.0
    %1325 = vmatpush1.msra.mxu0 0.0
    %1326 = vmatprep.subr.mxu0 0.0
    %1327 = vmatpush1.msra.mxu0 0.0
    %1328 = vmatprep.subr.mxu0 0.0
    %1329 = vmatpush1.msra.mxu0 0.0
    %1330 = vmatprep.subr.mxu0 0.0
    %1331 = vmatpush1.msra.mxu0 0.0
    %1332 = vmatprep.subr.mxu0 0.0
    %1333 = vmatpush1.msra.mxu0 0.0
    %1334 = vmatprep.subr.mxu0 0.0
    %1335 = vmatpush1.msra.mxu0 0.0
    %1336 = vmatprep.mubr.f32.mxu0 0.0
    %1337 = vmatmul.mubr.f32.gmra.mrb[0].mxu0 %v1249
    %v1338 = vpop.f32.mrb[0].mxu0
    %v1339 = vadd.f32 %v1246, %v1338
    %v1340 = vpop.f32.mrb[0].mxu0
    %1341 = vmatprep.mubr.f32.mxu0 0.0
    %1342 = vmatmul.mubr.f32.gmra.mrb[0].mxu0 %v1252
    %v1343 = vpop.f32.mrb[0].mxu0
    %v1344 = vadd.f32 %v1246, %v1343
    %v1345 = vpop.f32.mrb[0].mxu0
    %1346 = vmatprep.mubr.f32.mxu0 0.0
    %1347 = vmatmul.mubr.f32.gmra.mrb[0].mxu0 %v1255
    %v1348 = vpop.f32.mrb[0].mxu0
    %v1349 = vadd.f32 %v1246, %v1348
    %v1350 = vpop.f32.mrb[0].mxu0
    %1351 = vmatprep.mubr.f32.mxu0 0.0
    %1352 = vmatmul.mubr.f32.gmra.mrb[0].mxu0 %v1258
    %v1353 = vpop.f32.mrb[0].mxu0
    %v1354 = vadd.f32 %v1246, %v1353
    %v1355 = vpop.f32.mrb[0].mxu0
    %1356 = vmatprep.mubr.f32.mxu0 0.0
    %1357 = vmatmul.mubr.f32.gmra.mrb[0].mxu0 %v1261
    %v1358 = vpop.f32.mrb[0].mxu0
    %v1359 = vadd.f32 %v1246, %v1358
    %v1360 = vpop.f32.mrb[0].mxu0
    %1361 = vmatprep.mubr.f32.mxu0 0.0
    %1362 = vmatmul.mubr.f32.gmra.mrb[0].mxu0 %v1264
    %v1363 = vpop.f32.mrb[0].mxu0
    %v1364 = vadd.f32 %v1246, %v1363
    %v1365 = vpop.f32.mrb[0].mxu0
    %1366 = vmatprep.mubr.f32.mxu0 0.0
    %1367 = vmatmul.mubr.f32.gmra.mrb[0].mxu0 %v1267
    %v1368 = vpop.f32.mrb[0].mxu0
    %v1369 = vadd.f32 %v1246, %v1368
    %v1370 = vpop.f32.mrb[0].mxu0
    %1371 = vmatprep.mubr.f32.mxu0 0.0
    %1372 = vmatmul.mubr.f32.gmra.mrb[0].mxu0 %v1270
    %v1373 = vpop.f32.mrb[0].mxu0
    %v1374 = vadd.f32 %v1246, %v1373
    %v1375 = vpop.f32.mrb[0].mxu0
    %1376 = vdwg.mxu0
    %v1377 = vadd.f32 %v1339, %v687
    %v1378 = vadd.f32 %v1344, %v688
    %v1379 = vadd.f32 %v1349, %v689
    %v1380 = vadd.f32 %v1354, %v690
    %v1381 = vadd.f32 %v1359, %v691
    %v1382 = vadd.f32 %v1364, %v692
    %v1383 = vadd.f32 %v1369, %v693
    %v1384 = vadd.f32 %v1374, %v694
    %v1385 = vld [vmem:[%s25] sm:$0xff]
    %v1386 = vld [vmem:[%s25 + $0x8] sm:$0xff]
    %v1387 = vld [vmem:[%s27] sm:$0x1]
    %v1389 = vlaneseq
    %v1390 = vshrl.u32 %v1389, 7
    %v1391 = vsub.s32 0, %v1390
    %v1392 = vrot.slane %v1387, %v1391
    %v1395 = vsel %vm776, %v1377, 0
    %v1398 = vsel %vm776, %v1378, 0
    %v1401 = vsel %vm776, %v1379, 0
    %v1404 = vsel %vm776, %v1380, 0
    %v1407 = vsel %vm776, %v1381, 0
    %v1410 = vsel %vm776, %v1382, 0
    %v1413 = vsel %vm776, %v1383, 0
    %v1416 = vsel %vm776, %v1384, 0
    %1418 = vmatprep.subr.mxu0 0.0
    %1419 = vmatpush1.msra.mxu0 %v1385
    %1420 = vmatprep.subr.mxu0 0.0
    %1421 = vmatpush1.msra.mxu0 %v1386
    %1422 = vmatprep.subr.mxu0 0.0
    %1423 = vmatpush1.msra.mxu0 0.0
    %1424 = vmatprep.subr.mxu0 0.0
    %1425 = vmatpush1.msra.mxu0 0.0
    %1426 = vmatprep.subr.mxu0 0.0
    %1427 = vmatpush1.msra.mxu0 0.0
    %1428 = vmatprep.subr.mxu0 0.0
    %1429 = vmatpush1.msra.mxu0 0.0
    %1430 = vmatprep.subr.mxu0 0.0
    %1431 = vmatpush1.msra.mxu0 0.0
    %1432 = vmatprep.subr.mxu0 0.0
    %1433 = vmatpush1.msra.mxu0 0.0
    %1434 = vmatprep.subr.mxu0 0.0
    %1435 = vmatpush1.msra.mxu0 0.0
    %1436 = vmatprep.subr.mxu0 0.0
    %1437 = vmatpush1.msra.mxu0 0.0
    %1438 = vmatprep.subr.mxu0 0.0
    %1439 = vmatpush1.msra.mxu0 0.0
    %1440 = vmatprep.subr.mxu0 0.0
    %1441 = vmatpush1.msra.mxu0 0.0
    %1442 = vmatprep.subr.mxu0 0.0
    %1443 = vmatpush1.msra.mxu0 0.0
    %1444 = vmatprep.subr.mxu0 0.0
    %1445 = vmatpush1.msra.mxu0 0.0
    %1446 = vmatprep.subr.mxu0 0.0
    %1447 = vmatpush1.msra.mxu0 0.0
    %1448 = vmatprep.subr.mxu0 0.0
    %1449 = vmatpush1.msra.mxu0 0.0
    %1450 = vmatprep.subr.mxu0 0.0
    %1451 = vmatpush1.msra.mxu0 0.0
    %1452 = vmatprep.subr.mxu0 0.0
    %1453 = vmatpush1.msra.mxu0 0.0
    %1454 = vmatprep.subr.mxu0 0.0
    %1455 = vmatpush1.msra.mxu0 0.0
    %1456 = vmatprep.subr.mxu0 0.0
    %1457 = vmatpush1.msra.mxu0 0.0
    %1458 = vmatprep.subr.mxu0 0.0
    %1459 = vmatpush1.msra.mxu0 0.0
    %1460 = vmatprep.subr.mxu0 0.0
    %1461 = vmatpush1.msra.mxu0 0.0
    %1462 = vmatprep.subr.mxu0 0.0
    %1463 = vmatpush1.msra.mxu0 0.0
    %1464 = vmatprep.subr.mxu0 0.0
    %1465 = vmatpush1.msra.mxu0 0.0
    %1466 = vmatprep.subr.mxu0 0.0
    %1467 = vmatpush1.msra.mxu0 0.0
    %1468 = vmatprep.subr.mxu0 0.0
    %1469 = vmatpush1.msra.mxu0 0.0
    %1470 = vmatprep.subr.mxu0 0.0
    %1471 = vmatpush1.msra.mxu0 0.0
    %1472 = vmatprep.subr.mxu0 0.0
    %1473 = vmatpush1.msra.mxu0 0.0
    %1474 = vmatprep.subr.mxu0 0.0
    %1475 = vmatpush1.msra.mxu0 0.0
    %1476 = vmatprep.subr.mxu0 0.0
    %1477 = vmatpush1.msra.mxu0 0.0
    %1478 = vmatprep.subr.mxu0 0.0
    %1479 = vmatpush1.msra.mxu0 0.0
    %1480 = vmatprep.subr.mxu0 0.0
    %1481 = vmatpush1.msra.mxu0 0.0
    %1482 = vmatprep.mubr.f32.mxu0 0.0
    %1483 = vmatmul.mubr.f32.gmra.mrb[0].mxu0 %v1395
    %v1484 = vpop.f32.mrb[0].mxu0
    %v1485 = vadd.f32 %v1392, %v1484
    %v1486 = vpop.f32.mrb[0].mxu0
    %1487 = vmatprep.mubr.f32.mxu0 0.0
    %1488 = vmatmul.mubr.f32.gmra.mrb[0].mxu0 %v1398
    %v1489 = vpop.f32.mrb[0].mxu0
    %v1490 = vadd.f32 %v1392, %v1489
    %v1491 = vpop.f32.mrb[0].mxu0
    %1492 = vmatprep.mubr.f32.mxu0 0.0
    %1493 = vmatmul.mubr.f32.gmra.mrb[0].mxu0 %v1401
    %v1494 = vpop.f32.mrb[0].mxu0
    %v1495 = vadd.f32 %v1392, %v1494
    %v1496 = vpop.f32.mrb[0].mxu0
    %1497 = vmatprep.mubr.f32.mxu0 0.0
    %1498 = vmatmul.mubr.f32.gmra.mrb[0].mxu0 %v1404
    %v1499 = vpop.f32.mrb[0].mxu0
    %v1500 = vadd.f32 %v1392, %v1499
    %v1501 = vpop.f32.mrb[0].mxu0
    %1502 = vmatprep.mubr.f32.mxu0 0.0
    %1503 = vmatmul.mubr.f32.gmra.mrb[0].mxu0 %v1407
    %v1504 = vpop.f32.mrb[0].mxu0
    %v1505 = vadd.f32 %v1392, %v1504
    %v1506 = vpop.f32.mrb[0].mxu0
    %1507 = vmatprep.mubr.f32.mxu0 0.0
    %1508 = vmatmul.mubr.f32.gmra.mrb[0].mxu0 %v1410
    %v1509 = vpop.f32.mrb[0].mxu0
    %v1510 = vadd.f32 %v1392, %v1509
    %v1511 = vpop.f32.mrb[0].mxu0
    %1512 = vmatprep.mubr.f32.mxu0 0.0
    %1513 = vmatmul.mubr.f32.gmra.mrb[0].mxu0 %v1413
    %v1514 = vpop.f32.mrb[0].mxu0
    %v1515 = vadd.f32 %v1392, %v1514
    %v1516 = vpop.f32.mrb[0].mxu0
    %1517 = vmatprep.mubr.f32.mxu0 0.0
    %1518 = vmatmul.mubr.f32.gmra.mrb[0].mxu0 %v1416
    %v1519 = vpop.f32.mrb[0].mxu0
    %v1520 = vadd.f32 %v1392, %v1519
    %v1521 = vpop.f32.mrb[0].mxu0
    %1522 = vdwg.mxu0
    %v1523 = vxor.u32 %v1485, 2147483648
    %v1524 = vxor.u32 %v1490, 2147483648
    %v1525 = vxor.u32 %v1495, 2147483648
    %v1526 = vxor.u32 %v1500, 2147483648
    %v1527 = vxor.u32 %v1505, 2147483648
    %v1528 = vxor.u32 %v1510, 2147483648
    %v1529 = vxor.u32 %v1515, 2147483648
    %v1530 = vxor.u32 %v1520, 2147483648
    %v1531 = vmul.f32 %v1523, 1.442695
    %v1532 = vpow.pop %v1531
    %v1533 = vmul.f32 %v1524, 1.442695
    %v1534 = vpow.pop %v1533
    %v1535 = vmul.f32 %v1525, 1.442695
    %v1536 = vpow.pop %v1535
    %v1537 = vmul.f32 %v1526, 1.442695
    %v1538 = vpow.pop %v1537
    %v1539 = vmul.f32 %v1527, 1.442695
    %v1540 = vpow.pop %v1539
    %v1541 = vmul.f32 %v1528, 1.442695
    %v1542 = vpow.pop %v1541
    %v1543 = vmul.f32 %v1529, 1.442695
    %v1544 = vpow.pop %v1543
    %v1545 = vmul.f32 %v1530, 1.442695
    %v1546 = vpow.pop %v1545
    %v1547 = vadd.f32 %v1532, 1.0
    %v1548 = vadd.f32 %v1534, 1.0
    %v1549 = vadd.f32 %v1536, 1.0
    %v1550 = vadd.f32 %v1538, 1.0
    %v1551 = vadd.f32 %v1540, 1.0
    %v1552 = vadd.f32 %v1542, 1.0
    %v1553 = vadd.f32 %v1544, 1.0
    %v1554 = vadd.f32 %v1546, 1.0
    %v1555 = vrcp.pop %v1547
    %v1556 = vmul.f32 1.0, %v1555
    %v1557 = vrcp.pop %v1548
    %v1558 = vmul.f32 1.0, %v1557
    %v1559 = vrcp.pop %v1549
    %v1560 = vmul.f32 1.0, %v1559
    %v1561 = vrcp.pop %v1550
    %v1562 = vmul.f32 1.0, %v1561
    %v1563 = vrcp.pop %v1551
    %v1564 = vmul.f32 1.0, %v1563
    %v1565 = vrcp.pop %v1552
    %v1566 = vmul.f32 1.0, %v1565
    %v1567 = vrcp.pop %v1553
    %v1568 = vmul.f32 1.0, %v1567
    %v1569 = vrcp.pop %v1554
    %v1570 = vmul.f32 1.0, %v1569
    %v1571 = vmax.f32 %v1485, 0.0
    %v1572 = vmax.f32 %v1490, 0.0
    %v1573 = vmax.f32 %v1495, 0.0
    %v1574 = vmax.f32 %v1500, 0.0
    %v1575 = vmax.f32 %v1505, 0.0
    %v1576 = vmax.f32 %v1510, 0.0
    %v1577 = vmax.f32 %v1515, 0.0
    %v1578 = vmax.f32 %v1520, 0.0
    %1587 = vrot.lane.b32.xlu0 %v1556, 112
    %v1588 = vpop.permute.xlu0 %1587
    %1589 = vrot.lane.b32.xlu0 %v1558, 112
    %v1590 = vpop.permute.xlu0 %1589
    %1591 = vrot.lane.b32.xlu0 %v1560, 112
    %v1592 = vpop.permute.xlu0 %1591
    %1593 = vrot.lane.b32.xlu0 %v1562, 112
    %v1594 = vpop.permute.xlu0 %1593
    %1595 = vrot.lane.b32.xlu0 %v1564, 112
    %v1596 = vpop.permute.xlu0 %1595
    %1597 = vrot.lane.b32.xlu0 %v1566, 112
    %v1598 = vpop.permute.xlu0 %1597
    %1599 = vrot.lane.b32.xlu0 %v1568, 112
    %v1600 = vpop.permute.xlu0 %1599
    %1601 = vrot.lane.b32.xlu0 %v1570, 112
    %v1602 = vpop.permute.xlu0 %1601
    %v1611 = vmul.f32 %v1571, %v1588
    %v1612 = vmul.f32 %v1572, %v1590
    %v1613 = vmul.f32 %v1573, %v1592
    %v1614 = vmul.f32 %v1574, %v1594
    %v1615 = vmul.f32 %v1575, %v1596
    %v1616 = vmul.f32 %v1576, %v1598
    %v1617 = vmul.f32 %v1577, %v1600
    %v1618 = vmul.f32 %v1578, %v1602
    %v1619 = vsub.f32 1.0, %v1556
    %v1620 = vsub.f32 1.0, %v1558
    %v1621 = vsub.f32 1.0, %v1560
    %v1622 = vsub.f32 1.0, %v1562
    %v1623 = vsub.f32 1.0, %v1564
    %v1624 = vsub.f32 1.0, %v1566
    %v1625 = vsub.f32 1.0, %v1568
    %v1626 = vsub.f32 1.0, %v1570
    %1635 = vrot.lane.b32.xlu0 %v1619, 112
    %v1636 = vpop.permute.xlu0 %1635
    %1637 = vrot.lane.b32.xlu0 %v1620, 112
    %v1638 = vpop.permute.xlu0 %1637
    %1639 = vrot.lane.b32.xlu0 %v1621, 112
    %v1640 = vpop.permute.xlu0 %1639
    %1641 = vrot.lane.b32.xlu0 %v1622, 112
    %v1642 = vpop.permute.xlu0 %1641
    %1643 = vrot.lane.b32.xlu0 %v1623, 112
    %v1644 = vpop.permute.xlu0 %1643
    %1645 = vrot.lane.b32.xlu0 %v1624, 112
    %v1646 = vpop.permute.xlu0 %1645
    %1647 = vrot.lane.b32.xlu0 %v1625, 112
    %v1648 = vpop.permute.xlu0 %1647
    %1649 = vrot.lane.b32.xlu0 %v1626, 112
    %v1650 = vpop.permute.xlu0 %1649
    %v1659 = vmul.f32 %v1377, %v1636
    %v1660 = vmul.f32 %v1378, %v1638
    %v1661 = vmul.f32 %v1379, %v1640
    %v1662 = vmul.f32 %v1380, %v1642
    %v1663 = vmul.f32 %v1381, %v1644
    %v1664 = vmul.f32 %v1382, %v1646
    %v1665 = vmul.f32 %v1383, %v1648
    %v1666 = vmul.f32 %v1384, %v1650
    %v1667 = vadd.f32 %v1611, %v1659
    %v1668 = vadd.f32 %v1612, %v1660
    %v1669 = vadd.f32 %v1613, %v1661
    %v1670 = vadd.f32 %v1614, %v1662
    %v1671 = vadd.f32 %v1615, %v1663
    %v1672 = vadd.f32 %v1616, %v1664
    %v1673 = vadd.f32 %v1617, %v1665
    %v1674 = vadd.f32 %v1618, %v1666
    %s1675 = scalar_lea.vmem %s25, 16
    %v1676 = vld [vmem:[%s1675] sm:$0xff]
    %v1677 = vld [vmem:[%s1675 + $0x8] sm:$0xff]
    %s1678 = scalar_lea.vmem %s27, 1
    %v1679 = vld [vmem:[%s1678] sm:$0x1]
    %v1681 = vlaneseq
    %v1682 = vshrl.u32 %v1681, 7
    %v1683 = vsub.s32 0, %v1682
    %v1684 = vrot.slane %v1679, %v1683
    %v1687 = vsel %vm776, %v1667, 0
    %v1690 = vsel %vm776, %v1668, 0
    %v1693 = vsel %vm776, %v1669, 0
    %v1696 = vsel %vm776, %v1670, 0
    %v1699 = vsel %vm776, %v1671, 0
    %v1702 = vsel %vm776, %v1672, 0
    %v1705 = vsel %vm776, %v1673, 0
    %v1708 = vsel %vm776, %v1674, 0
    %1710 = vmatprep.subr.mxu0 0.0
    %1711 = vmatpush1.msra.mxu0 %v1676
    %1712 = vmatprep.subr.mxu0 0.0
    %1713 = vmatpush1.msra.mxu0 %v1677
    %1714 = vmatprep.subr.mxu0 0.0
    %1715 = vmatpush1.msra.mxu0 0.0
    %1716 = vmatprep.subr.mxu0 0.0
    %1717 = vmatpush1.msra.mxu0 0.0
    %1718 = vmatprep.subr.mxu0 0.0
    %1719 = vmatpush1.msra.mxu0 0.0
    %1720 = vmatprep.subr.mxu0 0.0
    %1721 = vmatpush1.msra.mxu0 0.0
    %1722 = vmatprep.subr.mxu0 0.0
    %1723 = vmatpush1.msra.mxu0 0.0
    %1724 = vmatprep.subr.mxu0 0.0
    %1725 = vmatpush1.msra.mxu0 0.0
    %1726 = vmatprep.subr.mxu0 0.0
    %1727 = vmatpush1.msra.mxu0 0.0
    %1728 = vmatprep.subr.mxu0 0.0
    %1729 = vmatpush1.msra.mxu0 0.0
    %1730 = vmatprep.subr.mxu0 0.0
    %1731 = vmatpush1.msra.mxu0 0.0
    %1732 = vmatprep.subr.mxu0 0.0
    %1733 = vmatpush1.msra.mxu0 0.0
    %1734 = vmatprep.subr.mxu0 0.0
    %1735 = vmatpush1.msra.mxu0 0.0
    %1736 = vmatprep.subr.mxu0 0.0
    %1737 = vmatpush1.msra.mxu0 0.0
    %1738 = vmatprep.subr.mxu0 0.0
    %1739 = vmatpush1.msra.mxu0 0.0
    %1740 = vmatprep.subr.mxu0 0.0
    %1741 = vmatpush1.msra.mxu0 0.0
    %1742 = vmatprep.subr.mxu0 0.0
    %1743 = vmatpush1.msra.mxu0 0.0
    %1744 = vmatprep.subr.mxu0 0.0
    %1745 = vmatpush1.msra.mxu0 0.0
    %1746 = vmatprep.subr.mxu0 0.0
    %1747 = vmatpush1.msra.mxu0 0.0
    %1748 = vmatprep.subr.mxu0 0.0
    %1749 = vmatpush1.msra.mxu0 0.0
    %1750 = vmatprep.subr.mxu0 0.0
    %1751 = vmatpush1.msra.mxu0 0.0
    %1752 = vmatprep.subr.mxu0 0.0
    %1753 = vmatpush1.msra.mxu0 0.0
    %1754 = vmatprep.subr.mxu0 0.0
    %1755 = vmatpush1.msra.mxu0 0.0
    %1756 = vmatprep.subr.mxu0 0.0
    %1757 = vmatpush1.msra.mxu0 0.0
    %1758 = vmatprep.subr.mxu0 0.0
    %1759 = vmatpush1.msra.mxu0 0.0
    %1760 = vmatprep.subr.mxu0 0.0
    %1761 = vmatpush1.msra.mxu0 0.0
    %1762 = vmatprep.subr.mxu0 0.0
    %1763 = vmatpush1.msra.mxu0 0.0
    %1764 = vmatprep.subr.mxu0 0.0
    %1765 = vmatpush1.msra.mxu0 0.0
    %1766 = vmatprep.subr.mxu0 0.0
    %1767 = vmatpush1.msra.mxu0 0.0
    %1768 = vmatprep.subr.mxu0 0.0
    %1769 = vmatpush1.msra.mxu0 0.0
    %1770 = vmatprep.subr.mxu0 0.0
    %1771 = vmatpush1.msra.mxu0 0.0
    %1772 = vmatprep.subr.mxu0 0.0
    %1773 = vmatpush1.msra.mxu0 0.0
    %1774 = vmatprep.mubr.f32.mxu0 0.0
    %1775 = vmatmul.mubr.f32.gmra.mrb[0].mxu0 %v1687
    %v1776 = vpop.f32.mrb[0].mxu0
    %v1777 = vadd.f32 %v1684, %v1776
    %v1778 = vpop.f32.mrb[0].mxu0
    %1779 = vmatprep.mubr.f32.mxu0 0.0
    %1780 = vmatmul.mubr.f32.gmra.mrb[0].mxu0 %v1690
    %v1781 = vpop.f32.mrb[0].mxu0
    %v1782 = vadd.f32 %v1684, %v1781
    %v1783 = vpop.f32.mrb[0].mxu0
    %1784 = vmatprep.mubr.f32.mxu0 0.0
    %1785 = vmatmul.mubr.f32.gmra.mrb[0].mxu0 %v1693
    %v1786 = vpop.f32.mrb[0].mxu0
    %v1787 = vadd.f32 %v1684, %v1786
    %v1788 = vpop.f32.mrb[0].mxu0
    %1789 = vmatprep.mubr.f32.mxu0 0.0
    %1790 = vmatmul.mubr.f32.gmra.mrb[0].mxu0 %v1696
    %v1791 = vpop.f32.mrb[0].mxu0
    %v1792 = vadd.f32 %v1684, %v1791
    %v1793 = vpop.f32.mrb[0].mxu0
    %1794 = vmatprep.mubr.f32.mxu0 0.0
    %1795 = vmatmul.mubr.f32.gmra.mrb[0].mxu0 %v1699
    %v1796 = vpop.f32.mrb[0].mxu0
    %v1797 = vadd.f32 %v1684, %v1796
    %v1798 = vpop.f32.mrb[0].mxu0
    %1799 = vmatprep.mubr.f32.mxu0 0.0
    %1800 = vmatmul.mubr.f32.gmra.mrb[0].mxu0 %v1702
    %v1801 = vpop.f32.mrb[0].mxu0
    %v1802 = vadd.f32 %v1684, %v1801
    %v1803 = vpop.f32.mrb[0].mxu0
    %1804 = vmatprep.mubr.f32.mxu0 0.0
    %1805 = vmatmul.mubr.f32.gmra.mrb[0].mxu0 %v1705
    %v1806 = vpop.f32.mrb[0].mxu0
    %v1807 = vadd.f32 %v1684, %v1806
    %v1808 = vpop.f32.mrb[0].mxu0
    %1809 = vmatprep.mubr.f32.mxu0 0.0
    %1810 = vmatmul.mubr.f32.gmra.mrb[0].mxu0 %v1708
    %v1811 = vpop.f32.mrb[0].mxu0
    %v1812 = vadd.f32 %v1684, %v1811
    %v1813 = vpop.f32.mrb[0].mxu0
    %1814 = vdwg.mxu0
    %v1815 = vxor.u32 %v1777, 2147483648
    %v1816 = vxor.u32 %v1782, 2147483648
    %v1817 = vxor.u32 %v1787, 2147483648
    %v1818 = vxor.u32 %v1792, 2147483648
    %v1819 = vxor.u32 %v1797, 2147483648
    %v1820 = vxor.u32 %v1802, 2147483648
    %v1821 = vxor.u32 %v1807, 2147483648
    %v1822 = vxor.u32 %v1812, 2147483648
    %v1823 = vmul.f32 %v1815, 1.442695
    %v1824 = vpow.pop %v1823
    %v1825 = vmul.f32 %v1816, 1.442695
    %v1826 = vpow.pop %v1825
    %v1827 = vmul.f32 %v1817, 1.442695
    %v1828 = vpow.pop %v1827
    %v1829 = vmul.f32 %v1818, 1.442695
    %v1830 = vpow.pop %v1829
    %v1831 = vmul.f32 %v1819, 1.442695
    %v1832 = vpow.pop %v1831
    %v1833 = vmul.f32 %v1820, 1.442695
    %v1834 = vpow.pop %v1833
    %v1835 = vmul.f32 %v1821, 1.442695
    %v1836 = vpow.pop %v1835
    %v1837 = vmul.f32 %v1822, 1.442695
    %v1838 = vpow.pop %v1837
    %v1839 = vadd.f32 %v1824, 1.0
    %v1840 = vadd.f32 %v1826, 1.0
    %v1841 = vadd.f32 %v1828, 1.0
    %v1842 = vadd.f32 %v1830, 1.0
    %v1843 = vadd.f32 %v1832, 1.0
    %v1844 = vadd.f32 %v1834, 1.0
    %v1845 = vadd.f32 %v1836, 1.0
    %v1846 = vadd.f32 %v1838, 1.0
    %v1847 = vrcp.pop %v1839
    %v1848 = vmul.f32 1.0, %v1847
    %v1849 = vrcp.pop %v1840
    %v1850 = vmul.f32 1.0, %v1849
    %v1851 = vrcp.pop %v1841
    %v1852 = vmul.f32 1.0, %v1851
    %v1853 = vrcp.pop %v1842
    %v1854 = vmul.f32 1.0, %v1853
    %v1855 = vrcp.pop %v1843
    %v1856 = vmul.f32 1.0, %v1855
    %v1857 = vrcp.pop %v1844
    %v1858 = vmul.f32 1.0, %v1857
    %v1859 = vrcp.pop %v1845
    %v1860 = vmul.f32 1.0, %v1859
    %v1861 = vrcp.pop %v1846
    %v1862 = vmul.f32 1.0, %v1861
    %v1863 = vmax.f32 %v1777, 0.0
    %v1864 = vmax.f32 %v1782, 0.0
    %v1865 = vmax.f32 %v1787, 0.0
    %v1866 = vmax.f32 %v1792, 0.0
    %v1867 = vmax.f32 %v1797, 0.0
    %v1868 = vmax.f32 %v1802, 0.0
    %v1869 = vmax.f32 %v1807, 0.0
    %v1870 = vmax.f32 %v1812, 0.0
    %1879 = vrot.lane.b32.xlu0 %v1848, 112
    %v1880 = vpop.permute.xlu0 %1879
    %1881 = vrot.lane.b32.xlu0 %v1850, 112
    %v1882 = vpop.permute.xlu0 %1881
    %1883 = vrot.lane.b32.xlu0 %v1852, 112
    %v1884 = vpop.permute.xlu0 %1883
    %1885 = vrot.lane.b32.xlu0 %v1854, 112
    %v1886 = vpop.permute.xlu0 %1885
    %1887 = vrot.lane.b32.xlu0 %v1856, 112
    %v1888 = vpop.permute.xlu0 %1887
    %1889 = vrot.lane.b32.xlu0 %v1858, 112
    %v1890 = vpop.permute.xlu0 %1889
    %1891 = vrot.lane.b32.xlu0 %v1860, 112
    %v1892 = vpop.permute.xlu0 %1891
    %1893 = vrot.lane.b32.xlu0 %v1862, 112
    %v1894 = vpop.permute.xlu0 %1893
    %v1903 = vmul.f32 %v1863, %v1880
    %v1904 = vmul.f32 %v1864, %v1882
    %v1905 = vmul.f32 %v1865, %v1884
    %v1906 = vmul.f32 %v1866, %v1886
    %v1907 = vmul.f32 %v1867, %v1888
    %v1908 = vmul.f32 %v1868, %v1890
    %v1909 = vmul.f32 %v1869, %v1892
    %v1910 = vmul.f32 %v1870, %v1894
    %v1911 = vsub.f32 1.0, %v1848
    %v1912 = vsub.f32 1.0, %v1850
    %v1913 = vsub.f32 1.0, %v1852
    %v1914 = vsub.f32 1.0, %v1854
    %v1915 = vsub.f32 1.0, %v1856
    %v1916 = vsub.f32 1.0, %v1858
    %v1917 = vsub.f32 1.0, %v1860
    %v1918 = vsub.f32 1.0, %v1862
    %1927 = vrot.lane.b32.xlu0 %v1911, 112
    %v1928 = vpop.permute.xlu0 %1927
    %1929 = vrot.lane.b32.xlu0 %v1912, 112
    %v1930 = vpop.permute.xlu0 %1929
    %1931 = vrot.lane.b32.xlu0 %v1913, 112
    %v1932 = vpop.permute.xlu0 %1931
    %1933 = vrot.lane.b32.xlu0 %v1914, 112
    %v1934 = vpop.permute.xlu0 %1933
    %1935 = vrot.lane.b32.xlu0 %v1915, 112
    %v1936 = vpop.permute.xlu0 %1935
    %1937 = vrot.lane.b32.xlu0 %v1916, 112
    %v1938 = vpop.permute.xlu0 %1937
    %1939 = vrot.lane.b32.xlu0 %v1917, 112
    %v1940 = vpop.permute.xlu0 %1939
    %1941 = vrot.lane.b32.xlu0 %v1918, 112
    %v1942 = vpop.permute.xlu0 %1941
    %v1951 = vmul.f32 %v1667, %v1928
    %v1952 = vmul.f32 %v1668, %v1930
    %v1953 = vmul.f32 %v1669, %v1932
    %v1954 = vmul.f32 %v1670, %v1934
    %v1955 = vmul.f32 %v1671, %v1936
    %v1956 = vmul.f32 %v1672, %v1938
    %v1957 = vmul.f32 %v1673, %v1940
    %v1958 = vmul.f32 %v1674, %v1942
    %v1959 = vadd.f32 %v1903, %v1951
    %v1960 = vadd.f32 %v1904, %v1952
    %v1961 = vadd.f32 %v1905, %v1953
    %v1962 = vadd.f32 %v1906, %v1954
    %v1963 = vadd.f32 %v1907, %v1955
    %v1964 = vadd.f32 %v1908, %v1956
    %v1965 = vadd.f32 %v1909, %v1957
    %v1966 = vadd.f32 %v1910, %v1958
    %s1967 = scalar_lea.vmem %s25, 32
    %v1968 = vld [vmem:[%s1967] sm:$0xff]
    %v1969 = vld [vmem:[%s1967 + $0x8] sm:$0xff]
    %s1970 = scalar_lea.vmem %s27, 2
    %v1971 = vld [vmem:[%s1970] sm:$0x1]
    %v1973 = vlaneseq
    %v1974 = vshrl.u32 %v1973, 7
    %v1975 = vsub.s32 0, %v1974
    %v1976 = vrot.slane %v1971, %v1975
    %v1979 = vsel %vm776, %v1959, 0
    %v1982 = vsel %vm776, %v1960, 0
    %v1985 = vsel %vm776, %v1961, 0
    %v1988 = vsel %vm776, %v1962, 0
    %v1991 = vsel %vm776, %v1963, 0
    %v1994 = vsel %vm776, %v1964, 0
    %v1997 = vsel %vm776, %v1965, 0
    %v2000 = vsel %vm776, %v1966, 0
    %2002 = vmatprep.subr.mxu0 0.0
    %2003 = vmatpush1.msra.mxu0 %v1968
    %2004 = vmatprep.subr.mxu0 0.0
    %2005 = vmatpush1.msra.mxu0 %v1969
    %2006 = vmatprep.subr.mxu0 0.0
    %2007 = vmatpush1.msra.mxu0 0.0
    %2008 = vmatprep.subr.mxu0 0.0
    %2009 = vmatpush1.msra.mxu0 0.0
    %2010 = vmatprep.subr.mxu0 0.0
    %2011 = vmatpush1.msra.mxu0 0.0
    %2012 = vmatprep.subr.mxu0 0.0
    %2013 = vmatpush1.msra.mxu0 0.0
    %2014 = vmatprep.subr.mxu0 0.0
    %2015 = vmatpush1.msra.mxu0 0.0
    %2016 = vmatprep.subr.mxu0 0.0
    %2017 = vmatpush1.msra.mxu0 0.0
    %2018 = vmatprep.subr.mxu0 0.0
    %2019 = vmatpush1.msra.mxu0 0.0
    %2020 = vmatprep.subr.mxu0 0.0
    %2021 = vmatpush1.msra.mxu0 0.0
    %2022 = vmatprep.subr.mxu0 0.0
    %2023 = vmatpush1.msra.mxu0 0.0
    %2024 = vmatprep.subr.mxu0 0.0
    %2025 = vmatpush1.msra.mxu0 0.0
    %2026 = vmatprep.subr.mxu0 0.0
    %2027 = vmatpush1.msra.mxu0 0.0
    %2028 = vmatprep.subr.mxu0 0.0
    %2029 = vmatpush1.msra.mxu0 0.0
    %2030 = vmatprep.subr.mxu0 0.0
    %2031 = vmatpush1.msra.mxu0 0.0
    %2032 = vmatprep.subr.mxu0 0.0
    %2033 = vmatpush1.msra.mxu0 0.0
    %2034 = vmatprep.subr.mxu0 0.0
    %2035 = vmatpush1.msra.mxu0 0.0
    %2036 = vmatprep.subr.mxu0 0.0
    %2037 = vmatpush1.msra.mxu0 0.0
    %2038 = vmatprep.subr.mxu0 0.0
    %2039 = vmatpush1.msra.mxu0 0.0
    %2040 = vmatprep.subr.mxu0 0.0
    %2041 = vmatpush1.msra.mxu0 0.0
    %2042 = vmatprep.subr.mxu0 0.0
    %2043 = vmatpush1.msra.mxu0 0.0
    %2044 = vmatprep.subr.mxu0 0.0
    %2045 = vmatpush1.msra.mxu0 0.0
    %2046 = vmatprep.subr.mxu0 0.0
    %2047 = vmatpush1.msra.mxu0 0.0
    %2048 = vmatprep.subr.mxu0 0.0
    %2049 = vmatpush1.msra.mxu0 0.0
    %2050 = vmatprep.subr.mxu0 0.0
    %2051 = vmatpush1.msra.mxu0 0.0
    %2052 = vmatprep.subr.mxu0 0.0
    %2053 = vmatpush1.msra.mxu0 0.0
    %2054 = vmatprep.subr.mxu0 0.0
    %2055 = vmatpush1.msra.mxu0 0.0
    %2056 = vmatprep.subr.mxu0 0.0
    %2057 = vmatpush1.msra.mxu0 0.0
    %2058 = vmatprep.subr.mxu0 0.0
    %2059 = vmatpush1.msra.mxu0 0.0
    %2060 = vmatprep.subr.mxu0 0.0
    %2061 = vmatpush1.msra.mxu0 0.0
    %2062 = vmatprep.subr.mxu0 0.0
    %2063 = vmatpush1.msra.mxu0 0.0
    %2064 = vmatprep.subr.mxu0 0.0
    %2065 = vmatpush1.msra.mxu0 0.0
    %2066 = vmatprep.mubr.f32.mxu0 0.0
    %2067 = vmatmul.mubr.f32.gmra.mrb[0].mxu0 %v1979
    %v2068 = vpop.f32.mrb[0].mxu0
    %v2069 = vadd.f32 %v1976, %v2068
    %v2070 = vpop.f32.mrb[0].mxu0
    %2071 = vmatprep.mubr.f32.mxu0 0.0
    %2072 = vmatmul.mubr.f32.gmra.mrb[0].mxu0 %v1982
    %v2073 = vpop.f32.mrb[0].mxu0
    %v2074 = vadd.f32 %v1976, %v2073
    %v2075 = vpop.f32.mrb[0].mxu0
    %2076 = vmatprep.mubr.f32.mxu0 0.0
    %2077 = vmatmul.mubr.f32.gmra.mrb[0].mxu0 %v1985
    %v2078 = vpop.f32.mrb[0].mxu0
    %v2079 = vadd.f32 %v1976, %v2078
    %v2080 = vpop.f32.mrb[0].mxu0
    %2081 = vmatprep.mubr.f32.mxu0 0.0
    %2082 = vmatmul.mubr.f32.gmra.mrb[0].mxu0 %v1988
    %v2083 = vpop.f32.mrb[0].mxu0
    %v2084 = vadd.f32 %v1976, %v2083
    %v2085 = vpop.f32.mrb[0].mxu0
    %2086 = vmatprep.mubr.f32.mxu0 0.0
    %2087 = vmatmul.mubr.f32.gmra.mrb[0].mxu0 %v1991
    %v2088 = vpop.f32.mrb[0].mxu0
    %v2089 = vadd.f32 %v1976, %v2088
    %v2090 = vpop.f32.mrb[0].mxu0
    %2091 = vmatprep.mubr.f32.mxu0 0.0
    %2092 = vmatmul.mubr.f32.gmra.mrb[0].mxu0 %v1994
    %v2093 = vpop.f32.mrb[0].mxu0
    %v2094 = vadd.f32 %v1976, %v2093
    %v2095 = vpop.f32.mrb[0].mxu0
    %2096 = vmatprep.mubr.f32.mxu0 0.0
    %2097 = vmatmul.mubr.f32.gmra.mrb[0].mxu0 %v1997
    %v2098 = vpop.f32.mrb[0].mxu0
    %v2099 = vadd.f32 %v1976, %v2098
    %v2100 = vpop.f32.mrb[0].mxu0
    %2101 = vmatprep.mubr.f32.mxu0 0.0
    %2102 = vmatmul.mubr.f32.gmra.mrb[0].mxu0 %v2000
    %v2103 = vpop.f32.mrb[0].mxu0
    %v2104 = vadd.f32 %v1976, %v2103
    %v2105 = vpop.f32.mrb[0].mxu0
    %2106 = vdwg.mxu0
    %v2107 = vxor.u32 %v2069, 2147483648
    %v2108 = vxor.u32 %v2074, 2147483648
    %v2109 = vxor.u32 %v2079, 2147483648
    %v2110 = vxor.u32 %v2084, 2147483648
    %v2111 = vxor.u32 %v2089, 2147483648
    %v2112 = vxor.u32 %v2094, 2147483648
    %v2113 = vxor.u32 %v2099, 2147483648
    %v2114 = vxor.u32 %v2104, 2147483648
    %v2115 = vmul.f32 %v2107, 1.442695
    %v2116 = vpow.pop %v2115
    %v2117 = vmul.f32 %v2108, 1.442695
    %v2118 = vpow.pop %v2117
    %v2119 = vmul.f32 %v2109, 1.442695
    %v2120 = vpow.pop %v2119
    %v2121 = vmul.f32 %v2110, 1.442695
    %v2122 = vpow.pop %v2121
    %v2123 = vmul.f32 %v2111, 1.442695
    %v2124 = vpow.pop %v2123
    %v2125 = vmul.f32 %v2112, 1.442695
    %v2126 = vpow.pop %v2125
    %v2127 = vmul.f32 %v2113, 1.442695
    %v2128 = vpow.pop %v2127
    %v2129 = vmul.f32 %v2114, 1.442695
    %v2130 = vpow.pop %v2129
    %v2131 = vadd.f32 %v2116, 1.0
    %v2132 = vadd.f32 %v2118, 1.0
    %v2133 = vadd.f32 %v2120, 1.0
    %v2134 = vadd.f32 %v2122, 1.0
    %v2135 = vadd.f32 %v2124, 1.0
    %v2136 = vadd.f32 %v2126, 1.0
    %v2137 = vadd.f32 %v2128, 1.0
    %v2138 = vadd.f32 %v2130, 1.0
    %v2139 = vrcp.pop %v2131
    %v2140 = vmul.f32 1.0, %v2139
    %v2141 = vrcp.pop %v2132
    %v2142 = vmul.f32 1.0, %v2141
    %v2143 = vrcp.pop %v2133
    %v2144 = vmul.f32 1.0, %v2143
    %v2145 = vrcp.pop %v2134
    %v2146 = vmul.f32 1.0, %v2145
    %v2147 = vrcp.pop %v2135
    %v2148 = vmul.f32 1.0, %v2147
    %v2149 = vrcp.pop %v2136
    %v2150 = vmul.f32 1.0, %v2149
    %v2151 = vrcp.pop %v2137
    %v2152 = vmul.f32 1.0, %v2151
    %v2153 = vrcp.pop %v2138
    %v2154 = vmul.f32 1.0, %v2153
    %v2155 = vmax.f32 %v2069, 0.0
    %v2156 = vmax.f32 %v2074, 0.0
    %v2157 = vmax.f32 %v2079, 0.0
    %v2158 = vmax.f32 %v2084, 0.0
    %v2159 = vmax.f32 %v2089, 0.0
    %v2160 = vmax.f32 %v2094, 0.0
    %v2161 = vmax.f32 %v2099, 0.0
    %v2162 = vmax.f32 %v2104, 0.0
    %2171 = vrot.lane.b32.xlu0 %v2140, 112
    %v2172 = vpop.permute.xlu0 %2171
    %2173 = vrot.lane.b32.xlu0 %v2142, 112
    %v2174 = vpop.permute.xlu0 %2173
    %2175 = vrot.lane.b32.xlu0 %v2144, 112
    %v2176 = vpop.permute.xlu0 %2175
    %2177 = vrot.lane.b32.xlu0 %v2146, 112
    %v2178 = vpop.permute.xlu0 %2177
    %2179 = vrot.lane.b32.xlu0 %v2148, 112
    %v2180 = vpop.permute.xlu0 %2179
    %2181 = vrot.lane.b32.xlu0 %v2150, 112
    %v2182 = vpop.permute.xlu0 %2181
    %2183 = vrot.lane.b32.xlu0 %v2152, 112
    %v2184 = vpop.permute.xlu0 %2183
    %2185 = vrot.lane.b32.xlu0 %v2154, 112
    %v2186 = vpop.permute.xlu0 %2185
    %v2195 = vmul.f32 %v2155, %v2172
    %v2196 = vmul.f32 %v2156, %v2174
    %v2197 = vmul.f32 %v2157, %v2176
    %v2198 = vmul.f32 %v2158, %v2178
    %v2199 = vmul.f32 %v2159, %v2180
    %v2200 = vmul.f32 %v2160, %v2182
    %v2201 = vmul.f32 %v2161, %v2184
    %v2202 = vmul.f32 %v2162, %v2186
    %v2203 = vsub.f32 1.0, %v2140
    %v2204 = vsub.f32 1.0, %v2142
    %v2205 = vsub.f32 1.0, %v2144
    %v2206 = vsub.f32 1.0, %v2146
    %v2207 = vsub.f32 1.0, %v2148
    %v2208 = vsub.f32 1.0, %v2150
    %v2209 = vsub.f32 1.0, %v2152
    %v2210 = vsub.f32 1.0, %v2154
    %2219 = vrot.lane.b32.xlu0 %v2203, 112
    %v2220 = vpop.permute.xlu0 %2219
    %2221 = vrot.lane.b32.xlu0 %v2204, 112
    %v2222 = vpop.permute.xlu0 %2221
    %2223 = vrot.lane.b32.xlu0 %v2205, 112
    %v2224 = vpop.permute.xlu0 %2223
    %2225 = vrot.lane.b32.xlu0 %v2206, 112
    %v2226 = vpop.permute.xlu0 %2225
    %2227 = vrot.lane.b32.xlu0 %v2207, 112
    %v2228 = vpop.permute.xlu0 %2227
    %2229 = vrot.lane.b32.xlu0 %v2208, 112
    %v2230 = vpop.permute.xlu0 %2229
    %2231 = vrot.lane.b32.xlu0 %v2209, 112
    %v2232 = vpop.permute.xlu0 %2231
    %2233 = vrot.lane.b32.xlu0 %v2210, 112
    %v2234 = vpop.permute.xlu0 %2233
    %v2243 = vmul.f32 %v1959, %v2220
    %v2244 = vmul.f32 %v1960, %v2222
    %v2245 = vmul.f32 %v1961, %v2224
    %v2246 = vmul.f32 %v1962, %v2226
    %v2247 = vmul.f32 %v1963, %v2228
    %v2248 = vmul.f32 %v1964, %v2230
    %v2249 = vmul.f32 %v1965, %v2232
    %v2250 = vmul.f32 %v1966, %v2234
    %v2251 = vadd.f32 %v2195, %v2243
    %v2252 = vadd.f32 %v2196, %v2244
    %v2253 = vadd.f32 %v2197, %v2245
    %v2254 = vadd.f32 %v2198, %v2246
    %v2255 = vadd.f32 %v2199, %v2247
    %v2256 = vadd.f32 %v2200, %v2248
    %v2257 = vadd.f32 %v2201, %v2249
    %v2258 = vadd.f32 %v2202, %v2250
    %s2259 = scalar_lea.vmem %s25, 48
    %v2260 = vld [vmem:[%s2259] sm:$0xff]
    %v2261 = vld [vmem:[%s2259 + $0x8] sm:$0xff]
    %s2262 = scalar_lea.vmem %s27, 3
    %v2263 = vld [vmem:[%s2262] sm:$0x1]
    %v2265 = vlaneseq
    %v2266 = vshrl.u32 %v2265, 7
    %v2267 = vsub.s32 0, %v2266
    %v2268 = vrot.slane %v2263, %v2267
    %v2271 = vsel %vm776, %v2251, 0
    %v2274 = vsel %vm776, %v2252, 0
    %v2277 = vsel %vm776, %v2253, 0
    %v2280 = vsel %vm776, %v2254, 0
    %v2283 = vsel %vm776, %v2255, 0
    %v2286 = vsel %vm776, %v2256, 0
    %v2289 = vsel %vm776, %v2257, 0
    %v2292 = vsel %vm776, %v2258, 0
    %2294 = vmatprep.subr.mxu0 0.0
    %2295 = vmatpush1.msra.mxu0 %v2260
    %2296 = vmatprep.subr.mxu0 0.0
    %2297 = vmatpush1.msra.mxu0 %v2261
    %2298 = vmatprep.subr.mxu0 0.0
    %2299 = vmatpush1.msra.mxu0 0.0
    %2300 = vmatprep.subr.mxu0 0.0
    %2301 = vmatpush1.msra.mxu0 0.0
    %2302 = vmatprep.subr.mxu0 0.0
    %2303 = vmatpush1.msra.mxu0 0.0
    %2304 = vmatprep.subr.mxu0 0.0
    %2305 = vmatpush1.msra.mxu0 0.0
    %2306 = vmatprep.subr.mxu0 0.0
    %2307 = vmatpush1.msra.mxu0 0.0
    %2308 = vmatprep.subr.mxu0 0.0
    %2309 = vmatpush1.msra.mxu0 0.0
    %2310 = vmatprep.subr.mxu0 0.0
    %2311 = vmatpush1.msra.mxu0 0.0
    %2312 = vmatprep.subr.mxu0 0.0
    %2313 = vmatpush1.msra.mxu0 0.0
    %2314 = vmatprep.subr.mxu0 0.0
    %2315 = vmatpush1.msra.mxu0 0.0
    %2316 = vmatprep.subr.mxu0 0.0
    %2317 = vmatpush1.msra.mxu0 0.0
    %2318 = vmatprep.subr.mxu0 0.0
    %2319 = vmatpush1.msra.mxu0 0.0
    %2320 = vmatprep.subr.mxu0 0.0
    %2321 = vmatpush1.msra.mxu0 0.0
    %2322 = vmatprep.subr.mxu0 0.0
    %2323 = vmatpush1.msra.mxu0 0.0
    %2324 = vmatprep.subr.mxu0 0.0
    %2325 = vmatpush1.msra.mxu0 0.0
    %2326 = vmatprep.subr.mxu0 0.0
    %2327 = vmatpush1.msra.mxu0 0.0
    %2328 = vmatprep.subr.mxu0 0.0
    %2329 = vmatpush1.msra.mxu0 0.0
    %2330 = vmatprep.subr.mxu0 0.0
    %2331 = vmatpush1.msra.mxu0 0.0
    %2332 = vmatprep.subr.mxu0 0.0
    %2333 = vmatpush1.msra.mxu0 0.0
    %2334 = vmatprep.subr.mxu0 0.0
    %2335 = vmatpush1.msra.mxu0 0.0
    %2336 = vmatprep.subr.mxu0 0.0
    %2337 = vmatpush1.msra.mxu0 0.0
    %2338 = vmatprep.subr.mxu0 0.0
    %2339 = vmatpush1.msra.mxu0 0.0
    %2340 = vmatprep.subr.mxu0 0.0
    %2341 = vmatpush1.msra.mxu0 0.0
    %2342 = vmatprep.subr.mxu0 0.0
    %2343 = vmatpush1.msra.mxu0 0.0
    %2344 = vmatprep.subr.mxu0 0.0
    %2345 = vmatpush1.msra.mxu0 0.0
    %2346 = vmatprep.subr.mxu0 0.0
    %2347 = vmatpush1.msra.mxu0 0.0
    %2348 = vmatprep.subr.mxu0 0.0
    %2349 = vmatpush1.msra.mxu0 0.0
    %2350 = vmatprep.subr.mxu0 0.0
    %2351 = vmatpush1.msra.mxu0 0.0
    %2352 = vmatprep.subr.mxu0 0.0
    %2353 = vmatpush1.msra.mxu0 0.0
    %2354 = vmatprep.subr.mxu0 0.0
    %2355 = vmatpush1.msra.mxu0 0.0
    %2356 = vmatprep.subr.mxu0 0.0
    %2357 = vmatpush1.msra.mxu0 0.0
    %2358 = vmatprep.mubr.f32.mxu0 0.0
    %2359 = vmatmul.mubr.f32.gmra.mrb[0].mxu0 %v2271
    %v2360 = vpop.f32.mrb[0].mxu0
    %v2361 = vadd.f32 %v2268, %v2360
    %v2362 = vpop.f32.mrb[0].mxu0
    %2363 = vmatprep.mubr.f32.mxu0 0.0
    %2364 = vmatmul.mubr.f32.gmra.mrb[0].mxu0 %v2274
    %v2365 = vpop.f32.mrb[0].mxu0
    %v2366 = vadd.f32 %v2268, %v2365
    %v2367 = vpop.f32.mrb[0].mxu0
    %2368 = vmatprep.mubr.f32.mxu0 0.0
    %2369 = vmatmul.mubr.f32.gmra.mrb[0].mxu0 %v2277
    %v2370 = vpop.f32.mrb[0].mxu0
    %v2371 = vadd.f32 %v2268, %v2370
    %v2372 = vpop.f32.mrb[0].mxu0
    %2373 = vmatprep.mubr.f32.mxu0 0.0
    %2374 = vmatmul.mubr.f32.gmra.mrb[0].mxu0 %v2280
    %v2375 = vpop.f32.mrb[0].mxu0
    %v2376 = vadd.f32 %v2268, %v2375
    %v2377 = vpop.f32.mrb[0].mxu0
    %2378 = vmatprep.mubr.f32.mxu0 0.0
    %2379 = vmatmul.mubr.f32.gmra.mrb[0].mxu0 %v2283
    %v2380 = vpop.f32.mrb[0].mxu0
    %v2381 = vadd.f32 %v2268, %v2380
    %v2382 = vpop.f32.mrb[0].mxu0
    %2383 = vmatprep.mubr.f32.mxu0 0.0
    %2384 = vmatmul.mubr.f32.gmra.mrb[0].mxu0 %v2286
    %v2385 = vpop.f32.mrb[0].mxu0
    %v2386 = vadd.f32 %v2268, %v2385
    %v2387 = vpop.f32.mrb[0].mxu0
    %2388 = vmatprep.mubr.f32.mxu0 0.0
    %2389 = vmatmul.mubr.f32.gmra.mrb[0].mxu0 %v2289
    %v2390 = vpop.f32.mrb[0].mxu0
    %v2391 = vadd.f32 %v2268, %v2390
    %v2392 = vpop.f32.mrb[0].mxu0
    %2393 = vmatprep.mubr.f32.mxu0 0.0
    %2394 = vmatmul.mubr.f32.gmra.mrb[0].mxu0 %v2292
    %v2395 = vpop.f32.mrb[0].mxu0
    %v2396 = vadd.f32 %v2268, %v2395
    %v2397 = vpop.f32.mrb[0].mxu0
    %2398 = vdwg.mxu0
    %v2399 = vxor.u32 %v2361, 2147483648
    %v2400 = vxor.u32 %v2366, 2147483648
    %v2401 = vxor.u32 %v2371, 2147483648
    %v2402 = vxor.u32 %v2376, 2147483648
    %v2403 = vxor.u32 %v2381, 2147483648
    %v2404 = vxor.u32 %v2386, 2147483648
    %v2405 = vxor.u32 %v2391, 2147483648
    %v2406 = vxor.u32 %v2396, 2147483648
    %v2407 = vmul.f32 %v2399, 1.442695
    %v2408 = vpow.pop %v2407
    %v2409 = vmul.f32 %v2400, 1.442695
    %v2410 = vpow.pop %v2409
    %v2411 = vmul.f32 %v2401, 1.442695
    %v2412 = vpow.pop %v2411
    %v2413 = vmul.f32 %v2402, 1.442695
    %v2414 = vpow.pop %v2413
    %v2415 = vmul.f32 %v2403, 1.442695
    %v2416 = vpow.pop %v2415
    %v2417 = vmul.f32 %v2404, 1.442695
    %v2418 = vpow.pop %v2417
    %v2419 = vmul.f32 %v2405, 1.442695
    %v2420 = vpow.pop %v2419
    %v2421 = vmul.f32 %v2406, 1.442695
    %v2422 = vpow.pop %v2421
    %v2423 = vadd.f32 %v2408, 1.0
    %v2424 = vadd.f32 %v2410, 1.0
    %v2425 = vadd.f32 %v2412, 1.0
    %v2426 = vadd.f32 %v2414, 1.0
    %v2427 = vadd.f32 %v2416, 1.0
    %v2428 = vadd.f32 %v2418, 1.0
    %v2429 = vadd.f32 %v2420, 1.0
    %v2430 = vadd.f32 %v2422, 1.0
    %v2431 = vrcp.pop %v2423
    %v2432 = vmul.f32 1.0, %v2431
    %v2433 = vrcp.pop %v2424
    %v2434 = vmul.f32 1.0, %v2433
    %v2435 = vrcp.pop %v2425
    %v2436 = vmul.f32 1.0, %v2435
    %v2437 = vrcp.pop %v2426
    %v2438 = vmul.f32 1.0, %v2437
    %v2439 = vrcp.pop %v2427
    %v2440 = vmul.f32 1.0, %v2439
    %v2441 = vrcp.pop %v2428
    %v2442 = vmul.f32 1.0, %v2441
    %v2443 = vrcp.pop %v2429
    %v2444 = vmul.f32 1.0, %v2443
    %v2445 = vrcp.pop %v2430
    %v2446 = vmul.f32 1.0, %v2445
    %v2447 = vmax.f32 %v2361, 0.0
    %v2448 = vmax.f32 %v2366, 0.0
    %v2449 = vmax.f32 %v2371, 0.0
    %v2450 = vmax.f32 %v2376, 0.0
    %v2451 = vmax.f32 %v2381, 0.0
    %v2452 = vmax.f32 %v2386, 0.0
    %v2453 = vmax.f32 %v2391, 0.0
    %v2454 = vmax.f32 %v2396, 0.0
    %2463 = vrot.lane.b32.xlu0 %v2432, 112
    %v2464 = vpop.permute.xlu0 %2463
    %2465 = vrot.lane.b32.xlu0 %v2434, 112
    %v2466 = vpop.permute.xlu0 %2465
    %2467 = vrot.lane.b32.xlu0 %v2436, 112
    %v2468 = vpop.permute.xlu0 %2467
    %2469 = vrot.lane.b32.xlu0 %v2438, 112
    %v2470 = vpop.permute.xlu0 %2469
    %2471 = vrot.lane.b32.xlu0 %v2440, 112
    %v2472 = vpop.permute.xlu0 %2471
    %2473 = vrot.lane.b32.xlu0 %v2442, 112
    %v2474 = vpop.permute.xlu0 %2473
    %2475 = vrot.lane.b32.xlu0 %v2444, 112
    %v2476 = vpop.permute.xlu0 %2475
    %2477 = vrot.lane.b32.xlu0 %v2446, 112
    %v2478 = vpop.permute.xlu0 %2477
    %v2487 = vmul.f32 %v2447, %v2464
    %v2488 = vmul.f32 %v2448, %v2466
    %v2489 = vmul.f32 %v2449, %v2468
    %v2490 = vmul.f32 %v2450, %v2470
    %v2491 = vmul.f32 %v2451, %v2472
    %v2492 = vmul.f32 %v2452, %v2474
    %v2493 = vmul.f32 %v2453, %v2476
    %v2494 = vmul.f32 %v2454, %v2478
    %v2495 = vsub.f32 1.0, %v2432
    %v2496 = vsub.f32 1.0, %v2434
    %v2497 = vsub.f32 1.0, %v2436
    %v2498 = vsub.f32 1.0, %v2438
    %v2499 = vsub.f32 1.0, %v2440
    %v2500 = vsub.f32 1.0, %v2442
    %v2501 = vsub.f32 1.0, %v2444
    %v2502 = vsub.f32 1.0, %v2446
    %2511 = vrot.lane.b32.xlu0 %v2495, 112
    %v2512 = vpop.permute.xlu0 %2511
    %2513 = vrot.lane.b32.xlu0 %v2496, 112
    %v2514 = vpop.permute.xlu0 %2513
    %2515 = vrot.lane.b32.xlu0 %v2497, 112
    %v2516 = vpop.permute.xlu0 %2515
    %2517 = vrot.lane.b32.xlu0 %v2498, 112
    %v2518 = vpop.permute.xlu0 %2517
    %2519 = vrot.lane.b32.xlu0 %v2499, 112
    %v2520 = vpop.permute.xlu0 %2519
    %2521 = vrot.lane.b32.xlu0 %v2500, 112
    %v2522 = vpop.permute.xlu0 %2521
    %2523 = vrot.lane.b32.xlu0 %v2501, 112
    %v2524 = vpop.permute.xlu0 %2523
    %2525 = vrot.lane.b32.xlu0 %v2502, 112
    %v2526 = vpop.permute.xlu0 %2525
    %v2535 = vmul.f32 %v2251, %v2512
    %v2536 = vmul.f32 %v2252, %v2514
    %v2537 = vmul.f32 %v2253, %v2516
    %v2538 = vmul.f32 %v2254, %v2518
    %v2539 = vmul.f32 %v2255, %v2520
    %v2540 = vmul.f32 %v2256, %v2522
    %v2541 = vmul.f32 %v2257, %v2524
    %v2542 = vmul.f32 %v2258, %v2526
    %v2543 = vadd.f32 %v2487, %v2535
    %v2544 = vadd.f32 %v2488, %v2536
    %v2545 = vadd.f32 %v2489, %v2537
    %v2546 = vadd.f32 %v2490, %v2538
    %v2547 = vadd.f32 %v2491, %v2539
    %v2548 = vadd.f32 %v2492, %v2540
    %v2549 = vadd.f32 %v2493, %v2541
    %v2550 = vadd.f32 %v2494, %v2542
    %2559 = vrot.lane.b32.xlu0 %v2550, 16
    %v2560 = vpop.permute.xlu0 %2559
    %2561 = vrot.lane.b32.xlu0 %v2549, 16
    %v2562 = vpop.permute.xlu0 %2561
    %2563 = vrot.lane.b32.xlu0 %v2548, 16
    %v2564 = vpop.permute.xlu0 %2563
    %2565 = vrot.lane.b32.xlu0 %v2547, 16
    %v2566 = vpop.permute.xlu0 %2565
    %2567 = vrot.lane.b32.xlu0 %v2546, 16
    %v2568 = vpop.permute.xlu0 %2567
    %2569 = vrot.lane.b32.xlu0 %v2545, 16
    %v2570 = vpop.permute.xlu0 %2569
    %2571 = vrot.lane.b32.xlu0 %v2544, 16
    %v2572 = vpop.permute.xlu0 %2571
    %2573 = vrot.lane.b32.xlu0 %v2543, 16
    %v2574 = vpop.permute.xlu0 %2573
    %v2583 = vsel %vm776, %v2543, %v2560
    %v2584 = vsel %vm776, %v2544, %v2562
    %v2585 = vsel %vm776, %v2545, %v2564
    %v2586 = vsel %vm776, %v2546, %v2566
    %v2587 = vsel %vm776, %v2547, %v2568
    %v2588 = vsel %vm776, %v2548, %v2570
    %v2589 = vsel %vm776, %v2549, %v2572
    %v2590 = vsel %vm776, %v2550, %v2574
    %v2591 = vld [vmem:[%s29] sm:$0xff]
    %v2592 = vld [vmem:[%s29 + $0x8] sm:$0xff]
    %v2593 = vld [vmem:[%s29 + $0x10] sm:$0xff]
    %v2594 = vld [vmem:[%s29 + $0x18] sm:$0xff]
    %v2595 = vld [vmem:[#allocation7] sm:$0x1]
    %v2597 = vlaneseq
    %v2598 = vshrl.u32 %v2597, 7
    %v2599 = vsub.s32 0, %v2598
    %v2600 = vrot.slane %v2595, %v2599
    %v2603 = vsel %vm409, %v2583, 0
    %v2606 = vsel %vm409, %v2584, 0
    %v2609 = vsel %vm409, %v2585, 0
    %v2612 = vsel %vm409, %v2586, 0
    %v2615 = vsel %vm409, %v2587, 0
    %v2618 = vsel %vm409, %v2588, 0
    %v2621 = vsel %vm409, %v2589, 0
    %v2624 = vsel %vm409, %v2590, 0
    %2626 = vmatprep.subr.mxu0 0.0
    %2627 = vmatpush1.msra.mxu0 %v2591
    %2628 = vmatprep.subr.mxu0 0.0
    %2629 = vmatpush1.msra.mxu0 %v2592
    %2630 = vmatprep.subr.mxu0 0.0
    %2631 = vmatpush1.msra.mxu0 %v2593
    %2632 = vmatprep.subr.mxu0 0.0
    %2633 = vmatpush1.msra.mxu0 %v2594
    %2634 = vmatprep.subr.mxu0 0.0
    %2635 = vmatpush1.msra.mxu0 0.0
    %2636 = vmatprep.subr.mxu0 0.0
    %2637 = vmatpush1.msra.mxu0 0.0
    %2638 = vmatprep.subr.mxu0 0.0
    %2639 = vmatpush1.msra.mxu0 0.0
    %2640 = vmatprep.subr.mxu0 0.0
    %2641 = vmatpush1.msra.mxu0 0.0
    %2642 = vmatprep.subr.mxu0 0.0
    %2643 = vmatpush1.msra.mxu0 0.0
    %2644 = vmatprep.subr.mxu0 0.0
    %2645 = vmatpush1.msra.mxu0 0.0
    %2646 = vmatprep.subr.mxu0 0.0
    %2647 = vmatpush1.msra.mxu0 0.0
    %2648 = vmatprep.subr.mxu0 0.0
    %2649 = vmatpush1.msra.mxu0 0.0
    %2650 = vmatprep.subr.mxu0 0.0
    %2651 = vmatpush1.msra.mxu0 0.0
    %2652 = vmatprep.subr.mxu0 0.0
    %2653 = vmatpush1.msra.mxu0 0.0
    %2654 = vmatprep.subr.mxu0 0.0
    %2655 = vmatpush1.msra.mxu0 0.0
    %2656 = vmatprep.subr.mxu0 0.0
    %2657 = vmatpush1.msra.mxu0 0.0
    %2658 = vmatprep.subr.mxu0 0.0
    %2659 = vmatpush1.msra.mxu0 0.0
    %2660 = vmatprep.subr.mxu0 0.0
    %2661 = vmatpush1.msra.mxu0 0.0
    %2662 = vmatprep.subr.mxu0 0.0
    %2663 = vmatpush1.msra.mxu0 0.0
    %2664 = vmatprep.subr.mxu0 0.0
    %2665 = vmatpush1.msra.mxu0 0.0
    %2666 = vmatprep.subr.mxu0 0.0
    %2667 = vmatpush1.msra.mxu0 0.0
    %2668 = vmatprep.subr.mxu0 0.0
    %2669 = vmatpush1.msra.mxu0 0.0
    %2670 = vmatprep.subr.mxu0 0.0
    %2671 = vmatpush1.msra.mxu0 0.0
    %2672 = vmatprep.subr.mxu0 0.0
    %2673 = vmatpush1.msra.mxu0 0.0
    %2674 = vmatprep.subr.mxu0 0.0
    %2675 = vmatpush1.msra.mxu0 0.0
    %2676 = vmatprep.subr.mxu0 0.0
    %2677 = vmatpush1.msra.mxu0 0.0
    %2678 = vmatprep.subr.mxu0 0.0
    %2679 = vmatpush1.msra.mxu0 0.0
    %2680 = vmatprep.subr.mxu0 0.0
    %2681 = vmatpush1.msra.mxu0 0.0
    %2682 = vmatprep.subr.mxu0 0.0
    %2683 = vmatpush1.msra.mxu0 0.0
    %2684 = vmatprep.subr.mxu0 0.0
    %2685 = vmatpush1.msra.mxu0 0.0
    %2686 = vmatprep.subr.mxu0 0.0
    %2687 = vmatpush1.msra.mxu0 0.0
    %2688 = vmatprep.subr.mxu0 0.0
    %2689 = vmatpush1.msra.mxu0 0.0
    %2690 = vmatprep.mubr.f32.mxu0 0.0
    %2691 = vmatmul.mubr.f32.gmra.mrb[0].mxu0 %v2603
    %v2692 = vpop.f32.mrb[0].mxu0
    %v2693 = vadd.f32 %v2600, %v2692
    %v2694 = vpop.f32.mrb[0].mxu0
    %2695 = vmatprep.mubr.f32.mxu0 0.0
    %2696 = vmatmul.mubr.f32.gmra.mrb[0].mxu0 %v2606
    %v2697 = vpop.f32.mrb[0].mxu0
    %v2698 = vadd.f32 %v2600, %v2697
    %v2699 = vpop.f32.mrb[0].mxu0
    %2700 = vmatprep.mubr.f32.mxu0 0.0
    %2701 = vmatmul.mubr.f32.gmra.mrb[0].mxu0 %v2609
    %v2702 = vpop.f32.mrb[0].mxu0
    %v2703 = vadd.f32 %v2600, %v2702
    %v2704 = vpop.f32.mrb[0].mxu0
    %2705 = vmatprep.mubr.f32.mxu0 0.0
    %2706 = vmatmul.mubr.f32.gmra.mrb[0].mxu0 %v2612
    %v2707 = vpop.f32.mrb[0].mxu0
    %v2708 = vadd.f32 %v2600, %v2707
    %v2709 = vpop.f32.mrb[0].mxu0
    %2710 = vmatprep.mubr.f32.mxu0 0.0
    %2711 = vmatmul.mubr.f32.gmra.mrb[0].mxu0 %v2615
    %v2712 = vpop.f32.mrb[0].mxu0
    %v2713 = vadd.f32 %v2600, %v2712
    %v2714 = vpop.f32.mrb[0].mxu0
    %2715 = vmatprep.mubr.f32.mxu0 0.0
    %2716 = vmatmul.mubr.f32.gmra.mrb[0].mxu0 %v2618
    %v2717 = vpop.f32.mrb[0].mxu0
    %v2718 = vadd.f32 %v2600, %v2717
    %v2719 = vpop.f32.mrb[0].mxu0
    %2720 = vmatprep.mubr.f32.mxu0 0.0
    %2721 = vmatmul.mubr.f32.gmra.mrb[0].mxu0 %v2621
    %v2722 = vpop.f32.mrb[0].mxu0
    %v2723 = vadd.f32 %v2600, %v2722
    %v2724 = vpop.f32.mrb[0].mxu0
    %2725 = vmatprep.mubr.f32.mxu0 0.0
    %2726 = vmatmul.mubr.f32.gmra.mrb[0].mxu0 %v2624
    %v2727 = vpop.f32.mrb[0].mxu0
    %v2728 = vadd.f32 %v2600, %v2727
    %v2729 = vpop.f32.mrb[0].mxu0
    %2730 = vdwg.mxu0
    %v2731 = vld [vmem:[%s33] sm:$0xff]
    %v2732 = vld [vmem:[%s33 + $0x8] sm:$0xff]
    %v2733 = vld [vmem:[%s33 + $0x10] sm:$0xff]
    %v2734 = vld [vmem:[%s33 + $0x18] sm:$0xff]
    %v2735 = vld [vmem:[#allocation9] sm:$0x1]
    %v2737 = vlaneseq
    %v2738 = vshrl.u32 %v2737, 7
    %v2739 = vsub.s32 0, %v2738
    %v2740 = vrot.slane %v2735, %v2739
    %v2742 = vsel %vm409, 0.0, 0
    %2744 = vmatprep.subr.mxu0 0.0
    %2745 = vmatpush1.msra.mxu0 %v2731
    %2746 = vmatprep.subr.mxu0 0.0
    %2747 = vmatpush1.msra.mxu0 %v2732
    %2748 = vmatprep.subr.mxu0 0.0
    %2749 = vmatpush1.msra.mxu0 %v2733
    %2750 = vmatprep.subr.mxu0 0.0
    %2751 = vmatpush1.msra.mxu0 %v2734
    %2752 = vmatprep.subr.mxu0 0.0
    %2753 = vmatpush1.msra.mxu0 0.0
    %2754 = vmatprep.subr.mxu0 0.0
    %2755 = vmatpush1.msra.mxu0 0.0
    %2756 = vmatprep.subr.mxu0 0.0
    %2757 = vmatpush1.msra.mxu0 0.0
    %2758 = vmatprep.subr.mxu0 0.0
    %2759 = vmatpush1.msra.mxu0 0.0
    %2760 = vmatprep.subr.mxu0 0.0
    %2761 = vmatpush1.msra.mxu0 0.0
    %2762 = vmatprep.subr.mxu0 0.0
    %2763 = vmatpush1.msra.mxu0 0.0
    %2764 = vmatprep.subr.mxu0 0.0
    %2765 = vmatpush1.msra.mxu0 0.0
    %2766 = vmatprep.subr.mxu0 0.0
    %2767 = vmatpush1.msra.mxu0 0.0
    %2768 = vmatprep.subr.mxu0 0.0
    %2769 = vmatpush1.msra.mxu0 0.0
    %2770 = vmatprep.subr.mxu0 0.0
    %2771 = vmatpush1.msra.mxu0 0.0
    %2772 = vmatprep.subr.mxu0 0.0
    %2773 = vmatpush1.msra.mxu0 0.0
    %2774 = vmatprep.subr.mxu0 0.0
    %2775 = vmatpush1.msra.mxu0 0.0
    %2776 = vmatprep.subr.mxu0 0.0
    %2777 = vmatpush1.msra.mxu0 0.0
    %2778 = vmatprep.subr.mxu0 0.0
    %2779 = vmatpush1.msra.mxu0 0.0
    %2780 = vmatprep.subr.mxu0 0.0
    %2781 = vmatpush1.msra.mxu0 0.0
    %2782 = vmatprep.subr.mxu0 0.0
    %2783 = vmatpush1.msra.mxu0 0.0
    %2784 = vmatprep.subr.mxu0 0.0
    %2785 = vmatpush1.msra.mxu0 0.0
    %2786 = vmatprep.subr.mxu0 0.0
    %2787 = vmatpush1.msra.mxu0 0.0
    %2788 = vmatprep.subr.mxu0 0.0
    %2789 = vmatpush1.msra.mxu0 0.0
    %2790 = vmatprep.subr.mxu0 0.0
    %2791 = vmatpush1.msra.mxu0 0.0
    %2792 = vmatprep.subr.mxu0 0.0
    %2793 = vmatpush1.msra.mxu0 0.0
    %2794 = vmatprep.subr.mxu0 0.0
    %2795 = vmatpush1.msra.mxu0 0.0
    %2796 = vmatprep.subr.mxu0 0.0
    %2797 = vmatpush1.msra.mxu0 0.0
    %2798 = vmatprep.subr.mxu0 0.0
    %2799 = vmatpush1.msra.mxu0 0.0
    %2800 = vmatprep.subr.mxu0 0.0
    %2801 = vmatpush1.msra.mxu0 0.0
    %2802 = vmatprep.subr.mxu0 0.0
    %2803 = vmatpush1.msra.mxu0 0.0
    %2804 = vmatprep.subr.mxu0 0.0
    %2805 = vmatpush1.msra.mxu0 0.0
    %2806 = vmatprep.subr.mxu0 0.0
    %2807 = vmatpush1.msra.mxu0 0.0
    %2808 = vmatprep.mubr.f32.mxu0 0.0
    %2809 = vmatmul.mubr.f32.gmra.mrb[0].mxu0 %v2742
    %v2810 = vpop.f32.mrb[0].mxu0
    %v2811 = vadd.f32 %v2740, %v2810
    %v2812 = vpop.f32.mrb[0].mxu0
    %2813 = vdwg.mxu0
    %v2814 = vadd.f32 %v2693, %v2811
    %v2815 = vxor.u32 %v2814, 2147483648
    %v2816 = vmul.f32 %v2815, 1.442695
    %v2817 = vpow.pop %v2816
    %v2818 = vadd.f32 %v2817, 1.0
    %v2819 = vrcp.pop %v2818
    %v2820 = vmul.f32 1.0, %v2819
    %2822 = vrot.lane.b32.xlu0 %v2811, 64
    %v2823 = vpop.permute.xlu0 %2822
    %v2825 = vmul.f32 %v2820, %v2823
    %2827 = vrot.lane.b32.xlu0 %v2825, 64
    %v2828 = vpop.permute.xlu0 %2827
    %v2830 = vadd.f32 %v2693, %v2828
    %v2831 = vtanh.pop %v2830
    %v2832 = vsub.f32 1.0, %v2820
    %2834 = vrot.lane.b32.xlu0 %v2831, 96
    %v2835 = vpop.permute.xlu0 %2834
    %v2837 = vmul.f32 %v2832, %v2835
    %v2838 = vmul.f32 %v2820, 0.0
    %v2839 = vadd.f32 %v2837, %v2838
    %2841 = vrot.lane.b32.xlu0 %v2839, 96
    %v2842 = vpop.permute.xlu0 %2841
    %2844 = vst.msk [vmem:[#allocation2] sm:$0xff] %vm776, %v2842
    %vm2845 = vcmask 261248
    %2846 = vst.msk [vmem:[#allocation2 + $0x38] sm:$0xff] %vm2845, %v2842
    %v2847 = vsel %vm409, %v2842, 0
    %2849 = vmatprep.subr.mxu0 0.0
    %2850 = vmatpush1.msra.mxu0 %v2731
    %2851 = vmatprep.subr.mxu0 0.0
    %2852 = vmatpush1.msra.mxu0 %v2732
    %2853 = vmatprep.subr.mxu0 0.0
    %2854 = vmatpush1.msra.mxu0 %v2733
    %2855 = vmatprep.subr.mxu0 0.0
    %2856 = vmatpush1.msra.mxu0 %v2734
    %2857 = vmatprep.subr.mxu0 0.0
    %2858 = vmatpush1.msra.mxu0 0.0
    %2859 = vmatprep.subr.mxu0 0.0
    %2860 = vmatpush1.msra.mxu0 0.0
    %2861 = vmatprep.subr.mxu0 0.0
    %2862 = vmatpush1.msra.mxu0 0.0
    %2863 = vmatprep.subr.mxu0 0.0
    %2864 = vmatpush1.msra.mxu0 0.0
    %2865 = vmatprep.subr.mxu0 0.0
    %2866 = vmatpush1.msra.mxu0 0.0
    %2867 = vmatprep.subr.mxu0 0.0
    %2868 = vmatpush1.msra.mxu0 0.0
    %2869 = vmatprep.subr.mxu0 0.0
    %2870 = vmatpush1.msra.mxu0 0.0
    %2871 = vmatprep.subr.mxu0 0.0
    %2872 = vmatpush1.msra.mxu0 0.0
    %2873 = vmatprep.subr.mxu0 0.0
    %2874 = vmatpush1.msra.mxu0 0.0
    %2875 = vmatprep.subr.mxu0 0.0
    %2876 = vmatpush1.msra.mxu0 0.0
    %2877 = vmatprep.subr.mxu0 0.0
    %2878 = vmatpush1.msra.mxu0 0.0
    %2879 = vmatprep.subr.mxu0 0.0
    %2880 = vmatpush1.msra.mxu0 0.0
    %2881 = vmatprep.subr.mxu0 0.0
    %2882 = vmatpush1.msra.mxu0 0.0
    %2883 = vmatprep.subr.mxu0 0.0
    %2884 = vmatpush1.msra.mxu0 0.0
    %2885 = vmatprep.subr.mxu0 0.0
    %2886 = vmatpush1.msra.mxu0 0.0
    %2887 = vmatprep.subr.mxu0 0.0
    %2888 = vmatpush1.msra.mxu0 0.0
    %2889 = vmatprep.subr.mxu0 0.0
    %2890 = vmatpush1.msra.mxu0 0.0
    %2891 = vmatprep.subr.mxu0 0.0
    %2892 = vmatpush1.msra.mxu0 0.0
    %2893 = vmatprep.subr.mxu0 0.0
    %2894 = vmatpush1.msra.mxu0 0.0
    %2895 = vmatprep.subr.mxu0 0.0
    %2896 = vmatpush1.msra.mxu0 0.0
    %2897 = vmatprep.subr.mxu0 0.0
    %2898 = vmatpush1.msra.mxu0 0.0
    %2899 = vmatprep.subr.mxu0 0.0
    %2900 = vmatpush1.msra.mxu0 0.0
    %2901 = vmatprep.subr.mxu0 0.0
    %2902 = vmatpush1.msra.mxu0 0.0
    %2903 = vmatprep.subr.mxu0 0.0
    %2904 = vmatpush1.msra.mxu0 0.0
    %2905 = vmatprep.subr.mxu0 0.0
    %2906 = vmatpush1.msra.mxu0 0.0
    %2907 = vmatprep.subr.mxu0 0.0
    %2908 = vmatpush1.msra.mxu0 0.0
    %2909 = vmatprep.subr.mxu0 0.0
    %2910 = vmatpush1.msra.mxu0 0.0
    %2911 = vmatprep.subr.mxu0 0.0
    %2912 = vmatpush1.msra.mxu0 0.0
    %2913 = vmatprep.mubr.f32.mxu0 0.0
    %2914 = vmatmul.mubr.f32.gmra.mrb[0].mxu0 %v2847
    %v2915 = vpop.f32.mrb[0].mxu0
    %v2916 = vadd.f32 %v2740, %v2915
    %v2917 = vpop.f32.mrb[0].mxu0
    %2918 = vdwg.mxu0
    %v2919 = vadd.f32 %v2698, %v2916
    %v2920 = vxor.u32 %v2919, 2147483648
    %v2921 = vmul.f32 %v2920, 1.442695
    %v2922 = vpow.pop %v2921
    %v2923 = vadd.f32 %v2922, 1.0
    %v2924 = vrcp.pop %v2923
    %v2925 = vmul.f32 1.0, %v2924
    %2927 = vrot.lane.b32.xlu0 %v2916, 64
    %v2928 = vpop.permute.xlu0 %2927
    %v2930 = vmul.f32 %v2925, %v2928
    %2932 = vrot.lane.b32.xlu0 %v2930, 64
    %v2933 = vpop.permute.xlu0 %2932
    %v2935 = vadd.f32 %v2698, %v2933
    %v2936 = vtanh.pop %v2935
    %v2937 = vsub.f32 1.0, %v2925
    %2939 = vrot.lane.b32.xlu0 %v2936, 96
    %v2940 = vpop.permute.xlu0 %2939
    %v2942 = vmul.f32 %v2937, %v2940
    %v2943 = vmul.f32 %v2925, %v2839
    %v2944 = vadd.f32 %v2942, %v2943
    %2946 = vrot.lane.b32.xlu0 %v2944, 96
    %v2947 = vpop.permute.xlu0 %2946
    %2949 = vst.msk [vmem:[#allocation2 + $0x8] sm:$0xff] %vm776, %v2947
    %2950 = vst.msk [vmem:[#allocation2 + $0x30] sm:$0xff] %vm2845, %v2947
    %v2951 = vsel %vm409, %v2947, 0
    %2953 = vmatprep.subr.mxu0 0.0
    %2954 = vmatpush1.msra.mxu0 %v2731
    %2955 = vmatprep.subr.mxu0 0.0
    %2956 = vmatpush1.msra.mxu0 %v2732
    %2957 = vmatprep.subr.mxu0 0.0
    %2958 = vmatpush1.msra.mxu0 %v2733
    %2959 = vmatprep.subr.mxu0 0.0
    %2960 = vmatpush1.msra.mxu0 %v2734
    %2961 = vmatprep.subr.mxu0 0.0
    %2962 = vmatpush1.msra.mxu0 0.0
    %2963 = vmatprep.subr.mxu0 0.0
    %2964 = vmatpush1.msra.mxu0 0.0
    %2965 = vmatprep.subr.mxu0 0.0
    %2966 = vmatpush1.msra.mxu0 0.0
    %2967 = vmatprep.subr.mxu0 0.0
    %2968 = vmatpush1.msra.mxu0 0.0
    %2969 = vmatprep.subr.mxu0 0.0
    %2970 = vmatpush1.msra.mxu0 0.0
    %2971 = vmatprep.subr.mxu0 0.0
    %2972 = vmatpush1.msra.mxu0 0.0
    %2973 = vmatprep.subr.mxu0 0.0
    %2974 = vmatpush1.msra.mxu0 0.0
    %2975 = vmatprep.subr.mxu0 0.0
    %2976 = vmatpush1.msra.mxu0 0.0
    %2977 = vmatprep.subr.mxu0 0.0
    %2978 = vmatpush1.msra.mxu0 0.0
    %2979 = vmatprep.subr.mxu0 0.0
    %2980 = vmatpush1.msra.mxu0 0.0
    %2981 = vmatprep.subr.mxu0 0.0
    %2982 = vmatpush1.msra.mxu0 0.0
    %2983 = vmatprep.subr.mxu0 0.0
    %2984 = vmatpush1.msra.mxu0 0.0
    %2985 = vmatprep.subr.mxu0 0.0
    %2986 = vmatpush1.msra.mxu0 0.0
    %2987 = vmatprep.subr.mxu0 0.0
    %2988 = vmatpush1.msra.mxu0 0.0
    %2989 = vmatprep.subr.mxu0 0.0
    %2990 = vmatpush1.msra.mxu0 0.0
    %2991 = vmatprep.subr.mxu0 0.0
    %2992 = vmatpush1.msra.mxu0 0.0
    %2993 = vmatprep.subr.mxu0 0.0
    %2994 = vmatpush1.msra.mxu0 0.0
    %2995 = vmatprep.subr.mxu0 0.0
    %2996 = vmatpush1.msra.mxu0 0.0
    %2997 = vmatprep.subr.mxu0 0.0
    %2998 = vmatpush1.msra.mxu0 0.0
    %2999 = vmatprep.subr.mxu0 0.0
    %3000 = vmatpush1.msra.mxu0 0.0
    %3001 = vmatprep.subr.mxu0 0.0
    %3002 = vmatpush1.msra.mxu0 0.0
    %3003 = vmatprep.subr.mxu0 0.0
    %3004 = vmatpush1.msra.mxu0 0.0
    %3005 = vmatprep.subr.mxu0 0.0
    %3006 = vmatpush1.msra.mxu0 0.0
    %3007 = vmatprep.subr.mxu0 0.0
    %3008 = vmatpush1.msra.mxu0 0.0
    %3009 = vmatprep.subr.mxu0 0.0
    %3010 = vmatpush1.msra.mxu0 0.0
    %3011 = vmatprep.subr.mxu0 0.0
    %3012 = vmatpush1.msra.mxu0 0.0
    %3013 = vmatprep.subr.mxu0 0.0
    %3014 = vmatpush1.msra.mxu0 0.0
    %3015 = vmatprep.subr.mxu0 0.0
    %3016 = vmatpush1.msra.mxu0 0.0
    %3017 = vmatprep.mubr.f32.mxu0 0.0
    %3018 = vmatmul.mubr.f32.gmra.mrb[0].mxu0 %v2951
    %v3019 = vpop.f32.mrb[0].mxu0
    %v3020 = vadd.f32 %v2740, %v3019
    %v3021 = vpop.f32.mrb[0].mxu0
    %3022 = vdwg.mxu0
    %v3023 = vadd.f32 %v2703, %v3020
    %v3024 = vxor.u32 %v3023, 2147483648
    %v3025 = vmul.f32 %v3024, 1.442695
    %v3026 = vpow.pop %v3025
    %v3027 = vadd.f32 %v3026, 1.0
    %v3028 = vrcp.pop %v3027
    %v3029 = vmul.f32 1.0, %v3028
    %3031 = vrot.lane.b32.xlu0 %v3020, 64
    %v3032 = vpop.permute.xlu0 %3031
    %v3034 = vmul.f32 %v3029, %v3032
    %3036 = vrot.lane.b32.xlu0 %v3034, 64
    %v3037 = vpop.permute.xlu0 %3036
    %v3039 = vadd.f32 %v2703, %v3037
    %v3040 = vtanh.pop %v3039
    %v3041 = vsub.f32 1.0, %v3029
    %3043 = vrot.lane.b32.xlu0 %v3040, 96
    %v3044 = vpop.permute.xlu0 %3043
    %v3046 = vmul.f32 %v3041, %v3044
    %v3047 = vmul.f32 %v3029, %v2944
    %v3048 = vadd.f32 %v3046, %v3047
    %3050 = vrot.lane.b32.xlu0 %v3048, 96
    %v3051 = vpop.permute.xlu0 %3050
    %3053 = vst.msk [vmem:[#allocation2 + $0x10] sm:$0xff] %vm776, %v3051
    %3054 = vst.msk [vmem:[#allocation2 + $0x28] sm:$0xff] %vm2845, %v3051
    %v3055 = vsel %vm409, %v3051, 0
    %3057 = vmatprep.subr.mxu0 0.0
    %3058 = vmatpush1.msra.mxu0 %v2731
    %3059 = vmatprep.subr.mxu0 0.0
    %3060 = vmatpush1.msra.mxu0 %v2732
    %3061 = vmatprep.subr.mxu0 0.0
    %3062 = vmatpush1.msra.mxu0 %v2733
    %3063 = vmatprep.subr.mxu0 0.0
    %3064 = vmatpush1.msra.mxu0 %v2734
    %3065 = vmatprep.subr.mxu0 0.0
    %3066 = vmatpush1.msra.mxu0 0.0
    %3067 = vmatprep.subr.mxu0 0.0
    %3068 = vmatpush1.msra.mxu0 0.0
    %3069 = vmatprep.subr.mxu0 0.0
    %3070 = vmatpush1.msra.mxu0 0.0
    %3071 = vmatprep.subr.mxu0 0.0
    %3072 = vmatpush1.msra.mxu0 0.0
    %3073 = vmatprep.subr.mxu0 0.0
    %3074 = vmatpush1.msra.mxu0 0.0
    %3075 = vmatprep.subr.mxu0 0.0
    %3076 = vmatpush1.msra.mxu0 0.0
    %3077 = vmatprep.subr.mxu0 0.0
    %3078 = vmatpush1.msra.mxu0 0.0
    %3079 = vmatprep.subr.mxu0 0.0
    %3080 = vmatpush1.msra.mxu0 0.0
    %3081 = vmatprep.subr.mxu0 0.0
    %3082 = vmatpush1.msra.mxu0 0.0
    %3083 = vmatprep.subr.mxu0 0.0
    %3084 = vmatpush1.msra.mxu0 0.0
    %3085 = vmatprep.subr.mxu0 0.0
    %3086 = vmatpush1.msra.mxu0 0.0
    %3087 = vmatprep.subr.mxu0 0.0
    %3088 = vmatpush1.msra.mxu0 0.0
    %3089 = vmatprep.subr.mxu0 0.0
    %3090 = vmatpush1.msra.mxu0 0.0
    %3091 = vmatprep.subr.mxu0 0.0
    %3092 = vmatpush1.msra.mxu0 0.0
    %3093 = vmatprep.subr.mxu0 0.0
    %3094 = vmatpush1.msra.mxu0 0.0
    %3095 = vmatprep.subr.mxu0 0.0
    %3096 = vmatpush1.msra.mxu0 0.0
    %3097 = vmatprep.subr.mxu0 0.0
    %3098 = vmatpush1.msra.mxu0 0.0
    %3099 = vmatprep.subr.mxu0 0.0
    %3100 = vmatpush1.msra.mxu0 0.0
    %3101 = vmatprep.subr.mxu0 0.0
    %3102 = vmatpush1.msra.mxu0 0.0
    %3103 = vmatprep.subr.mxu0 0.0
    %3104 = vmatpush1.msra.mxu0 0.0
    %3105 = vmatprep.subr.mxu0 0.0
    %3106 = vmatpush1.msra.mxu0 0.0
    %3107 = vmatprep.subr.mxu0 0.0
    %3108 = vmatpush1.msra.mxu0 0.0
    %3109 = vmatprep.subr.mxu0 0.0
    %3110 = vmatpush1.msra.mxu0 0.0
    %3111 = vmatprep.subr.mxu0 0.0
    %3112 = vmatpush1.msra.mxu0 0.0
    %3113 = vmatprep.subr.mxu0 0.0
    %3114 = vmatpush1.msra.mxu0 0.0
    %3115 = vmatprep.subr.mxu0 0.0
    %3116 = vmatpush1.msra.mxu0 0.0
    %3117 = vmatprep.subr.mxu0 0.0
    %3118 = vmatpush1.msra.mxu0 0.0
    %3119 = vmatprep.subr.mxu0 0.0
    %3120 = vmatpush1.msra.mxu0 0.0
    %3121 = vmatprep.mubr.f32.mxu0 0.0
    %3122 = vmatmul.mubr.f32.gmra.mrb[0].mxu0 %v3055
    %v3123 = vpop.f32.mrb[0].mxu0
    %v3124 = vadd.f32 %v2740, %v3123
    %v3125 = vpop.f32.mrb[0].mxu0
    %3126 = vdwg.mxu0
    %v3127 = vadd.f32 %v2708, %v3124
    %v3128 = vxor.u32 %v3127, 2147483648
    %v3129 = vmul.f32 %v3128, 1.442695
    %v3130 = vpow.pop %v3129
    %v3131 = vadd.f32 %v3130, 1.0
    %v3132 = vrcp.pop %v3131
    %v3133 = vmul.f32 1.0, %v3132
    %3135 = vrot.lane.b32.xlu0 %v3124, 64
    %v3136 = vpop.permute.xlu0 %3135
    %v3138 = vmul.f32 %v3133, %v3136
    %3140 = vrot.lane.b32.xlu0 %v3138, 64
    %v3141 = vpop.permute.xlu0 %3140
    %v3143 = vadd.f32 %v2708, %v3141
    %v3144 = vtanh.pop %v3143
    %v3145 = vsub.f32 1.0, %v3133
    %3147 = vrot.lane.b32.xlu0 %v3144, 96
    %v3148 = vpop.permute.xlu0 %3147
    %v3150 = vmul.f32 %v3145, %v3148
    %v3151 = vmul.f32 %v3133, %v3048
    %v3152 = vadd.f32 %v3150, %v3151
    %3154 = vrot.lane.b32.xlu0 %v3152, 96
    %v3155 = vpop.permute.xlu0 %3154
    %3157 = vst.msk [vmem:[#allocation2 + $0x18] sm:$0xff] %vm776, %v3155
    %3158 = vst.msk [vmem:[#allocation2 + $0x20] sm:$0xff] %vm2845, %v3155
    %v3159 = vsel %vm409, %v3155, 0
    %3161 = vmatprep.subr.mxu0 0.0
    %3162 = vmatpush1.msra.mxu0 %v2731
    %3163 = vmatprep.subr.mxu0 0.0
    %3164 = vmatpush1.msra.mxu0 %v2732
    %3165 = vmatprep.subr.mxu0 0.0
    %3166 = vmatpush1.msra.mxu0 %v2733
    %3167 = vmatprep.subr.mxu0 0.0
    %3168 = vmatpush1.msra.mxu0 %v2734
    %3169 = vmatprep.subr.mxu0 0.0
    %3170 = vmatpush1.msra.mxu0 0.0
    %3171 = vmatprep.subr.mxu0 0.0
    %3172 = vmatpush1.msra.mxu0 0.0
    %3173 = vmatprep.subr.mxu0 0.0
    %3174 = vmatpush1.msra.mxu0 0.0
    %3175 = vmatprep.subr.mxu0 0.0
    %3176 = vmatpush1.msra.mxu0 0.0
    %3177 = vmatprep.subr.mxu0 0.0
    %3178 = vmatpush1.msra.mxu0 0.0
    %3179 = vmatprep.subr.mxu0 0.0
    %3180 = vmatpush1.msra.mxu0 0.0
    %3181 = vmatprep.subr.mxu0 0.0
    %3182 = vmatpush1.msra.mxu0 0.0
    %3183 = vmatprep.subr.mxu0 0.0
    %3184 = vmatpush1.msra.mxu0 0.0
    %3185 = vmatprep.subr.mxu0 0.0
    %3186 = vmatpush1.msra.mxu0 0.0
    %3187 = vmatprep.subr.mxu0 0.0
    %3188 = vmatpush1.msra.mxu0 0.0
    %3189 = vmatprep.subr.mxu0 0.0
    %3190 = vmatpush1.msra.mxu0 0.0
    %3191 = vmatprep.subr.mxu0 0.0
    %3192 = vmatpush1.msra.mxu0 0.0
    %3193 = vmatprep.subr.mxu0 0.0
    %3194 = vmatpush1.msra.mxu0 0.0
    %3195 = vmatprep.subr.mxu0 0.0
    %3196 = vmatpush1.msra.mxu0 0.0
    %3197 = vmatprep.subr.mxu0 0.0
    %3198 = vmatpush1.msra.mxu0 0.0
    %3199 = vmatprep.subr.mxu0 0.0
    %3200 = vmatpush1.msra.mxu0 0.0
    %3201 = vmatprep.subr.mxu0 0.0
    %3202 = vmatpush1.msra.mxu0 0.0
    %3203 = vmatprep.subr.mxu0 0.0
    %3204 = vmatpush1.msra.mxu0 0.0
    %3205 = vmatprep.subr.mxu0 0.0
    %3206 = vmatpush1.msra.mxu0 0.0
    %3207 = vmatprep.subr.mxu0 0.0
    %3208 = vmatpush1.msra.mxu0 0.0
    %3209 = vmatprep.subr.mxu0 0.0
    %3210 = vmatpush1.msra.mxu0 0.0
    %3211 = vmatprep.subr.mxu0 0.0
    %3212 = vmatpush1.msra.mxu0 0.0
    %3213 = vmatprep.subr.mxu0 0.0
    %3214 = vmatpush1.msra.mxu0 0.0
    %3215 = vmatprep.subr.mxu0 0.0
    %3216 = vmatpush1.msra.mxu0 0.0
    %3217 = vmatprep.subr.mxu0 0.0
    %3218 = vmatpush1.msra.mxu0 0.0
    %3219 = vmatprep.subr.mxu0 0.0
    %3220 = vmatpush1.msra.mxu0 0.0
    %3221 = vmatprep.subr.mxu0 0.0
    %3222 = vmatpush1.msra.mxu0 0.0
    %3223 = vmatprep.subr.mxu0 0.0
    %3224 = vmatpush1.msra.mxu0 0.0
    %3225 = vmatprep.mubr.f32.mxu0 0.0
    %3226 = vmatmul.mubr.f32.gmra.mrb[0].mxu0 %v3159
    %v3227 = vpop.f32.mrb[0].mxu0
    %v3228 = vadd.f32 %v2740, %v3227
    %v3229 = vpop.f32.mrb[0].mxu0
    %3230 = vdwg.mxu0
    %v3231 = vadd.f32 %v2713, %v3228
    %v3232 = vxor.u32 %v3231, 2147483648
    %v3233 = vmul.f32 %v3232, 1.442695
    %v3234 = vpow.pop %v3233
    %v3235 = vadd.f32 %v3234, 1.0
    %v3236 = vrcp.pop %v3235
    %v3237 = vmul.f32 1.0, %v3236
    %3239 = vrot.lane.b32.xlu0 %v3228, 64
    %v3240 = vpop.permute.xlu0 %3239
    %v3242 = vmul.f32 %v3237, %v3240
    %3244 = vrot.lane.b32.xlu0 %v3242, 64
    %v3245 = vpop.permute.xlu0 %3244
    %v3247 = vadd.f32 %v2713, %v3245
    %v3248 = vtanh.pop %v3247
    %v3249 = vsub.f32 1.0, %v3237
    %3251 = vrot.lane.b32.xlu0 %v3248, 96
    %v3252 = vpop.permute.xlu0 %3251
    %v3254 = vmul.f32 %v3249, %v3252
    %v3255 = vmul.f32 %v3237, %v3152
    %v3256 = vadd.f32 %v3254, %v3255
    %3258 = vrot.lane.b32.xlu0 %v3256, 96
    %v3259 = vpop.permute.xlu0 %3258
    %3261 = vst.msk [vmem:[#allocation2 + $0x20] sm:$0xff] %vm776, %v3259
    %3262 = vst.msk [vmem:[#allocation2 + $0x18] sm:$0xff] %vm2845, %v3259
    %v3263 = vsel %vm409, %v3259, 0
    %3265 = vmatprep.subr.mxu0 0.0
    %3266 = vmatpush1.msra.mxu0 %v2731
    %3267 = vmatprep.subr.mxu0 0.0
    %3268 = vmatpush1.msra.mxu0 %v2732
    %3269 = vmatprep.subr.mxu0 0.0
    %3270 = vmatpush1.msra.mxu0 %v2733
    %3271 = vmatprep.subr.mxu0 0.0
    %3272 = vmatpush1.msra.mxu0 %v2734
    %3273 = vmatprep.subr.mxu0 0.0
    %3274 = vmatpush1.msra.mxu0 0.0
    %3275 = vmatprep.subr.mxu0 0.0
    %3276 = vmatpush1.msra.mxu0 0.0
    %3277 = vmatprep.subr.mxu0 0.0
    %3278 = vmatpush1.msra.mxu0 0.0
    %3279 = vmatprep.subr.mxu0 0.0
    %3280 = vmatpush1.msra.mxu0 0.0
    %3281 = vmatprep.subr.mxu0 0.0
    %3282 = vmatpush1.msra.mxu0 0.0
    %3283 = vmatprep.subr.mxu0 0.0
    %3284 = vmatpush1.msra.mxu0 0.0
    %3285 = vmatprep.subr.mxu0 0.0
    %3286 = vmatpush1.msra.mxu0 0.0
    %3287 = vmatprep.subr.mxu0 0.0
    %3288 = vmatpush1.msra.mxu0 0.0
    %3289 = vmatprep.subr.mxu0 0.0
    %3290 = vmatpush1.msra.mxu0 0.0
    %3291 = vmatprep.subr.mxu0 0.0
    %3292 = vmatpush1.msra.mxu0 0.0
    %3293 = vmatprep.subr.mxu0 0.0
    %3294 = vmatpush1.msra.mxu0 0.0
    %3295 = vmatprep.subr.mxu0 0.0
    %3296 = vmatpush1.msra.mxu0 0.0
    %3297 = vmatprep.subr.mxu0 0.0
    %3298 = vmatpush1.msra.mxu0 0.0
    %3299 = vmatprep.subr.mxu0 0.0
    %3300 = vmatpush1.msra.mxu0 0.0
    %3301 = vmatprep.subr.mxu0 0.0
    %3302 = vmatpush1.msra.mxu0 0.0
    %3303 = vmatprep.subr.mxu0 0.0
    %3304 = vmatpush1.msra.mxu0 0.0
    %3305 = vmatprep.subr.mxu0 0.0
    %3306 = vmatpush1.msra.mxu0 0.0
    %3307 = vmatprep.subr.mxu0 0.0
    %3308 = vmatpush1.msra.mxu0 0.0
    %3309 = vmatprep.subr.mxu0 0.0
    %3310 = vmatpush1.msra.mxu0 0.0
    %3311 = vmatprep.subr.mxu0 0.0
    %3312 = vmatpush1.msra.mxu0 0.0
    %3313 = vmatprep.subr.mxu0 0.0
    %3314 = vmatpush1.msra.mxu0 0.0
    %3315 = vmatprep.subr.mxu0 0.0
    %3316 = vmatpush1.msra.mxu0 0.0
    %3317 = vmatprep.subr.mxu0 0.0
    %3318 = vmatpush1.msra.mxu0 0.0
    %3319 = vmatprep.subr.mxu0 0.0
    %3320 = vmatpush1.msra.mxu0 0.0
    %3321 = vmatprep.subr.mxu0 0.0
    %3322 = vmatpush1.msra.mxu0 0.0
    %3323 = vmatprep.subr.mxu0 0.0
    %3324 = vmatpush1.msra.mxu0 0.0
    %3325 = vmatprep.subr.mxu0 0.0
    %3326 = vmatpush1.msra.mxu0 0.0
    %3327 = vmatprep.subr.mxu0 0.0
    %3328 = vmatpush1.msra.mxu0 0.0
    %3329 = vmatprep.mubr.f32.mxu0 0.0
    %3330 = vmatmul.mubr.f32.gmra.mrb[0].mxu0 %v3263
    %v3331 = vpop.f32.mrb[0].mxu0
    %v3332 = vadd.f32 %v2740, %v3331
    %v3333 = vpop.f32.mrb[0].mxu0
    %3334 = vdwg.mxu0
    %v3335 = vadd.f32 %v2718, %v3332
    %v3336 = vxor.u32 %v3335, 2147483648
    %v3337 = vmul.f32 %v3336, 1.442695
    %v3338 = vpow.pop %v3337
    %v3339 = vadd.f32 %v3338, 1.0
    %v3340 = vrcp.pop %v3339
    %v3341 = vmul.f32 1.0, %v3340
    %3343 = vrot.lane.b32.xlu0 %v3332, 64
    %v3344 = vpop.permute.xlu0 %3343
    %v3346 = vmul.f32 %v3341, %v3344
    %3348 = vrot.lane.b32.xlu0 %v3346, 64
    %v3349 = vpop.permute.xlu0 %3348
    %v3351 = vadd.f32 %v2718, %v3349
    %v3352 = vtanh.pop %v3351
    %v3353 = vsub.f32 1.0, %v3341
    %3355 = vrot.lane.b32.xlu0 %v3352, 96
    %v3356 = vpop.permute.xlu0 %3355
    %v3358 = vmul.f32 %v3353, %v3356
    %v3359 = vmul.f32 %v3341, %v3256
    %v3360 = vadd.f32 %v3358, %v3359
    %3362 = vrot.lane.b32.xlu0 %v3360, 96
    %v3363 = vpop.permute.xlu0 %3362
    %3365 = vst.msk [vmem:[#allocation2 + $0x28] sm:$0xff] %vm776, %v3363
    %3366 = vst.msk [vmem:[#allocation2 + $0x10] sm:$0xff] %vm2845, %v3363
    %v3367 = vsel %vm409, %v3363, 0
    %3369 = vmatprep.subr.mxu0 0.0
    %3370 = vmatpush1.msra.mxu0 %v2731
    %3371 = vmatprep.subr.mxu0 0.0
    %3372 = vmatpush1.msra.mxu0 %v2732
    %3373 = vmatprep.subr.mxu0 0.0
    %3374 = vmatpush1.msra.mxu0 %v2733
    %3375 = vmatprep.subr.mxu0 0.0
    %3376 = vmatpush1.msra.mxu0 %v2734
    %3377 = vmatprep.subr.mxu0 0.0
    %3378 = vmatpush1.msra.mxu0 0.0
    %3379 = vmatprep.subr.mxu0 0.0
    %3380 = vmatpush1.msra.mxu0 0.0
    %3381 = vmatprep.subr.mxu0 0.0
    %3382 = vmatpush1.msra.mxu0 0.0
    %3383 = vmatprep.subr.mxu0 0.0
    %3384 = vmatpush1.msra.mxu0 0.0
    %3385 = vmatprep.subr.mxu0 0.0
    %3386 = vmatpush1.msra.mxu0 0.0
    %3387 = vmatprep.subr.mxu0 0.0
    %3388 = vmatpush1.msra.mxu0 0.0
    %3389 = vmatprep.subr.mxu0 0.0
    %3390 = vmatpush1.msra.mxu0 0.0
    %3391 = vmatprep.subr.mxu0 0.0
    %3392 = vmatpush1.msra.mxu0 0.0
    %3393 = vmatprep.subr.mxu0 0.0
    %3394 = vmatpush1.msra.mxu0 0.0
    %3395 = vmatprep.subr.mxu0 0.0
    %3396 = vmatpush1.msra.mxu0 0.0
    %3397 = vmatprep.subr.mxu0 0.0
    %3398 = vmatpush1.msra.mxu0 0.0
    %3399 = vmatprep.subr.mxu0 0.0
    %3400 = vmatpush1.msra.mxu0 0.0
    %3401 = vmatprep.subr.mxu0 0.0
    %3402 = vmatpush1.msra.mxu0 0.0
    %3403 = vmatprep.subr.mxu0 0.0
    %3404 = vmatpush1.msra.mxu0 0.0
    %3405 = vmatprep.subr.mxu0 0.0
    %3406 = vmatpush1.msra.mxu0 0.0
    %3407 = vmatprep.subr.mxu0 0.0
    %3408 = vmatpush1.msra.mxu0 0.0
    %3409 = vmatprep.subr.mxu0 0.0
    %3410 = vmatpush1.msra.mxu0 0.0
    %3411 = vmatprep.subr.mxu0 0.0
    %3412 = vmatpush1.msra.mxu0 0.0
    %3413 = vmatprep.subr.mxu0 0.0
    %3414 = vmatpush1.msra.mxu0 0.0
    %3415 = vmatprep.subr.mxu0 0.0
    %3416 = vmatpush1.msra.mxu0 0.0
    %3417 = vmatprep.subr.mxu0 0.0
    %3418 = vmatpush1.msra.mxu0 0.0
    %3419 = vmatprep.subr.mxu0 0.0
    %3420 = vmatpush1.msra.mxu0 0.0
    %3421 = vmatprep.subr.mxu0 0.0
    %3422 = vmatpush1.msra.mxu0 0.0
    %3423 = vmatprep.subr.mxu0 0.0
    %3424 = vmatpush1.msra.mxu0 0.0
    %3425 = vmatprep.subr.mxu0 0.0
    %3426 = vmatpush1.msra.mxu0 0.0
    %3427 = vmatprep.subr.mxu0 0.0
    %3428 = vmatpush1.msra.mxu0 0.0
    %3429 = vmatprep.subr.mxu0 0.0
    %3430 = vmatpush1.msra.mxu0 0.0
    %3431 = vmatprep.subr.mxu0 0.0
    %3432 = vmatpush1.msra.mxu0 0.0
    %3433 = vmatprep.mubr.f32.mxu0 0.0
    %3434 = vmatmul.mubr.f32.gmra.mrb[0].mxu0 %v3367
    %v3435 = vpop.f32.mrb[0].mxu0
    %v3436 = vadd.f32 %v2740, %v3435
    %v3437 = vpop.f32.mrb[0].mxu0
    %3438 = vdwg.mxu0
    %v3439 = vadd.f32 %v2723, %v3436
    %v3440 = vxor.u32 %v3439, 2147483648
    %v3441 = vmul.f32 %v3440, 1.442695
    %v3442 = vpow.pop %v3441
    %v3443 = vadd.f32 %v3442, 1.0
    %v3444 = vrcp.pop %v3443
    %v3445 = vmul.f32 1.0, %v3444
    %3447 = vrot.lane.b32.xlu0 %v3436, 64
    %v3448 = vpop.permute.xlu0 %3447
    %v3450 = vmul.f32 %v3445, %v3448
    %3452 = vrot.lane.b32.xlu0 %v3450, 64
    %v3453 = vpop.permute.xlu0 %3452
    %v3455 = vadd.f32 %v2723, %v3453
    %v3456 = vtanh.pop %v3455
    %v3457 = vsub.f32 1.0, %v3445
    %3459 = vrot.lane.b32.xlu0 %v3456, 96
    %v3460 = vpop.permute.xlu0 %3459
    %v3462 = vmul.f32 %v3457, %v3460
    %v3463 = vmul.f32 %v3445, %v3360
    %v3464 = vadd.f32 %v3462, %v3463
    %3466 = vrot.lane.b32.xlu0 %v3464, 96
    %v3467 = vpop.permute.xlu0 %3466
    %3469 = vst.msk [vmem:[#allocation2 + $0x30] sm:$0xff] %vm776, %v3467
    %3470 = vst.msk [vmem:[#allocation2 + $0x8] sm:$0xff] %vm2845, %v3467
    %v3471 = vsel %vm409, %v3467, 0
    %3473 = vmatprep.subr.mxu0 0.0
    %3474 = vmatpush1.msra.mxu0 %v2731
    %3475 = vmatprep.subr.mxu0 0.0
    %3476 = vmatpush1.msra.mxu0 %v2732
    %3477 = vmatprep.subr.mxu0 0.0
    %3478 = vmatpush1.msra.mxu0 %v2733
    %3479 = vmatprep.subr.mxu0 0.0
    %3480 = vmatpush1.msra.mxu0 %v2734
    %3481 = vmatprep.subr.mxu0 0.0
    %3482 = vmatpush1.msra.mxu0 0.0
    %3483 = vmatprep.subr.mxu0 0.0
    %3484 = vmatpush1.msra.mxu0 0.0
    %3485 = vmatprep.subr.mxu0 0.0
    %3486 = vmatpush1.msra.mxu0 0.0
    %3487 = vmatprep.subr.mxu0 0.0
    %3488 = vmatpush1.msra.mxu0 0.0
    %3489 = vmatprep.subr.mxu0 0.0
    %3490 = vmatpush1.msra.mxu0 0.0
    %3491 = vmatprep.subr.mxu0 0.0
    %3492 = vmatpush1.msra.mxu0 0.0
    %3493 = vmatprep.subr.mxu0 0.0
    %3494 = vmatpush1.msra.mxu0 0.0
    %3495 = vmatprep.subr.mxu0 0.0
    %3496 = vmatpush1.msra.mxu0 0.0
    %3497 = vmatprep.subr.mxu0 0.0
    %3498 = vmatpush1.msra.mxu0 0.0
    %3499 = vmatprep.subr.mxu0 0.0
    %3500 = vmatpush1.msra.mxu0 0.0
    %3501 = vmatprep.subr.mxu0 0.0
    %3502 = vmatpush1.msra.mxu0 0.0
    %3503 = vmatprep.subr.mxu0 0.0
    %3504 = vmatpush1.msra.mxu0 0.0
    %3505 = vmatprep.subr.mxu0 0.0
    %3506 = vmatpush1.msra.mxu0 0.0
    %3507 = vmatprep.subr.mxu0 0.0
    %3508 = vmatpush1.msra.mxu0 0.0
    %3509 = vmatprep.subr.mxu0 0.0
    %3510 = vmatpush1.msra.mxu0 0.0
    %3511 = vmatprep.subr.mxu0 0.0
    %3512 = vmatpush1.msra.mxu0 0.0
    %3513 = vmatprep.subr.mxu0 0.0
    %3514 = vmatpush1.msra.mxu0 0.0
    %3515 = vmatprep.subr.mxu0 0.0
    %3516 = vmatpush1.msra.mxu0 0.0
    %3517 = vmatprep.subr.mxu0 0.0
    %3518 = vmatpush1.msra.mxu0 0.0
    %3519 = vmatprep.subr.mxu0 0.0
    %3520 = vmatpush1.msra.mxu0 0.0
    %3521 = vmatprep.subr.mxu0 0.0
    %3522 = vmatpush1.msra.mxu0 0.0
    %3523 = vmatprep.subr.mxu0 0.0
    %3524 = vmatpush1.msra.mxu0 0.0
    %3525 = vmatprep.subr.mxu0 0.0
    %3526 = vmatpush1.msra.mxu0 0.0
    %3527 = vmatprep.subr.mxu0 0.0
    %3528 = vmatpush1.msra.mxu0 0.0
    %3529 = vmatprep.subr.mxu0 0.0
    %3530 = vmatpush1.msra.mxu0 0.0
    %3531 = vmatprep.subr.mxu0 0.0
    %3532 = vmatpush1.msra.mxu0 0.0
    %3533 = vmatprep.subr.mxu0 0.0
    %3534 = vmatpush1.msra.mxu0 0.0
    %3535 = vmatprep.subr.mxu0 0.0
    %3536 = vmatpush1.msra.mxu0 0.0
    %3537 = vmatprep.mubr.f32.mxu0 0.0
    %3538 = vmatmul.mubr.f32.gmra.mrb[0].mxu0 %v3471
    %v3539 = vpop.f32.mrb[0].mxu0
    %v3540 = vadd.f32 %v2740, %v3539
    %v3541 = vpop.f32.mrb[0].mxu0
    %3542 = vdwg.mxu0
    %v3543 = vadd.f32 %v2728, %v3540
    %v3544 = vxor.u32 %v3543, 2147483648
    %v3545 = vmul.f32 %v3544, 1.442695
    %v3546 = vpow.pop %v3545
    %v3547 = vadd.f32 %v3546, 1.0
    %v3548 = vrcp.pop %v3547
    %v3549 = vmul.f32 1.0, %v3548
    %3551 = vrot.lane.b32.xlu0 %v3540, 64
    %v3552 = vpop.permute.xlu0 %3551
    %v3554 = vmul.f32 %v3549, %v3552
    %3556 = vrot.lane.b32.xlu0 %v3554, 64
    %v3557 = vpop.permute.xlu0 %3556
    %v3559 = vadd.f32 %v2728, %v3557
    %v3560 = vtanh.pop %v3559
    %v3561 = vsub.f32 1.0, %v3549
    %3563 = vrot.lane.b32.xlu0 %v3560, 96
    %v3564 = vpop.permute.xlu0 %3563
    %v3566 = vmul.f32 %v3561, %v3564
    %v3567 = vmul.f32 %v3549, %v3464
    %v3568 = vadd.f32 %v3566, %v3567
    %3570 = vrot.lane.b32.xlu0 %v3568, 96
    %v3571 = vpop.permute.xlu0 %3570
    %3573 = vst.msk [vmem:[#allocation2 + $0x38] sm:$0xff] %vm776, %v3571
    %3574 = vst.msk [vmem:[#allocation2] sm:$0xff] %vm2845, %v3571
    %v3575 = vld [vmem:[#allocation2] sm:$0xff]
    %v3576 = vld [vmem:[#allocation2 + $0x8] sm:$0xff]
    %v3577 = vld [vmem:[#allocation2 + $0x10] sm:$0xff]
    %v3578 = vld [vmem:[#allocation2 + $0x18] sm:$0xff]
    %v3579 = vld [vmem:[#allocation2 + $0x20] sm:$0xff]
    %v3580 = vld [vmem:[#allocation2 + $0x28] sm:$0xff]
    %v3581 = vld [vmem:[#allocation2 + $0x30] sm:$0xff]
    %v3582 = vld [vmem:[#allocation2 + $0x38] sm:$0xff]
    %3591 = vrot.lane.b32.xlu0 %v3582, 32
    %v3592 = vpop.permute.xlu0 %3591
    %3593 = vrot.lane.b32.xlu0 %v3581, 32
    %v3594 = vpop.permute.xlu0 %3593
    %3595 = vrot.lane.b32.xlu0 %v3580, 32
    %v3596 = vpop.permute.xlu0 %3595
    %3597 = vrot.lane.b32.xlu0 %v3579, 32
    %v3598 = vpop.permute.xlu0 %3597
    %3599 = vrot.lane.b32.xlu0 %v3578, 32
    %v3600 = vpop.permute.xlu0 %3599
    %3601 = vrot.lane.b32.xlu0 %v3577, 32
    %v3602 = vpop.permute.xlu0 %3601
    %3603 = vrot.lane.b32.xlu0 %v3576, 32
    %v3604 = vpop.permute.xlu0 %3603
    %3605 = vrot.lane.b32.xlu0 %v3575, 32
    %v3606 = vpop.permute.xlu0 %3605
    %v3615 = vsel %vm409, %v3575, %v3592
    %v3616 = vsel %vm409, %v3576, %v3594
    %v3617 = vsel %vm409, %v3577, %v3596
    %v3618 = vsel %vm409, %v3578, %v3598
    %v3619 = vsel %vm409, %v3579, %v3600
    %v3620 = vsel %vm409, %v3580, %v3602
    %v3621 = vsel %vm409, %v3581, %v3604
    %v3622 = vsel %vm409, %v3582, %v3606
    %v3623 = vld [vmem:[%s37] sm:$0xff]
    %v3624 = vld [vmem:[%s37 + $0x8] sm:$0xff]
    %v3625 = vld [vmem:[%s37 + $0x10] sm:$0xff]
    %v3626 = vld [vmem:[%s37 + $0x18] sm:$0xff]
    %v3627 = vld [vmem:[%s37 + $0x20] sm:$0xff]
    %v3628 = vld [vmem:[%s37 + $0x28] sm:$0xff]
    %v3629 = vld [vmem:[%s37 + $0x30] sm:$0xff]
    %v3630 = vld [vmem:[%s37 + $0x38] sm:$0xff]
    %v3631 = vld [vmem:[%s39] sm:$0x1]
    %v3633 = vlaneseq
    %v3634 = vshrl.u32 %v3633, 7
    %v3635 = vsub.s32 0, %v3634
    %v3636 = vrot.slane %v3631, %v3635
    %v3639 = vsel %vm817, %v3615, 0
    %v3642 = vsel %vm817, %v3616, 0
    %v3645 = vsel %vm817, %v3617, 0
    %v3648 = vsel %vm817, %v3618, 0
    %v3651 = vsel %vm817, %v3619, 0
    %v3654 = vsel %vm817, %v3620, 0
    %v3657 = vsel %vm817, %v3621, 0
    %v3660 = vsel %vm817, %v3622, 0
    %3662 = vmatprep.subr.mxu0 0.0
    %3663 = vmatpush1.msra.mxu0 %v3623
    %3664 = vmatprep.subr.mxu0 0.0
    %3665 = vmatpush1.msra.mxu0 %v3624
    %3666 = vmatprep.subr.mxu0 0.0
    %3667 = vmatpush1.msra.mxu0 %v3625
    %3668 = vmatprep.subr.mxu0 0.0
    %3669 = vmatpush1.msra.mxu0 %v3626
    %3670 = vmatprep.subr.mxu0 0.0
    %3671 = vmatpush1.msra.mxu0 %v3627
    %3672 = vmatprep.subr.mxu0 0.0
    %3673 = vmatpush1.msra.mxu0 %v3628
    %3674 = vmatprep.subr.mxu0 0.0
    %3675 = vmatpush1.msra.mxu0 %v3629
    %3676 = vmatprep.subr.mxu0 0.0
    %3677 = vmatpush1.msra.mxu0 %v3630
    %3678 = vmatprep.subr.mxu0 0.0
    %3679 = vmatpush1.msra.mxu0 0.0
    %3680 = vmatprep.subr.mxu0 0.0
    %3681 = vmatpush1.msra.mxu0 0.0
    %3682 = vmatprep.subr.mxu0 0.0
    %3683 = vmatpush1.msra.mxu0 0.0
    %3684 = vmatprep.subr.mxu0 0.0
    %3685 = vmatpush1.msra.mxu0 0.0
    %3686 = vmatprep.subr.mxu0 0.0
    %3687 = vmatpush1.msra.mxu0 0.0
    %3688 = vmatprep.subr.mxu0 0.0
    %3689 = vmatpush1.msra.mxu0 0.0
    %3690 = vmatprep.subr.mxu0 0.0
    %3691 = vmatpush1.msra.mxu0 0.0
    %3692 = vmatprep.subr.mxu0 0.0
    %3693 = vmatpush1.msra.mxu0 0.0
    %3694 = vmatprep.subr.mxu0 0.0
    %3695 = vmatpush1.msra.mxu0 0.0
    %3696 = vmatprep.subr.mxu0 0.0
    %3697 = vmatpush1.msra.mxu0 0.0
    %3698 = vmatprep.subr.mxu0 0.0
    %3699 = vmatpush1.msra.mxu0 0.0
    %3700 = vmatprep.subr.mxu0 0.0
    %3701 = vmatpush1.msra.mxu0 0.0
    %3702 = vmatprep.subr.mxu0 0.0
    %3703 = vmatpush1.msra.mxu0 0.0
    %3704 = vmatprep.subr.mxu0 0.0
    %3705 = vmatpush1.msra.mxu0 0.0
    %3706 = vmatprep.subr.mxu0 0.0
    %3707 = vmatpush1.msra.mxu0 0.0
    %3708 = vmatprep.subr.mxu0 0.0
    %3709 = vmatpush1.msra.mxu0 0.0
    %3710 = vmatprep.subr.mxu0 0.0
    %3711 = vmatpush1.msra.mxu0 0.0
    %3712 = vmatprep.subr.mxu0 0.0
    %3713 = vmatpush1.msra.mxu0 0.0
    %3714 = vmatprep.subr.mxu0 0.0
    %3715 = vmatpush1.msra.mxu0 0.0
    %3716 = vmatprep.subr.mxu0 0.0
    %3717 = vmatpush1.msra.mxu0 0.0
    %3718 = vmatprep.subr.mxu0 0.0
    %3719 = vmatpush1.msra.mxu0 0.0
    %3720 = vmatprep.subr.mxu0 0.0
    %3721 = vmatpush1.msra.mxu0 0.0
    %3722 = vmatprep.subr.mxu0 0.0
    %3723 = vmatpush1.msra.mxu0 0.0
    %3724 = vmatprep.subr.mxu0 0.0
    %3725 = vmatpush1.msra.mxu0 0.0
    %3726 = vmatprep.mubr.f32.mxu0 0.0
    %3727 = vmatmul.mubr.f32.gmra.mrb[0].mxu0 %v3639
    %v3728 = vpop.f32.mrb[0].mxu0
    %v3729 = vadd.f32 %v3636, %v3728
    %v3730 = vpop.f32.mrb[0].mxu0
    %3731 = vmatprep.mubr.f32.mxu0 0.0
    %3732 = vmatmul.mubr.f32.gmra.mrb[0].mxu0 %v3642
    %v3733 = vpop.f32.mrb[0].mxu0
    %v3734 = vadd.f32 %v3636, %v3733
    %v3735 = vpop.f32.mrb[0].mxu0
    %3736 = vmatprep.mubr.f32.mxu0 0.0
    %3737 = vmatmul.mubr.f32.gmra.mrb[0].mxu0 %v3645
    %v3738 = vpop.f32.mrb[0].mxu0
    %v3739 = vadd.f32 %v3636, %v3738
    %v3740 = vpop.f32.mrb[0].mxu0
    %3741 = vmatprep.mubr.f32.mxu0 0.0
    %3742 = vmatmul.mubr.f32.gmra.mrb[0].mxu0 %v3648
    %v3743 = vpop.f32.mrb[0].mxu0
    %v3744 = vadd.f32 %v3636, %v3743
    %v3745 = vpop.f32.mrb[0].mxu0
    %3746 = vmatprep.mubr.f32.mxu0 0.0
    %3747 = vmatmul.mubr.f32.gmra.mrb[0].mxu0 %v3651
    %v3748 = vpop.f32.mrb[0].mxu0
    %v3749 = vadd.f32 %v3636, %v3748
    %v3750 = vpop.f32.mrb[0].mxu0
    %3751 = vmatprep.mubr.f32.mxu0 0.0
    %3752 = vmatmul.mubr.f32.gmra.mrb[0].mxu0 %v3654
    %v3753 = vpop.f32.mrb[0].mxu0
    %v3754 = vadd.f32 %v3636, %v3753
    %v3755 = vpop.f32.mrb[0].mxu0
    %3756 = vmatprep.mubr.f32.mxu0 0.0
    %3757 = vmatmul.mubr.f32.gmra.mrb[0].mxu0 %v3657
    %v3758 = vpop.f32.mrb[0].mxu0
    %v3759 = vadd.f32 %v3636, %v3758
    %v3760 = vpop.f32.mrb[0].mxu0
    %3761 = vmatprep.mubr.f32.mxu0 0.0
    %3762 = vmatmul.mubr.f32.gmra.mrb[0].mxu0 %v3660
    %v3763 = vpop.f32.mrb[0].mxu0
    %v3764 = vadd.f32 %v3636, %v3763
    %v3765 = vpop.f32.mrb[0].mxu0
    %3766 = vdwg.mxu0
    %v3767 = vld [vmem:[%s41] sm:$0xff]
    %v3768 = vld [vmem:[%s41 + $0x8] sm:$0xff]
    %v3769 = vld [vmem:[%s41 + $0x10] sm:$0xff]
    %v3770 = vld [vmem:[%s41 + $0x18] sm:$0xff]
    %3771 = vmatprep.subr.mxu0 0.0
    %3772 = vmatpush1.msra.mxu0 %v3767
    %3773 = vmatprep.subr.mxu0 0.0
    %3774 = vmatpush1.msra.mxu0 %v3768
    %3775 = vmatprep.subr.mxu0 0.0
    %3776 = vmatpush1.msra.mxu0 %v3769
    %3777 = vmatprep.subr.mxu0 0.0
    %3778 = vmatpush1.msra.mxu0 %v3770
    %3779 = vmatprep.subr.mxu0 0.0
    %3780 = vmatpush1.msra.mxu0 0.0
    %3781 = vmatprep.subr.mxu0 0.0
    %3782 = vmatpush1.msra.mxu0 0.0
    %3783 = vmatprep.subr.mxu0 0.0
    %3784 = vmatpush1.msra.mxu0 0.0
    %3785 = vmatprep.subr.mxu0 0.0
    %3786 = vmatpush1.msra.mxu0 0.0
    %3787 = vmatprep.subr.mxu0 0.0
    %3788 = vmatpush1.msra.mxu0 0.0
    %3789 = vmatprep.subr.mxu0 0.0
    %3790 = vmatpush1.msra.mxu0 0.0
    %3791 = vmatprep.subr.mxu0 0.0
    %3792 = vmatpush1.msra.mxu0 0.0
    %3793 = vmatprep.subr.mxu0 0.0
    %3794 = vmatpush1.msra.mxu0 0.0
    %3795 = vmatprep.subr.mxu0 0.0
    %3796 = vmatpush1.msra.mxu0 0.0
    %3797 = vmatprep.subr.mxu0 0.0
    %3798 = vmatpush1.msra.mxu0 0.0
    %3799 = vmatprep.subr.mxu0 0.0
    %3800 = vmatpush1.msra.mxu0 0.0
    %3801 = vmatprep.subr.mxu0 0.0
    %3802 = vmatpush1.msra.mxu0 0.0
    %3803 = vmatprep.subr.mxu0 0.0
    %3804 = vmatpush1.msra.mxu0 0.0
    %3805 = vmatprep.subr.mxu0 0.0
    %3806 = vmatpush1.msra.mxu0 0.0
    %3807 = vmatprep.subr.mxu0 0.0
    %3808 = vmatpush1.msra.mxu0 0.0
    %3809 = vmatprep.subr.mxu0 0.0
    %3810 = vmatpush1.msra.mxu0 0.0
    %3811 = vmatprep.subr.mxu0 0.0
    %3812 = vmatpush1.msra.mxu0 0.0
    %3813 = vmatprep.subr.mxu0 0.0
    %3814 = vmatpush1.msra.mxu0 0.0
    %3815 = vmatprep.subr.mxu0 0.0
    %3816 = vmatpush1.msra.mxu0 0.0
    %3817 = vmatprep.subr.mxu0 0.0
    %3818 = vmatpush1.msra.mxu0 0.0
    %3819 = vmatprep.subr.mxu0 0.0
    %3820 = vmatpush1.msra.mxu0 0.0
    %3821 = vmatprep.subr.mxu0 0.0
    %3822 = vmatpush1.msra.mxu0 0.0
    %3823 = vmatprep.subr.mxu0 0.0
    %3824 = vmatpush1.msra.mxu0 0.0
    %3825 = vmatprep.subr.mxu0 0.0
    %3826 = vmatpush1.msra.mxu0 0.0
    %3827 = vmatprep.subr.mxu0 0.0
    %3828 = vmatpush1.msra.mxu0 0.0
    %3829 = vmatprep.subr.mxu0 0.0
    %3830 = vmatpush1.msra.mxu0 0.0
    %3831 = vmatprep.subr.mxu0 0.0
    %3832 = vmatpush1.msra.mxu0 0.0
    %3833 = vmatprep.subr.mxu0 0.0
    %3834 = vmatpush1.msra.mxu0 0.0
    %3835 = vmatprep.mubr.f32.mxu0 0.0
    %3836 = vmatmul.mubr.f32.gmra.mrb[0].mxu0 %v2742
    %v3837 = vpop.f32.mrb[0].mxu0
    %v3838 = vadd.f32 0.0, %v3837
    %v3839 = vpop.f32.mrb[0].mxu0
    %3840 = vdwg.mxu0
    %v3841 = vadd.f32 %v3729, %v3838
    %v3842 = vxor.u32 %v3841, 2147483648
    %v3843 = vmul.f32 %v3842, 1.442695
    %v3844 = vpow.pop %v3843
    %v3845 = vadd.f32 %v3844, 1.0
    %v3846 = vrcp.pop %v3845
    %v3847 = vmul.f32 1.0, %v3846
    %v3848 = vtanh.pop %v3841
    %v3849 = vmul.f32 %v3847, 0.0
    %3851 = vrot.lane.b32.xlu0 %v3848, 32
    %v3852 = vpop.permute.xlu0 %3851
    %v3854 = vmul.f32 %v3847, %v3852
    %3856 = vrot.lane.b32.xlu0 %v3854, 32
    %v3857 = vpop.permute.xlu0 %3856
    %v3859 = vadd.f32 %v3849, %v3857
    %v3860 = vtanh.pop %v3859
    %3862 = vrot.lane.b32.xlu0 %v3860, 32
    %v3863 = vpop.permute.xlu0 %3862
    %v3865 = vmul.f32 %v3847, %v3863
    %3867 = vrot.lane.b32.xlu0 %v3865, 64
    %v3868 = vpop.permute.xlu0 %3867
    %3870 = vst.msk [vmem:[#allocation3] sm:$0xff] %vm776, %v3868
    %3871 = vst.msk [vmem:[#allocation3 + $0x38] sm:$0xff] %vm2845, %v3868
    %v3872 = vsel %vm409, %v3868, 0
    %3874 = vmatprep.subr.mxu0 0.0
    %3875 = vmatpush1.msra.mxu0 %v3767
    %3876 = vmatprep.subr.mxu0 0.0
    %3877 = vmatpush1.msra.mxu0 %v3768
    %3878 = vmatprep.subr.mxu0 0.0
    %3879 = vmatpush1.msra.mxu0 %v3769
    %3880 = vmatprep.subr.mxu0 0.0
    %3881 = vmatpush1.msra.mxu0 %v3770
    %3882 = vmatprep.subr.mxu0 0.0
    %3883 = vmatpush1.msra.mxu0 0.0
    %3884 = vmatprep.subr.mxu0 0.0
    %3885 = vmatpush1.msra.mxu0 0.0
    %3886 = vmatprep.subr.mxu0 0.0
    %3887 = vmatpush1.msra.mxu0 0.0
    %3888 = vmatprep.subr.mxu0 0.0
    %3889 = vmatpush1.msra.mxu0 0.0
    %3890 = vmatprep.subr.mxu0 0.0
    %3891 = vmatpush1.msra.mxu0 0.0
    %3892 = vmatprep.subr.mxu0 0.0
    %3893 = vmatpush1.msra.mxu0 0.0
    %3894 = vmatprep.subr.mxu0 0.0
    %3895 = vmatpush1.msra.mxu0 0.0
    %3896 = vmatprep.subr.mxu0 0.0
    %3897 = vmatpush1.msra.mxu0 0.0
    %3898 = vmatprep.subr.mxu0 0.0
    %3899 = vmatpush1.msra.mxu0 0.0
    %3900 = vmatprep.subr.mxu0 0.0
    %3901 = vmatpush1.msra.mxu0 0.0
    %3902 = vmatprep.subr.mxu0 0.0
    %3903 = vmatpush1.msra.mxu0 0.0
    %3904 = vmatprep.subr.mxu0 0.0
    %3905 = vmatpush1.msra.mxu0 0.0
    %3906 = vmatprep.subr.mxu0 0.0
    %3907 = vmatpush1.msra.mxu0 0.0
    %3908 = vmatprep.subr.mxu0 0.0
    %3909 = vmatpush1.msra.mxu0 0.0
    %3910 = vmatprep.subr.mxu0 0.0
    %3911 = vmatpush1.msra.mxu0 0.0
    %3912 = vmatprep.subr.mxu0 0.0
    %3913 = vmatpush1.msra.mxu0 0.0
    %3914 = vmatprep.subr.mxu0 0.0
    %3915 = vmatpush1.msra.mxu0 0.0
    %3916 = vmatprep.subr.mxu0 0.0
    %3917 = vmatpush1.msra.mxu0 0.0
    %3918 = vmatprep.subr.mxu0 0.0
    %3919 = vmatpush1.msra.mxu0 0.0
    %3920 = vmatprep.subr.mxu0 0.0
    %3921 = vmatpush1.msra.mxu0 0.0
    %3922 = vmatprep.subr.mxu0 0.0
    %3923 = vmatpush1.msra.mxu0 0.0
    %3924 = vmatprep.subr.mxu0 0.0
    %3925 = vmatpush1.msra.mxu0 0.0
    %3926 = vmatprep.subr.mxu0 0.0
    %3927 = vmatpush1.msra.mxu0 0.0
    %3928 = vmatprep.subr.mxu0 0.0
    %3929 = vmatpush1.msra.mxu0 0.0
    %3930 = vmatprep.subr.mxu0 0.0
    %3931 = vmatpush1.msra.mxu0 0.0
    %3932 = vmatprep.subr.mxu0 0.0
    %3933 = vmatpush1.msra.mxu0 0.0
    %3934 = vmatprep.subr.mxu0 0.0
    %3935 = vmatpush1.msra.mxu0 0.0
    %3936 = vmatprep.subr.mxu0 0.0
    %3937 = vmatpush1.msra.mxu0 0.0
    %3938 = vmatprep.mubr.f32.mxu0 0.0
    %3939 = vmatmul.mubr.f32.gmra.mrb[0].mxu0 %v3872
    %v3940 = vpop.f32.mrb[0].mxu0
    %v3941 = vadd.f32 0.0, %v3940
    %v3942 = vpop.f32.mrb[0].mxu0
    %3943 = vdwg.mxu0
    %v3944 = vadd.f32 %v3734, %v3941
    %v3945 = vxor.u32 %v3944, 2147483648
    %v3946 = vmul.f32 %v3945, 1.442695
    %v3947 = vpow.pop %v3946
    %v3948 = vadd.f32 %v3947, 1.0
    %v3949 = vrcp.pop %v3948
    %v3950 = vmul.f32 1.0, %v3949
    %v3951 = vtanh.pop %v3944
    %v3952 = vmul.f32 %v3950, %v3859
    %3954 = vrot.lane.b32.xlu0 %v3951, 32
    %v3955 = vpop.permute.xlu0 %3954
    %v3957 = vmul.f32 %v3950, %v3955
    %3959 = vrot.lane.b32.xlu0 %v3957, 32
    %v3960 = vpop.permute.xlu0 %3959
    %v3962 = vadd.f32 %v3952, %v3960
    %v3963 = vtanh.pop %v3962
    %3965 = vrot.lane.b32.xlu0 %v3963, 32
    %v3966 = vpop.permute.xlu0 %3965
    %v3968 = vmul.f32 %v3950, %v3966
    %3970 = vrot.lane.b32.xlu0 %v3968, 64
    %v3971 = vpop.permute.xlu0 %3970
    %3973 = vst.msk [vmem:[#allocation3 + $0x8] sm:$0xff] %vm776, %v3971
    %3974 = vst.msk [vmem:[#allocation3 + $0x30] sm:$0xff] %vm2845, %v3971
    %v3975 = vsel %vm409, %v3971, 0
    %3977 = vmatprep.subr.mxu0 0.0
    %3978 = vmatpush1.msra.mxu0 %v3767
    %3979 = vmatprep.subr.mxu0 0.0
    %3980 = vmatpush1.msra.mxu0 %v3768
    %3981 = vmatprep.subr.mxu0 0.0
    %3982 = vmatpush1.msra.mxu0 %v3769
    %3983 = vmatprep.subr.mxu0 0.0
    %3984 = vmatpush1.msra.mxu0 %v3770
    %3985 = vmatprep.subr.mxu0 0.0
    %3986 = vmatpush1.msra.mxu0 0.0
    %3987 = vmatprep.subr.mxu0 0.0
    %3988 = vmatpush1.msra.mxu0 0.0
    %3989 = vmatprep.subr.mxu0 0.0
    %3990 = vmatpush1.msra.mxu0 0.0
    %3991 = vmatprep.subr.mxu0 0.0
    %3992 = vmatpush1.msra.mxu0 0.0
    %3993 = vmatprep.subr.mxu0 0.0
    %3994 = vmatpush1.msra.mxu0 0.0
    %3995 = vmatprep.subr.mxu0 0.0
    %3996 = vmatpush1.msra.mxu0 0.0
    %3997 = vmatprep.subr.mxu0 0.0
    %3998 = vmatpush1.msra.mxu0 0.0
    %3999 = vmatprep.subr.mxu0 0.0
    %4000 = vmatpush1.msra.mxu0 0.0
    %4001 = vmatprep.subr.mxu0 0.0
    %4002 = vmatpush1.msra.mxu0 0.0
    %4003 = vmatprep.subr.mxu0 0.0
    %4004 = vmatpush1.msra.mxu0 0.0
    %4005 = vmatprep.subr.mxu0 0.0
    %4006 = vmatpush1.msra.mxu0 0.0
    %4007 = vmatprep.subr.mxu0 0.0
    %4008 = vmatpush1.msra.mxu0 0.0
    %4009 = vmatprep.subr.mxu0 0.0
    %4010 = vmatpush1.msra.mxu0 0.0
    %4011 = vmatprep.subr.mxu0 0.0
    %4012 = vmatpush1.msra.mxu0 0.0
    %4013 = vmatprep.subr.mxu0 0.0
    %4014 = vmatpush1.msra.mxu0 0.0
    %4015 = vmatprep.subr.mxu0 0.0
    %4016 = vmatpush1.msra.mxu0 0.0
    %4017 = vmatprep.subr.mxu0 0.0
    %4018 = vmatpush1.msra.mxu0 0.0
    %4019 = vmatprep.subr.mxu0 0.0
    %4020 = vmatpush1.msra.mxu0 0.0
    %4021 = vmatprep.subr.mxu0 0.0
    %4022 = vmatpush1.msra.mxu0 0.0
    %4023 = vmatprep.subr.mxu0 0.0
    %4024 = vmatpush1.msra.mxu0 0.0
    %4025 = vmatprep.subr.mxu0 0.0
    %4026 = vmatpush1.msra.mxu0 0.0
    %4027 = vmatprep.subr.mxu0 0.0
    %4028 = vmatpush1.msra.mxu0 0.0
    %4029 = vmatprep.subr.mxu0 0.0
    %4030 = vmatpush1.msra.mxu0 0.0
    %4031 = vmatprep.subr.mxu0 0.0
    %4032 = vmatpush1.msra.mxu0 0.0
    %4033 = vmatprep.subr.mxu0 0.0
    %4034 = vmatpush1.msra.mxu0 0.0
    %4035 = vmatprep.subr.mxu0 0.0
    %4036 = vmatpush1.msra.mxu0 0.0
    %4037 = vmatprep.subr.mxu0 0.0
    %4038 = vmatpush1.msra.mxu0 0.0
    %4039 = vmatprep.subr.mxu0 0.0
    %4040 = vmatpush1.msra.mxu0 0.0
    %4041 = vmatprep.mubr.f32.mxu0 0.0
    %4042 = vmatmul.mubr.f32.gmra.mrb[0].mxu0 %v3975
    %v4043 = vpop.f32.mrb[0].mxu0
    %v4044 = vadd.f32 0.0, %v4043
    %v4045 = vpop.f32.mrb[0].mxu0
    %4046 = vdwg.mxu0
    %v4047 = vadd.f32 %v3739, %v4044
    %v4048 = vxor.u32 %v4047, 2147483648
    %v4049 = vmul.f32 %v4048, 1.442695
    %v4050 = vpow.pop %v4049
    %v4051 = vadd.f32 %v4050, 1.0
    %v4052 = vrcp.pop %v4051
    %v4053 = vmul.f32 1.0, %v4052
    %v4054 = vtanh.pop %v4047
    %v4055 = vmul.f32 %v4053, %v3962
    %4057 = vrot.lane.b32.xlu0 %v4054, 32
    %v4058 = vpop.permute.xlu0 %4057
    %v4060 = vmul.f32 %v4053, %v4058
    %4062 = vrot.lane.b32.xlu0 %v4060, 32
    %v4063 = vpop.permute.xlu0 %4062
    %v4065 = vadd.f32 %v4055, %v4063
    %v4066 = vtanh.pop %v4065
    %4068 = vrot.lane.b32.xlu0 %v4066, 32
    %v4069 = vpop.permute.xlu0 %4068
    %v4071 = vmul.f32 %v4053, %v4069
    %4073 = vrot.lane.b32.xlu0 %v4071, 64
    %v4074 = vpop.permute.xlu0 %4073
    %4076 = vst.msk [vmem:[#allocation3 + $0x10] sm:$0xff] %vm776, %v4074
    %4077 = vst.msk [vmem:[#allocation3 + $0x28] sm:$0xff] %vm2845, %v4074
    %v4078 = vsel %vm409, %v4074, 0
    %4080 = vmatprep.subr.mxu0 0.0
    %4081 = vmatpush1.msra.mxu0 %v3767
    %4082 = vmatprep.subr.mxu0 0.0
    %4083 = vmatpush1.msra.mxu0 %v3768
    %4084 = vmatprep.subr.mxu0 0.0
    %4085 = vmatpush1.msra.mxu0 %v3769
    %4086 = vmatprep.subr.mxu0 0.0
    %4087 = vmatpush1.msra.mxu0 %v3770
    %4088 = vmatprep.subr.mxu0 0.0
    %4089 = vmatpush1.msra.mxu0 0.0
    %4090 = vmatprep.subr.mxu0 0.0
    %4091 = vmatpush1.msra.mxu0 0.0
    %4092 = vmatprep.subr.mxu0 0.0
    %4093 = vmatpush1.msra.mxu0 0.0
    %4094 = vmatprep.subr.mxu0 0.0
    %4095 = vmatpush1.msra.mxu0 0.0
    %4096 = vmatprep.subr.mxu0 0.0
    %4097 = vmatpush1.msra.mxu0 0.0
    %4098 = vmatprep.subr.mxu0 0.0
    %4099 = vmatpush1.msra.mxu0 0.0
    %4100 = vmatprep.subr.mxu0 0.0
    %4101 = vmatpush1.msra.mxu0 0.0
    %4102 = vmatprep.subr.mxu0 0.0
    %4103 = vmatpush1.msra.mxu0 0.0
    %4104 = vmatprep.subr.mxu0 0.0
    %4105 = vmatpush1.msra.mxu0 0.0
    %4106 = vmatprep.subr.mxu0 0.0
    %4107 = vmatpush1.msra.mxu0 0.0
    %4108 = vmatprep.subr.mxu0 0.0
    %4109 = vmatpush1.msra.mxu0 0.0
    %4110 = vmatprep.subr.mxu0 0.0
    %4111 = vmatpush1.msra.mxu0 0.0
    %4112 = vmatprep.subr.mxu0 0.0
    %4113 = vmatpush1.msra.mxu0 0.0
    %4114 = vmatprep.subr.mxu0 0.0
    %4115 = vmatpush1.msra.mxu0 0.0
    %4116 = vmatprep.subr.mxu0 0.0
    %4117 = vmatpush1.msra.mxu0 0.0
    %4118 = vmatprep.subr.mxu0 0.0
    %4119 = vmatpush1.msra.mxu0 0.0
    %4120 = vmatprep.subr.mxu0 0.0
    %4121 = vmatpush1.msra.mxu0 0.0
    %4122 = vmatprep.subr.mxu0 0.0
    %4123 = vmatpush1.msra.mxu0 0.0
    %4124 = vmatprep.subr.mxu0 0.0
    %4125 = vmatpush1.msra.mxu0 0.0
    %4126 = vmatprep.subr.mxu0 0.0
    %4127 = vmatpush1.msra.mxu0 0.0
    %4128 = vmatprep.subr.mxu0 0.0
    %4129 = vmatpush1.msra.mxu0 0.0
    %4130 = vmatprep.subr.mxu0 0.0
    %4131 = vmatpush1.msra.mxu0 0.0
    %4132 = vmatprep.subr.mxu0 0.0
    %4133 = vmatpush1.msra.mxu0 0.0
    %4134 = vmatprep.subr.mxu0 0.0
    %4135 = vmatpush1.msra.mxu0 0.0
    %4136 = vmatprep.subr.mxu0 0.0
    %4137 = vmatpush1.msra.mxu0 0.0
    %4138 = vmatprep.subr.mxu0 0.0
    %4139 = vmatpush1.msra.mxu0 0.0
    %4140 = vmatprep.subr.mxu0 0.0
    %4141 = vmatpush1.msra.mxu0 0.0
    %4142 = vmatprep.subr.mxu0 0.0
    %4143 = vmatpush1.msra.mxu0 0.0
    %4144 = vmatprep.mubr.f32.mxu0 0.0
    %4145 = vmatmul.mubr.f32.gmra.mrb[0].mxu0 %v4078
    %v4146 = vpop.f32.mrb[0].mxu0
    %v4147 = vadd.f32 0.0, %v4146
    %v4148 = vpop.f32.mrb[0].mxu0
    %4149 = vdwg.mxu0
    %v4150 = vadd.f32 %v3744, %v4147
    %v4151 = vxor.u32 %v4150, 2147483648
    %v4152 = vmul.f32 %v4151, 1.442695
    %v4153 = vpow.pop %v4152
    %v4154 = vadd.f32 %v4153, 1.0
    %v4155 = vrcp.pop %v4154
    %v4156 = vmul.f32 1.0, %v4155
    %v4157 = vtanh.pop %v4150
    %v4158 = vmul.f32 %v4156, %v4065
    %4160 = vrot.lane.b32.xlu0 %v4157, 32
    %v4161 = vpop.permute.xlu0 %4160
    %v4163 = vmul.f32 %v4156, %v4161
    %4165 = vrot.lane.b32.xlu0 %v4163, 32
    %v4166 = vpop.permute.xlu0 %4165
    %v4168 = vadd.f32 %v4158, %v4166
    %v4169 = vtanh.pop %v4168
    %4171 = vrot.lane.b32.xlu0 %v4169, 32
    %v4172 = vpop.permute.xlu0 %4171
    %v4174 = vmul.f32 %v4156, %v4172
    %4176 = vrot.lane.b32.xlu0 %v4174, 64
    %v4177 = vpop.permute.xlu0 %4176
    %4179 = vst.msk [vmem:[#allocation3 + $0x18] sm:$0xff] %vm776, %v4177
    %4180 = vst.msk [vmem:[#allocation3 + $0x20] sm:$0xff] %vm2845, %v4177
    %v4181 = vsel %vm409, %v4177, 0
    %4183 = vmatprep.subr.mxu0 0.0
    %4184 = vmatpush1.msra.mxu0 %v3767
    %4185 = vmatprep.subr.mxu0 0.0
    %4186 = vmatpush1.msra.mxu0 %v3768
    %4187 = vmatprep.subr.mxu0 0.0
    %4188 = vmatpush1.msra.mxu0 %v3769
    %4189 = vmatprep.subr.mxu0 0.0
    %4190 = vmatpush1.msra.mxu0 %v3770
    %4191 = vmatprep.subr.mxu0 0.0
    %4192 = vmatpush1.msra.mxu0 0.0
    %4193 = vmatprep.subr.mxu0 0.0
    %4194 = vmatpush1.msra.mxu0 0.0
    %4195 = vmatprep.subr.mxu0 0.0
    %4196 = vmatpush1.msra.mxu0 0.0
    %4197 = vmatprep.subr.mxu0 0.0
    %4198 = vmatpush1.msra.mxu0 0.0
    %4199 = vmatprep.subr.mxu0 0.0
    %4200 = vmatpush1.msra.mxu0 0.0
    %4201 = vmatprep.subr.mxu0 0.0
    %4202 = vmatpush1.msra.mxu0 0.0
    %4203 = vmatprep.subr.mxu0 0.0
    %4204 = vmatpush1.msra.mxu0 0.0
    %4205 = vmatprep.subr.mxu0 0.0
    %4206 = vmatpush1.msra.mxu0 0.0
    %4207 = vmatprep.subr.mxu0 0.0
    %4208 = vmatpush1.msra.mxu0 0.0
    %4209 = vmatprep.subr.mxu0 0.0
    %4210 = vmatpush1.msra.mxu0 0.0
    %4211 = vmatprep.subr.mxu0 0.0
    %4212 = vmatpush1.msra.mxu0 0.0
    %4213 = vmatprep.subr.mxu0 0.0
    %4214 = vmatpush1.msra.mxu0 0.0
    %4215 = vmatprep.subr.mxu0 0.0
    %4216 = vmatpush1.msra.mxu0 0.0
    %4217 = vmatprep.subr.mxu0 0.0
    %4218 = vmatpush1.msra.mxu0 0.0
    %4219 = vmatprep.subr.mxu0 0.0
    %4220 = vmatpush1.msra.mxu0 0.0
    %4221 = vmatprep.subr.mxu0 0.0
    %4222 = vmatpush1.msra.mxu0 0.0
    %4223 = vmatprep.subr.mxu0 0.0
    %4224 = vmatpush1.msra.mxu0 0.0
    %4225 = vmatprep.subr.mxu0 0.0
    %4226 = vmatpush1.msra.mxu0 0.0
    %4227 = vmatprep.subr.mxu0 0.0
    %4228 = vmatpush1.msra.mxu0 0.0
    %4229 = vmatprep.subr.mxu0 0.0
    %4230 = vmatpush1.msra.mxu0 0.0
    %4231 = vmatprep.subr.mxu0 0.0
    %4232 = vmatpush1.msra.mxu0 0.0
    %4233 = vmatprep.subr.mxu0 0.0
    %4234 = vmatpush1.msra.mxu0 0.0
    %4235 = vmatprep.subr.mxu0 0.0
    %4236 = vmatpush1.msra.mxu0 0.0
    %4237 = vmatprep.subr.mxu0 0.0
    %4238 = vmatpush1.msra.mxu0 0.0
    %4239 = vmatprep.subr.mxu0 0.0
    %4240 = vmatpush1.msra.mxu0 0.0
    %4241 = vmatprep.subr.mxu0 0.0
    %4242 = vmatpush1.msra.mxu0 0.0
    %4243 = vmatprep.subr.mxu0 0.0
    %4244 = vmatpush1.msra.mxu0 0.0
    %4245 = vmatprep.subr.mxu0 0.0
    %4246 = vmatpush1.msra.mxu0 0.0
    %4247 = vmatprep.mubr.f32.mxu0 0.0
    %4248 = vmatmul.mubr.f32.gmra.mrb[0].mxu0 %v4181
    %v4249 = vpop.f32.mrb[0].mxu0
    %v4250 = vadd.f32 0.0, %v4249
    %v4251 = vpop.f32.mrb[0].mxu0
    %4252 = vdwg.mxu0
    %v4253 = vadd.f32 %v3749, %v4250
    %v4254 = vxor.u32 %v4253, 2147483648
    %v4255 = vmul.f32 %v4254, 1.442695
    %v4256 = vpow.pop %v4255
    %v4257 = vadd.f32 %v4256, 1.0
    %v4258 = vrcp.pop %v4257
    %v4259 = vmul.f32 1.0, %v4258
    %v4260 = vtanh.pop %v4253
    %v4261 = vmul.f32 %v4259, %v4168
    %4263 = vrot.lane.b32.xlu0 %v4260, 32
    %v4264 = vpop.permute.xlu0 %4263
    %v4266 = vmul.f32 %v4259, %v4264
    %4268 = vrot.lane.b32.xlu0 %v4266, 32
    %v4269 = vpop.permute.xlu0 %4268
    %v4271 = vadd.f32 %v4261, %v4269
    %v4272 = vtanh.pop %v4271
    %4274 = vrot.lane.b32.xlu0 %v4272, 32
    %v4275 = vpop.permute.xlu0 %4274
    %v4277 = vmul.f32 %v4259, %v4275
    %4279 = vrot.lane.b32.xlu0 %v4277, 64
    %v4280 = vpop.permute.xlu0 %4279
    %4282 = vst.msk [vmem:[#allocation3 + $0x20] sm:$0xff] %vm776, %v4280
    %4283 = vst.msk [vmem:[#allocation3 + $0x18] sm:$0xff] %vm2845, %v4280
    %v4284 = vsel %vm409, %v4280, 0
    %4286 = vmatprep.subr.mxu0 0.0
    %4287 = vmatpush1.msra.mxu0 %v3767
    %4288 = vmatprep.subr.mxu0 0.0
    %4289 = vmatpush1.msra.mxu0 %v3768
    %4290 = vmatprep.subr.mxu0 0.0
    %4291 = vmatpush1.msra.mxu0 %v3769
    %4292 = vmatprep.subr.mxu0 0.0
    %4293 = vmatpush1.msra.mxu0 %v3770
    %4294 = vmatprep.subr.mxu0 0.0
    %4295 = vmatpush1.msra.mxu0 0.0
    %4296 = vmatprep.subr.mxu0 0.0
    %4297 = vmatpush1.msra.mxu0 0.0
    %4298 = vmatprep.subr.mxu0 0.0
    %4299 = vmatpush1.msra.mxu0 0.0
    %4300 = vmatprep.subr.mxu0 0.0
    %4301 = vmatpush1.msra.mxu0 0.0
    %4302 = vmatprep.subr.mxu0 0.0
    %4303 = vmatpush1.msra.mxu0 0.0
    %4304 = vmatprep.subr.mxu0 0.0
    %4305 = vmatpush1.msra.mxu0 0.0
    %4306 = vmatprep.subr.mxu0 0.0
    %4307 = vmatpush1.msra.mxu0 0.0
    %4308 = vmatprep.subr.mxu0 0.0
    %4309 = vmatpush1.msra.mxu0 0.0
    %4310 = vmatprep.subr.mxu0 0.0
    %4311 = vmatpush1.msra.mxu0 0.0
    %4312 = vmatprep.subr.mxu0 0.0
    %4313 = vmatpush1.msra.mxu0 0.0
    %4314 = vmatprep.subr.mxu0 0.0
    %4315 = vmatpush1.msra.mxu0 0.0
    %4316 = vmatprep.subr.mxu0 0.0
    %4317 = vmatpush1.msra.mxu0 0.0
    %4318 = vmatprep.subr.mxu0 0.0
    %4319 = vmatpush1.msra.mxu0 0.0
    %4320 = vmatprep.subr.mxu0 0.0
    %4321 = vmatpush1.msra.mxu0 0.0
    %4322 = vmatprep.subr.mxu0 0.0
    %4323 = vmatpush1.msra.mxu0 0.0
    %4324 = vmatprep.subr.mxu0 0.0
    %4325 = vmatpush1.msra.mxu0 0.0
    %4326 = vmatprep.subr.mxu0 0.0
    %4327 = vmatpush1.msra.mxu0 0.0
    %4328 = vmatprep.subr.mxu0 0.0
    %4329 = vmatpush1.msra.mxu0 0.0
    %4330 = vmatprep.subr.mxu0 0.0
    %4331 = vmatpush1.msra.mxu0 0.0
    %4332 = vmatprep.subr.mxu0 0.0
    %4333 = vmatpush1.msra.mxu0 0.0
    %4334 = vmatprep.subr.mxu0 0.0
    %4335 = vmatpush1.msra.mxu0 0.0
    %4336 = vmatprep.subr.mxu0 0.0
    %4337 = vmatpush1.msra.mxu0 0.0
    %4338 = vmatprep.subr.mxu0 0.0
    %4339 = vmatpush1.msra.mxu0 0.0
    %4340 = vmatprep.subr.mxu0 0.0
    %4341 = vmatpush1.msra.mxu0 0.0
    %4342 = vmatprep.subr.mxu0 0.0
    %4343 = vmatpush1.msra.mxu0 0.0
    %4344 = vmatprep.subr.mxu0 0.0
    %4345 = vmatpush1.msra.mxu0 0.0
    %4346 = vmatprep.subr.mxu0 0.0
    %4347 = vmatpush1.msra.mxu0 0.0
    %4348 = vmatprep.subr.mxu0 0.0
    %4349 = vmatpush1.msra.mxu0 0.0
    %4350 = vmatprep.mubr.f32.mxu0 0.0
    %4351 = vmatmul.mubr.f32.gmra.mrb[0].mxu0 %v4284
    %v4352 = vpop.f32.mrb[0].mxu0
    %v4353 = vadd.f32 0.0, %v4352
    %v4354 = vpop.f32.mrb[0].mxu0
    %4355 = vdwg.mxu0
    %v4356 = vadd.f32 %v3754, %v4353
    %v4357 = vxor.u32 %v4356, 2147483648
    %v4358 = vmul.f32 %v4357, 1.442695
    %v4359 = vpow.pop %v4358
    %v4360 = vadd.f32 %v4359, 1.0
    %v4361 = vrcp.pop %v4360
    %v4362 = vmul.f32 1.0, %v4361
    %v4363 = vtanh.pop %v4356
    %v4364 = vmul.f32 %v4362, %v4271
    %4366 = vrot.lane.b32.xlu0 %v4363, 32
    %v4367 = vpop.permute.xlu0 %4366
    %v4369 = vmul.f32 %v4362, %v4367
    %4371 = vrot.lane.b32.xlu0 %v4369, 32
    %v4372 = vpop.permute.xlu0 %4371
    %v4374 = vadd.f32 %v4364, %v4372
    %v4375 = vtanh.pop %v4374
    %4377 = vrot.lane.b32.xlu0 %v4375, 32
    %v4378 = vpop.permute.xlu0 %4377
    %v4380 = vmul.f32 %v4362, %v4378
    %4382 = vrot.lane.b32.xlu0 %v4380, 64
    %v4383 = vpop.permute.xlu0 %4382
    %4385 = vst.msk [vmem:[#allocation3 + $0x28] sm:$0xff] %vm776, %v4383
    %4386 = vst.msk [vmem:[#allocation3 + $0x10] sm:$0xff] %vm2845, %v4383
    %v4387 = vsel %vm409, %v4383, 0
    %4389 = vmatprep.subr.mxu0 0.0
    %4390 = vmatpush1.msra.mxu0 %v3767
    %4391 = vmatprep.subr.mxu0 0.0
    %4392 = vmatpush1.msra.mxu0 %v3768
    %4393 = vmatprep.subr.mxu0 0.0
    %4394 = vmatpush1.msra.mxu0 %v3769
    %4395 = vmatprep.subr.mxu0 0.0
    %4396 = vmatpush1.msra.mxu0 %v3770
    %4397 = vmatprep.subr.mxu0 0.0
    %4398 = vmatpush1.msra.mxu0 0.0
    %4399 = vmatprep.subr.mxu0 0.0
    %4400 = vmatpush1.msra.mxu0 0.0
    %4401 = vmatprep.subr.mxu0 0.0
    %4402 = vmatpush1.msra.mxu0 0.0
    %4403 = vmatprep.subr.mxu0 0.0
    %4404 = vmatpush1.msra.mxu0 0.0
    %4405 = vmatprep.subr.mxu0 0.0
    %4406 = vmatpush1.msra.mxu0 0.0
    %4407 = vmatprep.subr.mxu0 0.0
    %4408 = vmatpush1.msra.mxu0 0.0
    %4409 = vmatprep.subr.mxu0 0.0
    %4410 = vmatpush1.msra.mxu0 0.0
    %4411 = vmatprep.subr.mxu0 0.0
    %4412 = vmatpush1.msra.mxu0 0.0
    %4413 = vmatprep.subr.mxu0 0.0
    %4414 = vmatpush1.msra.mxu0 0.0
    %4415 = vmatprep.subr.mxu0 0.0
    %4416 = vmatpush1.msra.mxu0 0.0
    %4417 = vmatprep.subr.mxu0 0.0
    %4418 = vmatpush1.msra.mxu0 0.0
    %4419 = vmatprep.subr.mxu0 0.0
    %4420 = vmatpush1.msra.mxu0 0.0
    %4421 = vmatprep.subr.mxu0 0.0
    %4422 = vmatpush1.msra.mxu0 0.0
    %4423 = vmatprep.subr.mxu0 0.0
    %4424 = vmatpush1.msra.mxu0 0.0
    %4425 = vmatprep.subr.mxu0 0.0
    %4426 = vmatpush1.msra.mxu0 0.0
    %4427 = vmatprep.subr.mxu0 0.0
    %4428 = vmatpush1.msra.mxu0 0.0
    %4429 = vmatprep.subr.mxu0 0.0
    %4430 = vmatpush1.msra.mxu0 0.0
    %4431 = vmatprep.subr.mxu0 0.0
    %4432 = vmatpush1.msra.mxu0 0.0
    %4433 = vmatprep.subr.mxu0 0.0
    %4434 = vmatpush1.msra.mxu0 0.0
    %4435 = vmatprep.subr.mxu0 0.0
    %4436 = vmatpush1.msra.mxu0 0.0
    %4437 = vmatprep.subr.mxu0 0.0
    %4438 = vmatpush1.msra.mxu0 0.0
    %4439 = vmatprep.subr.mxu0 0.0
    %4440 = vmatpush1.msra.mxu0 0.0
    %4441 = vmatprep.subr.mxu0 0.0
    %4442 = vmatpush1.msra.mxu0 0.0
    %4443 = vmatprep.subr.mxu0 0.0
    %4444 = vmatpush1.msra.mxu0 0.0
    %4445 = vmatprep.subr.mxu0 0.0
    %4446 = vmatpush1.msra.mxu0 0.0
    %4447 = vmatprep.subr.mxu0 0.0
    %4448 = vmatpush1.msra.mxu0 0.0
    %4449 = vmatprep.subr.mxu0 0.0
    %4450 = vmatpush1.msra.mxu0 0.0
    %4451 = vmatprep.subr.mxu0 0.0
    %4452 = vmatpush1.msra.mxu0 0.0
    %4453 = vmatprep.mubr.f32.mxu0 0.0
    %4454 = vmatmul.mubr.f32.gmra.mrb[0].mxu0 %v4387
    %v4455 = vpop.f32.mrb[0].mxu0
    %v4456 = vadd.f32 0.0, %v4455
    %v4457 = vpop.f32.mrb[0].mxu0
    %4458 = vdwg.mxu0
    %v4459 = vadd.f32 %v3759, %v4456
    %v4460 = vxor.u32 %v4459, 2147483648
    %v4461 = vmul.f32 %v4460, 1.442695
    %v4462 = vpow.pop %v4461
    %v4463 = vadd.f32 %v4462, 1.0
    %v4464 = vrcp.pop %v4463
    %v4465 = vmul.f32 1.0, %v4464
    %v4466 = vtanh.pop %v4459
    %v4467 = vmul.f32 %v4465, %v4374
    %4469 = vrot.lane.b32.xlu0 %v4466, 32
    %v4470 = vpop.permute.xlu0 %4469
    %v4472 = vmul.f32 %v4465, %v4470
    %4474 = vrot.lane.b32.xlu0 %v4472, 32
    %v4475 = vpop.permute.xlu0 %4474
    %v4477 = vadd.f32 %v4467, %v4475
    %v4478 = vtanh.pop %v4477
    %4480 = vrot.lane.b32.xlu0 %v4478, 32
    %v4481 = vpop.permute.xlu0 %4480
    %v4483 = vmul.f32 %v4465, %v4481
    %4485 = vrot.lane.b32.xlu0 %v4483, 64
    %v4486 = vpop.permute.xlu0 %4485
    %4488 = vst.msk [vmem:[#allocation3 + $0x30] sm:$0xff] %vm776, %v4486
    %4489 = vst.msk [vmem:[#allocation3 + $0x8] sm:$0xff] %vm2845, %v4486
    %v4490 = vsel %vm409, %v4486, 0
    %4492 = vmatprep.subr.mxu0 0.0
    %4493 = vmatpush1.msra.mxu0 %v3767
    %4494 = vmatprep.subr.mxu0 0.0
    %4495 = vmatpush1.msra.mxu0 %v3768
    %4496 = vmatprep.subr.mxu0 0.0
    %4497 = vmatpush1.msra.mxu0 %v3769
    %4498 = vmatprep.subr.mxu0 0.0
    %4499 = vmatpush1.msra.mxu0 %v3770
    %4500 = vmatprep.subr.mxu0 0.0
    %4501 = vmatpush1.msra.mxu0 0.0
    %4502 = vmatprep.subr.mxu0 0.0
    %4503 = vmatpush1.msra.mxu0 0.0
    %4504 = vmatprep.subr.mxu0 0.0
    %4505 = vmatpush1.msra.mxu0 0.0
    %4506 = vmatprep.subr.mxu0 0.0
    %4507 = vmatpush1.msra.mxu0 0.0
    %4508 = vmatprep.subr.mxu0 0.0
    %4509 = vmatpush1.msra.mxu0 0.0
    %4510 = vmatprep.subr.mxu0 0.0
    %4511 = vmatpush1.msra.mxu0 0.0
    %4512 = vmatprep.subr.mxu0 0.0
    %4513 = vmatpush1.msra.mxu0 0.0
    %4514 = vmatprep.subr.mxu0 0.0
    %4515 = vmatpush1.msra.mxu0 0.0
    %4516 = vmatprep.subr.mxu0 0.0
    %4517 = vmatpush1.msra.mxu0 0.0
    %4518 = vmatprep.subr.mxu0 0.0
    %4519 = vmatpush1.msra.mxu0 0.0
    %4520 = vmatprep.subr.mxu0 0.0
    %4521 = vmatpush1.msra.mxu0 0.0
    %4522 = vmatprep.subr.mxu0 0.0
    %4523 = vmatpush1.msra.mxu0 0.0
    %4524 = vmatprep.subr.mxu0 0.0
    %4525 = vmatpush1.msra.mxu0 0.0
    %4526 = vmatprep.subr.mxu0 0.0
    %4527 = vmatpush1.msra.mxu0 0.0
    %4528 = vmatprep.subr.mxu0 0.0
    %4529 = vmatpush1.msra.mxu0 0.0
    %4530 = vmatprep.subr.mxu0 0.0
    %4531 = vmatpush1.msra.mxu0 0.0
    %4532 = vmatprep.subr.mxu0 0.0
    %4533 = vmatpush1.msra.mxu0 0.0
    %4534 = vmatprep.subr.mxu0 0.0
    %4535 = vmatpush1.msra.mxu0 0.0
    %4536 = vmatprep.subr.mxu0 0.0
    %4537 = vmatpush1.msra.mxu0 0.0
    %4538 = vmatprep.subr.mxu0 0.0
    %4539 = vmatpush1.msra.mxu0 0.0
    %4540 = vmatprep.subr.mxu0 0.0
    %4541 = vmatpush1.msra.mxu0 0.0
    %4542 = vmatprep.subr.mxu0 0.0
    %4543 = vmatpush1.msra.mxu0 0.0
    %4544 = vmatprep.subr.mxu0 0.0
    %4545 = vmatpush1.msra.mxu0 0.0
    %4546 = vmatprep.subr.mxu0 0.0
    %4547 = vmatpush1.msra.mxu0 0.0
    %4548 = vmatprep.subr.mxu0 0.0
    %4549 = vmatpush1.msra.mxu0 0.0
    %4550 = vmatprep.subr.mxu0 0.0
    %4551 = vmatpush1.msra.mxu0 0.0
    %4552 = vmatprep.subr.mxu0 0.0
    %4553 = vmatpush1.msra.mxu0 0.0
    %4554 = vmatprep.subr.mxu0 0.0
    %4555 = vmatpush1.msra.mxu0 0.0
    %4556 = vmatprep.mubr.f32.mxu0 0.0
    %4557 = vmatmul.mubr.f32.gmra.mrb[0].mxu0 %v4490
    %v4558 = vpop.f32.mrb[0].mxu0
    %v4559 = vadd.f32 0.0, %v4558
    %v4560 = vpop.f32.mrb[0].mxu0
    %4561 = vdwg.mxu0
    %v4562 = vadd.f32 %v3764, %v4559
    %v4563 = vxor.u32 %v4562, 2147483648
    %v4564 = vmul.f32 %v4563, 1.442695
    %v4565 = vpow.pop %v4564
    %v4566 = vadd.f32 %v4565, 1.0
    %v4567 = vrcp.pop %v4566
    %v4568 = vmul.f32 1.0, %v4567
    %v4569 = vtanh.pop %v4562
    %v4570 = vmul.f32 %v4568, %v4477
    %4572 = vrot.lane.b32.xlu0 %v4569, 32
    %v4573 = vpop.permute.xlu0 %4572
    %v4575 = vmul.f32 %v4568, %v4573
    %4577 = vrot.lane.b32.xlu0 %v4575, 32
    %v4578 = vpop.permute.xlu0 %4577
    %v4580 = vadd.f32 %v4570, %v4578
    %v4581 = vtanh.pop %v4580
    %4583 = vrot.lane.b32.xlu0 %v4581, 32
    %v4584 = vpop.permute.xlu0 %4583
    %v4586 = vmul.f32 %v4568, %v4584
    %4588 = vrot.lane.b32.xlu0 %v4586, 64
    %v4589 = vpop.permute.xlu0 %4588
    %4591 = vst.msk [vmem:[#allocation3 + $0x38] sm:$0xff] %vm776, %v4589
    %4592 = vst.msk [vmem:[#allocation3] sm:$0xff] %vm2845, %v4589
    %v4593 = vld [vmem:[#allocation3] sm:$0xff]
    %v4594 = vld [vmem:[#allocation3 + $0x8] sm:$0xff]
    %v4595 = vld [vmem:[#allocation3 + $0x10] sm:$0xff]
    %v4596 = vld [vmem:[#allocation3 + $0x18] sm:$0xff]
    %v4597 = vld [vmem:[#allocation3 + $0x20] sm:$0xff]
    %v4598 = vld [vmem:[#allocation3 + $0x28] sm:$0xff]
    %v4599 = vld [vmem:[#allocation3 + $0x30] sm:$0xff]
    %v4600 = vld [vmem:[#allocation3 + $0x38] sm:$0xff]
    %v4601 = vld [vmem:[#allocation10] sm:$0x1]
    %v4603 = vlaneseq
    %v4604 = vshrl.u32 %v4603, 7
    %v4605 = vsub.s32 0, %v4604
    %v4606 = vrot.slane %v4601, %v4605
    %v4608 = vmul.f32 %v4593, %v4606
    %v4609 = vmul.f32 %v4594, %v4606
    %v4610 = vmul.f32 %v4595, %v4606
    %v4611 = vmul.f32 %v4596, %v4606
    %v4612 = vmul.f32 %v4597, %v4606
    %v4613 = vmul.f32 %v4598, %v4606
    %v4614 = vmul.f32 %v4599, %v4606
    %v4615 = vmul.f32 %v4600, %v4606
    %v4616 = vld [vmem:[#allocation12] sm:$0x1]
    %v4618 = vlaneseq
    %v4619 = vshrl.u32 %v4618, 7
    %v4620 = vsub.s32 0, %v4619
    %v4621 = vrot.slane %v4616, %v4620
    %v4623 = vadd.f32 %v4608, %v4621
    %v4624 = vadd.f32 %v4609, %v4621
    %v4625 = vadd.f32 %v4610, %v4621
    %v4626 = vadd.f32 %v4611, %v4621
    %v4627 = vadd.f32 %v4612, %v4621
    %v4628 = vadd.f32 %v4613, %v4621
    %v4629 = vadd.f32 %v4614, %v4621
    %v4630 = vadd.f32 %v4615, %v4621
    %4639 = vrot.lane.b32.xlu0 %v4630, 32
    %v4640 = vpop.permute.xlu0 %4639
    %4641 = vrot.lane.b32.xlu0 %v4629, 32
    %v4642 = vpop.permute.xlu0 %4641
    %4643 = vrot.lane.b32.xlu0 %v4628, 32
    %v4644 = vpop.permute.xlu0 %4643
    %4645 = vrot.lane.b32.xlu0 %v4627, 32
    %v4646 = vpop.permute.xlu0 %4645
    %4647 = vrot.lane.b32.xlu0 %v4626, 32
    %v4648 = vpop.permute.xlu0 %4647
    %4649 = vrot.lane.b32.xlu0 %v4625, 32
    %v4650 = vpop.permute.xlu0 %4649
    %4651 = vrot.lane.b32.xlu0 %v4624, 32
    %v4652 = vpop.permute.xlu0 %4651
    %4653 = vrot.lane.b32.xlu0 %v4623, 32
    %v4654 = vpop.permute.xlu0 %4653
    %v4663 = vsel %vm409, %v4623, %v4640
    %v4664 = vsel %vm409, %v4624, %v4642
    %v4665 = vsel %vm409, %v4625, %v4644
    %v4666 = vsel %vm409, %v4626, %v4646
    %v4667 = vsel %vm409, %v4627, %v4648
    %v4668 = vsel %vm409, %v4628, %v4650
    %v4669 = vsel %vm409, %v4629, %v4652
    %v4670 = vsel %vm409, %v4630, %v4654
    %v4671 = vld [vmem:[%s47] sm:$0xff]
    %v4672 = vld [vmem:[%s47 + $0x8] sm:$0xff]
    %v4673 = vld [vmem:[%s47 + $0x10] sm:$0xff]
    %v4674 = vld [vmem:[%s47 + $0x18] sm:$0xff]
    %v4675 = vld [vmem:[%s47 + $0x20] sm:$0xff]
    %v4676 = vld [vmem:[%s47 + $0x28] sm:$0xff]
    %v4677 = vld [vmem:[%s47 + $0x30] sm:$0xff]
    %v4678 = vld [vmem:[%s47 + $0x38] sm:$0xff]
    %v4679 = vld [vmem:[%s49] sm:$0x1]
    %v4681 = vlaneseq
    %v4682 = vshrl.u32 %v4681, 7
    %v4683 = vsub.s32 0, %v4682
    %v4684 = vrot.slane %v4679, %v4683
    %v4687 = vsel %vm817, %v4663, 0
    %v4690 = vsel %vm817, %v4664, 0
    %v4693 = vsel %vm817, %v4665, 0
    %v4696 = vsel %vm817, %v4666, 0
    %v4699 = vsel %vm817, %v4667, 0
    %v4702 = vsel %vm817, %v4668, 0
    %v4705 = vsel %vm817, %v4669, 0
    %v4708 = vsel %vm817, %v4670, 0
    %4710 = vmatprep.subr.mxu0 0.0
    %4711 = vmatpush1.msra.mxu0 %v4671
    %4712 = vmatprep.subr.mxu0 0.0
    %4713 = vmatpush1.msra.mxu0 %v4672
    %4714 = vmatprep.subr.mxu0 0.0
    %4715 = vmatpush1.msra.mxu0 %v4673
    %4716 = vmatprep.subr.mxu0 0.0
    %4717 = vmatpush1.msra.mxu0 %v4674
    %4718 = vmatprep.subr.mxu0 0.0
    %4719 = vmatpush1.msra.mxu0 %v4675
    %4720 = vmatprep.subr.mxu0 0.0
    %4721 = vmatpush1.msra.mxu0 %v4676
    %4722 = vmatprep.subr.mxu0 0.0
    %4723 = vmatpush1.msra.mxu0 %v4677
    %4724 = vmatprep.subr.mxu0 0.0
    %4725 = vmatpush1.msra.mxu0 %v4678
    %4726 = vmatprep.subr.mxu0 0.0
    %4727 = vmatpush1.msra.mxu0 0.0
    %4728 = vmatprep.subr.mxu0 0.0
    %4729 = vmatpush1.msra.mxu0 0.0
    %4730 = vmatprep.subr.mxu0 0.0
    %4731 = vmatpush1.msra.mxu0 0.0
    %4732 = vmatprep.subr.mxu0 0.0
    %4733 = vmatpush1.msra.mxu0 0.0
    %4734 = vmatprep.subr.mxu0 0.0
    %4735 = vmatpush1.msra.mxu0 0.0
    %4736 = vmatprep.subr.mxu0 0.0
    %4737 = vmatpush1.msra.mxu0 0.0
    %4738 = vmatprep.subr.mxu0 0.0
    %4739 = vmatpush1.msra.mxu0 0.0
    %4740 = vmatprep.subr.mxu0 0.0
    %4741 = vmatpush1.msra.mxu0 0.0
    %4742 = vmatprep.subr.mxu0 0.0
    %4743 = vmatpush1.msra.mxu0 0.0
    %4744 = vmatprep.subr.mxu0 0.0
    %4745 = vmatpush1.msra.mxu0 0.0
    %4746 = vmatprep.subr.mxu0 0.0
    %4747 = vmatpush1.msra.mxu0 0.0
    %4748 = vmatprep.subr.mxu0 0.0
    %4749 = vmatpush1.msra.mxu0 0.0
    %4750 = vmatprep.subr.mxu0 0.0
    %4751 = vmatpush1.msra.mxu0 0.0
    %4752 = vmatprep.subr.mxu0 0.0
    %4753 = vmatpush1.msra.mxu0 0.0
    %4754 = vmatprep.subr.mxu0 0.0
    %4755 = vmatpush1.msra.mxu0 0.0
    %4756 = vmatprep.subr.mxu0 0.0
    %4757 = vmatpush1.msra.mxu0 0.0
    %4758 = vmatprep.subr.mxu0 0.0
    %4759 = vmatpush1.msra.mxu0 0.0
    %4760 = vmatprep.subr.mxu0 0.0
    %4761 = vmatpush1.msra.mxu0 0.0
    %4762 = vmatprep.subr.mxu0 0.0
    %4763 = vmatpush1.msra.mxu0 0.0
    %4764 = vmatprep.subr.mxu0 0.0
    %4765 = vmatpush1.msra.mxu0 0.0
    %4766 = vmatprep.subr.mxu0 0.0
    %4767 = vmatpush1.msra.mxu0 0.0
    %4768 = vmatprep.subr.mxu0 0.0
    %4769 = vmatpush1.msra.mxu0 0.0
    %4770 = vmatprep.subr.mxu0 0.0
    %4771 = vmatpush1.msra.mxu0 0.0
    %4772 = vmatprep.subr.mxu0 0.0
    %4773 = vmatpush1.msra.mxu0 0.0
    %4774 = vmatprep.mubr.f32.mxu0 0.0
    %4775 = vmatmul.mubr.f32.gmra.mrb[0].mxu0 %v4687
    %v4776 = vpop.f32.mrb[0].mxu0
    %v4777 = vadd.f32 %v4684, %v4776
    %v4778 = vpop.f32.mrb[0].mxu0
    %4779 = vmatprep.mubr.f32.mxu0 0.0
    %4780 = vmatmul.mubr.f32.gmra.mrb[0].mxu0 %v4690
    %v4781 = vpop.f32.mrb[0].mxu0
    %v4782 = vadd.f32 %v4684, %v4781
    %v4783 = vpop.f32.mrb[0].mxu0
    %4784 = vmatprep.mubr.f32.mxu0 0.0
    %4785 = vmatmul.mubr.f32.gmra.mrb[0].mxu0 %v4693
    %v4786 = vpop.f32.mrb[0].mxu0
    %v4787 = vadd.f32 %v4684, %v4786
    %v4788 = vpop.f32.mrb[0].mxu0
    %4789 = vmatprep.mubr.f32.mxu0 0.0
    %4790 = vmatmul.mubr.f32.gmra.mrb[0].mxu0 %v4696
    %v4791 = vpop.f32.mrb[0].mxu0
    %v4792 = vadd.f32 %v4684, %v4791
    %v4793 = vpop.f32.mrb[0].mxu0
    %4794 = vmatprep.mubr.f32.mxu0 0.0
    %4795 = vmatmul.mubr.f32.gmra.mrb[0].mxu0 %v4699
    %v4796 = vpop.f32.mrb[0].mxu0
    %v4797 = vadd.f32 %v4684, %v4796
    %v4798 = vpop.f32.mrb[0].mxu0
    %4799 = vmatprep.mubr.f32.mxu0 0.0
    %4800 = vmatmul.mubr.f32.gmra.mrb[0].mxu0 %v4702
    %v4801 = vpop.f32.mrb[0].mxu0
    %v4802 = vadd.f32 %v4684, %v4801
    %v4803 = vpop.f32.mrb[0].mxu0
    %4804 = vmatprep.mubr.f32.mxu0 0.0
    %4805 = vmatmul.mubr.f32.gmra.mrb[0].mxu0 %v4705
    %v4806 = vpop.f32.mrb[0].mxu0
    %v4807 = vadd.f32 %v4684, %v4806
    %v4808 = vpop.f32.mrb[0].mxu0
    %4809 = vmatprep.mubr.f32.mxu0 0.0
    %4810 = vmatmul.mubr.f32.gmra.mrb[0].mxu0 %v4708
    %v4811 = vpop.f32.mrb[0].mxu0
    %v4812 = vadd.f32 %v4684, %v4811
    %v4813 = vpop.f32.mrb[0].mxu0
    %4814 = vdwg.mxu0
    %v4815 = vld [vmem:[%s51] sm:$0xff]
    %v4816 = vld [vmem:[%s51 + $0x8] sm:$0xff]
    %v4817 = vld [vmem:[%s51 + $0x10] sm:$0xff]
    %v4818 = vld [vmem:[%s51 + $0x18] sm:$0xff]
    %v4819 = vsel %vm409, %v4589, 0
    %4821 = vmatprep.subr.mxu0 0.0
    %4822 = vmatpush1.msra.mxu0 %v4815
    %4823 = vmatprep.subr.mxu0 0.0
    %4824 = vmatpush1.msra.mxu0 %v4816
    %4825 = vmatprep.subr.mxu0 0.0
    %4826 = vmatpush1.msra.mxu0 %v4817
    %4827 = vmatprep.subr.mxu0 0.0
    %4828 = vmatpush1.msra.mxu0 %v4818
    %4829 = vmatprep.subr.mxu0 0.0
    %4830 = vmatpush1.msra.mxu0 0.0
    %4831 = vmatprep.subr.mxu0 0.0
    %4832 = vmatpush1.msra.mxu0 0.0
    %4833 = vmatprep.subr.mxu0 0.0
    %4834 = vmatpush1.msra.mxu0 0.0
    %4835 = vmatprep.subr.mxu0 0.0
    %4836 = vmatpush1.msra.mxu0 0.0
    %4837 = vmatprep.subr.mxu0 0.0
    %4838 = vmatpush1.msra.mxu0 0.0
    %4839 = vmatprep.subr.mxu0 0.0
    %4840 = vmatpush1.msra.mxu0 0.0
    %4841 = vmatprep.subr.mxu0 0.0
    %4842 = vmatpush1.msra.mxu0 0.0
    %4843 = vmatprep.subr.mxu0 0.0
    %4844 = vmatpush1.msra.mxu0 0.0
    %4845 = vmatprep.subr.mxu0 0.0
    %4846 = vmatpush1.msra.mxu0 0.0
    %4847 = vmatprep.subr.mxu0 0.0
    %4848 = vmatpush1.msra.mxu0 0.0
    %4849 = vmatprep.subr.mxu0 0.0
    %4850 = vmatpush1.msra.mxu0 0.0
    %4851 = vmatprep.subr.mxu0 0.0
    %4852 = vmatpush1.msra.mxu0 0.0
    %4853 = vmatprep.subr.mxu0 0.0
    %4854 = vmatpush1.msra.mxu0 0.0
    %4855 = vmatprep.subr.mxu0 0.0
    %4856 = vmatpush1.msra.mxu0 0.0
    %4857 = vmatprep.subr.mxu0 0.0
    %4858 = vmatpush1.msra.mxu0 0.0
    %4859 = vmatprep.subr.mxu0 0.0
    %4860 = vmatpush1.msra.mxu0 0.0
    %4861 = vmatprep.subr.mxu0 0.0
    %4862 = vmatpush1.msra.mxu0 0.0
    %4863 = vmatprep.subr.mxu0 0.0
    %4864 = vmatpush1.msra.mxu0 0.0
    %4865 = vmatprep.subr.mxu0 0.0
    %4866 = vmatpush1.msra.mxu0 0.0
    %4867 = vmatprep.subr.mxu0 0.0
    %4868 = vmatpush1.msra.mxu0 0.0
    %4869 = vmatprep.subr.mxu0 0.0
    %4870 = vmatpush1.msra.mxu0 0.0
    %4871 = vmatprep.subr.mxu0 0.0
    %4872 = vmatpush1.msra.mxu0 0.0
    %4873 = vmatprep.subr.mxu0 0.0
    %4874 = vmatpush1.msra.mxu0 0.0
    %4875 = vmatprep.subr.mxu0 0.0
    %4876 = vmatpush1.msra.mxu0 0.0
    %4877 = vmatprep.subr.mxu0 0.0
    %4878 = vmatpush1.msra.mxu0 0.0
    %4879 = vmatprep.subr.mxu0 0.0
    %4880 = vmatpush1.msra.mxu0 0.0
    %4881 = vmatprep.subr.mxu0 0.0
    %4882 = vmatpush1.msra.mxu0 0.0
    %4883 = vmatprep.subr.mxu0 0.0
    %4884 = vmatpush1.msra.mxu0 0.0
    %4885 = vmatprep.mubr.f32.mxu0 0.0
    %4886 = vmatmul.mubr.f32.gmra.mrb[0].mxu0 %v4819
    %v4887 = vpop.f32.mrb[0].mxu0
    %v4888 = vadd.f32 0.0, %v4887
    %v4889 = vpop.f32.mrb[0].mxu0
    %4890 = vdwg.mxu0
    %v4891 = vadd.f32 %v4777, %v4888
    %v4892 = vxor.u32 %v4891, 2147483648
    %v4893 = vmul.f32 %v4892, 1.442695
    %v4894 = vpow.pop %v4893
    %v4895 = vadd.f32 %v4894, 1.0
    %v4896 = vrcp.pop %v4895
    %v4897 = vmul.f32 1.0, %v4896
    %v4898 = vtanh.pop %v4891
    %v4899 = vmul.f32 %v4897, %v4580
    %4901 = vrot.lane.b32.xlu0 %v4898, 32
    %v4902 = vpop.permute.xlu0 %4901
    %v4904 = vmul.f32 %v4897, %v4902
    %4906 = vrot.lane.b32.xlu0 %v4904, 32
    %v4907 = vpop.permute.xlu0 %4906
    %v4909 = vadd.f32 %v4899, %v4907
    %v4910 = vtanh.pop %v4909
    %4912 = vrot.lane.b32.xlu0 %v4910, 32
    %v4913 = vpop.permute.xlu0 %4912
    %v4915 = vmul.f32 %v4897, %v4913
    %4917 = vrot.lane.b32.xlu0 %v4915, 64
    %v4918 = vpop.permute.xlu0 %4917
    %4920 = vst.msk [vmem:[#allocation4] sm:$0xff] %vm776, %v4918
    %4921 = vst.msk [vmem:[#allocation4 + $0x38] sm:$0xff] %vm2845, %v4918
    %v4922 = vsel %vm409, %v4918, 0
    %4924 = vmatprep.subr.mxu0 0.0
    %4925 = vmatpush1.msra.mxu0 %v4815
    %4926 = vmatprep.subr.mxu0 0.0
    %4927 = vmatpush1.msra.mxu0 %v4816
    %4928 = vmatprep.subr.mxu0 0.0
    %4929 = vmatpush1.msra.mxu0 %v4817
    %4930 = vmatprep.subr.mxu0 0.0
    %4931 = vmatpush1.msra.mxu0 %v4818
    %4932 = vmatprep.subr.mxu0 0.0
    %4933 = vmatpush1.msra.mxu0 0.0
    %4934 = vmatprep.subr.mxu0 0.0
    %4935 = vmatpush1.msra.mxu0 0.0
    %4936 = vmatprep.subr.mxu0 0.0
    %4937 = vmatpush1.msra.mxu0 0.0
    %4938 = vmatprep.subr.mxu0 0.0
    %4939 = vmatpush1.msra.mxu0 0.0
    %4940 = vmatprep.subr.mxu0 0.0
    %4941 = vmatpush1.msra.mxu0 0.0
    %4942 = vmatprep.subr.mxu0 0.0
    %4943 = vmatpush1.msra.mxu0 0.0
    %4944 = vmatprep.subr.mxu0 0.0
    %4945 = vmatpush1.msra.mxu0 0.0
    %4946 = vmatprep.subr.mxu0 0.0
    %4947 = vmatpush1.msra.mxu0 0.0
    %4948 = vmatprep.subr.mxu0 0.0
    %4949 = vmatpush1.msra.mxu0 0.0
    %4950 = vmatprep.subr.mxu0 0.0
    %4951 = vmatpush1.msra.mxu0 0.0
    %4952 = vmatprep.subr.mxu0 0.0
    %4953 = vmatpush1.msra.mxu0 0.0
    %4954 = vmatprep.subr.mxu0 0.0
    %4955 = vmatpush1.msra.mxu0 0.0
    %4956 = vmatprep.subr.mxu0 0.0
    %4957 = vmatpush1.msra.mxu0 0.0
    %4958 = vmatprep.subr.mxu0 0.0
    %4959 = vmatpush1.msra.mxu0 0.0
    %4960 = vmatprep.subr.mxu0 0.0
    %4961 = vmatpush1.msra.mxu0 0.0
    %4962 = vmatprep.subr.mxu0 0.0
    %4963 = vmatpush1.msra.mxu0 0.0
    %4964 = vmatprep.subr.mxu0 0.0
    %4965 = vmatpush1.msra.mxu0 0.0
    %4966 = vmatprep.subr.mxu0 0.0
    %4967 = vmatpush1.msra.mxu0 0.0
    %4968 = vmatprep.subr.mxu0 0.0
    %4969 = vmatpush1.msra.mxu0 0.0
    %4970 = vmatprep.subr.mxu0 0.0
    %4971 = vmatpush1.msra.mxu0 0.0
    %4972 = vmatprep.subr.mxu0 0.0
    %4973 = vmatpush1.msra.mxu0 0.0
    %4974 = vmatprep.subr.mxu0 0.0
    %4975 = vmatpush1.msra.mxu0 0.0
    %4976 = vmatprep.subr.mxu0 0.0
    %4977 = vmatpush1.msra.mxu0 0.0
    %4978 = vmatprep.subr.mxu0 0.0
    %4979 = vmatpush1.msra.mxu0 0.0
    %4980 = vmatprep.subr.mxu0 0.0
    %4981 = vmatpush1.msra.mxu0 0.0
    %4982 = vmatprep.subr.mxu0 0.0
    %4983 = vmatpush1.msra.mxu0 0.0
    %4984 = vmatprep.subr.mxu0 0.0
    %4985 = vmatpush1.msra.mxu0 0.0
    %4986 = vmatprep.subr.mxu0 0.0
    %4987 = vmatpush1.msra.mxu0 0.0
    %4988 = vmatprep.mubr.f32.mxu0 0.0
    %4989 = vmatmul.mubr.f32.gmra.mrb[0].mxu0 %v4922
    %v4990 = vpop.f32.mrb[0].mxu0
    %v4991 = vadd.f32 0.0, %v4990
    %v4992 = vpop.f32.mrb[0].mxu0
    %4993 = vdwg.mxu0
    %v4994 = vadd.f32 %v4782, %v4991
    %v4995 = vxor.u32 %v4994, 2147483648
    %v4996 = vmul.f32 %v4995, 1.442695
    %v4997 = vpow.pop %v4996
    %v4998 = vadd.f32 %v4997, 1.0
    %v4999 = vrcp.pop %v4998
    %v5000 = vmul.f32 1.0, %v4999
    %v5001 = vtanh.pop %v4994
    %v5002 = vmul.f32 %v5000, %v4909
    %5004 = vrot.lane.b32.xlu0 %v5001, 32
    %v5005 = vpop.permute.xlu0 %5004
    %v5007 = vmul.f32 %v5000, %v5005
    %5009 = vrot.lane.b32.xlu0 %v5007, 32
    %v5010 = vpop.permute.xlu0 %5009
    %v5012 = vadd.f32 %v5002, %v5010
    %v5013 = vtanh.pop %v5012
    %5015 = vrot.lane.b32.xlu0 %v5013, 32
    %v5016 = vpop.permute.xlu0 %5015
    %v5018 = vmul.f32 %v5000, %v5016
    %5020 = vrot.lane.b32.xlu0 %v5018, 64
    %v5021 = vpop.permute.xlu0 %5020
    %5023 = vst.msk [vmem:[#allocation4 + $0x8] sm:$0xff] %vm776, %v5021
    %5024 = vst.msk [vmem:[#allocation4 + $0x30] sm:$0xff] %vm2845, %v5021
    %v5025 = vsel %vm409, %v5021, 0
    %5027 = vmatprep.subr.mxu0 0.0
    %5028 = vmatpush1.msra.mxu0 %v4815
    %5029 = vmatprep.subr.mxu0 0.0
    %5030 = vmatpush1.msra.mxu0 %v4816
    %5031 = vmatprep.subr.mxu0 0.0
    %5032 = vmatpush1.msra.mxu0 %v4817
    %5033 = vmatprep.subr.mxu0 0.0
    %5034 = vmatpush1.msra.mxu0 %v4818
    %5035 = vmatprep.subr.mxu0 0.0
    %5036 = vmatpush1.msra.mxu0 0.0
    %5037 = vmatprep.subr.mxu0 0.0
    %5038 = vmatpush1.msra.mxu0 0.0
    %5039 = vmatprep.subr.mxu0 0.0
    %5040 = vmatpush1.msra.mxu0 0.0
    %5041 = vmatprep.subr.mxu0 0.0
    %5042 = vmatpush1.msra.mxu0 0.0
    %5043 = vmatprep.subr.mxu0 0.0
    %5044 = vmatpush1.msra.mxu0 0.0
    %5045 = vmatprep.subr.mxu0 0.0
    %5046 = vmatpush1.msra.mxu0 0.0
    %5047 = vmatprep.subr.mxu0 0.0
    %5048 = vmatpush1.msra.mxu0 0.0
    %5049 = vmatprep.subr.mxu0 0.0
    %5050 = vmatpush1.msra.mxu0 0.0
    %5051 = vmatprep.subr.mxu0 0.0
    %5052 = vmatpush1.msra.mxu0 0.0
    %5053 = vmatprep.subr.mxu0 0.0
    %5054 = vmatpush1.msra.mxu0 0.0
    %5055 = vmatprep.subr.mxu0 0.0
    %5056 = vmatpush1.msra.mxu0 0.0
    %5057 = vmatprep.subr.mxu0 0.0
    %5058 = vmatpush1.msra.mxu0 0.0
    %5059 = vmatprep.subr.mxu0 0.0
    %5060 = vmatpush1.msra.mxu0 0.0
    %5061 = vmatprep.subr.mxu0 0.0
    %5062 = vmatpush1.msra.mxu0 0.0
    %5063 = vmatprep.subr.mxu0 0.0
    %5064 = vmatpush1.msra.mxu0 0.0
    %5065 = vmatprep.subr.mxu0 0.0
    %5066 = vmatpush1.msra.mxu0 0.0
    %5067 = vmatprep.subr.mxu0 0.0
    %5068 = vmatpush1.msra.mxu0 0.0
    %5069 = vmatprep.subr.mxu0 0.0
    %5070 = vmatpush1.msra.mxu0 0.0
    %5071 = vmatprep.subr.mxu0 0.0
    %5072 = vmatpush1.msra.mxu0 0.0
    %5073 = vmatprep.subr.mxu0 0.0
    %5074 = vmatpush1.msra.mxu0 0.0
    %5075 = vmatprep.subr.mxu0 0.0
    %5076 = vmatpush1.msra.mxu0 0.0
    %5077 = vmatprep.subr.mxu0 0.0
    %5078 = vmatpush1.msra.mxu0 0.0
    %5079 = vmatprep.subr.mxu0 0.0
    %5080 = vmatpush1.msra.mxu0 0.0
    %5081 = vmatprep.subr.mxu0 0.0
    %5082 = vmatpush1.msra.mxu0 0.0
    %5083 = vmatprep.subr.mxu0 0.0
    %5084 = vmatpush1.msra.mxu0 0.0
    %5085 = vmatprep.subr.mxu0 0.0
    %5086 = vmatpush1.msra.mxu0 0.0
    %5087 = vmatprep.subr.mxu0 0.0
    %5088 = vmatpush1.msra.mxu0 0.0
    %5089 = vmatprep.subr.mxu0 0.0
    %5090 = vmatpush1.msra.mxu0 0.0
    %5091 = vmatprep.mubr.f32.mxu0 0.0
    %5092 = vmatmul.mubr.f32.gmra.mrb[0].mxu0 %v5025
    %v5093 = vpop.f32.mrb[0].mxu0
    %v5094 = vadd.f32 0.0, %v5093
    %v5095 = vpop.f32.mrb[0].mxu0
    %5096 = vdwg.mxu0
    %v5097 = vadd.f32 %v4787, %v5094
    %v5098 = vxor.u32 %v5097, 2147483648
    %v5099 = vmul.f32 %v5098, 1.442695
    %v5100 = vpow.pop %v5099
    %v5101 = vadd.f32 %v5100, 1.0
    %v5102 = vrcp.pop %v5101
    %v5103 = vmul.f32 1.0, %v5102
    %v5104 = vtanh.pop %v5097
    %v5105 = vmul.f32 %v5103, %v5012
    %5107 = vrot.lane.b32.xlu0 %v5104, 32
    %v5108 = vpop.permute.xlu0 %5107
    %v5110 = vmul.f32 %v5103, %v5108
    %5112 = vrot.lane.b32.xlu0 %v5110, 32
    %v5113 = vpop.permute.xlu0 %5112
    %v5115 = vadd.f32 %v5105, %v5113
    %v5116 = vtanh.pop %v5115
    %5118 = vrot.lane.b32.xlu0 %v5116, 32
    %v5119 = vpop.permute.xlu0 %5118
    %v5121 = vmul.f32 %v5103, %v5119
    %5123 = vrot.lane.b32.xlu0 %v5121, 64
    %v5124 = vpop.permute.xlu0 %5123
    %5126 = vst.msk [vmem:[#allocation4 + $0x10] sm:$0xff] %vm776, %v5124
    %5127 = vst.msk [vmem:[#allocation4 + $0x28] sm:$0xff] %vm2845, %v5124
    %v5128 = vsel %vm409, %v5124, 0
    %5130 = vmatprep.subr.mxu0 0.0
    %5131 = vmatpush1.msra.mxu0 %v4815
    %5132 = vmatprep.subr.mxu0 0.0
    %5133 = vmatpush1.msra.mxu0 %v4816
    %5134 = vmatprep.subr.mxu0 0.0
    %5135 = vmatpush1.msra.mxu0 %v4817
    %5136 = vmatprep.subr.mxu0 0.0
    %5137 = vmatpush1.msra.mxu0 %v4818
    %5138 = vmatprep.subr.mxu0 0.0
    %5139 = vmatpush1.msra.mxu0 0.0
    %5140 = vmatprep.subr.mxu0 0.0
    %5141 = vmatpush1.msra.mxu0 0.0
    %5142 = vmatprep.subr.mxu0 0.0
    %5143 = vmatpush1.msra.mxu0 0.0
    %5144 = vmatprep.subr.mxu0 0.0
    %5145 = vmatpush1.msra.mxu0 0.0
    %5146 = vmatprep.subr.mxu0 0.0
    %5147 = vmatpush1.msra.mxu0 0.0
    %5148 = vmatprep.subr.mxu0 0.0
    %5149 = vmatpush1.msra.mxu0 0.0
    %5150 = vmatprep.subr.mxu0 0.0
    %5151 = vmatpush1.msra.mxu0 0.0
    %5152 = vmatprep.subr.mxu0 0.0
    %5153 = vmatpush1.msra.mxu0 0.0
    %5154 = vmatprep.subr.mxu0 0.0
    %5155 = vmatpush1.msra.mxu0 0.0
    %5156 = vmatprep.subr.mxu0 0.0
    %5157 = vmatpush1.msra.mxu0 0.0
    %5158 = vmatprep.subr.mxu0 0.0
    %5159 = vmatpush1.msra.mxu0 0.0
    %5160 = vmatprep.subr.mxu0 0.0
    %5161 = vmatpush1.msra.mxu0 0.0
    %5162 = vmatprep.subr.mxu0 0.0
    %5163 = vmatpush1.msra.mxu0 0.0
    %5164 = vmatprep.subr.mxu0 0.0
    %5165 = vmatpush1.msra.mxu0 0.0
    %5166 = vmatprep.subr.mxu0 0.0
    %5167 = vmatpush1.msra.mxu0 0.0
    %5168 = vmatprep.subr.mxu0 0.0
    %5169 = vmatpush1.msra.mxu0 0.0
    %5170 = vmatprep.subr.mxu0 0.0
    %5171 = vmatpush1.msra.mxu0 0.0
    %5172 = vmatprep.subr.mxu0 0.0
    %5173 = vmatpush1.msra.mxu0 0.0
    %5174 = vmatprep.subr.mxu0 0.0
    %5175 = vmatpush1.msra.mxu0 0.0
    %5176 = vmatprep.subr.mxu0 0.0
    %5177 = vmatpush1.msra.mxu0 0.0
    %5178 = vmatprep.subr.mxu0 0.0
    %5179 = vmatpush1.msra.mxu0 0.0
    %5180 = vmatprep.subr.mxu0 0.0
    %5181 = vmatpush1.msra.mxu0 0.0
    %5182 = vmatprep.subr.mxu0 0.0
    %5183 = vmatpush1.msra.mxu0 0.0
    %5184 = vmatprep.subr.mxu0 0.0
    %5185 = vmatpush1.msra.mxu0 0.0
    %5186 = vmatprep.subr.mxu0 0.0
    %5187 = vmatpush1.msra.mxu0 0.0
    %5188 = vmatprep.subr.mxu0 0.0
    %5189 = vmatpush1.msra.mxu0 0.0
    %5190 = vmatprep.subr.mxu0 0.0
    %5191 = vmatpush1.msra.mxu0 0.0
    %5192 = vmatprep.subr.mxu0 0.0
    %5193 = vmatpush1.msra.mxu0 0.0
    %5194 = vmatprep.mubr.f32.mxu0 0.0
    %5195 = vmatmul.mubr.f32.gmra.mrb[0].mxu0 %v5128
    %v5196 = vpop.f32.mrb[0].mxu0
    %v5197 = vadd.f32 0.0, %v5196
    %v5198 = vpop.f32.mrb[0].mxu0
    %5199 = vdwg.mxu0
    %v5200 = vadd.f32 %v4792, %v5197
    %v5201 = vxor.u32 %v5200, 2147483648
    %v5202 = vmul.f32 %v5201, 1.442695
    %v5203 = vpow.pop %v5202
    %v5204 = vadd.f32 %v5203, 1.0
    %v5205 = vrcp.pop %v5204
    %v5206 = vmul.f32 1.0, %v5205
    %v5207 = vtanh.pop %v5200
    %v5208 = vmul.f32 %v5206, %v5115
    %5210 = vrot.lane.b32.xlu0 %v5207, 32
    %v5211 = vpop.permute.xlu0 %5210
    %v5213 = vmul.f32 %v5206, %v5211
    %5215 = vrot.lane.b32.xlu0 %v5213, 32
    %v5216 = vpop.permute.xlu0 %5215
    %v5218 = vadd.f32 %v5208, %v5216
    %v5219 = vtanh.pop %v5218
    %5221 = vrot.lane.b32.xlu0 %v5219, 32
    %v5222 = vpop.permute.xlu0 %5221
    %v5224 = vmul.f32 %v5206, %v5222
    %5226 = vrot.lane.b32.xlu0 %v5224, 64
    %v5227 = vpop.permute.xlu0 %5226
    %5229 = vst.msk [vmem:[#allocation4 + $0x18] sm:$0xff] %vm776, %v5227
    %5230 = vst.msk [vmem:[#allocation4 + $0x20] sm:$0xff] %vm2845, %v5227
    %v5231 = vsel %vm409, %v5227, 0
    %5233 = vmatprep.subr.mxu0 0.0
    %5234 = vmatpush1.msra.mxu0 %v4815
    %5235 = vmatprep.subr.mxu0 0.0
    %5236 = vmatpush1.msra.mxu0 %v4816
    %5237 = vmatprep.subr.mxu0 0.0
    %5238 = vmatpush1.msra.mxu0 %v4817
    %5239 = vmatprep.subr.mxu0 0.0
    %5240 = vmatpush1.msra.mxu0 %v4818
    %5241 = vmatprep.subr.mxu0 0.0
    %5242 = vmatpush1.msra.mxu0 0.0
    %5243 = vmatprep.subr.mxu0 0.0
    %5244 = vmatpush1.msra.mxu0 0.0
    %5245 = vmatprep.subr.mxu0 0.0
    %5246 = vmatpush1.msra.mxu0 0.0
    %5247 = vmatprep.subr.mxu0 0.0
    %5248 = vmatpush1.msra.mxu0 0.0
    %5249 = vmatprep.subr.mxu0 0.0
    %5250 = vmatpush1.msra.mxu0 0.0
    %5251 = vmatprep.subr.mxu0 0.0
    %5252 = vmatpush1.msra.mxu0 0.0
    %5253 = vmatprep.subr.mxu0 0.0
    %5254 = vmatpush1.msra.mxu0 0.0
    %5255 = vmatprep.subr.mxu0 0.0
    %5256 = vmatpush1.msra.mxu0 0.0
    %5257 = vmatprep.subr.mxu0 0.0
    %5258 = vmatpush1.msra.mxu0 0.0
    %5259 = vmatprep.subr.mxu0 0.0
    %5260 = vmatpush1.msra.mxu0 0.0
    %5261 = vmatprep.subr.mxu0 0.0
    %5262 = vmatpush1.msra.mxu0 0.0
    %5263 = vmatprep.subr.mxu0 0.0
    %5264 = vmatpush1.msra.mxu0 0.0
    %5265 = vmatprep.subr.mxu0 0.0
    %5266 = vmatpush1.msra.mxu0 0.0
    %5267 = vmatprep.subr.mxu0 0.0
    %5268 = vmatpush1.msra.mxu0 0.0
    %5269 = vmatprep.subr.mxu0 0.0
    %5270 = vmatpush1.msra.mxu0 0.0
    %5271 = vmatprep.subr.mxu0 0.0
    %5272 = vmatpush1.msra.mxu0 0.0
    %5273 = vmatprep.subr.mxu0 0.0
    %5274 = vmatpush1.msra.mxu0 0.0
    %5275 = vmatprep.subr.mxu0 0.0
    %5276 = vmatpush1.msra.mxu0 0.0
    %5277 = vmatprep.subr.mxu0 0.0
    %5278 = vmatpush1.msra.mxu0 0.0
    %5279 = vmatprep.subr.mxu0 0.0
    %5280 = vmatpush1.msra.mxu0 0.0
    %5281 = vmatprep.subr.mxu0 0.0
    %5282 = vmatpush1.msra.mxu0 0.0
    %5283 = vmatprep.subr.mxu0 0.0
    %5284 = vmatpush1.msra.mxu0 0.0
    %5285 = vmatprep.subr.mxu0 0.0
    %5286 = vmatpush1.msra.mxu0 0.0
    %5287 = vmatprep.subr.mxu0 0.0
    %5288 = vmatpush1.msra.mxu0 0.0
    %5289 = vmatprep.subr.mxu0 0.0
    %5290 = vmatpush1.msra.mxu0 0.0
    %5291 = vmatprep.subr.mxu0 0.0
    %5292 = vmatpush1.msra.mxu0 0.0
    %5293 = vmatprep.subr.mxu0 0.0
    %5294 = vmatpush1.msra.mxu0 0.0
    %5295 = vmatprep.subr.mxu0 0.0
    %5296 = vmatpush1.msra.mxu0 0.0
    %5297 = vmatprep.mubr.f32.mxu0 0.0
    %5298 = vmatmul.mubr.f32.gmra.mrb[0].mxu0 %v5231
    %v5299 = vpop.f32.mrb[0].mxu0
    %v5300 = vadd.f32 0.0, %v5299
    %v5301 = vpop.f32.mrb[0].mxu0
    %5302 = vdwg.mxu0
    %v5303 = vadd.f32 %v4797, %v5300
    %v5304 = vxor.u32 %v5303, 2147483648
    %v5305 = vmul.f32 %v5304, 1.442695
    %v5306 = vpow.pop %v5305
    %v5307 = vadd.f32 %v5306, 1.0
    %v5308 = vrcp.pop %v5307
    %v5309 = vmul.f32 1.0, %v5308
    %v5310 = vtanh.pop %v5303
    %v5311 = vmul.f32 %v5309, %v5218
    %5313 = vrot.lane.b32.xlu0 %v5310, 32
    %v5314 = vpop.permute.xlu0 %5313
    %v5316 = vmul.f32 %v5309, %v5314
    %5318 = vrot.lane.b32.xlu0 %v5316, 32
    %v5319 = vpop.permute.xlu0 %5318
    %v5321 = vadd.f32 %v5311, %v5319
    %v5322 = vtanh.pop %v5321
    %5324 = vrot.lane.b32.xlu0 %v5322, 32
    %v5325 = vpop.permute.xlu0 %5324
    %v5327 = vmul.f32 %v5309, %v5325
    %5329 = vrot.lane.b32.xlu0 %v5327, 64
    %v5330 = vpop.permute.xlu0 %5329
    %5332 = vst.msk [vmem:[#allocation4 + $0x20] sm:$0xff] %vm776, %v5330
    %5333 = vst.msk [vmem:[#allocation4 + $0x18] sm:$0xff] %vm2845, %v5330
    %v5334 = vsel %vm409, %v5330, 0
    %5336 = vmatprep.subr.mxu0 0.0
    %5337 = vmatpush1.msra.mxu0 %v4815
    %5338 = vmatprep.subr.mxu0 0.0
    %5339 = vmatpush1.msra.mxu0 %v4816
    %5340 = vmatprep.subr.mxu0 0.0
    %5341 = vmatpush1.msra.mxu0 %v4817
    %5342 = vmatprep.subr.mxu0 0.0
    %5343 = vmatpush1.msra.mxu0 %v4818
    %5344 = vmatprep.subr.mxu0 0.0
    %5345 = vmatpush1.msra.mxu0 0.0
    %5346 = vmatprep.subr.mxu0 0.0
    %5347 = vmatpush1.msra.mxu0 0.0
    %5348 = vmatprep.subr.mxu0 0.0
    %5349 = vmatpush1.msra.mxu0 0.0
    %5350 = vmatprep.subr.mxu0 0.0
    %5351 = vmatpush1.msra.mxu0 0.0
    %5352 = vmatprep.subr.mxu0 0.0
    %5353 = vmatpush1.msra.mxu0 0.0
    %5354 = vmatprep.subr.mxu0 0.0
    %5355 = vmatpush1.msra.mxu0 0.0
    %5356 = vmatprep.subr.mxu0 0.0
    %5357 = vmatpush1.msra.mxu0 0.0
    %5358 = vmatprep.subr.mxu0 0.0
    %5359 = vmatpush1.msra.mxu0 0.0
    %5360 = vmatprep.subr.mxu0 0.0
    %5361 = vmatpush1.msra.mxu0 0.0
    %5362 = vmatprep.subr.mxu0 0.0
    %5363 = vmatpush1.msra.mxu0 0.0
    %5364 = vmatprep.subr.mxu0 0.0
    %5365 = vmatpush1.msra.mxu0 0.0
    %5366 = vmatprep.subr.mxu0 0.0
    %5367 = vmatpush1.msra.mxu0 0.0
    %5368 = vmatprep.subr.mxu0 0.0
    %5369 = vmatpush1.msra.mxu0 0.0
    %5370 = vmatprep.subr.mxu0 0.0
    %5371 = vmatpush1.msra.mxu0 0.0
    %5372 = vmatprep.subr.mxu0 0.0
    %5373 = vmatpush1.msra.mxu0 0.0
    %5374 = vmatprep.subr.mxu0 0.0
    %5375 = vmatpush1.msra.mxu0 0.0
    %5376 = vmatprep.subr.mxu0 0.0
    %5377 = vmatpush1.msra.mxu0 0.0
    %5378 = vmatprep.subr.mxu0 0.0
    %5379 = vmatpush1.msra.mxu0 0.0
    %5380 = vmatprep.subr.mxu0 0.0
    %5381 = vmatpush1.msra.mxu0 0.0
    %5382 = vmatprep.subr.mxu0 0.0
    %5383 = vmatpush1.msra.mxu0 0.0
    %5384 = vmatprep.subr.mxu0 0.0
    %5385 = vmatpush1.msra.mxu0 0.0
    %5386 = vmatprep.subr.mxu0 0.0
    %5387 = vmatpush1.msra.mxu0 0.0
    %5388 = vmatprep.subr.mxu0 0.0
    %5389 = vmatpush1.msra.mxu0 0.0
    %5390 = vmatprep.subr.mxu0 0.0
    %5391 = vmatpush1.msra.mxu0 0.0
    %5392 = vmatprep.subr.mxu0 0.0
    %5393 = vmatpush1.msra.mxu0 0.0
    %5394 = vmatprep.subr.mxu0 0.0
    %5395 = vmatpush1.msra.mxu0 0.0
    %5396 = vmatprep.subr.mxu0 0.0
    %5397 = vmatpush1.msra.mxu0 0.0
    %5398 = vmatprep.subr.mxu0 0.0
    %5399 = vmatpush1.msra.mxu0 0.0
    %5400 = vmatprep.mubr.f32.mxu0 0.0
    %5401 = vmatmul.mubr.f32.gmra.mrb[0].mxu0 %v5334
    %v5402 = vpop.f32.mrb[0].mxu0
    %v5403 = vadd.f32 0.0, %v5402
    %v5404 = vpop.f32.mrb[0].mxu0
    %5405 = vdwg.mxu0
    %v5406 = vadd.f32 %v4802, %v5403
    %v5407 = vxor.u32 %v5406, 2147483648
    %v5408 = vmul.f32 %v5407, 1.442695
    %v5409 = vpow.pop %v5408
    %v5410 = vadd.f32 %v5409, 1.0
    %v5411 = vrcp.pop %v5410
    %v5412 = vmul.f32 1.0, %v5411
    %v5413 = vtanh.pop %v5406
    %v5414 = vmul.f32 %v5412, %v5321
    %5416 = vrot.lane.b32.xlu0 %v5413, 32
    %v5417 = vpop.permute.xlu0 %5416
    %v5419 = vmul.f32 %v5412, %v5417
    %5421 = vrot.lane.b32.xlu0 %v5419, 32
    %v5422 = vpop.permute.xlu0 %5421
    %v5424 = vadd.f32 %v5414, %v5422
    %v5425 = vtanh.pop %v5424
    %5427 = vrot.lane.b32.xlu0 %v5425, 32
    %v5428 = vpop.permute.xlu0 %5427
    %v5430 = vmul.f32 %v5412, %v5428
    %5432 = vrot.lane.b32.xlu0 %v5430, 64
    %v5433 = vpop.permute.xlu0 %5432
    %5435 = vst.msk [vmem:[#allocation4 + $0x28] sm:$0xff] %vm776, %v5433
    %5436 = vst.msk [vmem:[#allocation4 + $0x10] sm:$0xff] %vm2845, %v5433
    %v5437 = vsel %vm409, %v5433, 0
    %5439 = vmatprep.subr.mxu0 0.0
    %5440 = vmatpush1.msra.mxu0 %v4815
    %5441 = vmatprep.subr.mxu0 0.0
    %5442 = vmatpush1.msra.mxu0 %v4816
    %5443 = vmatprep.subr.mxu0 0.0
    %5444 = vmatpush1.msra.mxu0 %v4817
    %5445 = vmatprep.subr.mxu0 0.0
    %5446 = vmatpush1.msra.mxu0 %v4818
    %5447 = vmatprep.subr.mxu0 0.0
    %5448 = vmatpush1.msra.mxu0 0.0
    %5449 = vmatprep.subr.mxu0 0.0
    %5450 = vmatpush1.msra.mxu0 0.0
    %5451 = vmatprep.subr.mxu0 0.0
    %5452 = vmatpush1.msra.mxu0 0.0
    %5453 = vmatprep.subr.mxu0 0.0
    %5454 = vmatpush1.msra.mxu0 0.0
    %5455 = vmatprep.subr.mxu0 0.0
    %5456 = vmatpush1.msra.mxu0 0.0
    %5457 = vmatprep.subr.mxu0 0.0
    %5458 = vmatpush1.msra.mxu0 0.0
    %5459 = vmatprep.subr.mxu0 0.0
    %5460 = vmatpush1.msra.mxu0 0.0
    %5461 = vmatprep.subr.mxu0 0.0
    %5462 = vmatpush1.msra.mxu0 0.0
    %5463 = vmatprep.subr.mxu0 0.0
    %5464 = vmatpush1.msra.mxu0 0.0
    %5465 = vmatprep.subr.mxu0 0.0
    %5466 = vmatpush1.msra.mxu0 0.0
    %5467 = vmatprep.subr.mxu0 0.0
    %5468 = vmatpush1.msra.mxu0 0.0
    %5469 = vmatprep.subr.mxu0 0.0
    %5470 = vmatpush1.msra.mxu0 0.0
    %5471 = vmatprep.subr.mxu0 0.0
    %5472 = vmatpush1.msra.mxu0 0.0
    %5473 = vmatprep.subr.mxu0 0.0
    %5474 = vmatpush1.msra.mxu0 0.0
    %5475 = vmatprep.subr.mxu0 0.0
    %5476 = vmatpush1.msra.mxu0 0.0
    %5477 = vmatprep.subr.mxu0 0.0
    %5478 = vmatpush1.msra.mxu0 0.0
    %5479 = vmatprep.subr.mxu0 0.0
    %5480 = vmatpush1.msra.mxu0 0.0
    %5481 = vmatprep.subr.mxu0 0.0
    %5482 = vmatpush1.msra.mxu0 0.0
    %5483 = vmatprep.subr.mxu0 0.0
    %5484 = vmatpush1.msra.mxu0 0.0
    %5485 = vmatprep.subr.mxu0 0.0
    %5486 = vmatpush1.msra.mxu0 0.0
    %5487 = vmatprep.subr.mxu0 0.0
    %5488 = vmatpush1.msra.mxu0 0.0
    %5489 = vmatprep.subr.mxu0 0.0
    %5490 = vmatpush1.msra.mxu0 0.0
    %5491 = vmatprep.subr.mxu0 0.0
    %5492 = vmatpush1.msra.mxu0 0.0
    %5493 = vmatprep.subr.mxu0 0.0
    %5494 = vmatpush1.msra.mxu0 0.0
    %5495 = vmatprep.subr.mxu0 0.0
    %5496 = vmatpush1.msra.mxu0 0.0
    %5497 = vmatprep.subr.mxu0 0.0
    %5498 = vmatpush1.msra.mxu0 0.0
    %5499 = vmatprep.subr.mxu0 0.0
    %5500 = vmatpush1.msra.mxu0 0.0
    %5501 = vmatprep.subr.mxu0 0.0
    %5502 = vmatpush1.msra.mxu0 0.0
    %5503 = vmatprep.mubr.f32.mxu0 0.0
    %5504 = vmatmul.mubr.f32.gmra.mrb[0].mxu0 %v5437
    %v5505 = vpop.f32.mrb[0].mxu0
    %v5506 = vadd.f32 0.0, %v5505
    %v5507 = vpop.f32.mrb[0].mxu0
    %5508 = vdwg.mxu0
    %v5509 = vadd.f32 %v4807, %v5506
    %v5510 = vxor.u32 %v5509, 2147483648
    %v5511 = vmul.f32 %v5510, 1.442695
    %v5512 = vpow.pop %v5511
    %v5513 = vadd.f32 %v5512, 1.0
    %v5514 = vrcp.pop %v5513
    %v5515 = vmul.f32 1.0, %v5514
    %v5516 = vtanh.pop %v5509
    %v5517 = vmul.f32 %v5515, %v5424
    %5519 = vrot.lane.b32.xlu0 %v5516, 32
    %v5520 = vpop.permute.xlu0 %5519
    %v5522 = vmul.f32 %v5515, %v5520
    %5524 = vrot.lane.b32.xlu0 %v5522, 32
    %v5525 = vpop.permute.xlu0 %5524
    %v5527 = vadd.f32 %v5517, %v5525
    %v5528 = vtanh.pop %v5527
    %5530 = vrot.lane.b32.xlu0 %v5528, 32
    %v5531 = vpop.permute.xlu0 %5530
    %v5533 = vmul.f32 %v5515, %v5531
    %5535 = vrot.lane.b32.xlu0 %v5533, 64
    %v5536 = vpop.permute.xlu0 %5535
    %5538 = vst.msk [vmem:[#allocation4 + $0x30] sm:$0xff] %vm776, %v5536
    %5539 = vst.msk [vmem:[#allocation4 + $0x8] sm:$0xff] %vm2845, %v5536
    %v5540 = vsel %vm409, %v5536, 0
    %5542 = vmatprep.subr.mxu0 0.0
    %5543 = vmatpush1.msra.mxu0 %v4815
    %5544 = vmatprep.subr.mxu0 0.0
    %5545 = vmatpush1.msra.mxu0 %v4816
    %5546 = vmatprep.subr.mxu0 0.0
    %5547 = vmatpush1.msra.mxu0 %v4817
    %5548 = vmatprep.subr.mxu0 0.0
    %5549 = vmatpush1.msra.mxu0 %v4818
    %5550 = vmatprep.subr.mxu0 0.0
    %5551 = vmatpush1.msra.mxu0 0.0
    %5552 = vmatprep.subr.mxu0 0.0
    %5553 = vmatpush1.msra.mxu0 0.0
    %5554 = vmatprep.subr.mxu0 0.0
    %5555 = vmatpush1.msra.mxu0 0.0
    %5556 = vmatprep.subr.mxu0 0.0
    %5557 = vmatpush1.msra.mxu0 0.0
    %5558 = vmatprep.subr.mxu0 0.0
    %5559 = vmatpush1.msra.mxu0 0.0
    %5560 = vmatprep.subr.mxu0 0.0
    %5561 = vmatpush1.msra.mxu0 0.0
    %5562 = vmatprep.subr.mxu0 0.0
    %5563 = vmatpush1.msra.mxu0 0.0
    %5564 = vmatprep.subr.mxu0 0.0
    %5565 = vmatpush1.msra.mxu0 0.0
    %5566 = vmatprep.subr.mxu0 0.0
    %5567 = vmatpush1.msra.mxu0 0.0
    %5568 = vmatprep.subr.mxu0 0.0
    %5569 = vmatpush1.msra.mxu0 0.0
    %5570 = vmatprep.subr.mxu0 0.0
    %5571 = vmatpush1.msra.mxu0 0.0
    %5572 = vmatprep.subr.mxu0 0.0
    %5573 = vmatpush1.msra.mxu0 0.0
    %5574 = vmatprep.subr.mxu0 0.0
    %5575 = vmatpush1.msra.mxu0 0.0
    %5576 = vmatprep.subr.mxu0 0.0
    %5577 = vmatpush1.msra.mxu0 0.0
    %5578 = vmatprep.subr.mxu0 0.0
    %5579 = vmatpush1.msra.mxu0 0.0
    %5580 = vmatprep.subr.mxu0 0.0
    %5581 = vmatpush1.msra.mxu0 0.0
    %5582 = vmatprep.subr.mxu0 0.0
    %5583 = vmatpush1.msra.mxu0 0.0
    %5584 = vmatprep.subr.mxu0 0.0
    %5585 = vmatpush1.msra.mxu0 0.0
    %5586 = vmatprep.subr.mxu0 0.0
    %5587 = vmatpush1.msra.mxu0 0.0
    %5588 = vmatprep.subr.mxu0 0.0
    %5589 = vmatpush1.msra.mxu0 0.0
    %5590 = vmatprep.subr.mxu0 0.0
    %5591 = vmatpush1.msra.mxu0 0.0
    %5592 = vmatprep.subr.mxu0 0.0
    %5593 = vmatpush1.msra.mxu0 0.0
    %5594 = vmatprep.subr.mxu0 0.0
    %5595 = vmatpush1.msra.mxu0 0.0
    %5596 = vmatprep.subr.mxu0 0.0
    %5597 = vmatpush1.msra.mxu0 0.0
    %5598 = vmatprep.subr.mxu0 0.0
    %5599 = vmatpush1.msra.mxu0 0.0
    %5600 = vmatprep.subr.mxu0 0.0
    %5601 = vmatpush1.msra.mxu0 0.0
    %5602 = vmatprep.subr.mxu0 0.0
    %5603 = vmatpush1.msra.mxu0 0.0
    %5604 = vmatprep.subr.mxu0 0.0
    %5605 = vmatpush1.msra.mxu0 0.0
    %5606 = vmatprep.mubr.f32.mxu0 0.0
    %5607 = vmatmul.mubr.f32.gmra.mrb[0].mxu0 %v5540
    %v5608 = vpop.f32.mrb[0].mxu0
    %v5609 = vadd.f32 0.0, %v5608
    %v5610 = vpop.f32.mrb[0].mxu0
    %5611 = vdwg.mxu0
    %v5612 = vadd.f32 %v4812, %v5609
    %v5613 = vxor.u32 %v5612, 2147483648
    %v5614 = vmul.f32 %v5613, 1.442695
    %v5615 = vpow.pop %v5614
    %v5616 = vadd.f32 %v5615, 1.0
    %v5617 = vrcp.pop %v5616
    %v5618 = vmul.f32 1.0, %v5617
    %v5619 = vtanh.pop %v5612
    %v5620 = vmul.f32 %v5618, %v5527
    %5622 = vrot.lane.b32.xlu0 %v5619, 32
    %v5623 = vpop.permute.xlu0 %5622
    %v5625 = vmul.f32 %v5618, %v5623
    %5627 = vrot.lane.b32.xlu0 %v5625, 32
    %v5628 = vpop.permute.xlu0 %5627
    %v5630 = vadd.f32 %v5620, %v5628
    %v5631 = vtanh.pop %v5630
    %5633 = vrot.lane.b32.xlu0 %v5631, 32
    %v5634 = vpop.permute.xlu0 %5633
    %v5636 = vmul.f32 %v5618, %v5634
    %5638 = vrot.lane.b32.xlu0 %v5636, 64
    %v5639 = vpop.permute.xlu0 %5638
    %5641 = vst.msk [vmem:[#allocation4 + $0x38] sm:$0xff] %vm776, %v5639
    %5642 = vst.msk [vmem:[#allocation4] sm:$0xff] %vm2845, %v5639
    %v5643 = vld [vmem:[#allocation4] sm:$0xff]
    %v5644 = vld [vmem:[#allocation4 + $0x8] sm:$0xff]
    %v5645 = vld [vmem:[#allocation4 + $0x10] sm:$0xff]
    %v5646 = vld [vmem:[#allocation4 + $0x18] sm:$0xff]
    %v5647 = vld [vmem:[#allocation4 + $0x20] sm:$0xff]
    %v5648 = vld [vmem:[#allocation4 + $0x28] sm:$0xff]
    %v5649 = vld [vmem:[#allocation4 + $0x30] sm:$0xff]
    %v5650 = vld [vmem:[#allocation4 + $0x38] sm:$0xff]
    %v5651 = vld [vmem:[#allocation13] sm:$0x1]
    %v5653 = vlaneseq
    %v5654 = vshrl.u32 %v5653, 7
    %v5655 = vsub.s32 0, %v5654
    %v5656 = vrot.slane %v5651, %v5655
    %v5658 = vmul.f32 %v5643, %v5656
    %v5659 = vmul.f32 %v5644, %v5656
    %v5660 = vmul.f32 %v5645, %v5656
    %v5661 = vmul.f32 %v5646, %v5656
    %v5662 = vmul.f32 %v5647, %v5656
    %v5663 = vmul.f32 %v5648, %v5656
    %v5664 = vmul.f32 %v5649, %v5656
    %v5665 = vmul.f32 %v5650, %v5656
    %v5666 = vld [vmem:[#allocation15] sm:$0x1]
    %v5668 = vlaneseq
    %v5669 = vshrl.u32 %v5668, 7
    %v5670 = vsub.s32 0, %v5669
    %v5671 = vrot.slane %v5666, %v5670
    %v5673 = vadd.f32 %v5658, %v5671
    %v5674 = vadd.f32 %v5659, %v5671
    %v5675 = vadd.f32 %v5660, %v5671
    %v5676 = vadd.f32 %v5661, %v5671
    %v5677 = vadd.f32 %v5662, %v5671
    %v5678 = vadd.f32 %v5663, %v5671
    %v5679 = vadd.f32 %v5664, %v5671
    %v5680 = vadd.f32 %v5665, %v5671
    %v5681 = vld [vmem:[%s57] sm:$0xff]
    %v5682 = vld [vmem:[%s57 + $0x8] sm:$0xff]
    %v5683 = vld [vmem:[%s57 + $0x10] sm:$0xff]
    %v5684 = vld [vmem:[%s57 + $0x18] sm:$0xff]
    %v5685 = vld [vmem:[%s59] sm:$0x1]
    %v5687 = vlaneseq
    %v5688 = vshrl.u32 %v5687, 7
    %v5689 = vsub.s32 0, %v5688
    %v5690 = vrot.slane %v5685, %v5689
    %v5693 = vsel %vm409, %v5673, 0
    %v5696 = vsel %vm409, %v5674, 0
    %v5699 = vsel %vm409, %v5675, 0
    %v5702 = vsel %vm409, %v5676, 0
    %v5705 = vsel %vm409, %v5677, 0
    %v5708 = vsel %vm409, %v5678, 0
    %v5711 = vsel %vm409, %v5679, 0
    %v5714 = vsel %vm409, %v5680, 0
    %5716 = vmatprep.subr.mxu0 0.0
    %5717 = vmatpush1.msra.mxu0 %v5681
    %5718 = vmatprep.subr.mxu0 0.0
    %5719 = vmatpush1.msra.mxu0 %v5682
    %5720 = vmatprep.subr.mxu0 0.0
    %5721 = vmatpush1.msra.mxu0 %v5683
    %5722 = vmatprep.subr.mxu0 0.0
    %5723 = vmatpush1.msra.mxu0 %v5684
    %5724 = vmatprep.subr.mxu0 0.0
    %5725 = vmatpush1.msra.mxu0 0.0
    %5726 = vmatprep.subr.mxu0 0.0
    %5727 = vmatpush1.msra.mxu0 0.0
    %5728 = vmatprep.subr.mxu0 0.0
    %5729 = vmatpush1.msra.mxu0 0.0
    %5730 = vmatprep.subr.mxu0 0.0
    %5731 = vmatpush1.msra.mxu0 0.0
    %5732 = vmatprep.subr.mxu0 0.0
    %5733 = vmatpush1.msra.mxu0 0.0
    %5734 = vmatprep.subr.mxu0 0.0
    %5735 = vmatpush1.msra.mxu0 0.0
    %5736 = vmatprep.subr.mxu0 0.0
    %5737 = vmatpush1.msra.mxu0 0.0
    %5738 = vmatprep.subr.mxu0 0.0
    %5739 = vmatpush1.msra.mxu0 0.0
    %5740 = vmatprep.subr.mxu0 0.0
    %5741 = vmatpush1.msra.mxu0 0.0
    %5742 = vmatprep.subr.mxu0 0.0
    %5743 = vmatpush1.msra.mxu0 0.0
    %5744 = vmatprep.subr.mxu0 0.0
    %5745 = vmatpush1.msra.mxu0 0.0
    %5746 = vmatprep.subr.mxu0 0.0
    %5747 = vmatpush1.msra.mxu0 0.0
    %5748 = vmatprep.subr.mxu0 0.0
    %5749 = vmatpush1.msra.mxu0 0.0
    %5750 = vmatprep.subr.mxu0 0.0
    %5751 = vmatpush1.msra.mxu0 0.0
    %5752 = vmatprep.subr.mxu0 0.0
    %5753 = vmatpush1.msra.mxu0 0.0
    %5754 = vmatprep.subr.mxu0 0.0
    %5755 = vmatpush1.msra.mxu0 0.0
    %5756 = vmatprep.subr.mxu0 0.0
    %5757 = vmatpush1.msra.mxu0 0.0
    %5758 = vmatprep.subr.mxu0 0.0
    %5759 = vmatpush1.msra.mxu0 0.0
    %5760 = vmatprep.subr.mxu0 0.0
    %5761 = vmatpush1.msra.mxu0 0.0
    %5762 = vmatprep.subr.mxu0 0.0
    %5763 = vmatpush1.msra.mxu0 0.0
    %5764 = vmatprep.subr.mxu0 0.0
    %5765 = vmatpush1.msra.mxu0 0.0
    %5766 = vmatprep.subr.mxu0 0.0
    %5767 = vmatpush1.msra.mxu0 0.0
    %5768 = vmatprep.subr.mxu0 0.0
    %5769 = vmatpush1.msra.mxu0 0.0
    %5770 = vmatprep.subr.mxu0 0.0
    %5771 = vmatpush1.msra.mxu0 0.0
    %5772 = vmatprep.subr.mxu0 0.0
    %5773 = vmatpush1.msra.mxu0 0.0
    %5774 = vmatprep.subr.mxu0 0.0
    %5775 = vmatpush1.msra.mxu0 0.0
    %5776 = vmatprep.subr.mxu0 0.0
    %5777 = vmatpush1.msra.mxu0 0.0
    %5778 = vmatprep.subr.mxu0 0.0
    %5779 = vmatpush1.msra.mxu0 0.0
    %5780 = vmatprep.mubr.f32.mxu0 0.0
    %5781 = vmatmul.mubr.f32.gmra.mrb[0].mxu0 %v5693
    %v5782 = vpop.f32.mrb[0].mxu0
    %v5783 = vadd.f32 %v5690, %v5782
    %v5784 = vpop.f32.mrb[0].mxu0
    %5785 = vmatprep.mubr.f32.mxu0 0.0
    %5786 = vmatmul.mubr.f32.gmra.mrb[0].mxu0 %v5696
    %v5787 = vpop.f32.mrb[0].mxu0
    %v5788 = vadd.f32 %v5690, %v5787
    %v5789 = vpop.f32.mrb[0].mxu0
    %5790 = vmatprep.mubr.f32.mxu0 0.0
    %5791 = vmatmul.mubr.f32.gmra.mrb[0].mxu0 %v5699
    %v5792 = vpop.f32.mrb[0].mxu0
    %v5793 = vadd.f32 %v5690, %v5792
    %v5794 = vpop.f32.mrb[0].mxu0
    %5795 = vmatprep.mubr.f32.mxu0 0.0
    %5796 = vmatmul.mubr.f32.gmra.mrb[0].mxu0 %v5702
    %v5797 = vpop.f32.mrb[0].mxu0
    %v5798 = vadd.f32 %v5690, %v5797
    %v5799 = vpop.f32.mrb[0].mxu0
    %5800 = vmatprep.mubr.f32.mxu0 0.0
    %5801 = vmatmul.mubr.f32.gmra.mrb[0].mxu0 %v5705
    %v5802 = vpop.f32.mrb[0].mxu0
    %v5803 = vadd.f32 %v5690, %v5802
    %v5804 = vpop.f32.mrb[0].mxu0
    %5805 = vmatprep.mubr.f32.mxu0 0.0
    %5806 = vmatmul.mubr.f32.gmra.mrb[0].mxu0 %v5708
    %v5807 = vpop.f32.mrb[0].mxu0
    %v5808 = vadd.f32 %v5690, %v5807
    %v5809 = vpop.f32.mrb[0].mxu0
    %5810 = vmatprep.mubr.f32.mxu0 0.0
    %5811 = vmatmul.mubr.f32.gmra.mrb[0].mxu0 %v5711
    %v5812 = vpop.f32.mrb[0].mxu0
    %v5813 = vadd.f32 %v5690, %v5812
    %v5814 = vpop.f32.mrb[0].mxu0
    %5815 = vmatprep.mubr.f32.mxu0 0.0
    %5816 = vmatmul.mubr.f32.gmra.mrb[0].mxu0 %v5714
    %v5817 = vpop.f32.mrb[0].mxu0
    %v5818 = vadd.f32 %v5690, %v5817
    %v5819 = vpop.f32.mrb[0].mxu0
    %5820 = vdwg.mxu0
    %vm5821 = vcmask 97280
    %5822 = vst.msk [vmem:[%s61] sm:$0xff] %vm5821, %v5783
    %5823 = vst.msk [vmem:[%s61 + $0x8] sm:$0xff] %vm5821, %v5788
    %5824 = vst.msk [vmem:[%s61 + $0x10] sm:$0xff] %vm5821, %v5793
    %5825 = vst.msk [vmem:[%s61 + $0x18] sm:$0xff] %vm5821, %v5798
    %5826 = vst.msk [vmem:[%s61 + $0x20] sm:$0xff] %vm5821, %v5803
    %5827 = vst.msk [vmem:[%s61 + $0x28] sm:$0xff] %vm5821, %v5808
    %5828 = vst.msk [vmem:[%s61 + $0x30] sm:$0xff] %vm5821, %v5813
    %5829 = vst.msk [vmem:[%s61 + $0x38] sm:$0xff] %vm5821, %v5818
    // Predicated region
    $region150: #{cbhg_model_forward.1} parent=1 // pred_check
      _
    $region151: #{cbhg_model_forward.1} parent=1 // pred_check_branch
      %5831 = sbr.rel (0) target = $region153
    $region152: #{cbhg_model_forward.1} parent=1 // pred_region
      _
    $region153: #{cbhg_model_forward.1} parent=1 // pred_fallthru
      _
    // Predicated region
    $region154: #{cbhg_model_forward.1} parent=1 // pred_check
      _
    $region155: #{cbhg_model_forward.1} parent=1 // pred_check_branch
      %5833 = sbr.rel (0) target = $region157
    $region156: #{cbhg_model_forward.1} parent=1 // pred_region
      _
    $region157: #{cbhg_model_forward.1} parent=1 // pred_fallthru
      _
    %5834 = vsyncpa [#allocation6], 1
    %5835 = vsyncpa [#allocation8], 1
    %5836 = vsyncpa [#allocation11], 1
    %5837 = vsyncpa [#allocation14], 1

</llo_original>
